<compile_context>
chip_gen: v7x
topology: tpu7x:2x2x1
jax: 0.10.0
libtpu: 0.0.40
codegen_flags: <defaults>
</compile_context>

<pallas_src>
import functools

import numpy as np
import jax
import jax.numpy as jnp
from jax.experimental import pallas as pl
from jax.experimental.pallas import tpu as pltpu

# ---------------------------------------------------------------------------
# Layout constants
# ---------------------------------------------------------------------------
OC1P = 32                 # conv1 out-channels padded 20 -> 32
OC2P = 64                 # conv2 out-channels padded 50 -> 64
FC1P = 512                # fc1 out padded 500 -> 512
CLSP = 128                # fc2 out padded 10 -> 128 (lane-dense store)
N_CLASSES = 10

N1 = 2 * 12 * OC1P        # 768: conv1 banded output width, cols = (dw, owp, oc)
K2 = 12 * OC1P            # 384: conv2 contraction width, rows = (w_in, c)
N2 = 2 * 4 * OC2P         # 512: conv2 banded output width, cols = (dw, owp, oc)
KF1 = 4 * OC2P            # 256: per-H-row fc1 contraction width, rows = (w, c)

VMEM_LIMIT = 32 * 1024 * 1024


# ---------------------------------------------------------------------------
# Fused kernel: one batch tile per grid step, everything resident in VMEM
# ---------------------------------------------------------------------------
def _lenet_kernel(x_ref, c1w_ref, c1b_ref, c2w_ref, c2b_ref,
                  f1w_ref, f1b_ref, f2w_ref, f2b_ref, o_ref,
                  conv1_scr, h1_scr, conv2_scr, *, tb):
    # ---- conv1: 5 banded row-matmuls, (tb*24, 28) @ (28, 768) -------------
    xb = x_ref[...].astype(jnp.bfloat16)                      # (tb, 28, 28)
    for i in range(5):
        lhs = xb[:, i:i + 24, :].reshape(tb * 24, 28)
        part = jnp.dot(lhs, c1w_ref[i], preferred_element_type=jnp.float32)
        part = part.reshape(tb, 24, N1)
        if i == 0:
            conv1_scr[...] = part
        else:
            conv1_scr[...] = conv1_scr[...] + part

    # ---- pool1 (2x2) + bias + ReLU -> h1 (tb, 12, 12*OC1P) ----------------
    for p in range(12):
        r = jnp.maximum(conv1_scr[:, 2 * p, :], conv1_scr[:, 2 * p + 1, :])
        r = jnp.maximum(r[:, :K2], r[:, K2:])                 # lane-aligned halves
        h1_scr[:, p, :] = jnp.maximum(r + c1b_ref[...], 0.0)

    # ---- conv2: 5 banded row-matmuls, (tb*8, 384) @ (384, 512) ------------
    for i in range(5):
        lhs = h1_scr[:, i:i + 8, :].astype(jnp.bfloat16).reshape(tb * 8, K2)
        part = jnp.dot(lhs, c2w_ref[i], preferred_element_type=jnp.float32)
        part = part.reshape(tb, 8, N2)
        if i == 0:
            conv2_scr[...] = part
        else:
            conv2_scr[...] = conv2_scr[...] + part

    # ---- pool2 + bias + ReLU, fused with the 4 fc1 partial matmuls --------
    hfc = jnp.zeros((tb, FC1P), jnp.float32)
    for p in range(4):
        r = jnp.maximum(conv2_scr[:, 2 * p, :], conv2_scr[:, 2 * p + 1, :])
        r = jnp.maximum(r[:, :KF1], r[:, KF1:])               # (tb, 256)
        r = jnp.maximum(r + c2b_ref[...], 0.0)
        hfc = hfc + jnp.dot(r.astype(jnp.bfloat16), f1w_ref[p],
                            preferred_element_type=jnp.float32)
    hfc = jnp.maximum(hfc + f1b_ref[...], 0.0)                # fc1 + ReLU

    logits = jnp.dot(hfc.astype(jnp.bfloat16), f2w_ref[...],
                     preferred_element_type=jnp.float32) + f2b_ref[...]

    # ---- masked log_softmax over the 10 real classes -----------------------
    col = jax.lax.broadcasted_iota(jnp.int32, logits.shape, 1)
    valid = col < N_CLASSES
    m = jnp.max(jnp.where(valid, logits, -1e30), axis=-1, keepdims=True)
    s = logits - m
    lse = jnp.log(jnp.sum(jnp.where(valid, jnp.exp(s), 0.0),
                          axis=-1, keepdims=True))
    o_ref[...] = (s - lse)[None].astype(o_ref.dtype)


# ---------------------------------------------------------------------------
# Wrapper
# ---------------------------------------------------------------------------
def _pick_tb(n):
    # Largest batch tile that divides N while keeping >=2 grid steps
    # (so "parallel" can shard across the two TensorCores on v7x).
    for tb in (16, 8, 4, 2, 1):
        if n % tb == 0 and n // tb >= 2:
            return tb
    return n


def lenet_forward(prep, x_nchw):
    n = x_nchw.shape[0]
    x = x_nchw.reshape(n, 28, 28)          # NCHW with C=1 -> (N, H, W)
    tb = _pick_tb(n)
    g = n // tb

    wbytes = sum(int(v.size) * v.dtype.itemsize for v in prep.values())
    cost = pl.CostEstimate(
        flops=n * (2 * 5 * 24 * 28 * N1 + 2 * 5 * 8 * K2 * N2
                   + 2 * 4 * KF1 * FC1P + 2 * FC1P * CLSP),
        transcendentals=n * (CLSP + 1),
        bytes_accessed=n * 28 * 28 * 4 + wbytes + n * CLSP * 4)

    out = pl.pallas_call(
        functools.partial(_lenet_kernel, tb=tb),
        out_shape=jax.ShapeDtypeStruct((g, tb, CLSP), jnp.float32),
        grid=(g,),
        in_specs=[
            pl.BlockSpec((tb, 28, 28), lambda i: (i, 0, 0)),    # input tile
            pl.BlockSpec((5, 28, N1), lambda i: (0, 0, 0)),     # conv1 banded W
            pl.BlockSpec((1, K2), lambda i: (0, 0)),            # conv1 bias row
            pl.BlockSpec((5, K2, N2), lambda i: (0, 0, 0)),     # conv2 banded W
            pl.BlockSpec((1, KF1), lambda i: (0, 0)),           # conv2 bias row
            pl.BlockSpec((4, KF1, FC1P), lambda i: (0, 0, 0)),  # fc1 (per H row)
            pl.BlockSpec((1, FC1P), lambda i: (0, 0)),          # fc1 bias
            pl.BlockSpec((FC1P, CLSP), lambda i: (0, 0)),       # fc2
            pl.BlockSpec((1, CLSP), lambda i: (0, 0)),          # fc2 bias
        ],
        out_specs=pl.BlockSpec((1, tb, CLSP), lambda i: (i, 0, 0)),
        scratch_shapes=[
            pltpu.VMEM((tb, 24, N1), jnp.float32),   # conv1 pre-pool
            pltpu.VMEM((tb, 12, K2), jnp.float32),   # pooled1 / conv2 input
            pltpu.VMEM((tb, 8, N2), jnp.float32),    # conv2 pre-pool
        ],
        compiler_params=pltpu.CompilerParams(
            dimension_semantics=("parallel",),
            vmem_limit_bytes=VMEM_LIMIT),
        cost_estimate=cost,
    )(x, prep["c1w"], prep["c1b"], prep["c2w"], prep["c2b"],
      prep["f1w"], prep["f1b"], prep["f2w"], prep["f2b"])

    return out.reshape(n, CLSP)[:, :N_CLASSES]


# ---------------------------------------------------------------------------
# Parameters (PyTorch layouts) + one-time kernel-friendly repack
# ---------------------------------------------------------------------------
def init_params(key):
    ks = jax.random.split(key, 8)

    def u(k, shape, fan_in):
        bound = 1.0 / jnp.sqrt(jnp.float32(fan_in))
        return jax.random.uniform(k, shape, jnp.float32, -bound, bound)

    return dict(
        conv1_w=u(ks[0], (20, 1, 5, 5), 1 * 5 * 5),
        conv1_b=u(ks[1], (20,), 1 * 5 * 5),
        conv2_w=u(ks[2], (50, 20, 5, 5), 20 * 5 * 5),
        conv2_b=u(ks[3], (50,), 20 * 5 * 5),
        fc1_w=u(ks[4], (500, 800), 800),   # PyTorch Linear layout: (out, in)
        fc1_b=u(ks[5], (500,), 800),
        fc2_w=u(ks[6], (10, 500), 500),
        fc2_b=u(ks[7], (10,), 500),
    )


def prepare_params(params):
    """One-time repack into banded / padded bf16 matrices.

    Output-column order for both convs is (dw, ow//2, oc) so the W-direction
    2x2 pool is a lane-aligned halving; PyTorch's NCHW view(-1, 800) flatten
    order is folded into the fc1 weight rows.
    """
    w1 = np.asarray(params["conv1_w"], np.float32)   # (20, 1, 5, 5)
    b1 = np.asarray(params["conv1_b"], np.float32)
    w2 = np.asarray(params["conv2_w"], np.float32)   # (50, 20, 5, 5)
    b2 = np.asarray(params["conv2_b"], np.float32)
    wf1 = np.asarray(params["fc1_w"], np.float32)    # (500, 800)
    bf1 = np.asarray(params["fc1_b"], np.float32)
    wf2 = np.asarray(params["fc2_w"], np.float32)    # (10, 500)
    bf2 = np.asarray(params["fc2_b"], np.float32)

    # conv1 banded: c1w[i, w_in, dw*12*OC1P + owp*OC1P + oc] = w1[oc,0,i,w_in-ow]
    c1w = np.zeros((5, 28, N1), np.float32)
    for i in range(5):
        for dw in range(2):
            for owp in range(12):
                ow = 2 * owp + dw
                col = dw * (12 * OC1P) + owp * OC1P
                for j in range(5):
                    c1w[i, ow + j, col:col + 20] = w1[:, 0, i, j]
    c1b = np.zeros((1, K2), np.float32)
    for owp in range(12):
        c1b[0, owp * OC1P: owp * OC1P + 20] = b1

    # conv2 banded: rows (w_in, c), cols (dw, owp, oc)
    c2w = np.zeros((5, K2, N2), np.float32)
    for i in range(5):
        for dw in range(2):
            for owp in range(4):
                ow = 2 * owp + dw
                col = dw * (4 * OC2P) + owp * OC2P
                for j in range(5):
                    row = (ow + j) * OC1P
                    c2w[i, row:row + 20, col:col + 50] = w2[:, :, i, j].T
    c2b = np.zeros((1, KF1), np.float32)
    for owp in range(4):
        c2b[0, owp * OC2P: owp * OC2P + 50] = b2

    # fc1: fold PyTorch flatten order (c, h, w); one matrix per pooled H row.
    wf1_4d = wf1.reshape(500, 50, 4, 4)              # (out, c, h, w)
    f1w = np.zeros((4, KF1, FC1P), np.float32)
    for h in range(4):
        for w in range(4):
            f1w[h, w * OC2P: w * OC2P + 50, :500] = wf1_4d[:, :, h, w].T
    f1b = np.zeros((1, FC1P), np.float32)
    f1b[0, :500] = bf1

    f2w = np.zeros((FC1P, CLSP), np.float32)
    f2w[:500, :10] = wf2.T
    f2b = np.zeros((1, CLSP), np.float32)
    f2b[0, :10] = bf2

    return dict(
        c1w=jnp.asarray(c1w, jnp.bfloat16), c1b=jnp.asarray(c1b),
        c2w=jnp.asarray(c2w, jnp.bfloat16), c2b=jnp.asarray(c2b),
        f1w=jnp.asarray(f1w, jnp.bfloat16), f1b=jnp.asarray(f1b),
        f2w=jnp.asarray(f2w, jnp.bfloat16), f2b=jnp.asarray(f2b),
    )


# ---------------------------------------------------------------------------
# Pure-JAX (XLA) reference of the PyTorch module, for tolerance checking
# ---------------------------------------------------------------------------
def reference_forward(params, x):
    dn = ("NCHW", "OIHW", "NCHW")
    y = jax.lax.conv_general_dilated(x, params["conv1_w"], (1, 1), "VALID",
                                     dimension_numbers=dn)
    y = jax.nn.relu(y + params["conv1_b"][None, :, None, None])
    y = jax.lax.reduce_window(y, -jnp.inf, jax.lax.max,
                              (1, 1, 2, 2), (1, 1, 2, 2), "VALID")
    y = jax.lax.conv_general_dilated(y, params["conv2_w"], (1, 1), "VALID",
                                     dimension_numbers=dn)
    y = jax.nn.relu(y + params["conv2_b"][None, :, None, None])
    y = jax.lax.reduce_window(y, -jnp.inf, jax.lax.max,
                              (1, 1, 2, 2), (1, 1, 2, 2), "VALID")
    y = y.reshape(y.shape[0], -1)                              # (N, 800), (c,h,w)
    y = jax.nn.relu(y @ params["fc1_w"].T + params["fc1_b"])
    y = y @ params["fc2_w"].T + params["fc2_b"]
    return jax.nn.log_softmax(y, axis=1)


if __name__ == "__main__":
    key = jax.random.PRNGKey(0)
    pkey, xkey = jax.random.split(key)
    params = init_params(pkey)
    prep = prepare_params(params)

    # Input shape implied by the module: (N, 1, 28, 28).
    x = jax.random.normal(xkey, (2, 1, 28, 28), jnp.float32)

    out = jax.jit(lenet_forward)(prep, x)
    jax.block_until_ready(out)
    assert out.shape == (2, N_CLASSES)
    # log_softmax rows must sum (in prob space) to 1.
    assert jnp.allclose(jnp.sum(jnp.exp(out), axis=1), 1.0, atol=1e-3)
    # Kernel runs bf16 on the MXU -> tolerance-based comparison vs f32 XLA ref.
    ref = reference_forward(params, x)
    assert jnp.allclose(out, ref, atol=0.1, rtol=0.1), (
        float(jnp.max(jnp.abs(out - ref))))
    print("KERNEL_OK")
</pallas_src>

<mosaic_0001>
module attributes {stable_mosaic.version = 11 : i64} {
  func.func @_lenet_kernel(%arg0: i32, %arg1: memref<1x28x28xf32, #tpu.memory_space<vmem>>, %arg2: memref<5x28x768xbf16, #tpu.memory_space<vmem>>, %arg3: memref<1x384xf32, #tpu.memory_space<vmem>>, %arg4: memref<5x384x512xbf16, #tpu.memory_space<vmem>>, %arg5: memref<1x256xf32, #tpu.memory_space<vmem>>, %arg6: memref<4x256x512xbf16, #tpu.memory_space<vmem>>, %arg7: memref<1x512xf32, #tpu.memory_space<vmem>>, %arg8: memref<512x128xbf16, #tpu.memory_space<vmem>>, %arg9: memref<1x128xf32, #tpu.memory_space<vmem>>, %arg10: memref<1x1x128xf32, #tpu.memory_space<vmem>>, %arg11: memref<1x24x768xf32, #tpu.memory_space<vmem>>, %arg12: memref<1x12x384xf32, #tpu.memory_space<vmem>>, %arg13: memref<1x8x512xf32, #tpu.memory_space<vmem>>) attributes {dimension_semantics = [#tpu.dimension_semantics<parallel>], iteration_bounds = array<i64: 2>, scalar_prefetch = 0 : i64, scratch_operands = 3 : i64, tpu.core_type = #tpu.core_type<tc>, window_params = [{transform_indices = @transform_0, window_bounds = array<i64: 1, 28, 28>}, {pipeline_mode = #tpu.pipeline_mode<synchronous>, transform_indices = @transform_1, window_bounds = array<i64: 5, 28, 768>}, {pipeline_mode = #tpu.pipeline_mode<synchronous>, transform_indices = @transform_2, window_bounds = array<i64: 1, 384>}, {pipeline_mode = #tpu.pipeline_mode<synchronous>, transform_indices = @transform_3, window_bounds = array<i64: 5, 384, 512>}, {pipeline_mode = #tpu.pipeline_mode<synchronous>, transform_indices = @transform_4, window_bounds = array<i64: 1, 256>}, {pipeline_mode = #tpu.pipeline_mode<synchronous>, transform_indices = @transform_5, window_bounds = array<i64: 4, 256, 512>}, {pipeline_mode = #tpu.pipeline_mode<synchronous>, transform_indices = @transform_6, window_bounds = array<i64: 1, 512>}, {pipeline_mode = #tpu.pipeline_mode<synchronous>, transform_indices = @transform_7, window_bounds = array<i64: 512, 128>}, {pipeline_mode = #tpu.pipeline_mode<synchronous>, transform_indices = @transform_8, window_bounds = array<i64: 1, 128>}, {transform_indices = @transform_9, window_bounds = array<i64: 1, 1, 128>}]} {
    %c0 = arith.constant 0 : index
    %c0_0 = arith.constant 0 : index
    %c0_1 = arith.constant 0 : index
    %0 = vector.load %arg1[%c0, %c0_0, %c0_1] : memref<1x28x28xf32, #tpu.memory_space<vmem>>, vector<1x28x28xf32>
    %1 = arith.truncf %0 : vector<1x28x28xf32> to vector<1x28x28xbf16>
    %2 = vector.extract_strided_slice %1 {offsets = [0, 0, 0], sizes = [1, 24, 28], strides = [1, 1, 1]} : vector<1x28x28xbf16> to vector<1x24x28xbf16>
    %3 = vector.shape_cast %2 : vector<1x24x28xbf16> to vector<24x28xbf16>
    %c0_2 = arith.constant 0 : index
    %c0_3 = arith.constant 0 : index
    %c0_4 = arith.constant 0 : index
    %4 = vector.load %arg2[%c0_2, %c0_3, %c0_4] : memref<5x28x768xbf16, #tpu.memory_space<vmem>>, vector<1x28x768xbf16>
    %5 = vector.shape_cast %4 : vector<1x28x768xbf16> to vector<28x768xbf16>
    %cst = arith.constant dense<0.000000e+00> : vector<24x768xf32>
    %6 = tpu.matmul %3, %5, %cst {dimension_numbers = #tpu.dot_dimension_numbers<[1], [0], [0], [1], [0, 0, 1, 1], [], []>} : vector<24x28xbf16>, vector<28x768xbf16>, vector<24x768xf32> -> vector<24x768xf32>
    %7 = vector.shape_cast %6 : vector<24x768xf32> to vector<1x24x768xf32>
    %c0_5 = arith.constant 0 : index
    %c0_6 = arith.constant 0 : index
    %c0_7 = arith.constant 0 : index
    %8 = vector.load %arg11[%c0_5, %c0_6, %c0_7] : memref<1x24x768xf32, #tpu.memory_space<vmem>>, vector<1x24x768xf32>
    tpu.vector_store %arg11[%c0_5, %c0_6, %c0_7], %7 {strides = array<i32>} : memref<1x24x768xf32, #tpu.memory_space<vmem>>, vector<1x24x768xf32>,
    %9 = vector.extract_strided_slice %1 {offsets = [0, 1, 0], sizes = [1, 24, 28], strides = [1, 1, 1]} : vector<1x28x28xbf16> to vector<1x24x28xbf16>
    %10 = vector.shape_cast %9 : vector<1x24x28xbf16> to vector<24x28xbf16>
    %c1 = arith.constant 1 : index
    %c0_8 = arith.constant 0 : index
    %c0_9 = arith.constant 0 : index
    %11 = vector.load %arg2[%c1, %c0_8, %c0_9] : memref<5x28x768xbf16, #tpu.memory_space<vmem>>, vector<1x28x768xbf16>
    %12 = vector.shape_cast %11 : vector<1x28x768xbf16> to vector<28x768xbf16>
    %cst_10 = arith.constant dense<0.000000e+00> : vector<24x768xf32>
    %13 = tpu.matmul %10, %12, %cst_10 {dimension_numbers = #tpu.dot_dimension_numbers<[1], [0], [0], [1], [0, 0, 1, 1], [], []>} : vector<24x28xbf16>, vector<28x768xbf16>, vector<24x768xf32> -> vector<24x768xf32>
    %14 = vector.shape_cast %13 : vector<24x768xf32> to vector<1x24x768xf32>
    %c0_11 = arith.constant 0 : index
    %c0_12 = arith.constant 0 : index
    %c0_13 = arith.constant 0 : index
    %15 = vector.load %arg11[%c0_11, %c0_12, %c0_13] : memref<1x24x768xf32, #tpu.memory_space<vmem>>, vector<1x24x768xf32>
    %16 = arith.addf %15, %14 : vector<1x24x768xf32>
    %c0_14 = arith.constant 0 : index
    %c0_15 = arith.constant 0 : index
    %c0_16 = arith.constant 0 : index
    %17 = vector.load %arg11[%c0_14, %c0_15, %c0_16] : memref<1x24x768xf32, #tpu.memory_space<vmem>>, vector<1x24x768xf32>
    tpu.vector_store %arg11[%c0_14, %c0_15, %c0_16], %16 {strides = array<i32>} : memref<1x24x768xf32, #tpu.memory_space<vmem>>, vector<1x24x768xf32>,
    %18 = vector.extract_strided_slice %1 {offsets = [0, 2, 0], sizes = [1, 24, 28], strides = [1, 1, 1]} : vector<1x28x28xbf16> to vector<1x24x28xbf16>
    %19 = vector.shape_cast %18 : vector<1x24x28xbf16> to vector<24x28xbf16>
    %c2 = arith.constant 2 : index
    %c0_17 = arith.constant 0 : index
    %c0_18 = arith.constant 0 : index
    %20 = vector.load %arg2[%c2, %c0_17, %c0_18] : memref<5x28x768xbf16, #tpu.memory_space<vmem>>, vector<1x28x768xbf16>
    %21 = vector.shape_cast %20 : vector<1x28x768xbf16> to vector<28x768xbf16>
    %cst_19 = arith.constant dense<0.000000e+00> : vector<24x768xf32>
    %22 = tpu.matmul %19, %21, %cst_19 {dimension_numbers = #tpu.dot_dimension_numbers<[1], [0], [0], [1], [0, 0, 1, 1], [], []>} : vector<24x28xbf16>, vector<28x768xbf16>, vector<24x768xf32> -> vector<24x768xf32>
    %23 = vector.shape_cast %22 : vector<24x768xf32> to vector<1x24x768xf32>
    %c0_20 = arith.constant 0 : index
    %c0_21 = arith.constant 0 : index
    %c0_22 = arith.constant 0 : index
    %24 = vector.load %arg11[%c0_20, %c0_21, %c0_22] : memref<1x24x768xf32, #tpu.memory_space<vmem>>, vector<1x24x768xf32>
    %25 = arith.addf %24, %23 : vector<1x24x768xf32>
    %c0_23 = arith.constant 0 : index
    %c0_24 = arith.constant 0 : index
    %c0_25 = arith.constant 0 : index
    %26 = vector.load %arg11[%c0_23, %c0_24, %c0_25] : memref<1x24x768xf32, #tpu.memory_space<vmem>>, vector<1x24x768xf32>
    tpu.vector_store %arg11[%c0_23, %c0_24, %c0_25], %25 {strides = array<i32>} : memref<1x24x768xf32, #tpu.memory_space<vmem>>, vector<1x24x768xf32>,
    %27 = vector.extract_strided_slice %1 {offsets = [0, 3, 0], sizes = [1, 24, 28], strides = [1, 1, 1]} : vector<1x28x28xbf16> to vector<1x24x28xbf16>
    %28 = vector.shape_cast %27 : vector<1x24x28xbf16> to vector<24x28xbf16>
    %c3 = arith.constant 3 : index
    %c0_26 = arith.constant 0 : index
    %c0_27 = arith.constant 0 : index
    %29 = vector.load %arg2[%c3, %c0_26, %c0_27] : memref<5x28x768xbf16, #tpu.memory_space<vmem>>, vector<1x28x768xbf16>
    %30 = vector.shape_cast %29 : vector<1x28x768xbf16> to vector<28x768xbf16>
    %cst_28 = arith.constant dense<0.000000e+00> : vector<24x768xf32>
    %31 = tpu.matmul %28, %30, %cst_28 {dimension_numbers = #tpu.dot_dimension_numbers<[1], [0], [0], [1], [0, 0, 1, 1], [], []>} : vector<24x28xbf16>, vector<28x768xbf16>, vector<24x768xf32> -> vector<24x768xf32>
    %32 = vector.shape_cast %31 : vector<24x768xf32> to vector<1x24x768xf32>
    %c0_29 = arith.constant 0 : index
    %c0_30 = arith.constant 0 : index
    %c0_31 = arith.constant 0 : index
    %33 = vector.load %arg11[%c0_29, %c0_30, %c0_31] : memref<1x24x768xf32, #tpu.memory_space<vmem>>, vector<1x24x768xf32>
    %34 = arith.addf %33, %32 : vector<1x24x768xf32>
    %c0_32 = arith.constant 0 : index
    %c0_33 = arith.constant 0 : index
    %c0_34 = arith.constant 0 : index
    %35 = vector.load %arg11[%c0_32, %c0_33, %c0_34] : memref<1x24x768xf32, #tpu.memory_space<vmem>>, vector<1x24x768xf32>
    tpu.vector_store %arg11[%c0_32, %c0_33, %c0_34], %34 {strides = array<i32>} : memref<1x24x768xf32, #tpu.memory_space<vmem>>, vector<1x24x768xf32>,
    %36 = vector.extract_strided_slice %1 {offsets = [0, 4, 0], sizes = [1, 24, 28], strides = [1, 1, 1]} : vector<1x28x28xbf16> to vector<1x24x28xbf16>
    %37 = vector.shape_cast %36 : vector<1x24x28xbf16> to vector<24x28xbf16>
    %c4 = arith.constant 4 : index
    %c0_35 = arith.constant 0 : index
    %c0_36 = arith.constant 0 : index
    %38 = vector.load %arg2[%c4, %c0_35, %c0_36] : memref<5x28x768xbf16, #tpu.memory_space<vmem>>, vector<1x28x768xbf16>
    %39 = vector.shape_cast %38 : vector<1x28x768xbf16> to vector<28x768xbf16>
    %cst_37 = arith.constant dense<0.000000e+00> : vector<24x768xf32>
    %40 = tpu.matmul %37, %39, %cst_37 {dimension_numbers = #tpu.dot_dimension_numbers<[1], [0], [0], [1], [0, 0, 1, 1], [], []>} : vector<24x28xbf16>, vector<28x768xbf16>, vector<24x768xf32> -> vector<24x768xf32>
    %41 = vector.shape_cast %40 : vector<24x768xf32> to vector<1x24x768xf32>
    %c0_38 = arith.constant 0 : index
    %c0_39 = arith.constant 0 : index
    %c0_40 = arith.constant 0 : index
    %42 = vector.load %arg11[%c0_38, %c0_39, %c0_40] : memref<1x24x768xf32, #tpu.memory_space<vmem>>, vector<1x24x768xf32>
    %43 = arith.addf %42, %41 : vector<1x24x768xf32>
    %c0_41 = arith.constant 0 : index
    %c0_42 = arith.constant 0 : index
    %c0_43 = arith.constant 0 : index
    %44 = vector.load %arg11[%c0_41, %c0_42, %c0_43] : memref<1x24x768xf32, #tpu.memory_space<vmem>>, vector<1x24x768xf32>
    tpu.vector_store %arg11[%c0_41, %c0_42, %c0_43], %43 {strides = array<i32>} : memref<1x24x768xf32, #tpu.memory_space<vmem>>, vector<1x24x768xf32>,
    %c0_44 = arith.constant 0 : index
    %c0_45 = arith.constant 0 : index
    %c0_46 = arith.constant 0 : index
    %45 = vector.load %arg11[%c0_44, %c0_45, %c0_46] : memref<1x24x768xf32, #tpu.memory_space<vmem>>, vector<1x1x768xf32>
    %46 = vector.shape_cast %45 : vector<1x1x768xf32> to vector<1x768xf32>
    %c0_47 = arith.constant 0 : index
    %c1_48 = arith.constant 1 : index
    %c0_49 = arith.constant 0 : index
    %47 = vector.load %arg11[%c0_47, %c1_48, %c0_49] : memref<1x24x768xf32, #tpu.memory_space<vmem>>, vector<1x1x768xf32>
    %48 = vector.shape_cast %47 : vector<1x1x768xf32> to vector<1x768xf32>
    %49 = arith.maximumf %46, %48 : vector<1x768xf32>
    %50 = vector.extract_strided_slice %49 {offsets = [0, 0], sizes = [1, 384], strides = [1, 1]} : vector<1x768xf32> to vector<1x384xf32>
    %51 = vector.extract_strided_slice %49 {offsets = [0, 384], sizes = [1, 384], strides = [1, 1]} : vector<1x768xf32> to vector<1x384xf32>
    %52 = arith.maximumf %50, %51 : vector<1x384xf32>
    %c0_50 = arith.constant 0 : index
    %c0_51 = arith.constant 0 : index
    %53 = vector.load %arg3[%c0_50, %c0_51] : memref<1x384xf32, #tpu.memory_space<vmem>>, vector<1x384xf32>
    %54 = arith.addf %52, %53 : vector<1x384xf32>
    %cst_52 = arith.constant 0.000000e+00 : f32
    %55 = vector.broadcast %cst_52 : f32 to vector<1x384xf32>
    %56 = arith.maximumf %54, %55 : vector<1x384xf32>
    %c0_53 = arith.constant 0 : index
    %c0_54 = arith.constant 0 : index
    %c0_55 = arith.constant 0 : index
    %57 = vector.load %arg12[%c0_53, %c0_54, %c0_55] : memref<1x12x384xf32, #tpu.memory_space<vmem>>, vector<1x1x384xf32>
    %58 = vector.shape_cast %57 : vector<1x1x384xf32> to vector<1x384xf32>
    %59 = vector.shape_cast %56 : vector<1x384xf32> to vector<1x1x384xf32>
    tpu.vector_store %arg12[%c0_53, %c0_54, %c0_55], %59 {strides = array<i32>} : memref<1x12x384xf32, #tpu.memory_space<vmem>>, vector<1x1x384xf32>,
    %c0_56 = arith.constant 0 : index
    %c2_57 = arith.constant 2 : index
    %c0_58 = arith.constant 0 : index
    %60 = vector.load %arg11[%c0_56, %c2_57, %c0_58] : memref<1x24x768xf32, #tpu.memory_space<vmem>>, vector<1x1x768xf32>
    %61 = vector.shape_cast %60 : vector<1x1x768xf32> to vector<1x768xf32>
    %c0_59 = arith.constant 0 : index
    %c3_60 = arith.constant 3 : index
    %c0_61 = arith.constant 0 : index
    %62 = vector.load %arg11[%c0_59, %c3_60, %c0_61] : memref<1x24x768xf32, #tpu.memory_space<vmem>>, vector<1x1x768xf32>
    %63 = vector.shape_cast %62 : vector<1x1x768xf32> to vector<1x768xf32>
    %64 = arith.maximumf %61, %63 : vector<1x768xf32>
    %65 = vector.extract_strided_slice %64 {offsets = [0, 0], sizes = [1, 384], strides = [1, 1]} : vector<1x768xf32> to vector<1x384xf32>
    %66 = vector.extract_strided_slice %64 {offsets = [0, 384], sizes = [1, 384], strides = [1, 1]} : vector<1x768xf32> to vector<1x384xf32>
    %67 = arith.maximumf %65, %66 : vector<1x384xf32>
    %c0_62 = arith.constant 0 : index
    %c0_63 = arith.constant 0 : index
    %68 = vector.load %arg3[%c0_62, %c0_63] : memref<1x384xf32, #tpu.memory_space<vmem>>, vector<1x384xf32>
    %69 = arith.addf %67, %68 : vector<1x384xf32>
    %cst_64 = arith.constant 0.000000e+00 : f32
    %70 = vector.broadcast %cst_64 : f32 to vector<1x384xf32>
    %71 = arith.maximumf %69, %70 : vector<1x384xf32>
    %c0_65 = arith.constant 0 : index
    %c1_66 = arith.constant 1 : index
    %c0_67 = arith.constant 0 : index
    %72 = vector.load %arg12[%c0_65, %c1_66, %c0_67] : memref<1x12x384xf32, #tpu.memory_space<vmem>>, vector<1x1x384xf32>
    %73 = vector.shape_cast %72 : vector<1x1x384xf32> to vector<1x384xf32>
    %74 = vector.shape_cast %71 : vector<1x384xf32> to vector<1x1x384xf32>
    tpu.vector_store %arg12[%c0_65, %c1_66, %c0_67], %74 {strides = array<i32>} : memref<1x12x384xf32, #tpu.memory_space<vmem>>, vector<1x1x384xf32>,
    %c0_68 = arith.constant 0 : index
    %c4_69 = arith.constant 4 : index
    %c0_70 = arith.constant 0 : index
    %75 = vector.load %arg11[%c0_68, %c4_69, %c0_70] : memref<1x24x768xf32, #tpu.memory_space<vmem>>, vector<1x1x768xf32>
    %76 = vector.shape_cast %75 : vector<1x1x768xf32> to vector<1x768xf32>
    %c0_71 = arith.constant 0 : index
    %c5 = arith.constant 5 : index
    %c0_72 = arith.constant 0 : index
    %77 = vector.load %arg11[%c0_71, %c5, %c0_72] : memref<1x24x768xf32, #tpu.memory_space<vmem>>, vector<1x1x768xf32>
    %78 = vector.shape_cast %77 : vector<1x1x768xf32> to vector<1x768xf32>
    %79 = arith.maximumf %76, %78 : vector<1x768xf32>
    %80 = vector.extract_strided_slice %79 {offsets = [0, 0], sizes = [1, 384], strides = [1, 1]} : vector<1x768xf32> to vector<1x384xf32>
    %81 = vector.extract_strided_slice %79 {offsets = [0, 384], sizes = [1, 384], strides = [1, 1]} : vector<1x768xf32> to vector<1x384xf32>
    %82 = arith.maximumf %80, %81 : vector<1x384xf32>
    %c0_73 = arith.constant 0 : index
    %c0_74 = arith.constant 0 : index
    %83 = vector.load %arg3[%c0_73, %c0_74] : memref<1x384xf32, #tpu.memory_space<vmem>>, vector<1x384xf32>
    %84 = arith.addf %82, %83 : vector<1x384xf32>
    %cst_75 = arith.constant 0.000000e+00 : f32
    %85 = vector.broadcast %cst_75 : f32 to vector<1x384xf32>
    %86 = arith.maximumf %84, %85 : vector<1x384xf32>
    %c0_76 = arith.constant 0 : index
    %c2_77 = arith.constant 2 : index
    %c0_78 = arith.constant 0 : index
    %87 = vector.load %arg12[%c0_76, %c2_77, %c0_78] : memref<1x12x384xf32, #tpu.memory_space<vmem>>, vector<1x1x384xf32>
    %88 = vector.shape_cast %87 : vector<1x1x384xf32> to vector<1x384xf32>
    %89 = vector.shape_cast %86 : vector<1x384xf32> to vector<1x1x384xf32>
    tpu.vector_store %arg12[%c0_76, %c2_77, %c0_78], %89 {strides = array<i32>} : memref<1x12x384xf32, #tpu.memory_space<vmem>>, vector<1x1x384xf32>,
    %c0_79 = arith.constant 0 : index
    %c6 = arith.constant 6 : index
    %c0_80 = arith.constant 0 : index
    %90 = vector.load %arg11[%c0_79, %c6, %c0_80] : memref<1x24x768xf32, #tpu.memory_space<vmem>>, vector<1x1x768xf32>
    %91 = vector.shape_cast %90 : vector<1x1x768xf32> to vector<1x768xf32>
    %c0_81 = arith.constant 0 : index
    %c7 = arith.constant 7 : index
    %c0_82 = arith.constant 0 : index
    %92 = vector.load %arg11[%c0_81, %c7, %c0_82] : memref<1x24x768xf32, #tpu.memory_space<vmem>>, vector<1x1x768xf32>
    %93 = vector.shape_cast %92 : vector<1x1x768xf32> to vector<1x768xf32>
    %94 = arith.maximumf %91, %93 : vector<1x768xf32>
    %95 = vector.extract_strided_slice %94 {offsets = [0, 0], sizes = [1, 384], strides = [1, 1]} : vector<1x768xf32> to vector<1x384xf32>
    %96 = vector.extract_strided_slice %94 {offsets = [0, 384], sizes = [1, 384], strides = [1, 1]} : vector<1x768xf32> to vector<1x384xf32>
    %97 = arith.maximumf %95, %96 : vector<1x384xf32>
    %c0_83 = arith.constant 0 : index
    %c0_84 = arith.constant 0 : index
    %98 = vector.load %arg3[%c0_83, %c0_84] : memref<1x384xf32, #tpu.memory_space<vmem>>, vector<1x384xf32>
    %99 = arith.addf %97, %98 : vector<1x384xf32>
    %cst_85 = arith.constant 0.000000e+00 : f32
    %100 = vector.broadcast %cst_85 : f32 to vector<1x384xf32>
    %101 = arith.maximumf %99, %100 : vector<1x384xf32>
    %c0_86 = arith.constant 0 : index
    %c3_87 = arith.constant 3 : index
    %c0_88 = arith.constant 0 : index
    %102 = vector.load %arg12[%c0_86, %c3_87, %c0_88] : memref<1x12x384xf32, #tpu.memory_space<vmem>>, vector<1x1x384xf32>
    %103 = vector.shape_cast %102 : vector<1x1x384xf32> to vector<1x384xf32>
    %104 = vector.shape_cast %101 : vector<1x384xf32> to vector<1x1x384xf32>
    tpu.vector_store %arg12[%c0_86, %c3_87, %c0_88], %104 {strides = array<i32>} : memref<1x12x384xf32, #tpu.memory_space<vmem>>, vector<1x1x384xf32>,
    %c0_89 = arith.constant 0 : index
    %c8 = arith.constant 8 : index
    %c0_90 = arith.constant 0 : index
    %105 = vector.load %arg11[%c0_89, %c8, %c0_90] : memref<1x24x768xf32, #tpu.memory_space<vmem>>, vector<1x1x768xf32>
    %106 = vector.shape_cast %105 : vector<1x1x768xf32> to vector<1x768xf32>
    %c0_91 = arith.constant 0 : index
    %c9 = arith.constant 9 : index
    %c0_92 = arith.constant 0 : index
    %107 = vector.load %arg11[%c0_91, %c9, %c0_92] : memref<1x24x768xf32, #tpu.memory_space<vmem>>, vector<1x1x768xf32>
    %108 = vector.shape_cast %107 : vector<1x1x768xf32> to vector<1x768xf32>
    %109 = arith.maximumf %106, %108 : vector<1x768xf32>
    %110 = vector.extract_strided_slice %109 {offsets = [0, 0], sizes = [1, 384], strides = [1, 1]} : vector<1x768xf32> to vector<1x384xf32>
    %111 = vector.extract_strided_slice %109 {offsets = [0, 384], sizes = [1, 384], strides = [1, 1]} : vector<1x768xf32> to vector<1x384xf32>
    %112 = arith.maximumf %110, %111 : vector<1x384xf32>
    %c0_93 = arith.constant 0 : index
    %c0_94 = arith.constant 0 : index
    %113 = vector.load %arg3[%c0_93, %c0_94] : memref<1x384xf32, #tpu.memory_space<vmem>>, vector<1x384xf32>
    %114 = arith.addf %112, %113 : vector<1x384xf32>
    %cst_95 = arith.constant 0.000000e+00 : f32
    %115 = vector.broadcast %cst_95 : f32 to vector<1x384xf32>
    %116 = arith.maximumf %114, %115 : vector<1x384xf32>
    %c0_96 = arith.constant 0 : index
    %c4_97 = arith.constant 4 : index
    %c0_98 = arith.constant 0 : index
    %117 = vector.load %arg12[%c0_96, %c4_97, %c0_98] : memref<1x12x384xf32, #tpu.memory_space<vmem>>, vector<1x1x384xf32>
    %118 = vector.shape_cast %117 : vector<1x1x384xf32> to vector<1x384xf32>
    %119 = vector.shape_cast %116 : vector<1x384xf32> to vector<1x1x384xf32>
    tpu.vector_store %arg12[%c0_96, %c4_97, %c0_98], %119 {strides = array<i32>} : memref<1x12x384xf32, #tpu.memory_space<vmem>>, vector<1x1x384xf32>,
    %c0_99 = arith.constant 0 : index
    %c10 = arith.constant 10 : index
    %c0_100 = arith.constant 0 : index
    %120 = vector.load %arg11[%c0_99, %c10, %c0_100] : memref<1x24x768xf32, #tpu.memory_space<vmem>>, vector<1x1x768xf32>
    %121 = vector.shape_cast %120 : vector<1x1x768xf32> to vector<1x768xf32>
    %c0_101 = arith.constant 0 : index
    %c11 = arith.constant 11 : index
    %c0_102 = arith.constant 0 : index
    %122 = vector.load %arg11[%c0_101, %c11, %c0_102] : memref<1x24x768xf32, #tpu.memory_space<vmem>>, vector<1x1x768xf32>
    %123 = vector.shape_cast %122 : vector<1x1x768xf32> to vector<1x768xf32>
    %124 = arith.maximumf %121, %123 : vector<1x768xf32>
    %125 = vector.extract_strided_slice %124 {offsets = [0, 0], sizes = [1, 384], strides = [1, 1]} : vector<1x768xf32> to vector<1x384xf32>
    %126 = vector.extract_strided_slice %124 {offsets = [0, 384], sizes = [1, 384], strides = [1, 1]} : vector<1x768xf32> to vector<1x384xf32>
    %127 = arith.maximumf %125, %126 : vector<1x384xf32>
    %c0_103 = arith.constant 0 : index
    %c0_104 = arith.constant 0 : index
    %128 = vector.load %arg3[%c0_103, %c0_104] : memref<1x384xf32, #tpu.memory_space<vmem>>, vector<1x384xf32>
    %129 = arith.addf %127, %128 : vector<1x384xf32>
    %cst_105 = arith.constant 0.000000e+00 : f32
    %130 = vector.broadcast %cst_105 : f32 to vector<1x384xf32>
    %131 = arith.maximumf %129, %130 : vector<1x384xf32>
    %c0_106 = arith.constant 0 : index
    %c5_107 = arith.constant 5 : index
    %c0_108 = arith.constant 0 : index
    %132 = vector.load %arg12[%c0_106, %c5_107, %c0_108] : memref<1x12x384xf32, #tpu.memory_space<vmem>>, vector<1x1x384xf32>
    %133 = vector.shape_cast %132 : vector<1x1x384xf32> to vector<1x384xf32>
    %134 = vector.shape_cast %131 : vector<1x384xf32> to vector<1x1x384xf32>
    tpu.vector_store %arg12[%c0_106, %c5_107, %c0_108], %134 {strides = array<i32>} : memref<1x12x384xf32, #tpu.memory_space<vmem>>, vector<1x1x384xf32>,
    %c0_109 = arith.constant 0 : index
    %c12 = arith.constant 12 : index
    %c0_110 = arith.constant 0 : index
    %135 = vector.load %arg11[%c0_109, %c12, %c0_110] : memref<1x24x768xf32, #tpu.memory_space<vmem>>, vector<1x1x768xf32>
    %136 = vector.shape_cast %135 : vector<1x1x768xf32> to vector<1x768xf32>
    %c0_111 = arith.constant 0 : index
    %c13 = arith.constant 13 : index
    %c0_112 = arith.constant 0 : index
    %137 = vector.load %arg11[%c0_111, %c13, %c0_112] : memref<1x24x768xf32, #tpu.memory_space<vmem>>, vector<1x1x768xf32>
    %138 = vector.shape_cast %137 : vector<1x1x768xf32> to vector<1x768xf32>
    %139 = arith.maximumf %136, %138 : vector<1x768xf32>
    %140 = vector.extract_strided_slice %139 {offsets = [0, 0], sizes = [1, 384], strides = [1, 1]} : vector<1x768xf32> to vector<1x384xf32>
    %141 = vector.extract_strided_slice %139 {offsets = [0, 384], sizes = [1, 384], strides = [1, 1]} : vector<1x768xf32> to vector<1x384xf32>
    %142 = arith.maximumf %140, %141 : vector<1x384xf32>
    %c0_113 = arith.constant 0 : index
    %c0_114 = arith.constant 0 : index
    %143 = vector.load %arg3[%c0_113, %c0_114] : memref<1x384xf32, #tpu.memory_space<vmem>>, vector<1x384xf32>
    %144 = arith.addf %142, %143 : vector<1x384xf32>
    %cst_115 = arith.constant 0.000000e+00 : f32
    %145 = vector.broadcast %cst_115 : f32 to vector<1x384xf32>
    %146 = arith.maximumf %144, %145 : vector<1x384xf32>
    %c0_116 = arith.constant 0 : index
    %c6_117 = arith.constant 6 : index
    %c0_118 = arith.constant 0 : index
    %147 = vector.load %arg12[%c0_116, %c6_117, %c0_118] : memref<1x12x384xf32, #tpu.memory_space<vmem>>, vector<1x1x384xf32>
    %148 = vector.shape_cast %147 : vector<1x1x384xf32> to vector<1x384xf32>
    %149 = vector.shape_cast %146 : vector<1x384xf32> to vector<1x1x384xf32>
    tpu.vector_store %arg12[%c0_116, %c6_117, %c0_118], %149 {strides = array<i32>} : memref<1x12x384xf32, #tpu.memory_space<vmem>>, vector<1x1x384xf32>,
    %c0_119 = arith.constant 0 : index
    %c14 = arith.constant 14 : index
    %c0_120 = arith.constant 0 : index
    %150 = vector.load %arg11[%c0_119, %c14, %c0_120] : memref<1x24x768xf32, #tpu.memory_space<vmem>>, vector<1x1x768xf32>
    %151 = vector.shape_cast %150 : vector<1x1x768xf32> to vector<1x768xf32>
    %c0_121 = arith.constant 0 : index
    %c15 = arith.constant 15 : index
    %c0_122 = arith.constant 0 : index
    %152 = vector.load %arg11[%c0_121, %c15, %c0_122] : memref<1x24x768xf32, #tpu.memory_space<vmem>>, vector<1x1x768xf32>
    %153 = vector.shape_cast %152 : vector<1x1x768xf32> to vector<1x768xf32>
    %154 = arith.maximumf %151, %153 : vector<1x768xf32>
    %155 = vector.extract_strided_slice %154 {offsets = [0, 0], sizes = [1, 384], strides = [1, 1]} : vector<1x768xf32> to vector<1x384xf32>
    %156 = vector.extract_strided_slice %154 {offsets = [0, 384], sizes = [1, 384], strides = [1, 1]} : vector<1x768xf32> to vector<1x384xf32>
    %157 = arith.maximumf %155, %156 : vector<1x384xf32>
    %c0_123 = arith.constant 0 : index
    %c0_124 = arith.constant 0 : index
    %158 = vector.load %arg3[%c0_123, %c0_124] : memref<1x384xf32, #tpu.memory_space<vmem>>, vector<1x384xf32>
    %159 = arith.addf %157, %158 : vector<1x384xf32>
    %cst_125 = arith.constant 0.000000e+00 : f32
    %160 = vector.broadcast %cst_125 : f32 to vector<1x384xf32>
    %161 = arith.maximumf %159, %160 : vector<1x384xf32>
    %c0_126 = arith.constant 0 : index
    %c7_127 = arith.constant 7 : index
    %c0_128 = arith.constant 0 : index
    %162 = vector.load %arg12[%c0_126, %c7_127, %c0_128] : memref<1x12x384xf32, #tpu.memory_space<vmem>>, vector<1x1x384xf32>
    %163 = vector.shape_cast %162 : vector<1x1x384xf32> to vector<1x384xf32>
    %164 = vector.shape_cast %161 : vector<1x384xf32> to vector<1x1x384xf32>
    tpu.vector_store %arg12[%c0_126, %c7_127, %c0_128], %164 {strides = array<i32>} : memref<1x12x384xf32, #tpu.memory_space<vmem>>, vector<1x1x384xf32>,
    %c0_129 = arith.constant 0 : index
    %c16 = arith.constant 16 : index
    %c0_130 = arith.constant 0 : index
    %165 = vector.load %arg11[%c0_129, %c16, %c0_130] : memref<1x24x768xf32, #tpu.memory_space<vmem>>, vector<1x1x768xf32>
    %166 = vector.shape_cast %165 : vector<1x1x768xf32> to vector<1x768xf32>
    %c0_131 = arith.constant 0 : index
    %c17 = arith.constant 17 : index
    %c0_132 = arith.constant 0 : index
    %167 = vector.load %arg11[%c0_131, %c17, %c0_132] : memref<1x24x768xf32, #tpu.memory_space<vmem>>, vector<1x1x768xf32>
    %168 = vector.shape_cast %167 : vector<1x1x768xf32> to vector<1x768xf32>
    %169 = arith.maximumf %166, %168 : vector<1x768xf32>
    %170 = vector.extract_strided_slice %169 {offsets = [0, 0], sizes = [1, 384], strides = [1, 1]} : vector<1x768xf32> to vector<1x384xf32>
    %171 = vector.extract_strided_slice %169 {offsets = [0, 384], sizes = [1, 384], strides = [1, 1]} : vector<1x768xf32> to vector<1x384xf32>
    %172 = arith.maximumf %170, %171 : vector<1x384xf32>
    %c0_133 = arith.constant 0 : index
    %c0_134 = arith.constant 0 : index
    %173 = vector.load %arg3[%c0_133, %c0_134] : memref<1x384xf32, #tpu.memory_space<vmem>>, vector<1x384xf32>
    %174 = arith.addf %172, %173 : vector<1x384xf32>
    %cst_135 = arith.constant 0.000000e+00 : f32
    %175 = vector.broadcast %cst_135 : f32 to vector<1x384xf32>
    %176 = arith.maximumf %174, %175 : vector<1x384xf32>
    %c0_136 = arith.constant 0 : index
    %c8_137 = arith.constant 8 : index
    %c0_138 = arith.constant 0 : index
    %177 = vector.load %arg12[%c0_136, %c8_137, %c0_138] : memref<1x12x384xf32, #tpu.memory_space<vmem>>, vector<1x1x384xf32>
    %178 = vector.shape_cast %177 : vector<1x1x384xf32> to vector<1x384xf32>
    %179 = vector.shape_cast %176 : vector<1x384xf32> to vector<1x1x384xf32>
    tpu.vector_store %arg12[%c0_136, %c8_137, %c0_138], %179 {strides = array<i32>} : memref<1x12x384xf32, #tpu.memory_space<vmem>>, vector<1x1x384xf32>,
    %c0_139 = arith.constant 0 : index
    %c18 = arith.constant 18 : index
    %c0_140 = arith.constant 0 : index
    %180 = vector.load %arg11[%c0_139, %c18, %c0_140] : memref<1x24x768xf32, #tpu.memory_space<vmem>>, vector<1x1x768xf32>
    %181 = vector.shape_cast %180 : vector<1x1x768xf32> to vector<1x768xf32>
    %c0_141 = arith.constant 0 : index
    %c19 = arith.constant 19 : index
    %c0_142 = arith.constant 0 : index
    %182 = vector.load %arg11[%c0_141, %c19, %c0_142] : memref<1x24x768xf32, #tpu.memory_space<vmem>>, vector<1x1x768xf32>
    %183 = vector.shape_cast %182 : vector<1x1x768xf32> to vector<1x768xf32>
    %184 = arith.maximumf %181, %183 : vector<1x768xf32>
    %185 = vector.extract_strided_slice %184 {offsets = [0, 0], sizes = [1, 384], strides = [1, 1]} : vector<1x768xf32> to vector<1x384xf32>
    %186 = vector.extract_strided_slice %184 {offsets = [0, 384], sizes = [1, 384], strides = [1, 1]} : vector<1x768xf32> to vector<1x384xf32>
    %187 = arith.maximumf %185, %186 : vector<1x384xf32>
    %c0_143 = arith.constant 0 : index
    %c0_144 = arith.constant 0 : index
    %188 = vector.load %arg3[%c0_143, %c0_144] : memref<1x384xf32, #tpu.memory_space<vmem>>, vector<1x384xf32>
    %189 = arith.addf %187, %188 : vector<1x384xf32>
    %cst_145 = arith.constant 0.000000e+00 : f32
    %190 = vector.broadcast %cst_145 : f32 to vector<1x384xf32>
    %191 = arith.maximumf %189, %190 : vector<1x384xf32>
    %c0_146 = arith.constant 0 : index
    %c9_147 = arith.constant 9 : index
    %c0_148 = arith.constant 0 : index
    %192 = vector.load %arg12[%c0_146, %c9_147, %c0_148] : memref<1x12x384xf32, #tpu.memory_space<vmem>>, vector<1x1x384xf32>
    %193 = vector.shape_cast %192 : vector<1x1x384xf32> to vector<1x384xf32>
    %194 = vector.shape_cast %191 : vector<1x384xf32> to vector<1x1x384xf32>
    tpu.vector_store %arg12[%c0_146, %c9_147, %c0_148], %194 {strides = array<i32>} : memref<1x12x384xf32, #tpu.memory_space<vmem>>, vector<1x1x384xf32>,
    %c0_149 = arith.constant 0 : index
    %c20 = arith.constant 20 : index
    %c0_150 = arith.constant 0 : index
    %195 = vector.load %arg11[%c0_149, %c20, %c0_150] : memref<1x24x768xf32, #tpu.memory_space<vmem>>, vector<1x1x768xf32>
    %196 = vector.shape_cast %195 : vector<1x1x768xf32> to vector<1x768xf32>
    %c0_151 = arith.constant 0 : index
    %c21 = arith.constant 21 : index
    %c0_152 = arith.constant 0 : index
    %197 = vector.load %arg11[%c0_151, %c21, %c0_152] : memref<1x24x768xf32, #tpu.memory_space<vmem>>, vector<1x1x768xf32>
    %198 = vector.shape_cast %197 : vector<1x1x768xf32> to vector<1x768xf32>
    %199 = arith.maximumf %196, %198 : vector<1x768xf32>
    %200 = vector.extract_strided_slice %199 {offsets = [0, 0], sizes = [1, 384], strides = [1, 1]} : vector<1x768xf32> to vector<1x384xf32>
    %201 = vector.extract_strided_slice %199 {offsets = [0, 384], sizes = [1, 384], strides = [1, 1]} : vector<1x768xf32> to vector<1x384xf32>
    %202 = arith.maximumf %200, %201 : vector<1x384xf32>
    %c0_153 = arith.constant 0 : index
    %c0_154 = arith.constant 0 : index
    %203 = vector.load %arg3[%c0_153, %c0_154] : memref<1x384xf32, #tpu.memory_space<vmem>>, vector<1x384xf32>
    %204 = arith.addf %202, %203 : vector<1x384xf32>
    %cst_155 = arith.constant 0.000000e+00 : f32
    %205 = vector.broadcast %cst_155 : f32 to vector<1x384xf32>
    %206 = arith.maximumf %204, %205 : vector<1x384xf32>
    %c0_156 = arith.constant 0 : index
    %c10_157 = arith.constant 10 : index
    %c0_158 = arith.constant 0 : index
    %207 = vector.load %arg12[%c0_156, %c10_157, %c0_158] : memref<1x12x384xf32, #tpu.memory_space<vmem>>, vector<1x1x384xf32>
    %208 = vector.shape_cast %207 : vector<1x1x384xf32> to vector<1x384xf32>
    %209 = vector.shape_cast %206 : vector<1x384xf32> to vector<1x1x384xf32>
    tpu.vector_store %arg12[%c0_156, %c10_157, %c0_158], %209 {strides = array<i32>} : memref<1x12x384xf32, #tpu.memory_space<vmem>>, vector<1x1x384xf32>,
    %c0_159 = arith.constant 0 : index
    %c22 = arith.constant 22 : index
    %c0_160 = arith.constant 0 : index
    %210 = vector.load %arg11[%c0_159, %c22, %c0_160] : memref<1x24x768xf32, #tpu.memory_space<vmem>>, vector<1x1x768xf32>
    %211 = vector.shape_cast %210 : vector<1x1x768xf32> to vector<1x768xf32>
    %c0_161 = arith.constant 0 : index
    %c23 = arith.constant 23 : index
    %c0_162 = arith.constant 0 : index
    %212 = vector.load %arg11[%c0_161, %c23, %c0_162] : memref<1x24x768xf32, #tpu.memory_space<vmem>>, vector<1x1x768xf32>
    %213 = vector.shape_cast %212 : vector<1x1x768xf32> to vector<1x768xf32>
    %214 = arith.maximumf %211, %213 : vector<1x768xf32>
    %215 = vector.extract_strided_slice %214 {offsets = [0, 0], sizes = [1, 384], strides = [1, 1]} : vector<1x768xf32> to vector<1x384xf32>
    %216 = vector.extract_strided_slice %214 {offsets = [0, 384], sizes = [1, 384], strides = [1, 1]} : vector<1x768xf32> to vector<1x384xf32>
    %217 = arith.maximumf %215, %216 : vector<1x384xf32>
    %c0_163 = arith.constant 0 : index
    %c0_164 = arith.constant 0 : index
    %218 = vector.load %arg3[%c0_163, %c0_164] : memref<1x384xf32, #tpu.memory_space<vmem>>, vector<1x384xf32>
    %219 = arith.addf %217, %218 : vector<1x384xf32>
    %cst_165 = arith.constant 0.000000e+00 : f32
    %220 = vector.broadcast %cst_165 : f32 to vector<1x384xf32>
    %221 = arith.maximumf %219, %220 : vector<1x384xf32>
    %c0_166 = arith.constant 0 : index
    %c11_167 = arith.constant 11 : index
    %c0_168 = arith.constant 0 : index
    %222 = vector.load %arg12[%c0_166, %c11_167, %c0_168] : memref<1x12x384xf32, #tpu.memory_space<vmem>>, vector<1x1x384xf32>
    %223 = vector.shape_cast %222 : vector<1x1x384xf32> to vector<1x384xf32>
    %224 = vector.shape_cast %221 : vector<1x384xf32> to vector<1x1x384xf32>
    tpu.vector_store %arg12[%c0_166, %c11_167, %c0_168], %224 {strides = array<i32>} : memref<1x12x384xf32, #tpu.memory_space<vmem>>, vector<1x1x384xf32>,
    %c0_169 = arith.constant 0 : index
    %c0_170 = arith.constant 0 : index
    %c0_171 = arith.constant 0 : index
    %225 = vector.load %arg12[%c0_169, %c0_170, %c0_171] : memref<1x12x384xf32, #tpu.memory_space<vmem>>, vector<1x8x384xf32>
    %226 = arith.truncf %225 : vector<1x8x384xf32> to vector<1x8x384xbf16>
    %227 = vector.shape_cast %226 : vector<1x8x384xbf16> to vector<8x384xbf16>
    %c0_172 = arith.constant 0 : index
    %c0_173 = arith.constant 0 : index
    %c0_174 = arith.constant 0 : index
    %228 = vector.load %arg4[%c0_172, %c0_173, %c0_174] : memref<5x384x512xbf16, #tpu.memory_space<vmem>>, vector<1x384x512xbf16>
    %229 = vector.shape_cast %228 : vector<1x384x512xbf16> to vector<384x512xbf16>
    %cst_175 = arith.constant dense<0.000000e+00> : vector<8x512xf32>
    %230 = tpu.matmul %227, %229, %cst_175 {dimension_numbers = #tpu.dot_dimension_numbers<[1], [0], [0], [1], [0, 0, 1, 1], [], []>} : vector<8x384xbf16>, vector<384x512xbf16>, vector<8x512xf32> -> vector<8x512xf32>
    %231 = vector.shape_cast %230 : vector<8x512xf32> to vector<1x8x512xf32>
    %c0_176 = arith.constant 0 : index
    %c0_177 = arith.constant 0 : index
    %c0_178 = arith.constant 0 : index
    %232 = vector.load %arg13[%c0_176, %c0_177, %c0_178] : memref<1x8x512xf32, #tpu.memory_space<vmem>>, vector<1x8x512xf32>
    tpu.vector_store %arg13[%c0_176, %c0_177, %c0_178], %231 {strides = array<i32>} : memref<1x8x512xf32, #tpu.memory_space<vmem>>, vector<1x8x512xf32>,
    %c0_179 = arith.constant 0 : index
    %c1_180 = arith.constant 1 : index
    %c0_181 = arith.constant 0 : index
    %233 = vector.load %arg12[%c0_179, %c1_180, %c0_181] : memref<1x12x384xf32, #tpu.memory_space<vmem>>, vector<1x8x384xf32>
    %234 = arith.truncf %233 : vector<1x8x384xf32> to vector<1x8x384xbf16>
    %235 = vector.shape_cast %234 : vector<1x8x384xbf16> to vector<8x384xbf16>
    %c1_182 = arith.constant 1 : index
    %c0_183 = arith.constant 0 : index
    %c0_184 = arith.constant 0 : index
    %236 = vector.load %arg4[%c1_182, %c0_183, %c0_184] : memref<5x384x512xbf16, #tpu.memory_space<vmem>>, vector<1x384x512xbf16>
    %237 = vector.shape_cast %236 : vector<1x384x512xbf16> to vector<384x512xbf16>
    %cst_185 = arith.constant dense<0.000000e+00> : vector<8x512xf32>
    %238 = tpu.matmul %235, %237, %cst_185 {dimension_numbers = #tpu.dot_dimension_numbers<[1], [0], [0], [1], [0, 0, 1, 1], [], []>} : vector<8x384xbf16>, vector<384x512xbf16>, vector<8x512xf32> -> vector<8x512xf32>
    %239 = vector.shape_cast %238 : vector<8x512xf32> to vector<1x8x512xf32>
    %c0_186 = arith.constant 0 : index
    %c0_187 = arith.constant 0 : index
    %c0_188 = arith.constant 0 : index
    %240 = vector.load %arg13[%c0_186, %c0_187, %c0_188] : memref<1x8x512xf32, #tpu.memory_space<vmem>>, vector<1x8x512xf32>
    %241 = arith.addf %240, %239 : vector<1x8x512xf32>
    %c0_189 = arith.constant 0 : index
    %c0_190 = arith.constant 0 : index
    %c0_191 = arith.constant 0 : index
    %242 = vector.load %arg13[%c0_189, %c0_190, %c0_191] : memref<1x8x512xf32, #tpu.memory_space<vmem>>, vector<1x8x512xf32>
    tpu.vector_store %arg13[%c0_189, %c0_190, %c0_191], %241 {strides = array<i32>} : memref<1x8x512xf32, #tpu.memory_space<vmem>>, vector<1x8x512xf32>,
    %c0_192 = arith.constant 0 : index
    %c2_193 = arith.constant 2 : index
    %c0_194 = arith.constant 0 : index
    %243 = vector.load %arg12[%c0_192, %c2_193, %c0_194] : memref<1x12x384xf32, #tpu.memory_space<vmem>>, vector<1x8x384xf32>
    %244 = arith.truncf %243 : vector<1x8x384xf32> to vector<1x8x384xbf16>
    %245 = vector.shape_cast %244 : vector<1x8x384xbf16> to vector<8x384xbf16>
    %c2_195 = arith.constant 2 : index
    %c0_196 = arith.constant 0 : index
    %c0_197 = arith.constant 0 : index
    %246 = vector.load %arg4[%c2_195, %c0_196, %c0_197] : memref<5x384x512xbf16, #tpu.memory_space<vmem>>, vector<1x384x512xbf16>
    %247 = vector.shape_cast %246 : vector<1x384x512xbf16> to vector<384x512xbf16>
    %cst_198 = arith.constant dense<0.000000e+00> : vector<8x512xf32>
    %248 = tpu.matmul %245, %247, %cst_198 {dimension_numbers = #tpu.dot_dimension_numbers<[1], [0], [0], [1], [0, 0, 1, 1], [], []>} : vector<8x384xbf16>, vector<384x512xbf16>, vector<8x512xf32> -> vector<8x512xf32>
    %249 = vector.shape_cast %248 : vector<8x512xf32> to vector<1x8x512xf32>
    %c0_199 = arith.constant 0 : index
    %c0_200 = arith.constant 0 : index
    %c0_201 = arith.constant 0 : index
    %250 = vector.load %arg13[%c0_199, %c0_200, %c0_201] : memref<1x8x512xf32, #tpu.memory_space<vmem>>, vector<1x8x512xf32>
    %251 = arith.addf %250, %249 : vector<1x8x512xf32>
    %c0_202 = arith.constant 0 : index
    %c0_203 = arith.constant 0 : index
    %c0_204 = arith.constant 0 : index
    %252 = vector.load %arg13[%c0_202, %c0_203, %c0_204] : memref<1x8x512xf32, #tpu.memory_space<vmem>>, vector<1x8x512xf32>
    tpu.vector_store %arg13[%c0_202, %c0_203, %c0_204], %251 {strides = array<i32>} : memref<1x8x512xf32, #tpu.memory_space<vmem>>, vector<1x8x512xf32>,
    %c0_205 = arith.constant 0 : index
    %c3_206 = arith.constant 3 : index
    %c0_207 = arith.constant 0 : index
    %253 = vector.load %arg12[%c0_205, %c3_206, %c0_207] : memref<1x12x384xf32, #tpu.memory_space<vmem>>, vector<1x8x384xf32>
    %254 = arith.truncf %253 : vector<1x8x384xf32> to vector<1x8x384xbf16>
    %255 = vector.shape_cast %254 : vector<1x8x384xbf16> to vector<8x384xbf16>
    %c3_208 = arith.constant 3 : index
    %c0_209 = arith.constant 0 : index
    %c0_210 = arith.constant 0 : index
    %256 = vector.load %arg4[%c3_208, %c0_209, %c0_210] : memref<5x384x512xbf16, #tpu.memory_space<vmem>>, vector<1x384x512xbf16>
    %257 = vector.shape_cast %256 : vector<1x384x512xbf16> to vector<384x512xbf16>
    %cst_211 = arith.constant dense<0.000000e+00> : vector<8x512xf32>
    %258 = tpu.matmul %255, %257, %cst_211 {dimension_numbers = #tpu.dot_dimension_numbers<[1], [0], [0], [1], [0, 0, 1, 1], [], []>} : vector<8x384xbf16>, vector<384x512xbf16>, vector<8x512xf32> -> vector<8x512xf32>
    %259 = vector.shape_cast %258 : vector<8x512xf32> to vector<1x8x512xf32>
    %c0_212 = arith.constant 0 : index
    %c0_213 = arith.constant 0 : index
    %c0_214 = arith.constant 0 : index
    %260 = vector.load %arg13[%c0_212, %c0_213, %c0_214] : memref<1x8x512xf32, #tpu.memory_space<vmem>>, vector<1x8x512xf32>
    %261 = arith.addf %260, %259 : vector<1x8x512xf32>
    %c0_215 = arith.constant 0 : index
    %c0_216 = arith.constant 0 : index
    %c0_217 = arith.constant 0 : index
    %262 = vector.load %arg13[%c0_215, %c0_216, %c0_217] : memref<1x8x512xf32, #tpu.memory_space<vmem>>, vector<1x8x512xf32>
    tpu.vector_store %arg13[%c0_215, %c0_216, %c0_217], %261 {strides = array<i32>} : memref<1x8x512xf32, #tpu.memory_space<vmem>>, vector<1x8x512xf32>,
    %c0_218 = arith.constant 0 : index
    %c4_219 = arith.constant 4 : index
    %c0_220 = arith.constant 0 : index
    %263 = vector.load %arg12[%c0_218, %c4_219, %c0_220] : memref<1x12x384xf32, #tpu.memory_space<vmem>>, vector<1x8x384xf32>
    %264 = arith.truncf %263 : vector<1x8x384xf32> to vector<1x8x384xbf16>
    %265 = vector.shape_cast %264 : vector<1x8x384xbf16> to vector<8x384xbf16>
    %c4_221 = arith.constant 4 : index
    %c0_222 = arith.constant 0 : index
    %c0_223 = arith.constant 0 : index
    %266 = vector.load %arg4[%c4_221, %c0_222, %c0_223] : memref<5x384x512xbf16, #tpu.memory_space<vmem>>, vector<1x384x512xbf16>
    %267 = vector.shape_cast %266 : vector<1x384x512xbf16> to vector<384x512xbf16>
    %cst_224 = arith.constant dense<0.000000e+00> : vector<8x512xf32>
    %268 = tpu.matmul %265, %267, %cst_224 {dimension_numbers = #tpu.dot_dimension_numbers<[1], [0], [0], [1], [0, 0, 1, 1], [], []>} : vector<8x384xbf16>, vector<384x512xbf16>, vector<8x512xf32> -> vector<8x512xf32>
    %269 = vector.shape_cast %268 : vector<8x512xf32> to vector<1x8x512xf32>
    %c0_225 = arith.constant 0 : index
    %c0_226 = arith.constant 0 : index
    %c0_227 = arith.constant 0 : index
    %270 = vector.load %arg13[%c0_225, %c0_226, %c0_227] : memref<1x8x512xf32, #tpu.memory_space<vmem>>, vector<1x8x512xf32>
    %271 = arith.addf %270, %269 : vector<1x8x512xf32>
    %c0_228 = arith.constant 0 : index
    %c0_229 = arith.constant 0 : index
    %c0_230 = arith.constant 0 : index
    %272 = vector.load %arg13[%c0_228, %c0_229, %c0_230] : memref<1x8x512xf32, #tpu.memory_space<vmem>>, vector<1x8x512xf32>
    tpu.vector_store %arg13[%c0_228, %c0_229, %c0_230], %271 {strides = array<i32>} : memref<1x8x512xf32, #tpu.memory_space<vmem>>, vector<1x8x512xf32>,
    %cst_231 = arith.constant 0.000000e+00 : f32
    %273 = vector.broadcast %cst_231 : f32 to vector<1x512xf32>
    %c0_232 = arith.constant 0 : index
    %c0_233 = arith.constant 0 : index
    %c0_234 = arith.constant 0 : index
    %274 = vector.load %arg13[%c0_232, %c0_233, %c0_234] : memref<1x8x512xf32, #tpu.memory_space<vmem>>, vector<1x1x512xf32>
    %275 = vector.shape_cast %274 : vector<1x1x512xf32> to vector<1x512xf32>
    %c0_235 = arith.constant 0 : index
    %c1_236 = arith.constant 1 : index
    %c0_237 = arith.constant 0 : index
    %276 = vector.load %arg13[%c0_235, %c1_236, %c0_237] : memref<1x8x512xf32, #tpu.memory_space<vmem>>, vector<1x1x512xf32>
    %277 = vector.shape_cast %276 : vector<1x1x512xf32> to vector<1x512xf32>
    %278 = arith.maximumf %275, %277 : vector<1x512xf32>
    %279 = vector.extract_strided_slice %278 {offsets = [0, 0], sizes = [1, 256], strides = [1, 1]} : vector<1x512xf32> to vector<1x256xf32>
    %280 = vector.extract_strided_slice %278 {offsets = [0, 256], sizes = [1, 256], strides = [1, 1]} : vector<1x512xf32> to vector<1x256xf32>
    %281 = arith.maximumf %279, %280 : vector<1x256xf32>
    %c0_238 = arith.constant 0 : index
    %c0_239 = arith.constant 0 : index
    %282 = vector.load %arg5[%c0_238, %c0_239] : memref<1x256xf32, #tpu.memory_space<vmem>>, vector<1x256xf32>
    %283 = arith.addf %281, %282 : vector<1x256xf32>
    %cst_240 = arith.constant 0.000000e+00 : f32
    %284 = vector.broadcast %cst_240 : f32 to vector<1x256xf32>
    %285 = arith.maximumf %283, %284 : vector<1x256xf32>
    %286 = arith.truncf %285 : vector<1x256xf32> to vector<1x256xbf16>
    %c0_241 = arith.constant 0 : index
    %c0_242 = arith.constant 0 : index
    %c0_243 = arith.constant 0 : index
    %287 = vector.load %arg6[%c0_241, %c0_242, %c0_243] : memref<4x256x512xbf16, #tpu.memory_space<vmem>>, vector<1x256x512xbf16>
    %288 = vector.shape_cast %287 : vector<1x256x512xbf16> to vector<256x512xbf16>
    %cst_244 = arith.constant dense<0.000000e+00> : vector<1x512xf32>
    %289 = tpu.matmul %286, %288, %cst_244 {dimension_numbers = #tpu.dot_dimension_numbers<[1], [0], [0], [1], [0, 0, 1, 1], [], []>} : vector<1x256xbf16>, vector<256x512xbf16>, vector<1x512xf32> -> vector<1x512xf32>
    %290 = arith.addf %273, %289 : vector<1x512xf32>
    %c0_245 = arith.constant 0 : index
    %c2_246 = arith.constant 2 : index
    %c0_247 = arith.constant 0 : index
    %291 = vector.load %arg13[%c0_245, %c2_246, %c0_247] : memref<1x8x512xf32, #tpu.memory_space<vmem>>, vector<1x1x512xf32>
    %292 = vector.shape_cast %291 : vector<1x1x512xf32> to vector<1x512xf32>
    %c0_248 = arith.constant 0 : index
    %c3_249 = arith.constant 3 : index
    %c0_250 = arith.constant 0 : index
    %293 = vector.load %arg13[%c0_248, %c3_249, %c0_250] : memref<1x8x512xf32, #tpu.memory_space<vmem>>, vector<1x1x512xf32>
    %294 = vector.shape_cast %293 : vector<1x1x512xf32> to vector<1x512xf32>
    %295 = arith.maximumf %292, %294 : vector<1x512xf32>
    %296 = vector.extract_strided_slice %295 {offsets = [0, 0], sizes = [1, 256], strides = [1, 1]} : vector<1x512xf32> to vector<1x256xf32>
    %297 = vector.extract_strided_slice %295 {offsets = [0, 256], sizes = [1, 256], strides = [1, 1]} : vector<1x512xf32> to vector<1x256xf32>
    %298 = arith.maximumf %296, %297 : vector<1x256xf32>
    %c0_251 = arith.constant 0 : index
    %c0_252 = arith.constant 0 : index
    %299 = vector.load %arg5[%c0_251, %c0_252] : memref<1x256xf32, #tpu.memory_space<vmem>>, vector<1x256xf32>
    %300 = arith.addf %298, %299 : vector<1x256xf32>
    %cst_253 = arith.constant 0.000000e+00 : f32
    %301 = vector.broadcast %cst_253 : f32 to vector<1x256xf32>
    %302 = arith.maximumf %300, %301 : vector<1x256xf32>
    %303 = arith.truncf %302 : vector<1x256xf32> to vector<1x256xbf16>
    %c1_254 = arith.constant 1 : index
    %c0_255 = arith.constant 0 : index
    %c0_256 = arith.constant 0 : index
    %304 = vector.load %arg6[%c1_254, %c0_255, %c0_256] : memref<4x256x512xbf16, #tpu.memory_space<vmem>>, vector<1x256x512xbf16>
    %305 = vector.shape_cast %304 : vector<1x256x512xbf16> to vector<256x512xbf16>
    %cst_257 = arith.constant dense<0.000000e+00> : vector<1x512xf32>
    %306 = tpu.matmul %303, %305, %cst_257 {dimension_numbers = #tpu.dot_dimension_numbers<[1], [0], [0], [1], [0, 0, 1, 1], [], []>} : vector<1x256xbf16>, vector<256x512xbf16>, vector<1x512xf32> -> vector<1x512xf32>
    %307 = arith.addf %290, %306 : vector<1x512xf32>
    %c0_258 = arith.constant 0 : index
    %c4_259 = arith.constant 4 : index
    %c0_260 = arith.constant 0 : index
    %308 = vector.load %arg13[%c0_258, %c4_259, %c0_260] : memref<1x8x512xf32, #tpu.memory_space<vmem>>, vector<1x1x512xf32>
    %309 = vector.shape_cast %308 : vector<1x1x512xf32> to vector<1x512xf32>
    %c0_261 = arith.constant 0 : index
    %c5_262 = arith.constant 5 : index
    %c0_263 = arith.constant 0 : index
    %310 = vector.load %arg13[%c0_261, %c5_262, %c0_263] : memref<1x8x512xf32, #tpu.memory_space<vmem>>, vector<1x1x512xf32>
    %311 = vector.shape_cast %310 : vector<1x1x512xf32> to vector<1x512xf32>
    %312 = arith.maximumf %309, %311 : vector<1x512xf32>
    %313 = vector.extract_strided_slice %312 {offsets = [0, 0], sizes = [1, 256], strides = [1, 1]} : vector<1x512xf32> to vector<1x256xf32>
    %314 = vector.extract_strided_slice %312 {offsets = [0, 256], sizes = [1, 256], strides = [1, 1]} : vector<1x512xf32> to vector<1x256xf32>
    %315 = arith.maximumf %313, %314 : vector<1x256xf32>
    %c0_264 = arith.constant 0 : index
    %c0_265 = arith.constant 0 : index
    %316 = vector.load %arg5[%c0_264, %c0_265] : memref<1x256xf32, #tpu.memory_space<vmem>>, vector<1x256xf32>
    %317 = arith.addf %315, %316 : vector<1x256xf32>
    %cst_266 = arith.constant 0.000000e+00 : f32
    %318 = vector.broadcast %cst_266 : f32 to vector<1x256xf32>
    %319 = arith.maximumf %317, %318 : vector<1x256xf32>
    %320 = arith.truncf %319 : vector<1x256xf32> to vector<1x256xbf16>
    %c2_267 = arith.constant 2 : index
    %c0_268 = arith.constant 0 : index
    %c0_269 = arith.constant 0 : index
    %321 = vector.load %arg6[%c2_267, %c0_268, %c0_269] : memref<4x256x512xbf16, #tpu.memory_space<vmem>>, vector<1x256x512xbf16>
    %322 = vector.shape_cast %321 : vector<1x256x512xbf16> to vector<256x512xbf16>
    %cst_270 = arith.constant dense<0.000000e+00> : vector<1x512xf32>
    %323 = tpu.matmul %320, %322, %cst_270 {dimension_numbers = #tpu.dot_dimension_numbers<[1], [0], [0], [1], [0, 0, 1, 1], [], []>} : vector<1x256xbf16>, vector<256x512xbf16>, vector<1x512xf32> -> vector<1x512xf32>
    %324 = arith.addf %307, %323 : vector<1x512xf32>
    %c0_271 = arith.constant 0 : index
    %c6_272 = arith.constant 6 : index
    %c0_273 = arith.constant 0 : index
    %325 = vector.load %arg13[%c0_271, %c6_272, %c0_273] : memref<1x8x512xf32, #tpu.memory_space<vmem>>, vector<1x1x512xf32>
    %326 = vector.shape_cast %325 : vector<1x1x512xf32> to vector<1x512xf32>
    %c0_274 = arith.constant 0 : index
    %c7_275 = arith.constant 7 : index
    %c0_276 = arith.constant 0 : index
    %327 = vector.load %arg13[%c0_274, %c7_275, %c0_276] : memref<1x8x512xf32, #tpu.memory_space<vmem>>, vector<1x1x512xf32>
    %328 = vector.shape_cast %327 : vector<1x1x512xf32> to vector<1x512xf32>
    %329 = arith.maximumf %326, %328 : vector<1x512xf32>
    %330 = vector.extract_strided_slice %329 {offsets = [0, 0], sizes = [1, 256], strides = [1, 1]} : vector<1x512xf32> to vector<1x256xf32>
    %331 = vector.extract_strided_slice %329 {offsets = [0, 256], sizes = [1, 256], strides = [1, 1]} : vector<1x512xf32> to vector<1x256xf32>
    %332 = arith.maximumf %330, %331 : vector<1x256xf32>
    %c0_277 = arith.constant 0 : index
    %c0_278 = arith.constant 0 : index
    %333 = vector.load %arg5[%c0_277, %c0_278] : memref<1x256xf32, #tpu.memory_space<vmem>>, vector<1x256xf32>
    %334 = arith.addf %332, %333 : vector<1x256xf32>
    %cst_279 = arith.constant 0.000000e+00 : f32
    %335 = vector.broadcast %cst_279 : f32 to vector<1x256xf32>
    %336 = arith.maximumf %334, %335 : vector<1x256xf32>
    %337 = arith.truncf %336 : vector<1x256xf32> to vector<1x256xbf16>
    %c3_280 = arith.constant 3 : index
    %c0_281 = arith.constant 0 : index
    %c0_282 = arith.constant 0 : index
    %338 = vector.load %arg6[%c3_280, %c0_281, %c0_282] : memref<4x256x512xbf16, #tpu.memory_space<vmem>>, vector<1x256x512xbf16>
    %339 = vector.shape_cast %338 : vector<1x256x512xbf16> to vector<256x512xbf16>
    %cst_283 = arith.constant dense<0.000000e+00> : vector<1x512xf32>
    %340 = tpu.matmul %337, %339, %cst_283 {dimension_numbers = #tpu.dot_dimension_numbers<[1], [0], [0], [1], [0, 0, 1, 1], [], []>} : vector<1x256xbf16>, vector<256x512xbf16>, vector<1x512xf32> -> vector<1x512xf32>
    %341 = arith.addf %324, %340 : vector<1x512xf32>
    %c0_284 = arith.constant 0 : index
    %c0_285 = arith.constant 0 : index
    %342 = vector.load %arg7[%c0_284, %c0_285] : memref<1x512xf32, #tpu.memory_space<vmem>>, vector<1x512xf32>
    %343 = arith.addf %341, %342 : vector<1x512xf32>
    %cst_286 = arith.constant 0.000000e+00 : f32
    %344 = vector.broadcast %cst_286 : f32 to vector<1x512xf32>
    %345 = arith.maximumf %343, %344 : vector<1x512xf32>
    %346 = arith.truncf %345 : vector<1x512xf32> to vector<1x512xbf16>
    %c0_287 = arith.constant 0 : index
    %c0_288 = arith.constant 0 : index
    %347 = vector.load %arg8[%c0_287, %c0_288] : memref<512x128xbf16, #tpu.memory_space<vmem>>, vector<512x128xbf16>
    %cst_289 = arith.constant dense<0.000000e+00> : vector<1x128xf32>
    %348 = tpu.matmul %346, %347, %cst_289 {dimension_numbers = #tpu.dot_dimension_numbers<[1], [0], [0], [1], [0, 0, 1, 1], [], []>} : vector<1x512xbf16>, vector<512x128xbf16>, vector<1x128xf32> -> vector<1x128xf32>
    %c0_290 = arith.constant 0 : index
    %c0_291 = arith.constant 0 : index
    %349 = vector.load %arg9[%c0_290, %c0_291] : memref<1x128xf32, #tpu.memory_space<vmem>>, vector<1x128xf32>
    %350 = arith.addf %348, %349 : vector<1x128xf32>
    %351 = tpu.iota {dimensions = array<i32: 1>} : vector<1x128xi32>
    %c10_i32 = arith.constant 10 : i32
    %352 = vector.broadcast %c10_i32 : i32 to vector<1x128xi32>
    %353 = arith.cmpi slt, %351, %352 : vector<1x128xi32>
    %cst_292 = arith.constant -1.000000e+30 : f32
    %354 = vector.broadcast %cst_292 : f32 to vector<1x128xf32>
    %355 = arith.select %353, %350, %354 : vector<1x128xi1>, vector<1x128xf32>
    %cst_293 = arith.constant dense<0xFF800000> : vector<1xf32>
    %356 = vector.multi_reduction <maximumf>, %355, %cst_293 [1] : vector<1x128xf32> to vector<1xf32>
    %357 = vector.shape_cast %356 : vector<1xf32> to vector<1x1xf32>
    %358 = vector.broadcast %357 : vector<1x1xf32> to vector<1x128xf32>
    %359 = arith.subf %350, %358 : vector<1x128xf32>
    %360 = math.exp %359 : vector<1x128xf32>
    %cst_294 = arith.constant 0.000000e+00 : f32
    %361 = vector.broadcast %cst_294 : f32 to vector<1x128xf32>
    %362 = arith.select %353, %360, %361 : vector<1x128xi1>, vector<1x128xf32>
    %cst_295 = arith.constant dense<0.000000e+00> : vector<1xf32>
    %363 = vector.multi_reduction <add>, %362, %cst_295 [1] : vector<1x128xf32> to vector<1xf32>
    %364 = vector.shape_cast %363 : vector<1xf32> to vector<1x1xf32>
    %365 = math.log %364 : vector<1x1xf32>
    %366 = vector.broadcast %365 : vector<1x1xf32> to vector<1x128xf32>
    %367 = arith.subf %359, %366 : vector<1x128xf32>
    %368 = vector.shape_cast %367 : vector<1x128xf32> to vector<1x1x128xf32>
    %c0_296 = arith.constant 0 : index
    %c0_297 = arith.constant 0 : index
    %c0_298 = arith.constant 0 : index
    %369 = vector.load %arg10[%c0_296, %c0_297, %c0_298] : memref<1x1x128xf32, #tpu.memory_space<vmem>>, vector<1x1x128xf32>
    tpu.vector_store %arg10[%c0_296, %c0_297, %c0_298], %368 {strides = array<i32>} : memref<1x1x128xf32, #tpu.memory_space<vmem>>, vector<1x1x128xf32>,
    return
  }
  func.func @transform_0(%arg0: i32) -> (i32, i32, i32) {
    %c0_i32 = arith.constant 0 : i32
    %c0_i32_0 = arith.constant 0 : i32
    %c0_i32_1 = arith.constant 0 : i32
    return %arg0, %c0_i32, %c0_i32_0 : i32, i32, i32
  }
  func.func @transform_1(%arg0: i32) -> (i32, i32, i32) {
    %c0_i32 = arith.constant 0 : i32
    %c0_i32_0 = arith.constant 0 : i32
    %c0_i32_1 = arith.constant 0 : i32
    %c0_i32_2 = arith.constant 0 : i32
    return %c0_i32, %c0_i32_0, %c0_i32_1 : i32, i32, i32
  }
  func.func @transform_2(%arg0: i32) -> (i32, i32) {
    %c0_i32 = arith.constant 0 : i32
    %c0_i32_0 = arith.constant 0 : i32
    %c0_i32_1 = arith.constant 0 : i32
    return %c0_i32, %c0_i32_0 : i32, i32
  }
  func.func @transform_3(%arg0: i32) -> (i32, i32, i32) {
    %c0_i32 = arith.constant 0 : i32
    %c0_i32_0 = arith.constant 0 : i32
    %c0_i32_1 = arith.constant 0 : i32
    %c0_i32_2 = arith.constant 0 : i32
    return %c0_i32, %c0_i32_0, %c0_i32_1 : i32, i32, i32
  }
  func.func @transform_4(%arg0: i32) -> (i32, i32) {
    %c0_i32 = arith.constant 0 : i32
    %c0_i32_0 = arith.constant 0 : i32
    %c0_i32_1 = arith.constant 0 : i32
    return %c0_i32, %c0_i32_0 : i32, i32
  }
  func.func @transform_5(%arg0: i32) -> (i32, i32, i32) {
    %c0_i32 = arith.constant 0 : i32
    %c0_i32_0 = arith.constant 0 : i32
    %c0_i32_1 = arith.constant 0 : i32
    %c0_i32_2 = arith.constant 0 : i32
    return %c0_i32, %c0_i32_0, %c0_i32_1 : i32, i32, i32
  }
  func.func @transform_6(%arg0: i32) -> (i32, i32) {
    %c0_i32 = arith.constant 0 : i32
    %c0_i32_0 = arith.constant 0 : i32
    %c0_i32_1 = arith.constant 0 : i32
    return %c0_i32, %c0_i32_0 : i32, i32
  }
  func.func @transform_7(%arg0: i32) -> (i32, i32) {
    %c0_i32 = arith.constant 0 : i32
    %c0_i32_0 = arith.constant 0 : i32
    %c0_i32_1 = arith.constant 0 : i32
    return %c0_i32, %c0_i32_0 : i32, i32
  }
  func.func @transform_8(%arg0: i32) -> (i32, i32) {
    %c0_i32 = arith.constant 0 : i32
    %c0_i32_0 = arith.constant 0 : i32
    %c0_i32_1 = arith.constant 0 : i32
    return %c0_i32, %c0_i32_0 : i32, i32
  }
  func.func @transform_9(%arg0: i32) -> (i32, i32, i32) {
    %c0_i32 = arith.constant 0 : i32
    %c0_i32_0 = arith.constant 0 : i32
    %c0_i32_1 = arith.constant 0 : i32
    return %arg0, %c0_i32, %c0_i32_0 : i32, i32, i32
  }
}

</mosaic_0001>

<llo_original>
// kernel: lenet_forward.1
$region0: #{lenet_forward.1}
  #allocation0 [shape = 'u32[]', space=smem, size = 0x4, offset = 0x4, fixed_abs, tag = 'smem constant byte address 0x4 - core index']
  #allocation1 [shape = 'u32[144,128]{1,0:T(1,128)}', space=vmem, size = 0x12000, scoped, tag = 'internal scratch']
  #allocation2 [shape = 'f32[1,24,768]{2,1,0:T(8,128)}', space=vmem, size = 0x12000, scoped, tag = 'scratch operand']
  #allocation3 [shape = 'f32[1,12,384]{2,1,0:T(8,128)}', space=vmem, size = 0x6000, scoped, tag = 'scratch operand']
  #allocation4 [shape = 'f32[1,8,512]{2,1,0:T(8,128)}', space=vmem, size = 0x4000, scoped, tag = 'scratch operand']
  %s0 = inlined_call_operand.vmem [shape: f32[2,28,28], index: 0, kind: input, shape index: {}]
  %s1 = inlined_call_operand.hbm [shape: bf16[5,28,768], index: 1, kind: input, shape index: {}]
  %s2 = inlined_call_operand.hbm [shape: f32[1,384], index: 2, kind: input, shape index: {}]
  %s3 = inlined_call_operand.hbm [shape: bf16[5,384,512], index: 3, kind: input, shape index: {}]
  %s4 = inlined_call_operand.hbm [shape: f32[1,256], index: 4, kind: input, shape index: {}]
  %s5 = inlined_call_operand.hbm [shape: bf16[4,256,512], index: 5, kind: input, shape index: {}]
  %s6 = inlined_call_operand.hbm [shape: f32[1,512], index: 6, kind: input, shape index: {}]
  %s7 = inlined_call_operand.hbm [shape: bf16[512,128], index: 7, kind: input, shape index: {}]
  %s8 = inlined_call_operand.hbm [shape: f32[1,128], index: 8, kind: input, shape index: {}]
  %s9 = inlined_call_operand.hbm [shape: f32[2,1,128], index: 9, kind: output, shape index: {}]
  %s10 = sld [smem:[#allocation0]]
  $region101: #{lenet_forward.1} parent=0
    _
  %s12 = ssub.s32 1, %s10
  %s13 = scalar_select 0, %s12, %s10
  $region1: #{lenet_forward.1} parent=0
    #allocation5 [shape = 'u8[245760]{0}', space=vmem, size = 0x3c000, scoped, tag = 'input window, operand 1, single buffered']
    #allocation6 [shape = 's32[2]{0}', space=sflag, size = 0x8, scoped, tag = 'scoped memory for lenet_forward.1']
    #allocation7 [shape = 's32[2]{0}', space=sflag, size = 0x8, scoped, tag = 'scoped memory for lenet_forward.1']
    #allocation8 [shape = 'u8[1536]{0}', space=vmem, size = 0x800, scoped, tag = 'input window, operand 2, single buffered']
    #allocation9 [shape = 's32[1]{0}', space=sflag, size = 0x4, scoped, tag = 'scoped memory for lenet_forward.1']
    #allocation10 [shape = 'u8[1966080]{0}', space=vmem, size = 0x1e0000, scoped, tag = 'input window, operand 3, single buffered']
    #allocation11 [shape = 'u8[1024]{0}', space=vmem, size = 0x400, scoped, tag = 'input window, operand 4, single buffered']
    #allocation12 [shape = 's32[1]{0}', space=sflag, size = 0x4, scoped, tag = 'scoped memory for lenet_forward.1']
    #allocation13 [shape = 'u8[1048576]{0}', space=vmem, size = 0x100000, scoped, tag = 'input window, operand 5, single buffered']
    #allocation14 [shape = 'u8[2048]{0}', space=vmem, size = 0x800, scoped, tag = 'input window, operand 6, single buffered']
    #allocation15 [shape = 's32[1]{0}', space=sflag, size = 0x4, scoped, tag = 'scoped memory for lenet_forward.1']
    #allocation16 [shape = 'u8[131072]{0}', space=vmem, size = 0x20000, scoped, tag = 'input window, operand 7, single buffered']
    #allocation17 [shape = 'u8[512]{0}', space=vmem, size = 0x400, scoped, tag = 'input window, operand 8, single buffered']
    #allocation18 [shape = 's32[1]{0}', space=sflag, size = 0x4, scoped, tag = 'scoped memory for lenet_forward.1']
    #allocation19 [shape = 'u8[1024]{0}', space=vmem, size = 0x400, scoped, tag = 'output window, operand 0']
    %14 = vsyncpa [#allocation6], 0
    %15 = vsyncpa [#allocation9], 0
    %16 = vsyncpa [#allocation12], 0
    %17 = vsyncpa [#allocation15], 0
    %18 = vsyncpa [#allocation18], 0
    %19 = vsyncpa [#allocation7], 0
    %s20 = scalar_lea.sflag [#allocation7], 1
    %21 = vsyncpa %s20, 0
    loop: start=0, step=1, limit=4
    $region2: #{lenet_forward.1} parent=1 // loop_pre_header
      _
    $region3: #{lenet_forward.1} parent=1 // loop_header
      %s23 = sphi 0, %s27
      %p24 = scmp.ge.s32.totalorder %s23, 4
      %s33 = sphi 0, %s35
      %s36 = sphi 0, %s33
      %s37 = sphi 0, %s36
      %s53 = sphi 0, %s37
      %s57 = sphi 0, %s57
      %s59 = sphi 0, %s57
      %s60 = sphi 0, %s59
      %s74 = sphi 0, %s60
      %s78 = sphi 0, %s78
      %s80 = sphi 0, %s78
      %s81 = sphi 0, %s80
      %s95 = sphi 0, %s81
      %s99 = sphi 0, %s99
      %s101 = sphi 0, %s99
      %s102 = sphi 0, %s101
      %s116 = sphi 0, %s102
      %s120 = sphi 0, %s120
      %s122 = sphi 0, %s120
      %s123 = sphi 0, %s122
      %s137 = sphi 0, %s123
      %s141 = sphi 0, %s141
      %s143 = sphi 0, %s141
      %s144 = sphi 0, %s143
      %s158 = sphi 0, %s144
      %s162 = sphi 0, %s162
      %s164 = sphi 0, %s162
      %s165 = sphi 0, %s164
      %s179 = sphi 0, %s165
      %s183 = sphi 0, %s183
      %s185 = sphi 0, %s183
      %s186 = sphi 0, %s185
      %s200 = sphi 0, %s186
      %s204 = sphi 0, %s204
      %s206 = sphi 0, %s204
      %s207 = sphi 0, %s206
      %s221 = sphi 0, %s207
      %s227 = sphi 0, %s229
      %s230 = sphi 0, %s227
      %s231 = sphi 0, %s230
      %s247 = sphi 0, %s231
    $region4: #{lenet_forward.1} parent=1 // loop_header_branch
      %26 = sbr.rel (%p24) target = $region8
    $region5: #{lenet_forward.1} parent=1 // loop_body
      %s28 = ssub.s32 %s23, 1
      %s29 = ssub.s32 %s23, 2
      %s30 = sadd.s32 %s23, 1
      %s31 = ssub.s32 %s23, %s30
      %p32 = scmp.eq.s32.totalorder %s31, 0
      %s34 = sadd.s32 %s33, 1
      %s35 = scalar_select %p32, %s33, %s34
      %p38 = pneg %p32
      %p39 = scmp.eq.s32.totalorder %s23, 1
      %p40 = por %p38, %p39
      %p41 = scmp.ne.s32.totalorder %s33, %s36
      %p42 = scmp.eq.s32.totalorder %s23, 0
      %p43 = por %p41, %p42
      %p44 = scmp.ne.s32.totalorder %s33, %s36
      %p45 = scmp.eq.s32.totalorder %s28, 1
      %p46 = por %p44, %p45
      %p47 = scmp.ne.s32.totalorder %s36, %s37
      %p48 = scmp.eq.s32.totalorder %s28, 0
      %p49 = por %p47, %p48
      %p50 = scmp.ne.s32.totalorder %s36, %s37
      %p51 = scmp.eq.s32.totalorder %s29, 1
      %p52 = por %p50, %p51
      %p54 = scmp.ne.s32.totalorder %s37, %s53
      %p55 = scmp.eq.s32.totalorder %s29, 0
      %p56 = por %p54, %p55
      %s58 = sadd.s32 %s57, 1
      %p61 = scmp.eq.s32.totalorder %s23, 1
      %p62 = scmp.ne.s32.totalorder %s57, %s59
      %p63 = scmp.eq.s32.totalorder %s23, 0
      %p64 = por %p62, %p63
      %p65 = scmp.ne.s32.totalorder %s57, %s59
      %p66 = scmp.eq.s32.totalorder %s28, 1
      %p67 = por %p65, %p66
      %p68 = scmp.ne.s32.totalorder %s59, %s60
      %p69 = scmp.eq.s32.totalorder %s28, 0
      %p70 = por %p68, %p69
      %p71 = scmp.ne.s32.totalorder %s59, %s60
      %p72 = scmp.eq.s32.totalorder %s29, 1
      %p73 = por %p71, %p72
      %p75 = scmp.ne.s32.totalorder %s60, %s74
      %p76 = scmp.eq.s32.totalorder %s29, 0
      %p77 = por %p75, %p76
      %s79 = sadd.s32 %s78, 1
      %p82 = scmp.eq.s32.totalorder %s23, 1
      %p83 = scmp.ne.s32.totalorder %s78, %s80
      %p84 = scmp.eq.s32.totalorder %s23, 0
      %p85 = por %p83, %p84
      %p86 = scmp.ne.s32.totalorder %s78, %s80
      %p87 = scmp.eq.s32.totalorder %s28, 1
      %p88 = por %p86, %p87
      %p89 = scmp.ne.s32.totalorder %s80, %s81
      %p90 = scmp.eq.s32.totalorder %s28, 0
      %p91 = por %p89, %p90
      %p92 = scmp.ne.s32.totalorder %s80, %s81
      %p93 = scmp.eq.s32.totalorder %s29, 1
      %p94 = por %p92, %p93
      %p96 = scmp.ne.s32.totalorder %s81, %s95
      %p97 = scmp.eq.s32.totalorder %s29, 0
      %p98 = por %p96, %p97
      %s100 = sadd.s32 %s99, 1
      %p103 = scmp.eq.s32.totalorder %s23, 1
      %p104 = scmp.ne.s32.totalorder %s99, %s101
      %p105 = scmp.eq.s32.totalorder %s23, 0
      %p106 = por %p104, %p105
      %p107 = scmp.ne.s32.totalorder %s99, %s101
      %p108 = scmp.eq.s32.totalorder %s28, 1
      %p109 = por %p107, %p108
      %p110 = scmp.ne.s32.totalorder %s101, %s102
      %p111 = scmp.eq.s32.totalorder %s28, 0
      %p112 = por %p110, %p111
      %p113 = scmp.ne.s32.totalorder %s101, %s102
      %p114 = scmp.eq.s32.totalorder %s29, 1
      %p115 = por %p113, %p114
      %p117 = scmp.ne.s32.totalorder %s102, %s116
      %p118 = scmp.eq.s32.totalorder %s29, 0
      %p119 = por %p117, %p118
      %s121 = sadd.s32 %s120, 1
      %p124 = scmp.eq.s32.totalorder %s23, 1
      %p125 = scmp.ne.s32.totalorder %s120, %s122
      %p126 = scmp.eq.s32.totalorder %s23, 0
      %p127 = por %p125, %p126
      %p128 = scmp.ne.s32.totalorder %s120, %s122
      %p129 = scmp.eq.s32.totalorder %s28, 1
      %p130 = por %p128, %p129
      %p131 = scmp.ne.s32.totalorder %s122, %s123
      %p132 = scmp.eq.s32.totalorder %s28, 0
      %p133 = por %p131, %p132
      %p134 = scmp.ne.s32.totalorder %s122, %s123
      %p135 = scmp.eq.s32.totalorder %s29, 1
      %p136 = por %p134, %p135
      %p138 = scmp.ne.s32.totalorder %s123, %s137
      %p139 = scmp.eq.s32.totalorder %s29, 0
      %p140 = por %p138, %p139
      %s142 = sadd.s32 %s141, 1
      %p145 = scmp.eq.s32.totalorder %s23, 1
      %p146 = scmp.ne.s32.totalorder %s141, %s143
      %p147 = scmp.eq.s32.totalorder %s23, 0
      %p148 = por %p146, %p147
      %p149 = scmp.ne.s32.totalorder %s141, %s143
      %p150 = scmp.eq.s32.totalorder %s28, 1
      %p151 = por %p149, %p150
      %p152 = scmp.ne.s32.totalorder %s143, %s144
      %p153 = scmp.eq.s32.totalorder %s28, 0
      %p154 = por %p152, %p153
      %p155 = scmp.ne.s32.totalorder %s143, %s144
      %p156 = scmp.eq.s32.totalorder %s29, 1
      %p157 = por %p155, %p156
      %p159 = scmp.ne.s32.totalorder %s144, %s158
      %p160 = scmp.eq.s32.totalorder %s29, 0
      %p161 = por %p159, %p160
      %s163 = sadd.s32 %s162, 1
      %p166 = scmp.eq.s32.totalorder %s23, 1
      %p167 = scmp.ne.s32.totalorder %s162, %s164
      %p168 = scmp.eq.s32.totalorder %s23, 0
      %p169 = por %p167, %p168
      %p170 = scmp.ne.s32.totalorder %s162, %s164
      %p171 = scmp.eq.s32.totalorder %s28, 1
      %p172 = por %p170, %p171
      %p173 = scmp.ne.s32.totalorder %s164, %s165
      %p174 = scmp.eq.s32.totalorder %s28, 0
      %p175 = por %p173, %p174
      %p176 = scmp.ne.s32.totalorder %s164, %s165
      %p177 = scmp.eq.s32.totalorder %s29, 1
      %p178 = por %p176, %p177
      %p180 = scmp.ne.s32.totalorder %s165, %s179
      %p181 = scmp.eq.s32.totalorder %s29, 0
      %p182 = por %p180, %p181
      %s184 = sadd.s32 %s183, 1
      %p187 = scmp.eq.s32.totalorder %s23, 1
      %p188 = scmp.ne.s32.totalorder %s183, %s185
      %p189 = scmp.eq.s32.totalorder %s23, 0
      %p190 = por %p188, %p189
      %p191 = scmp.ne.s32.totalorder %s183, %s185
      %p192 = scmp.eq.s32.totalorder %s28, 1
      %p193 = por %p191, %p192
      %p194 = scmp.ne.s32.totalorder %s185, %s186
      %p195 = scmp.eq.s32.totalorder %s28, 0
      %p196 = por %p194, %p195
      %p197 = scmp.ne.s32.totalorder %s185, %s186
      %p198 = scmp.eq.s32.totalorder %s29, 1
      %p199 = por %p197, %p198
      %p201 = scmp.ne.s32.totalorder %s186, %s200
      %p202 = scmp.eq.s32.totalorder %s29, 0
      %p203 = por %p201, %p202
      %s205 = sadd.s32 %s204, 1
      %p208 = scmp.eq.s32.totalorder %s23, 1
      %p209 = scmp.ne.s32.totalorder %s204, %s206
      %p210 = scmp.eq.s32.totalorder %s23, 0
      %p211 = por %p209, %p210
      %p212 = scmp.ne.s32.totalorder %s204, %s206
      %p213 = scmp.eq.s32.totalorder %s28, 1
      %p214 = por %p212, %p213
      %p215 = scmp.ne.s32.totalorder %s206, %s207
      %p216 = scmp.eq.s32.totalorder %s28, 0
      %p217 = por %p215, %p216
      %p218 = scmp.ne.s32.totalorder %s206, %s207
      %p219 = scmp.eq.s32.totalorder %s29, 1
      %p220 = por %p218, %p219
      %p222 = scmp.ne.s32.totalorder %s207, %s221
      %p223 = scmp.eq.s32.totalorder %s29, 0
      %p224 = por %p222, %p223
      %s225 = ssub.s32 %s23, %s30
      %p226 = scmp.eq.s32.totalorder %s225, 0
      %s228 = sadd.s32 %s227, 1
      %s229 = scalar_select %p226, %s227, %s228
      %p232 = pneg %p226
      %p233 = scmp.eq.s32.totalorder %s23, 1
      %p234 = por %p232, %p233
      %p235 = scmp.ne.s32.totalorder %s227, %s230
      %p236 = scmp.eq.s32.totalorder %s23, 0
      %p237 = por %p235, %p236
      %p238 = scmp.ne.s32.totalorder %s227, %s230
      %p239 = scmp.eq.s32.totalorder %s28, 1
      %p240 = por %p238, %p239
      %p241 = scmp.ne.s32.totalorder %s230, %s231
      %p242 = scmp.eq.s32.totalorder %s28, 0
      %p243 = por %p241, %p242
      %p244 = scmp.ne.s32.totalorder %s230, %s231
      %p245 = scmp.eq.s32.totalorder %s29, 1
      %p246 = por %p244, %p245
      %p248 = scmp.ne.s32.totalorder %s231, %s247
      %p249 = scmp.eq.s32.totalorder %s29, 0
      %p250 = por %p248, %p249
      %p251 = scmp.le.s32.totalorder 1, %s23
      %p252 = scmp.lt.s32.totalorder %s23, 3
      %p253 = pnand %p251, %p252
      %p254 = pneg %p253
      // Predicated region
      $region9: #{lenet_forward.1} parent=5 // pred_check
        _
      $region10: #{lenet_forward.1} parent=5 // pred_check_branch
        %256 = sbr.rel (%p253) target = $region12
      $region11: #{lenet_forward.1} parent=5 // pred_region
        %s257 = ssub.s32 %s23, 1
        // Predicated region
        $region13: #{lenet_forward.1} parent=11 // pred_check
          %p258 = pneg %p70
        $region14: #{lenet_forward.1} parent=11 // pred_check_branch
          %260 = sbr.rel (%p258) target = $region16
        $region15: #{lenet_forward.1} parent=11 // pred_region
          %s262 = ssub.s32 7680, 7680
          %263 = vsyncadd [#allocation6], %s262
          %s264 = sshll.u32 [#allocation5], 4
          %s265 = int_to_ptr.vmem [resolvable:$true] %s264
          %270 = dma.hbm_to_vmem [thread:$0]  %s1, 7680, %s265, [#allocation6], 384, 384, 24
        $region16: #{lenet_forward.1} parent=11 // pred_fallthru
          _
        // Predicated region
        $region17: #{lenet_forward.1} parent=11 // pred_check
          %p271 = pneg %p91
        $region18: #{lenet_forward.1} parent=11 // pred_check_branch
          %273 = sbr.rel (%p271) target = $region20
        $region19: #{lenet_forward.1} parent=11 // pred_region
          %s275 = ssub.s32 48, 48
          %276 = vsyncadd [#allocation9], %s275
          %s278 = sshll.u32 [#allocation8], 4
          %s279 = int_to_ptr.vmem [resolvable:$true] %s278
          %281 = dma.hbm_to_vmem [thread:$0]  %s2, 48, %s279, [#allocation9]
        $region20: #{lenet_forward.1} parent=11 // pred_fallthru
          _
        // Predicated region
        $region21: #{lenet_forward.1} parent=11 // pred_check
          %p282 = pneg %p112
        $region22: #{lenet_forward.1} parent=11 // pred_check_branch
          %284 = sbr.rel (%p282) target = $region24
        $region23: #{lenet_forward.1} parent=11 // pred_region
          %s286 = ssub.s32 61440, 61440
          %287 = vsyncadd [#allocation9], %s286
          %s288 = sshll.u32 [#allocation10], 4
          %s289 = int_to_ptr.vmem [resolvable:$true] %s288
          %294 = dma.hbm_to_vmem [thread:$0]  %s3, 61440, %s289, [#allocation9], 256, 256, 16
        $region24: #{lenet_forward.1} parent=11 // pred_fallthru
          _
        // Predicated region
        $region25: #{lenet_forward.1} parent=11 // pred_check
          %p295 = pneg %p133
        $region26: #{lenet_forward.1} parent=11 // pred_check_branch
          %297 = sbr.rel (%p295) target = $region28
        $region27: #{lenet_forward.1} parent=11 // pred_region
          %s299 = ssub.s32 32, 32
          %300 = vsyncadd [#allocation12], %s299
          %s302 = sshll.u32 [#allocation11], 4
          %s303 = int_to_ptr.vmem [resolvable:$true] %s302
          %305 = dma.hbm_to_vmem [thread:$0]  %s4, 32, %s303, [#allocation12]
        $region28: #{lenet_forward.1} parent=11 // pred_fallthru
          _
        // Predicated region
        $region29: #{lenet_forward.1} parent=11 // pred_check
          %p306 = pneg %p154
        $region30: #{lenet_forward.1} parent=11 // pred_check_branch
          %308 = sbr.rel (%p306) target = $region32
        $region31: #{lenet_forward.1} parent=11 // pred_region
          %s310 = ssub.s32 32768, 32768
          %311 = vsyncadd [#allocation12], %s310
          %s312 = sshll.u32 [#allocation13], 4
          %s313 = int_to_ptr.vmem [resolvable:$true] %s312
          %318 = dma.hbm_to_vmem [thread:$0]  %s5, 32768, %s313, [#allocation12], 256, 256, 16
        $region32: #{lenet_forward.1} parent=11 // pred_fallthru
          _
        // Predicated region
        $region33: #{lenet_forward.1} parent=11 // pred_check
          %p319 = pneg %p175
        $region34: #{lenet_forward.1} parent=11 // pred_check_branch
          %321 = sbr.rel (%p319) target = $region36
        $region35: #{lenet_forward.1} parent=11 // pred_region
          %s323 = ssub.s32 64, 64
          %324 = vsyncadd [#allocation15], %s323
          %s326 = sshll.u32 [#allocation14], 4
          %s327 = int_to_ptr.vmem [resolvable:$true] %s326
          %329 = dma.hbm_to_vmem [thread:$0]  %s6, 64, %s327, [#allocation15]
        $region36: #{lenet_forward.1} parent=11 // pred_fallthru
          _
        // Predicated region
        $region37: #{lenet_forward.1} parent=11 // pred_check
          %p330 = pneg %p196
        $region38: #{lenet_forward.1} parent=11 // pred_check_branch
          %332 = sbr.rel (%p330) target = $region40
        $region39: #{lenet_forward.1} parent=11 // pred_region
          %s334 = ssub.s32 4096, 4096
          %335 = vsyncadd [#allocation15], %s334
          %s336 = sshll.u32 [#allocation16], 4
          %s337 = int_to_ptr.vmem [resolvable:$true] %s336
          %342 = dma.hbm_to_vmem [thread:$0]  %s7, 4096, %s337, [#allocation15], 64, 64, 4
        $region40: #{lenet_forward.1} parent=11 // pred_fallthru
          _
        // Predicated region
        $region41: #{lenet_forward.1} parent=11 // pred_check
          %p343 = pneg %p217
        $region42: #{lenet_forward.1} parent=11 // pred_check_branch
          %345 = sbr.rel (%p343) target = $region44
        $region43: #{lenet_forward.1} parent=11 // pred_region
          %s347 = ssub.s32 16, 16
          %348 = vsyncadd [#allocation18], %s347
          %s350 = sshll.u32 [#allocation17], 4
          %s351 = int_to_ptr.vmem [resolvable:$true] %s350
          %353 = dma.hbm_to_vmem [thread:$0]  %s8, 16, %s351, [#allocation18]
        $region44: #{lenet_forward.1} parent=11 // pred_fallthru
          _
      $region12: #{lenet_forward.1} parent=5 // pred_fallthru
        _
      %p354 = scmp.lt.s32.totalorder %s23, 2
      // Predicated region
      $region45: #{lenet_forward.1} parent=5 // pred_check
        %p355 = pneg %p354
      $region46: #{lenet_forward.1} parent=5 // pred_check_branch
        %357 = sbr.rel (%p355) target = $region48
      $region47: #{lenet_forward.1} parent=5 // pred_region
        // Predicated region
        $region49: #{lenet_forward.1} parent=47 // pred_check
          %p358 = pneg %p43
        $region50: #{lenet_forward.1} parent=47 // pred_check_branch
          %360 = sbr.rel (%p358) target = $region52
        $region51: #{lenet_forward.1} parent=47 // pred_region
          %p361 = scmp.lt.s32.totalorder %s23, 1
          %s362 = scalar_select %p361, %s23, 1
          %s363 = smul.addr %s362, 4
          %s364 = smul.addr %s363, 8
          %s365 = scalar_lea.vmem %s0, %s364
        $region52: #{lenet_forward.1} parent=47 // pred_fallthru
          _
      $region48: #{lenet_forward.1} parent=5 // pred_fallthru
        _
      %p366 = scmp.le.s32.totalorder 1, %s23
      %p367 = scmp.lt.s32.totalorder %s23, 3
      %p368 = pnand %p366, %p367
      %p369 = pneg %p368
      // Predicated region
      $region53: #{lenet_forward.1} parent=5 // pred_check
        _
      $region54: #{lenet_forward.1} parent=5 // pred_check_branch
        %371 = sbr.rel (%p368) target = $region56
      $region55: #{lenet_forward.1} parent=5 // pred_region
        %s372 = ssub.s32 %s23, 1
        // Predicated region
        $region57: #{lenet_forward.1} parent=55 // pred_check
          %p373 = pneg %p70
        $region58: #{lenet_forward.1} parent=55 // pred_check_branch
          %375 = sbr.rel (%p373) target = $region60
        $region59: #{lenet_forward.1} parent=55 // pred_region
          %376 = dma.done [#allocation6], 7680
        $region60: #{lenet_forward.1} parent=55 // pred_fallthru
          _
        // Predicated region
        $region61: #{lenet_forward.1} parent=55 // pred_check
          %p377 = pneg %p91
        $region62: #{lenet_forward.1} parent=55 // pred_check_branch
          %379 = sbr.rel (%p377) target = $region64
        $region63: #{lenet_forward.1} parent=55 // pred_region
          %380 = dma.done [#allocation9], 48
        $region64: #{lenet_forward.1} parent=55 // pred_fallthru
          _
        // Predicated region
        $region65: #{lenet_forward.1} parent=55 // pred_check
          %p381 = pneg %p112
        $region66: #{lenet_forward.1} parent=55 // pred_check_branch
          %383 = sbr.rel (%p381) target = $region68
        $region67: #{lenet_forward.1} parent=55 // pred_region
          %384 = dma.done [#allocation9], 61440
        $region68: #{lenet_forward.1} parent=55 // pred_fallthru
          _
        // Predicated region
        $region69: #{lenet_forward.1} parent=55 // pred_check
          %p385 = pneg %p133
        $region70: #{lenet_forward.1} parent=55 // pred_check_branch
          %387 = sbr.rel (%p385) target = $region72
        $region71: #{lenet_forward.1} parent=55 // pred_region
          %388 = dma.done [#allocation12], 32
        $region72: #{lenet_forward.1} parent=55 // pred_fallthru
          _
        // Predicated region
        $region73: #{lenet_forward.1} parent=55 // pred_check
          %p389 = pneg %p154
        $region74: #{lenet_forward.1} parent=55 // pred_check_branch
          %391 = sbr.rel (%p389) target = $region76
        $region75: #{lenet_forward.1} parent=55 // pred_region
          %392 = dma.done [#allocation12], 32768
        $region76: #{lenet_forward.1} parent=55 // pred_fallthru
          _
        // Predicated region
        $region77: #{lenet_forward.1} parent=55 // pred_check
          %p393 = pneg %p175
        $region78: #{lenet_forward.1} parent=55 // pred_check_branch
          %395 = sbr.rel (%p393) target = $region80
        $region79: #{lenet_forward.1} parent=55 // pred_region
          %396 = dma.done [#allocation15], 64
        $region80: #{lenet_forward.1} parent=55 // pred_fallthru
          _
        // Predicated region
        $region81: #{lenet_forward.1} parent=55 // pred_check
          %p397 = pneg %p196
        $region82: #{lenet_forward.1} parent=55 // pred_check_branch
          %399 = sbr.rel (%p397) target = $region84
        $region83: #{lenet_forward.1} parent=55 // pred_region
          %400 = dma.done [#allocation15], 4096
        $region84: #{lenet_forward.1} parent=55 // pred_fallthru
          _
        // Predicated region
        $region85: #{lenet_forward.1} parent=55 // pred_check
          %p401 = pneg %p217
        $region86: #{lenet_forward.1} parent=55 // pred_check_branch
          %403 = sbr.rel (%p401) target = $region88
        $region87: #{lenet_forward.1} parent=55 // pred_region
          %404 = dma.done [#allocation18], 16
        $region88: #{lenet_forward.1} parent=55 // pred_fallthru
          _
        %p405 = scmp.lt.s32.totalorder %s28, 1
        %s406 = scalar_select %p405, %s28, 1
        %s407 = smul.addr %s406, 4
        %s408 = smul.addr %s407, 8
        %s409 = scalar_lea.vmem %s0, %s408
        %p410 = pneg %p49
        %p411 = pneg %p46
        %p412 = pneg %p70
        %p413 = pneg %p67
        %p414 = pneg %p91
        %p415 = pneg %p88
        %p416 = pneg %p112
        %p417 = pneg %p109
        %p418 = pneg %p133
        %p419 = pneg %p130
        %p420 = pneg %p154
        %p421 = pneg %p151
        %p422 = pneg %p175
        %p423 = pneg %p172
        %p424 = pneg %p196
        %p425 = pneg %p193
        %p426 = pneg %p217
        %p427 = pneg %p214
        %p428 = pneg %p243
        %p429 = pneg %p240
        %s430 = sand.u32 %s230, 1
        %s431 = scalar_lea.sflag [#allocation7], %s430
        %s432 = sand.u32 %s230, 1
        %s433 = scalar_lea.vmem [#allocation19], %s432
        %p434 = scmp.lt.s32.totalorder %s28, 1
        %s435 = scalar_select %p434, %s28, 1
        %s436 = smul.addr %s435, 4
        %s437 = smul.addr %s436, 8
        %s438 = scalar_lea.vmem %s0, %s437
        %v440 = vld [vmem:[%s438] sm:$0xff]
        %v441 = vld [vmem:[%s438 + $0x8] sm:$0xff]
        %v442 = vld [vmem:[%s438 + $0x10] sm:$0xff]
        %v443 = vld [vmem:[%s438 + $0x18] sm:$0xf]
        %v444 = vpack.c.bf16 %v441, %v440
        %v445 = vpack.c.bf16 %v443, %v442
        %v446 = vld [vmem:[#allocation5] sm:$0xff]
        %v447 = vld [vmem:[#allocation5 + $0x8] sm:$0xff]
        %v448 = vld [vmem:[#allocation5 + $0x10] sm:$0xff]
        %v449 = vld [vmem:[#allocation5 + $0x18] sm:$0xff]
        %v450 = vld [vmem:[#allocation5 + $0x20] sm:$0xff]
        %v451 = vld [vmem:[#allocation5 + $0x28] sm:$0xff]
        %v452 = vld [vmem:[#allocation5 + $0x30] sm:$0xff]
        %v453 = vld [vmem:[#allocation5 + $0x38] sm:$0xff]
        %v454 = vld [vmem:[#allocation5 + $0x40] sm:$0xff]
        %v455 = vld [vmem:[#allocation5 + $0x48] sm:$0x33]
        %v456 = vld [vmem:[#allocation5 + $0x50] sm:$0x33]
        %v457 = vld [vmem:[#allocation5 + $0x58] sm:$0x33]
        %v470 = vunpack.c.l.b16 %v446
        %v471 = vunpack.c.h.b16 %v446
        %v472 = vunpack.c.l.b16 %v447
        %v473 = vunpack.c.h.b16 %v447
        %v474 = vunpack.c.l.b16 %v448
        %v475 = vunpack.c.h.b16 %v448
        %v476 = vunpack.c.l.b16 %v449
        %v477 = vunpack.c.h.b16 %v449
        %v478 = vunpack.c.l.b16 %v450
        %v479 = vunpack.c.h.b16 %v450
        %v480 = vunpack.c.l.b16 %v451
        %v481 = vunpack.c.h.b16 %v451
        %v482 = vunpack.c.l.b16 %v452
        %v483 = vunpack.c.h.b16 %v452
        %v484 = vunpack.c.l.b16 %v453
        %v485 = vunpack.c.h.b16 %v453
        %v486 = vunpack.c.l.b16 %v454
        %v487 = vunpack.c.h.b16 %v454
        %v488 = vunpack.c.l.b16 %v455
        %v489 = vunpack.c.h.b16 %v455
        %v490 = vunpack.c.l.b16 %v456
        %v491 = vunpack.c.h.b16 %v456
        %v492 = vunpack.c.l.b16 %v457
        %v493 = vunpack.c.h.b16 %v457
        %v494 = vpack.c.b16 %v476, %v470
        %v495 = vpack.c.b16 %v477, %v471
        %v496 = vpack.c.b16 %v478, %v472
        %v497 = vpack.c.b16 %v479, %v473
        %v498 = vpack.c.b16 %v480, %v474
        %v499 = vpack.c.b16 %v481, %v475
        %v500 = vpack.c.b16 %v488, %v482
        %v501 = vpack.c.b16 %v489, %v483
        %v502 = vpack.c.b16 %v490, %v484
        %v503 = vpack.c.b16 %v491, %v485
        %v504 = vpack.c.b16 %v492, %v486
        %v505 = vpack.c.b16 %v493, %v487
        %vm512 = vcmask 228352
        %v514 = vsel %vm512, %v444, 0
        %v517 = vsel %vm512, %v445, 0
        %vm519 = vcmask 1045504
        %v521 = vsel %vm519, %v500, 0
        %v524 = vsel %vm519, %v501, 0
        %v527 = vsel %vm519, %v502, 0
        %v530 = vsel %vm519, %v503, 0
        %v533 = vsel %vm519, %v504, 0
        %v536 = vsel %vm519, %v505, 0
        %538 = vmatprep.subr.bf16.mxu0 %v495
        %539 = vmatpush1.bf16.msra.mxu0 %v494
        %540 = vmatprep.subr.bf16.mxu0 %v524
        %541 = vmatpush1.bf16.msra.mxu0 %v521
        %542 = vmatprep.subr.bf16.mxu0 0
        %543 = vmatpush1.bf16.msra.mxu0 0
        %544 = vmatprep.subr.bf16.mxu0 0
        %545 = vmatpush1.bf16.msra.mxu0 0
        %546 = vmatprep.subr.bf16.mxu0 0
        %547 = vmatpush1.bf16.msra.mxu0 0
        %548 = vmatprep.subr.bf16.mxu0 0
        %549 = vmatpush1.bf16.msra.mxu0 0
        %550 = vmatprep.subr.bf16.mxu0 0
        %551 = vmatpush1.bf16.msra.mxu0 0
        %552 = vmatprep.subr.bf16.mxu0 0
        %553 = vmatpush1.bf16.msra.mxu0 0
        %554 = vmatprep.subr.bf16.mxu0 0
        %555 = vmatpush1.bf16.msra.mxu0 0
        %556 = vmatprep.subr.bf16.mxu0 0
        %557 = vmatpush1.bf16.msra.mxu0 0
        %558 = vmatprep.subr.bf16.mxu0 0
        %559 = vmatpush1.bf16.msra.mxu0 0
        %560 = vmatprep.subr.bf16.mxu0 0
        %561 = vmatpush1.bf16.msra.mxu0 0
        %562 = vmatprep.subr.bf16.mxu0 0
        %563 = vmatpush1.bf16.msra.mxu0 0
        %564 = vmatprep.subr.bf16.mxu0 0
        %565 = vmatpush1.bf16.msra.mxu0 0
        %566 = vmatprep.subr.bf16.mxu0 0
        %567 = vmatpush1.bf16.msra.mxu0 0
        %568 = vmatprep.subr.bf16.mxu0 0
        %569 = vmatpush1.bf16.msra.mxu0 0
        %570 = vmatprep.mubr.bf16.mxu0 0
        %571 = vmatmul.mubr.bf16.gmra.mrb[0].mxu0 %v514
        %v572 = vpop.f32.mrb[0].mxu0
        %v573 = vadd.f32 0.0, %v572
        %v574 = vpop.f32.mrb[0].mxu0
        %v575 = vadd.f32 0.0, %v574
        %v576 = vpop.f32.mrb[0].mxu0
        %v577 = vadd.f32 0.0, %v576
        %v578 = vpop.f32.mrb[0].mxu0
        %v579 = vadd.f32 0.0, %v578
        %580 = vmatprep.mubr.bf16.mxu0 0
        %581 = vmatmul.mubr.bf16.gmra.mrb[0].mxu0 %v517
        %v582 = vpop.f32.mrb[0].mxu0
        %v583 = vadd.f32 0.0, %v582
        %v584 = vpop.f32.mrb[0].mxu0
        %v585 = vadd.f32 0.0, %v584
        %v586 = vpop.f32.mrb[0].mxu0
        %v587 = vpop.f32.mrb[0].mxu0
        %588 = vdwg.mxu0
        %589 = vmatprep.subr.bf16.mxu0 %v497
        %590 = vmatpush1.bf16.msra.mxu0 %v496
        %591 = vmatprep.subr.bf16.mxu0 %v530
        %592 = vmatpush1.bf16.msra.mxu0 %v527
        %593 = vmatprep.subr.bf16.mxu0 0
        %594 = vmatpush1.bf16.msra.mxu0 0
        %595 = vmatprep.subr.bf16.mxu0 0
        %596 = vmatpush1.bf16.msra.mxu0 0
        %597 = vmatprep.subr.bf16.mxu0 0
        %598 = vmatpush1.bf16.msra.mxu0 0
        %599 = vmatprep.subr.bf16.mxu0 0
        %600 = vmatpush1.bf16.msra.mxu0 0
        %601 = vmatprep.subr.bf16.mxu0 0
        %602 = vmatpush1.bf16.msra.mxu0 0
        %603 = vmatprep.subr.bf16.mxu0 0
        %604 = vmatpush1.bf16.msra.mxu0 0
        %605 = vmatprep.subr.bf16.mxu0 0
        %606 = vmatpush1.bf16.msra.mxu0 0
        %607 = vmatprep.subr.bf16.mxu0 0
        %608 = vmatpush1.bf16.msra.mxu0 0
        %609 = vmatprep.subr.bf16.mxu0 0
        %610 = vmatpush1.bf16.msra.mxu0 0
        %611 = vmatprep.subr.bf16.mxu0 0
        %612 = vmatpush1.bf16.msra.mxu0 0
        %613 = vmatprep.subr.bf16.mxu0 0
        %614 = vmatpush1.bf16.msra.mxu0 0
        %615 = vmatprep.subr.bf16.mxu0 0
        %616 = vmatpush1.bf16.msra.mxu0 0
        %617 = vmatprep.subr.bf16.mxu0 0
        %618 = vmatpush1.bf16.msra.mxu0 0
        %619 = vmatprep.subr.bf16.mxu0 0
        %620 = vmatpush1.bf16.msra.mxu0 0
        %621 = vmatprep.mubr.bf16.mxu0 0
        %622 = vmatmul.mubr.bf16.gmra.mrb[0].mxu0 %v514
        %v623 = vpop.f32.mrb[0].mxu0
        %v624 = vadd.f32 0.0, %v623
        %v625 = vpop.f32.mrb[0].mxu0
        %v626 = vadd.f32 0.0, %v625
        %v627 = vpop.f32.mrb[0].mxu0
        %v628 = vadd.f32 0.0, %v627
        %v629 = vpop.f32.mrb[0].mxu0
        %v630 = vadd.f32 0.0, %v629
        %631 = vmatprep.mubr.bf16.mxu0 0
        %632 = vmatmul.mubr.bf16.gmra.mrb[0].mxu0 %v517
        %v633 = vpop.f32.mrb[0].mxu0
        %v634 = vadd.f32 0.0, %v633
        %v635 = vpop.f32.mrb[0].mxu0
        %v636 = vadd.f32 0.0, %v635
        %v637 = vpop.f32.mrb[0].mxu0
        %v638 = vpop.f32.mrb[0].mxu0
        %639 = vdwg.mxu0
        %640 = vmatprep.subr.bf16.mxu0 %v499
        %641 = vmatpush1.bf16.msra.mxu0 %v498
        %642 = vmatprep.subr.bf16.mxu0 %v536
        %643 = vmatpush1.bf16.msra.mxu0 %v533
        %644 = vmatprep.subr.bf16.mxu0 0
        %645 = vmatpush1.bf16.msra.mxu0 0
        %646 = vmatprep.subr.bf16.mxu0 0
        %647 = vmatpush1.bf16.msra.mxu0 0
        %648 = vmatprep.subr.bf16.mxu0 0
        %649 = vmatpush1.bf16.msra.mxu0 0
        %650 = vmatprep.subr.bf16.mxu0 0
        %651 = vmatpush1.bf16.msra.mxu0 0
        %652 = vmatprep.subr.bf16.mxu0 0
        %653 = vmatpush1.bf16.msra.mxu0 0
        %654 = vmatprep.subr.bf16.mxu0 0
        %655 = vmatpush1.bf16.msra.mxu0 0
        %656 = vmatprep.subr.bf16.mxu0 0
        %657 = vmatpush1.bf16.msra.mxu0 0
        %658 = vmatprep.subr.bf16.mxu0 0
        %659 = vmatpush1.bf16.msra.mxu0 0
        %660 = vmatprep.subr.bf16.mxu0 0
        %661 = vmatpush1.bf16.msra.mxu0 0
        %662 = vmatprep.subr.bf16.mxu0 0
        %663 = vmatpush1.bf16.msra.mxu0 0
        %664 = vmatprep.subr.bf16.mxu0 0
        %665 = vmatpush1.bf16.msra.mxu0 0
        %666 = vmatprep.subr.bf16.mxu0 0
        %667 = vmatpush1.bf16.msra.mxu0 0
        %668 = vmatprep.subr.bf16.mxu0 0
        %669 = vmatpush1.bf16.msra.mxu0 0
        %670 = vmatprep.subr.bf16.mxu0 0
        %671 = vmatpush1.bf16.msra.mxu0 0
        %672 = vmatprep.mubr.bf16.mxu0 0
        %673 = vmatmul.mubr.bf16.gmra.mrb[0].mxu0 %v514
        %v674 = vpop.f32.mrb[0].mxu0
        %v675 = vadd.f32 0.0, %v674
        %v676 = vpop.f32.mrb[0].mxu0
        %v677 = vadd.f32 0.0, %v676
        %v678 = vpop.f32.mrb[0].mxu0
        %v679 = vadd.f32 0.0, %v678
        %v680 = vpop.f32.mrb[0].mxu0
        %v681 = vadd.f32 0.0, %v680
        %682 = vmatprep.mubr.bf16.mxu0 0
        %683 = vmatmul.mubr.bf16.gmra.mrb[0].mxu0 %v517
        %v684 = vpop.f32.mrb[0].mxu0
        %v685 = vadd.f32 0.0, %v684
        %v686 = vpop.f32.mrb[0].mxu0
        %v687 = vadd.f32 0.0, %v686
        %v688 = vpop.f32.mrb[0].mxu0
        %v689 = vpop.f32.mrb[0].mxu0
        %690 = vdwg.mxu0
        %691 = vst [vmem:[#allocation2] sm:$0xff] %v573
        %692 = vst [vmem:[#allocation2 + $0x8] sm:$0xff] %v575
        %693 = vst [vmem:[#allocation2 + $0x10] sm:$0xff] %v624
        %694 = vst [vmem:[#allocation2 + $0x18] sm:$0xff] %v626
        %695 = vst [vmem:[#allocation2 + $0x20] sm:$0xff] %v675
        %696 = vst [vmem:[#allocation2 + $0x28] sm:$0xff] %v677
        %697 = vst [vmem:[#allocation2 + $0x30] sm:$0xff] %v577
        %698 = vst [vmem:[#allocation2 + $0x38] sm:$0xff] %v579
        %699 = vst [vmem:[#allocation2 + $0x40] sm:$0xff] %v628
        %700 = vst [vmem:[#allocation2 + $0x48] sm:$0xff] %v630
        %701 = vst [vmem:[#allocation2 + $0x50] sm:$0xff] %v679
        %702 = vst [vmem:[#allocation2 + $0x58] sm:$0xff] %v681
        %703 = vst [vmem:[#allocation2 + $0x60] sm:$0xff] %v583
        %704 = vst [vmem:[#allocation2 + $0x68] sm:$0xff] %v585
        %705 = vst [vmem:[#allocation2 + $0x70] sm:$0xff] %v634
        %706 = vst [vmem:[#allocation2 + $0x78] sm:$0xff] %v636
        %707 = vst [vmem:[#allocation2 + $0x80] sm:$0xff] %v685
        %708 = vst [vmem:[#allocation2 + $0x88] sm:$0xff] %v687
        %s709 = scalar_lea.vmem [#allocation5], 96
        %v710 = vld [vmem:[%s709] sm:$0xff]
        %v711 = vld [vmem:[%s709 + $0x8] sm:$0xff]
        %v712 = vld [vmem:[%s709 + $0x10] sm:$0xff]
        %v713 = vld [vmem:[%s709 + $0x18] sm:$0xff]
        %v714 = vld [vmem:[%s709 + $0x20] sm:$0xff]
        %v715 = vld [vmem:[%s709 + $0x28] sm:$0xff]
        %v716 = vld [vmem:[%s709 + $0x30] sm:$0xff]
        %v717 = vld [vmem:[%s709 + $0x38] sm:$0xff]
        %v718 = vld [vmem:[%s709 + $0x40] sm:$0xff]
        %v719 = vld [vmem:[%s709 + $0x48] sm:$0x33]
        %v720 = vld [vmem:[%s709 + $0x50] sm:$0x33]
        %v721 = vld [vmem:[%s709 + $0x58] sm:$0x33]
        %vm722 = vsmask.f32 7424
        %v723 = vshrl.u32 %v444, 16
        %v725 = vshll.u32 %v444, 16
        %v727 = vrot.slane %v725, 1
        %v728 = vor.u32 %v723, %v727
        %v729 = vshll.u32 %v445, 16
        %v731 = vrot.slane %v729, 1
        %v732 = vsel %vm722, %v728, %v731
        %v733 = vshrl.u32 %v445, 16
        %v735 = vor.u32 %v733, %v731
        %v748 = vunpack.c.l.b16 %v710
        %v749 = vunpack.c.h.b16 %v710
        %v750 = vunpack.c.l.b16 %v711
        %v751 = vunpack.c.h.b16 %v711
        %v752 = vunpack.c.l.b16 %v712
        %v753 = vunpack.c.h.b16 %v712
        %v754 = vunpack.c.l.b16 %v713
        %v755 = vunpack.c.h.b16 %v713
        %v756 = vunpack.c.l.b16 %v714
        %v757 = vunpack.c.h.b16 %v714
        %v758 = vunpack.c.l.b16 %v715
        %v759 = vunpack.c.h.b16 %v715
        %v760 = vunpack.c.l.b16 %v716
        %v761 = vunpack.c.h.b16 %v716
        %v762 = vunpack.c.l.b16 %v717
        %v763 = vunpack.c.h.b16 %v717
        %v764 = vunpack.c.l.b16 %v718
        %v765 = vunpack.c.h.b16 %v718
        %v766 = vunpack.c.l.b16 %v719
        %v767 = vunpack.c.h.b16 %v719
        %v768 = vunpack.c.l.b16 %v720
        %v769 = vunpack.c.h.b16 %v720
        %v770 = vunpack.c.l.b16 %v721
        %v771 = vunpack.c.h.b16 %v721
        %v772 = vpack.c.b16 %v754, %v748
        %v773 = vpack.c.b16 %v755, %v749
        %v774 = vpack.c.b16 %v756, %v750
        %v775 = vpack.c.b16 %v757, %v751
        %v776 = vpack.c.b16 %v758, %v752
        %v777 = vpack.c.b16 %v759, %v753
        %v778 = vpack.c.b16 %v766, %v760
        %v779 = vpack.c.b16 %v767, %v761
        %v780 = vpack.c.b16 %v768, %v762
        %v781 = vpack.c.b16 %v769, %v763
        %v782 = vpack.c.b16 %v770, %v764
        %v783 = vpack.c.b16 %v771, %v765
        %v791 = vsel %vm512, %v732, 0
        %v794 = vsel %vm512, %v735, 0
        %v797 = vsel %vm519, %v778, 0
        %v800 = vsel %vm519, %v779, 0
        %v803 = vsel %vm519, %v780, 0
        %v806 = vsel %vm519, %v781, 0
        %v809 = vsel %vm519, %v782, 0
        %v812 = vsel %vm519, %v783, 0
        %814 = vmatprep.subr.bf16.mxu0 %v773
        %815 = vmatpush1.bf16.msra.mxu0 %v772
        %816 = vmatprep.subr.bf16.mxu0 %v800
        %817 = vmatpush1.bf16.msra.mxu0 %v797
        %818 = vmatprep.subr.bf16.mxu0 0
        %819 = vmatpush1.bf16.msra.mxu0 0
        %820 = vmatprep.subr.bf16.mxu0 0
        %821 = vmatpush1.bf16.msra.mxu0 0
        %822 = vmatprep.subr.bf16.mxu0 0
        %823 = vmatpush1.bf16.msra.mxu0 0
        %824 = vmatprep.subr.bf16.mxu0 0
        %825 = vmatpush1.bf16.msra.mxu0 0
        %826 = vmatprep.subr.bf16.mxu0 0
        %827 = vmatpush1.bf16.msra.mxu0 0
        %828 = vmatprep.subr.bf16.mxu0 0
        %829 = vmatpush1.bf16.msra.mxu0 0
        %830 = vmatprep.subr.bf16.mxu0 0
        %831 = vmatpush1.bf16.msra.mxu0 0
        %832 = vmatprep.subr.bf16.mxu0 0
        %833 = vmatpush1.bf16.msra.mxu0 0
        %834 = vmatprep.subr.bf16.mxu0 0
        %835 = vmatpush1.bf16.msra.mxu0 0
        %836 = vmatprep.subr.bf16.mxu0 0
        %837 = vmatpush1.bf16.msra.mxu0 0
        %838 = vmatprep.subr.bf16.mxu0 0
        %839 = vmatpush1.bf16.msra.mxu0 0
        %840 = vmatprep.subr.bf16.mxu0 0
        %841 = vmatpush1.bf16.msra.mxu0 0
        %842 = vmatprep.subr.bf16.mxu0 0
        %843 = vmatpush1.bf16.msra.mxu0 0
        %844 = vmatprep.subr.bf16.mxu0 0
        %845 = vmatpush1.bf16.msra.mxu0 0
        %846 = vmatprep.mubr.bf16.mxu0 0
        %847 = vmatmul.mubr.bf16.gmra.mrb[0].mxu0 %v791
        %v848 = vpop.f32.mrb[0].mxu0
        %v849 = vadd.f32 0.0, %v848
        %v850 = vpop.f32.mrb[0].mxu0
        %v851 = vadd.f32 0.0, %v850
        %v852 = vpop.f32.mrb[0].mxu0
        %v853 = vadd.f32 0.0, %v852
        %v854 = vpop.f32.mrb[0].mxu0
        %v855 = vadd.f32 0.0, %v854
        %856 = vmatprep.mubr.bf16.mxu0 0
        %857 = vmatmul.mubr.bf16.gmra.mrb[0].mxu0 %v794
        %v858 = vpop.f32.mrb[0].mxu0
        %v859 = vadd.f32 0.0, %v858
        %v860 = vpop.f32.mrb[0].mxu0
        %v861 = vadd.f32 0.0, %v860
        %v862 = vpop.f32.mrb[0].mxu0
        %v863 = vpop.f32.mrb[0].mxu0
        %864 = vdwg.mxu0
        %865 = vmatprep.subr.bf16.mxu0 %v775
        %866 = vmatpush1.bf16.msra.mxu0 %v774
        %867 = vmatprep.subr.bf16.mxu0 %v806
        %868 = vmatpush1.bf16.msra.mxu0 %v803
        %869 = vmatprep.subr.bf16.mxu0 0
        %870 = vmatpush1.bf16.msra.mxu0 0
        %871 = vmatprep.subr.bf16.mxu0 0
        %872 = vmatpush1.bf16.msra.mxu0 0
        %873 = vmatprep.subr.bf16.mxu0 0
        %874 = vmatpush1.bf16.msra.mxu0 0
        %875 = vmatprep.subr.bf16.mxu0 0
        %876 = vmatpush1.bf16.msra.mxu0 0
        %877 = vmatprep.subr.bf16.mxu0 0
        %878 = vmatpush1.bf16.msra.mxu0 0
        %879 = vmatprep.subr.bf16.mxu0 0
        %880 = vmatpush1.bf16.msra.mxu0 0
        %881 = vmatprep.subr.bf16.mxu0 0
        %882 = vmatpush1.bf16.msra.mxu0 0
        %883 = vmatprep.subr.bf16.mxu0 0
        %884 = vmatpush1.bf16.msra.mxu0 0
        %885 = vmatprep.subr.bf16.mxu0 0
        %886 = vmatpush1.bf16.msra.mxu0 0
        %887 = vmatprep.subr.bf16.mxu0 0
        %888 = vmatpush1.bf16.msra.mxu0 0
        %889 = vmatprep.subr.bf16.mxu0 0
        %890 = vmatpush1.bf16.msra.mxu0 0
        %891 = vmatprep.subr.bf16.mxu0 0
        %892 = vmatpush1.bf16.msra.mxu0 0
        %893 = vmatprep.subr.bf16.mxu0 0
        %894 = vmatpush1.bf16.msra.mxu0 0
        %895 = vmatprep.subr.bf16.mxu0 0
        %896 = vmatpush1.bf16.msra.mxu0 0
        %897 = vmatprep.mubr.bf16.mxu0 0
        %898 = vmatmul.mubr.bf16.gmra.mrb[0].mxu0 %v791
        %v899 = vpop.f32.mrb[0].mxu0
        %v900 = vadd.f32 0.0, %v899
        %v901 = vpop.f32.mrb[0].mxu0
        %v902 = vadd.f32 0.0, %v901
        %v903 = vpop.f32.mrb[0].mxu0
        %v904 = vadd.f32 0.0, %v903
        %v905 = vpop.f32.mrb[0].mxu0
        %v906 = vadd.f32 0.0, %v905
        %907 = vmatprep.mubr.bf16.mxu0 0
        %908 = vmatmul.mubr.bf16.gmra.mrb[0].mxu0 %v794
        %v909 = vpop.f32.mrb[0].mxu0
        %v910 = vadd.f32 0.0, %v909
        %v911 = vpop.f32.mrb[0].mxu0
        %v912 = vadd.f32 0.0, %v911
        %v913 = vpop.f32.mrb[0].mxu0
        %v914 = vpop.f32.mrb[0].mxu0
        %915 = vdwg.mxu0
        %916 = vmatprep.subr.bf16.mxu0 %v777
        %917 = vmatpush1.bf16.msra.mxu0 %v776
        %918 = vmatprep.subr.bf16.mxu0 %v812
        %919 = vmatpush1.bf16.msra.mxu0 %v809
        %920 = vmatprep.subr.bf16.mxu0 0
        %921 = vmatpush1.bf16.msra.mxu0 0
        %922 = vmatprep.subr.bf16.mxu0 0
        %923 = vmatpush1.bf16.msra.mxu0 0
        %924 = vmatprep.subr.bf16.mxu0 0
        %925 = vmatpush1.bf16.msra.mxu0 0
        %926 = vmatprep.subr.bf16.mxu0 0
        %927 = vmatpush1.bf16.msra.mxu0 0
        %928 = vmatprep.subr.bf16.mxu0 0
        %929 = vmatpush1.bf16.msra.mxu0 0
        %930 = vmatprep.subr.bf16.mxu0 0
        %931 = vmatpush1.bf16.msra.mxu0 0
        %932 = vmatprep.subr.bf16.mxu0 0
        %933 = vmatpush1.bf16.msra.mxu0 0
        %934 = vmatprep.subr.bf16.mxu0 0
        %935 = vmatpush1.bf16.msra.mxu0 0
        %936 = vmatprep.subr.bf16.mxu0 0
        %937 = vmatpush1.bf16.msra.mxu0 0
        %938 = vmatprep.subr.bf16.mxu0 0
        %939 = vmatpush1.bf16.msra.mxu0 0
        %940 = vmatprep.subr.bf16.mxu0 0
        %941 = vmatpush1.bf16.msra.mxu0 0
        %942 = vmatprep.subr.bf16.mxu0 0
        %943 = vmatpush1.bf16.msra.mxu0 0
        %944 = vmatprep.subr.bf16.mxu0 0
        %945 = vmatpush1.bf16.msra.mxu0 0
        %946 = vmatprep.subr.bf16.mxu0 0
        %947 = vmatpush1.bf16.msra.mxu0 0
        %948 = vmatprep.mubr.bf16.mxu0 0
        %949 = vmatmul.mubr.bf16.gmra.mrb[0].mxu0 %v791
        %v950 = vpop.f32.mrb[0].mxu0
        %v951 = vadd.f32 0.0, %v950
        %v952 = vpop.f32.mrb[0].mxu0
        %v953 = vadd.f32 0.0, %v952
        %v954 = vpop.f32.mrb[0].mxu0
        %v955 = vadd.f32 0.0, %v954
        %v956 = vpop.f32.mrb[0].mxu0
        %v957 = vadd.f32 0.0, %v956
        %958 = vmatprep.mubr.bf16.mxu0 0
        %959 = vmatmul.mubr.bf16.gmra.mrb[0].mxu0 %v794
        %v960 = vpop.f32.mrb[0].mxu0
        %v961 = vadd.f32 0.0, %v960
        %v962 = vpop.f32.mrb[0].mxu0
        %v963 = vadd.f32 0.0, %v962
        %v964 = vpop.f32.mrb[0].mxu0
        %v965 = vpop.f32.mrb[0].mxu0
        %966 = vdwg.mxu0
        %v967 = vld [vmem:[#allocation2] sm:$0xff]
        %v968 = vld [vmem:[#allocation2 + $0x8] sm:$0xff]
        %v969 = vld [vmem:[#allocation2 + $0x10] sm:$0xff]
        %v970 = vld [vmem:[#allocation2 + $0x18] sm:$0xff]
        %v971 = vld [vmem:[#allocation2 + $0x20] sm:$0xff]
        %v972 = vld [vmem:[#allocation2 + $0x28] sm:$0xff]
        %v973 = vld [vmem:[#allocation2 + $0x30] sm:$0xff]
        %v974 = vld [vmem:[#allocation2 + $0x38] sm:$0xff]
        %v975 = vld [vmem:[#allocation2 + $0x40] sm:$0xff]
        %v976 = vld [vmem:[#allocation2 + $0x48] sm:$0xff]
        %v977 = vld [vmem:[#allocation2 + $0x50] sm:$0xff]
        %v978 = vld [vmem:[#allocation2 + $0x58] sm:$0xff]
        %v979 = vld [vmem:[#allocation2 + $0x60] sm:$0xff]
        %v980 = vld [vmem:[#allocation2 + $0x68] sm:$0xff]
        %v981 = vld [vmem:[#allocation2 + $0x70] sm:$0xff]
        %v982 = vld [vmem:[#allocation2 + $0x78] sm:$0xff]
        %v983 = vld [vmem:[#allocation2 + $0x80] sm:$0xff]
        %v984 = vld [vmem:[#allocation2 + $0x88] sm:$0xff]
        %v985 = vadd.f32 %v967, %v849
        %v986 = vadd.f32 %v968, %v851
        %v987 = vadd.f32 %v969, %v900
        %v988 = vadd.f32 %v970, %v902
        %v989 = vadd.f32 %v971, %v951
        %v990 = vadd.f32 %v972, %v953
        %v991 = vadd.f32 %v973, %v853
        %v992 = vadd.f32 %v974, %v855
        %v993 = vadd.f32 %v975, %v904
        %v994 = vadd.f32 %v976, %v906
        %v995 = vadd.f32 %v977, %v955
        %v996 = vadd.f32 %v978, %v957
        %v997 = vadd.f32 %v979, %v859
        %v998 = vadd.f32 %v980, %v861
        %v999 = vadd.f32 %v981, %v910
        %v1000 = vadd.f32 %v982, %v912
        %v1001 = vadd.f32 %v983, %v961
        %v1002 = vadd.f32 %v984, %v963
        %1003 = vst [vmem:[#allocation2] sm:$0xff] %v985
        %1004 = vst [vmem:[#allocation2 + $0x8] sm:$0xff] %v986
        %1005 = vst [vmem:[#allocation2 + $0x10] sm:$0xff] %v987
        %1006 = vst [vmem:[#allocation2 + $0x18] sm:$0xff] %v988
        %1007 = vst [vmem:[#allocation2 + $0x20] sm:$0xff] %v989
        %1008 = vst [vmem:[#allocation2 + $0x28] sm:$0xff] %v990
        %1009 = vst [vmem:[#allocation2 + $0x30] sm:$0xff] %v991
        %1010 = vst [vmem:[#allocation2 + $0x38] sm:$0xff] %v992
        %1011 = vst [vmem:[#allocation2 + $0x40] sm:$0xff] %v993
        %1012 = vst [vmem:[#allocation2 + $0x48] sm:$0xff] %v994
        %1013 = vst [vmem:[#allocation2 + $0x50] sm:$0xff] %v995
        %1014 = vst [vmem:[#allocation2 + $0x58] sm:$0xff] %v996
        %1015 = vst [vmem:[#allocation2 + $0x60] sm:$0xff] %v997
        %1016 = vst [vmem:[#allocation2 + $0x68] sm:$0xff] %v998
        %1017 = vst [vmem:[#allocation2 + $0x70] sm:$0xff] %v999
        %1018 = vst [vmem:[#allocation2 + $0x78] sm:$0xff] %v1000
        %1019 = vst [vmem:[#allocation2 + $0x80] sm:$0xff] %v1001
        %1020 = vst [vmem:[#allocation2 + $0x88] sm:$0xff] %v1002
        %s1021 = scalar_lea.vmem [#allocation5], 192
        %v1022 = vld [vmem:[%s1021] sm:$0xff]
        %v1023 = vld [vmem:[%s1021 + $0x8] sm:$0xff]
        %v1024 = vld [vmem:[%s1021 + $0x10] sm:$0xff]
        %v1025 = vld [vmem:[%s1021 + $0x18] sm:$0xff]
        %v1026 = vld [vmem:[%s1021 + $0x20] sm:$0xff]
        %v1027 = vld [vmem:[%s1021 + $0x28] sm:$0xff]
        %v1028 = vld [vmem:[%s1021 + $0x30] sm:$0xff]
        %v1029 = vld [vmem:[%s1021 + $0x38] sm:$0xff]
        %v1030 = vld [vmem:[%s1021 + $0x40] sm:$0xff]
        %v1031 = vld [vmem:[%s1021 + $0x48] sm:$0x33]
        %v1032 = vld [vmem:[%s1021 + $0x50] sm:$0x33]
        %v1033 = vld [vmem:[%s1021 + $0x58] sm:$0x33]
        %vm1036 = vcmask 1046528
        %v1037 = vrot.slane %v444, 1
        %v1038 = vrot.slane %v445, 1
        %v1039 = vsel %vm1036, %v1037, %v1038
        %v1052 = vunpack.c.l.b16 %v1022
        %v1053 = vunpack.c.h.b16 %v1022
        %v1054 = vunpack.c.l.b16 %v1023
        %v1055 = vunpack.c.h.b16 %v1023
        %v1056 = vunpack.c.l.b16 %v1024
        %v1057 = vunpack.c.h.b16 %v1024
        %v1058 = vunpack.c.l.b16 %v1025
        %v1059 = vunpack.c.h.b16 %v1025
        %v1060 = vunpack.c.l.b16 %v1026
        %v1061 = vunpack.c.h.b16 %v1026
        %v1062 = vunpack.c.l.b16 %v1027
        %v1063 = vunpack.c.h.b16 %v1027
        %v1064 = vunpack.c.l.b16 %v1028
        %v1065 = vunpack.c.h.b16 %v1028
        %v1066 = vunpack.c.l.b16 %v1029
        %v1067 = vunpack.c.h.b16 %v1029
        %v1068 = vunpack.c.l.b16 %v1030
        %v1069 = vunpack.c.h.b16 %v1030
        %v1070 = vunpack.c.l.b16 %v1031
        %v1071 = vunpack.c.h.b16 %v1031
        %v1072 = vunpack.c.l.b16 %v1032
        %v1073 = vunpack.c.h.b16 %v1032
        %v1074 = vunpack.c.l.b16 %v1033
        %v1075 = vunpack.c.h.b16 %v1033
        %v1076 = vpack.c.b16 %v1058, %v1052
        %v1077 = vpack.c.b16 %v1059, %v1053
        %v1078 = vpack.c.b16 %v1060, %v1054
        %v1079 = vpack.c.b16 %v1061, %v1055
        %v1080 = vpack.c.b16 %v1062, %v1056
        %v1081 = vpack.c.b16 %v1063, %v1057
        %v1082 = vpack.c.b16 %v1070, %v1064
        %v1083 = vpack.c.b16 %v1071, %v1065
        %v1084 = vpack.c.b16 %v1072, %v1066
        %v1085 = vpack.c.b16 %v1073, %v1067
        %v1086 = vpack.c.b16 %v1074, %v1068
        %v1087 = vpack.c.b16 %v1075, %v1069
        %v1095 = vsel %vm512, %v1039, 0
        %v1098 = vsel %vm512, %v1038, 0
        %v1101 = vsel %vm519, %v1082, 0
        %v1104 = vsel %vm519, %v1083, 0
        %v1107 = vsel %vm519, %v1084, 0
        %v1110 = vsel %vm519, %v1085, 0
        %v1113 = vsel %vm519, %v1086, 0
        %v1116 = vsel %vm519, %v1087, 0
        %1118 = vmatprep.subr.bf16.mxu0 %v1077
        %1119 = vmatpush1.bf16.msra.mxu0 %v1076
        %1120 = vmatprep.subr.bf16.mxu0 %v1104
        %1121 = vmatpush1.bf16.msra.mxu0 %v1101
        %1122 = vmatprep.subr.bf16.mxu0 0
        %1123 = vmatpush1.bf16.msra.mxu0 0
        %1124 = vmatprep.subr.bf16.mxu0 0
        %1125 = vmatpush1.bf16.msra.mxu0 0
        %1126 = vmatprep.subr.bf16.mxu0 0
        %1127 = vmatpush1.bf16.msra.mxu0 0
        %1128 = vmatprep.subr.bf16.mxu0 0
        %1129 = vmatpush1.bf16.msra.mxu0 0
        %1130 = vmatprep.subr.bf16.mxu0 0
        %1131 = vmatpush1.bf16.msra.mxu0 0
        %1132 = vmatprep.subr.bf16.mxu0 0
        %1133 = vmatpush1.bf16.msra.mxu0 0
        %1134 = vmatprep.subr.bf16.mxu0 0
        %1135 = vmatpush1.bf16.msra.mxu0 0
        %1136 = vmatprep.subr.bf16.mxu0 0
        %1137 = vmatpush1.bf16.msra.mxu0 0
        %1138 = vmatprep.subr.bf16.mxu0 0
        %1139 = vmatpush1.bf16.msra.mxu0 0
        %1140 = vmatprep.subr.bf16.mxu0 0
        %1141 = vmatpush1.bf16.msra.mxu0 0
        %1142 = vmatprep.subr.bf16.mxu0 0
        %1143 = vmatpush1.bf16.msra.mxu0 0
        %1144 = vmatprep.subr.bf16.mxu0 0
        %1145 = vmatpush1.bf16.msra.mxu0 0
        %1146 = vmatprep.subr.bf16.mxu0 0
        %1147 = vmatpush1.bf16.msra.mxu0 0
        %1148 = vmatprep.subr.bf16.mxu0 0
        %1149 = vmatpush1.bf16.msra.mxu0 0
        %1150 = vmatprep.mubr.bf16.mxu0 0
        %1151 = vmatmul.mubr.bf16.gmra.mrb[0].mxu0 %v1095
        %v1152 = vpop.f32.mrb[0].mxu0
        %v1153 = vadd.f32 0.0, %v1152
        %v1154 = vpop.f32.mrb[0].mxu0
        %v1155 = vadd.f32 0.0, %v1154
        %v1156 = vpop.f32.mrb[0].mxu0
        %v1157 = vadd.f32 0.0, %v1156
        %v1158 = vpop.f32.mrb[0].mxu0
        %v1159 = vadd.f32 0.0, %v1158
        %1160 = vmatprep.mubr.bf16.mxu0 0
        %1161 = vmatmul.mubr.bf16.gmra.mrb[0].mxu0 %v1098
        %v1162 = vpop.f32.mrb[0].mxu0
        %v1163 = vadd.f32 0.0, %v1162
        %v1164 = vpop.f32.mrb[0].mxu0
        %v1165 = vadd.f32 0.0, %v1164
        %v1166 = vpop.f32.mrb[0].mxu0
        %v1167 = vpop.f32.mrb[0].mxu0
        %1168 = vdwg.mxu0
        %1169 = vmatprep.subr.bf16.mxu0 %v1079
        %1170 = vmatpush1.bf16.msra.mxu0 %v1078
        %1171 = vmatprep.subr.bf16.mxu0 %v1110
        %1172 = vmatpush1.bf16.msra.mxu0 %v1107
        %1173 = vmatprep.subr.bf16.mxu0 0
        %1174 = vmatpush1.bf16.msra.mxu0 0
        %1175 = vmatprep.subr.bf16.mxu0 0
        %1176 = vmatpush1.bf16.msra.mxu0 0
        %1177 = vmatprep.subr.bf16.mxu0 0
        %1178 = vmatpush1.bf16.msra.mxu0 0
        %1179 = vmatprep.subr.bf16.mxu0 0
        %1180 = vmatpush1.bf16.msra.mxu0 0
        %1181 = vmatprep.subr.bf16.mxu0 0
        %1182 = vmatpush1.bf16.msra.mxu0 0
        %1183 = vmatprep.subr.bf16.mxu0 0
        %1184 = vmatpush1.bf16.msra.mxu0 0
        %1185 = vmatprep.subr.bf16.mxu0 0
        %1186 = vmatpush1.bf16.msra.mxu0 0
        %1187 = vmatprep.subr.bf16.mxu0 0
        %1188 = vmatpush1.bf16.msra.mxu0 0
        %1189 = vmatprep.subr.bf16.mxu0 0
        %1190 = vmatpush1.bf16.msra.mxu0 0
        %1191 = vmatprep.subr.bf16.mxu0 0
        %1192 = vmatpush1.bf16.msra.mxu0 0
        %1193 = vmatprep.subr.bf16.mxu0 0
        %1194 = vmatpush1.bf16.msra.mxu0 0
        %1195 = vmatprep.subr.bf16.mxu0 0
        %1196 = vmatpush1.bf16.msra.mxu0 0
        %1197 = vmatprep.subr.bf16.mxu0 0
        %1198 = vmatpush1.bf16.msra.mxu0 0
        %1199 = vmatprep.subr.bf16.mxu0 0
        %1200 = vmatpush1.bf16.msra.mxu0 0
        %1201 = vmatprep.mubr.bf16.mxu0 0
        %1202 = vmatmul.mubr.bf16.gmra.mrb[0].mxu0 %v1095
        %v1203 = vpop.f32.mrb[0].mxu0
        %v1204 = vadd.f32 0.0, %v1203
        %v1205 = vpop.f32.mrb[0].mxu0
        %v1206 = vadd.f32 0.0, %v1205
        %v1207 = vpop.f32.mrb[0].mxu0
        %v1208 = vadd.f32 0.0, %v1207
        %v1209 = vpop.f32.mrb[0].mxu0
        %v1210 = vadd.f32 0.0, %v1209
        %1211 = vmatprep.mubr.bf16.mxu0 0
        %1212 = vmatmul.mubr.bf16.gmra.mrb[0].mxu0 %v1098
        %v1213 = vpop.f32.mrb[0].mxu0
        %v1214 = vadd.f32 0.0, %v1213
        %v1215 = vpop.f32.mrb[0].mxu0
        %v1216 = vadd.f32 0.0, %v1215
        %v1217 = vpop.f32.mrb[0].mxu0
        %v1218 = vpop.f32.mrb[0].mxu0
        %1219 = vdwg.mxu0
        %1220 = vmatprep.subr.bf16.mxu0 %v1081
        %1221 = vmatpush1.bf16.msra.mxu0 %v1080
        %1222 = vmatprep.subr.bf16.mxu0 %v1116
        %1223 = vmatpush1.bf16.msra.mxu0 %v1113
        %1224 = vmatprep.subr.bf16.mxu0 0
        %1225 = vmatpush1.bf16.msra.mxu0 0
        %1226 = vmatprep.subr.bf16.mxu0 0
        %1227 = vmatpush1.bf16.msra.mxu0 0
        %1228 = vmatprep.subr.bf16.mxu0 0
        %1229 = vmatpush1.bf16.msra.mxu0 0
        %1230 = vmatprep.subr.bf16.mxu0 0
        %1231 = vmatpush1.bf16.msra.mxu0 0
        %1232 = vmatprep.subr.bf16.mxu0 0
        %1233 = vmatpush1.bf16.msra.mxu0 0
        %1234 = vmatprep.subr.bf16.mxu0 0
        %1235 = vmatpush1.bf16.msra.mxu0 0
        %1236 = vmatprep.subr.bf16.mxu0 0
        %1237 = vmatpush1.bf16.msra.mxu0 0
        %1238 = vmatprep.subr.bf16.mxu0 0
        %1239 = vmatpush1.bf16.msra.mxu0 0
        %1240 = vmatprep.subr.bf16.mxu0 0
        %1241 = vmatpush1.bf16.msra.mxu0 0
        %1242 = vmatprep.subr.bf16.mxu0 0
        %1243 = vmatpush1.bf16.msra.mxu0 0
        %1244 = vmatprep.subr.bf16.mxu0 0
        %1245 = vmatpush1.bf16.msra.mxu0 0
        %1246 = vmatprep.subr.bf16.mxu0 0
        %1247 = vmatpush1.bf16.msra.mxu0 0
        %1248 = vmatprep.subr.bf16.mxu0 0
        %1249 = vmatpush1.bf16.msra.mxu0 0
        %1250 = vmatprep.subr.bf16.mxu0 0
        %1251 = vmatpush1.bf16.msra.mxu0 0
        %1252 = vmatprep.mubr.bf16.mxu0 0
        %1253 = vmatmul.mubr.bf16.gmra.mrb[0].mxu0 %v1095
        %v1254 = vpop.f32.mrb[0].mxu0
        %v1255 = vadd.f32 0.0, %v1254
        %v1256 = vpop.f32.mrb[0].mxu0
        %v1257 = vadd.f32 0.0, %v1256
        %v1258 = vpop.f32.mrb[0].mxu0
        %v1259 = vadd.f32 0.0, %v1258
        %v1260 = vpop.f32.mrb[0].mxu0
        %v1261 = vadd.f32 0.0, %v1260
        %1262 = vmatprep.mubr.bf16.mxu0 0
        %1263 = vmatmul.mubr.bf16.gmra.mrb[0].mxu0 %v1098
        %v1264 = vpop.f32.mrb[0].mxu0
        %v1265 = vadd.f32 0.0, %v1264
        %v1266 = vpop.f32.mrb[0].mxu0
        %v1267 = vadd.f32 0.0, %v1266
        %v1268 = vpop.f32.mrb[0].mxu0
        %v1269 = vpop.f32.mrb[0].mxu0
        %1270 = vdwg.mxu0
        %v1271 = vld [vmem:[#allocation2] sm:$0xff]
        %v1272 = vld [vmem:[#allocation2 + $0x8] sm:$0xff]
        %v1273 = vld [vmem:[#allocation2 + $0x10] sm:$0xff]
        %v1274 = vld [vmem:[#allocation2 + $0x18] sm:$0xff]
        %v1275 = vld [vmem:[#allocation2 + $0x20] sm:$0xff]
        %v1276 = vld [vmem:[#allocation2 + $0x28] sm:$0xff]
        %v1277 = vld [vmem:[#allocation2 + $0x30] sm:$0xff]
        %v1278 = vld [vmem:[#allocation2 + $0x38] sm:$0xff]
        %v1279 = vld [vmem:[#allocation2 + $0x40] sm:$0xff]
        %v1280 = vld [vmem:[#allocation2 + $0x48] sm:$0xff]
        %v1281 = vld [vmem:[#allocation2 + $0x50] sm:$0xff]
        %v1282 = vld [vmem:[#allocation2 + $0x58] sm:$0xff]
        %v1283 = vld [vmem:[#allocation2 + $0x60] sm:$0xff]
        %v1284 = vld [vmem:[#allocation2 + $0x68] sm:$0xff]
        %v1285 = vld [vmem:[#allocation2 + $0x70] sm:$0xff]
        %v1286 = vld [vmem:[#allocation2 + $0x78] sm:$0xff]
        %v1287 = vld [vmem:[#allocation2 + $0x80] sm:$0xff]
        %v1288 = vld [vmem:[#allocation2 + $0x88] sm:$0xff]
        %v1289 = vadd.f32 %v1271, %v1153
        %v1290 = vadd.f32 %v1272, %v1155
        %v1291 = vadd.f32 %v1273, %v1204
        %v1292 = vadd.f32 %v1274, %v1206
        %v1293 = vadd.f32 %v1275, %v1255
        %v1294 = vadd.f32 %v1276, %v1257
        %v1295 = vadd.f32 %v1277, %v1157
        %v1296 = vadd.f32 %v1278, %v1159
        %v1297 = vadd.f32 %v1279, %v1208
        %v1298 = vadd.f32 %v1280, %v1210
        %v1299 = vadd.f32 %v1281, %v1259
        %v1300 = vadd.f32 %v1282, %v1261
        %v1301 = vadd.f32 %v1283, %v1163
        %v1302 = vadd.f32 %v1284, %v1165
        %v1303 = vadd.f32 %v1285, %v1214
        %v1304 = vadd.f32 %v1286, %v1216
        %v1305 = vadd.f32 %v1287, %v1265
        %v1306 = vadd.f32 %v1288, %v1267
        %1307 = vst [vmem:[#allocation2] sm:$0xff] %v1289
        %1308 = vst [vmem:[#allocation2 + $0x8] sm:$0xff] %v1290
        %1309 = vst [vmem:[#allocation2 + $0x10] sm:$0xff] %v1291
        %1310 = vst [vmem:[#allocation2 + $0x18] sm:$0xff] %v1292
        %1311 = vst [vmem:[#allocation2 + $0x20] sm:$0xff] %v1293
        %1312 = vst [vmem:[#allocation2 + $0x28] sm:$0xff] %v1294
        %1313 = vst [vmem:[#allocation2 + $0x30] sm:$0xff] %v1295
        %1314 = vst [vmem:[#allocation2 + $0x38] sm:$0xff] %v1296
        %1315 = vst [vmem:[#allocation2 + $0x40] sm:$0xff] %v1297
        %1316 = vst [vmem:[#allocation2 + $0x48] sm:$0xff] %v1298
        %1317 = vst [vmem:[#allocation2 + $0x50] sm:$0xff] %v1299
        %1318 = vst [vmem:[#allocation2 + $0x58] sm:$0xff] %v1300
        %1319 = vst [vmem:[#allocation2 + $0x60] sm:$0xff] %v1301
        %1320 = vst [vmem:[#allocation2 + $0x68] sm:$0xff] %v1302
        %1321 = vst [vmem:[#allocation2 + $0x70] sm:$0xff] %v1303
        %1322 = vst [vmem:[#allocation2 + $0x78] sm:$0xff] %v1304
        %1323 = vst [vmem:[#allocation2 + $0x80] sm:$0xff] %v1305
        %1324 = vst [vmem:[#allocation2 + $0x88] sm:$0xff] %v1306
        %s1325 = scalar_lea.vmem [#allocation5], 288
        %v1326 = vld [vmem:[%s1325] sm:$0xff]
        %v1327 = vld [vmem:[%s1325 + $0x8] sm:$0xff]
        %v1328 = vld [vmem:[%s1325 + $0x10] sm:$0xff]
        %v1329 = vld [vmem:[%s1325 + $0x18] sm:$0xff]
        %v1330 = vld [vmem:[%s1325 + $0x20] sm:$0xff]
        %v1331 = vld [vmem:[%s1325 + $0x28] sm:$0xff]
        %v1332 = vld [vmem:[%s1325 + $0x30] sm:$0xff]
        %v1333 = vld [vmem:[%s1325 + $0x38] sm:$0xff]
        %v1334 = vld [vmem:[%s1325 + $0x40] sm:$0xff]
        %v1335 = vld [vmem:[%s1325 + $0x48] sm:$0x33]
        %v1336 = vld [vmem:[%s1325 + $0x50] sm:$0x33]
        %v1337 = vld [vmem:[%s1325 + $0x58] sm:$0x33]
        %vm1338 = vsmask.f32 6400
        %v1339 = vrot.slane %v723, 1
        %v1340 = vrot.slane %v725, 2
        %v1341 = vor.u32 %v1339, %v1340
        %v1342 = vrot.slane %v733, 1
        %v1343 = vrot.slane %v729, 2
        %v1344 = vor.u32 %v1342, %v1343
        %v1345 = vsel %vm1338, %v1341, %v1344
        %v1358 = vunpack.c.l.b16 %v1326
        %v1359 = vunpack.c.h.b16 %v1326
        %v1360 = vunpack.c.l.b16 %v1327
        %v1361 = vunpack.c.h.b16 %v1327
        %v1362 = vunpack.c.l.b16 %v1328
        %v1363 = vunpack.c.h.b16 %v1328
        %v1364 = vunpack.c.l.b16 %v1329
        %v1365 = vunpack.c.h.b16 %v1329
        %v1366 = vunpack.c.l.b16 %v1330
        %v1367 = vunpack.c.h.b16 %v1330
        %v1368 = vunpack.c.l.b16 %v1331
        %v1369 = vunpack.c.h.b16 %v1331
        %v1370 = vunpack.c.l.b16 %v1332
        %v1371 = vunpack.c.h.b16 %v1332
        %v1372 = vunpack.c.l.b16 %v1333
        %v1373 = vunpack.c.h.b16 %v1333
        %v1374 = vunpack.c.l.b16 %v1334
        %v1375 = vunpack.c.h.b16 %v1334
        %v1376 = vunpack.c.l.b16 %v1335
        %v1377 = vunpack.c.h.b16 %v1335
        %v1378 = vunpack.c.l.b16 %v1336
        %v1379 = vunpack.c.h.b16 %v1336
        %v1380 = vunpack.c.l.b16 %v1337
        %v1381 = vunpack.c.h.b16 %v1337
        %v1382 = vpack.c.b16 %v1364, %v1358
        %v1383 = vpack.c.b16 %v1365, %v1359
        %v1384 = vpack.c.b16 %v1366, %v1360
        %v1385 = vpack.c.b16 %v1367, %v1361
        %v1386 = vpack.c.b16 %v1368, %v1362
        %v1387 = vpack.c.b16 %v1369, %v1363
        %v1388 = vpack.c.b16 %v1376, %v1370
        %v1389 = vpack.c.b16 %v1377, %v1371
        %v1390 = vpack.c.b16 %v1378, %v1372
        %v1391 = vpack.c.b16 %v1379, %v1373
        %v1392 = vpack.c.b16 %v1380, %v1374
        %v1393 = vpack.c.b16 %v1381, %v1375
        %v1401 = vsel %vm512, %v1345, 0
        %v1404 = vsel %vm512, %v1344, 0
        %v1407 = vsel %vm519, %v1388, 0
        %v1410 = vsel %vm519, %v1389, 0
        %v1413 = vsel %vm519, %v1390, 0
        %v1416 = vsel %vm519, %v1391, 0
        %v1419 = vsel %vm519, %v1392, 0
        %v1422 = vsel %vm519, %v1393, 0
        %1424 = vmatprep.subr.bf16.mxu0 %v1383
        %1425 = vmatpush1.bf16.msra.mxu0 %v1382
        %1426 = vmatprep.subr.bf16.mxu0 %v1410
        %1427 = vmatpush1.bf16.msra.mxu0 %v1407
        %1428 = vmatprep.subr.bf16.mxu0 0
        %1429 = vmatpush1.bf16.msra.mxu0 0
        %1430 = vmatprep.subr.bf16.mxu0 0
        %1431 = vmatpush1.bf16.msra.mxu0 0
        %1432 = vmatprep.subr.bf16.mxu0 0
        %1433 = vmatpush1.bf16.msra.mxu0 0
        %1434 = vmatprep.subr.bf16.mxu0 0
        %1435 = vmatpush1.bf16.msra.mxu0 0
        %1436 = vmatprep.subr.bf16.mxu0 0
        %1437 = vmatpush1.bf16.msra.mxu0 0
        %1438 = vmatprep.subr.bf16.mxu0 0
        %1439 = vmatpush1.bf16.msra.mxu0 0
        %1440 = vmatprep.subr.bf16.mxu0 0
        %1441 = vmatpush1.bf16.msra.mxu0 0
        %1442 = vmatprep.subr.bf16.mxu0 0
        %1443 = vmatpush1.bf16.msra.mxu0 0
        %1444 = vmatprep.subr.bf16.mxu0 0
        %1445 = vmatpush1.bf16.msra.mxu0 0
        %1446 = vmatprep.subr.bf16.mxu0 0
        %1447 = vmatpush1.bf16.msra.mxu0 0
        %1448 = vmatprep.subr.bf16.mxu0 0
        %1449 = vmatpush1.bf16.msra.mxu0 0
        %1450 = vmatprep.subr.bf16.mxu0 0
        %1451 = vmatpush1.bf16.msra.mxu0 0
        %1452 = vmatprep.subr.bf16.mxu0 0
        %1453 = vmatpush1.bf16.msra.mxu0 0
        %1454 = vmatprep.subr.bf16.mxu0 0
        %1455 = vmatpush1.bf16.msra.mxu0 0
        %1456 = vmatprep.mubr.bf16.mxu0 0
        %1457 = vmatmul.mubr.bf16.gmra.mrb[0].mxu0 %v1401
        %v1458 = vpop.f32.mrb[0].mxu0
        %v1459 = vadd.f32 0.0, %v1458
        %v1460 = vpop.f32.mrb[0].mxu0
        %v1461 = vadd.f32 0.0, %v1460
        %v1462 = vpop.f32.mrb[0].mxu0
        %v1463 = vadd.f32 0.0, %v1462
        %v1464 = vpop.f32.mrb[0].mxu0
        %v1465 = vadd.f32 0.0, %v1464
        %1466 = vmatprep.mubr.bf16.mxu0 0
        %1467 = vmatmul.mubr.bf16.gmra.mrb[0].mxu0 %v1404
        %v1468 = vpop.f32.mrb[0].mxu0
        %v1469 = vadd.f32 0.0, %v1468
        %v1470 = vpop.f32.mrb[0].mxu0
        %v1471 = vadd.f32 0.0, %v1470
        %v1472 = vpop.f32.mrb[0].mxu0
        %v1473 = vpop.f32.mrb[0].mxu0
        %1474 = vdwg.mxu0
        %1475 = vmatprep.subr.bf16.mxu0 %v1385
        %1476 = vmatpush1.bf16.msra.mxu0 %v1384
        %1477 = vmatprep.subr.bf16.mxu0 %v1416
        %1478 = vmatpush1.bf16.msra.mxu0 %v1413
        %1479 = vmatprep.subr.bf16.mxu0 0
        %1480 = vmatpush1.bf16.msra.mxu0 0
        %1481 = vmatprep.subr.bf16.mxu0 0
        %1482 = vmatpush1.bf16.msra.mxu0 0
        %1483 = vmatprep.subr.bf16.mxu0 0
        %1484 = vmatpush1.bf16.msra.mxu0 0
        %1485 = vmatprep.subr.bf16.mxu0 0
        %1486 = vmatpush1.bf16.msra.mxu0 0
        %1487 = vmatprep.subr.bf16.mxu0 0
        %1488 = vmatpush1.bf16.msra.mxu0 0
        %1489 = vmatprep.subr.bf16.mxu0 0
        %1490 = vmatpush1.bf16.msra.mxu0 0
        %1491 = vmatprep.subr.bf16.mxu0 0
        %1492 = vmatpush1.bf16.msra.mxu0 0
        %1493 = vmatprep.subr.bf16.mxu0 0
        %1494 = vmatpush1.bf16.msra.mxu0 0
        %1495 = vmatprep.subr.bf16.mxu0 0
        %1496 = vmatpush1.bf16.msra.mxu0 0
        %1497 = vmatprep.subr.bf16.mxu0 0
        %1498 = vmatpush1.bf16.msra.mxu0 0
        %1499 = vmatprep.subr.bf16.mxu0 0
        %1500 = vmatpush1.bf16.msra.mxu0 0
        %1501 = vmatprep.subr.bf16.mxu0 0
        %1502 = vmatpush1.bf16.msra.mxu0 0
        %1503 = vmatprep.subr.bf16.mxu0 0
        %1504 = vmatpush1.bf16.msra.mxu0 0
        %1505 = vmatprep.subr.bf16.mxu0 0
        %1506 = vmatpush1.bf16.msra.mxu0 0
        %1507 = vmatprep.mubr.bf16.mxu0 0
        %1508 = vmatmul.mubr.bf16.gmra.mrb[0].mxu0 %v1401
        %v1509 = vpop.f32.mrb[0].mxu0
        %v1510 = vadd.f32 0.0, %v1509
        %v1511 = vpop.f32.mrb[0].mxu0
        %v1512 = vadd.f32 0.0, %v1511
        %v1513 = vpop.f32.mrb[0].mxu0
        %v1514 = vadd.f32 0.0, %v1513
        %v1515 = vpop.f32.mrb[0].mxu0
        %v1516 = vadd.f32 0.0, %v1515
        %1517 = vmatprep.mubr.bf16.mxu0 0
        %1518 = vmatmul.mubr.bf16.gmra.mrb[0].mxu0 %v1404
        %v1519 = vpop.f32.mrb[0].mxu0
        %v1520 = vadd.f32 0.0, %v1519
        %v1521 = vpop.f32.mrb[0].mxu0
        %v1522 = vadd.f32 0.0, %v1521
        %v1523 = vpop.f32.mrb[0].mxu0
        %v1524 = vpop.f32.mrb[0].mxu0
        %1525 = vdwg.mxu0
        %1526 = vmatprep.subr.bf16.mxu0 %v1387
        %1527 = vmatpush1.bf16.msra.mxu0 %v1386
        %1528 = vmatprep.subr.bf16.mxu0 %v1422
        %1529 = vmatpush1.bf16.msra.mxu0 %v1419
        %1530 = vmatprep.subr.bf16.mxu0 0
        %1531 = vmatpush1.bf16.msra.mxu0 0
        %1532 = vmatprep.subr.bf16.mxu0 0
        %1533 = vmatpush1.bf16.msra.mxu0 0
        %1534 = vmatprep.subr.bf16.mxu0 0
        %1535 = vmatpush1.bf16.msra.mxu0 0
        %1536 = vmatprep.subr.bf16.mxu0 0
        %1537 = vmatpush1.bf16.msra.mxu0 0
        %1538 = vmatprep.subr.bf16.mxu0 0
        %1539 = vmatpush1.bf16.msra.mxu0 0
        %1540 = vmatprep.subr.bf16.mxu0 0
        %1541 = vmatpush1.bf16.msra.mxu0 0
        %1542 = vmatprep.subr.bf16.mxu0 0
        %1543 = vmatpush1.bf16.msra.mxu0 0
        %1544 = vmatprep.subr.bf16.mxu0 0
        %1545 = vmatpush1.bf16.msra.mxu0 0
        %1546 = vmatprep.subr.bf16.mxu0 0
        %1547 = vmatpush1.bf16.msra.mxu0 0
        %1548 = vmatprep.subr.bf16.mxu0 0
        %1549 = vmatpush1.bf16.msra.mxu0 0
        %1550 = vmatprep.subr.bf16.mxu0 0
        %1551 = vmatpush1.bf16.msra.mxu0 0
        %1552 = vmatprep.subr.bf16.mxu0 0
        %1553 = vmatpush1.bf16.msra.mxu0 0
        %1554 = vmatprep.subr.bf16.mxu0 0
        %1555 = vmatpush1.bf16.msra.mxu0 0
        %1556 = vmatprep.subr.bf16.mxu0 0
        %1557 = vmatpush1.bf16.msra.mxu0 0
        %1558 = vmatprep.mubr.bf16.mxu0 0
        %1559 = vmatmul.mubr.bf16.gmra.mrb[0].mxu0 %v1401
        %v1560 = vpop.f32.mrb[0].mxu0
        %v1561 = vadd.f32 0.0, %v1560
        %v1562 = vpop.f32.mrb[0].mxu0
        %v1563 = vadd.f32 0.0, %v1562
        %v1564 = vpop.f32.mrb[0].mxu0
        %v1565 = vadd.f32 0.0, %v1564
        %v1566 = vpop.f32.mrb[0].mxu0
        %v1567 = vadd.f32 0.0, %v1566
        %1568 = vmatprep.mubr.bf16.mxu0 0
        %1569 = vmatmul.mubr.bf16.gmra.mrb[0].mxu0 %v1404
        %v1570 = vpop.f32.mrb[0].mxu0
        %v1571 = vadd.f32 0.0, %v1570
        %v1572 = vpop.f32.mrb[0].mxu0
        %v1573 = vadd.f32 0.0, %v1572
        %v1574 = vpop.f32.mrb[0].mxu0
        %v1575 = vpop.f32.mrb[0].mxu0
        %1576 = vdwg.mxu0
        %v1577 = vld [vmem:[#allocation2] sm:$0xff]
        %v1578 = vld [vmem:[#allocation2 + $0x8] sm:$0xff]
        %v1579 = vld [vmem:[#allocation2 + $0x10] sm:$0xff]
        %v1580 = vld [vmem:[#allocation2 + $0x18] sm:$0xff]
        %v1581 = vld [vmem:[#allocation2 + $0x20] sm:$0xff]
        %v1582 = vld [vmem:[#allocation2 + $0x28] sm:$0xff]
        %v1583 = vld [vmem:[#allocation2 + $0x30] sm:$0xff]
        %v1584 = vld [vmem:[#allocation2 + $0x38] sm:$0xff]
        %v1585 = vld [vmem:[#allocation2 + $0x40] sm:$0xff]
        %v1586 = vld [vmem:[#allocation2 + $0x48] sm:$0xff]
        %v1587 = vld [vmem:[#allocation2 + $0x50] sm:$0xff]
        %v1588 = vld [vmem:[#allocation2 + $0x58] sm:$0xff]
        %v1589 = vld [vmem:[#allocation2 + $0x60] sm:$0xff]
        %v1590 = vld [vmem:[#allocation2 + $0x68] sm:$0xff]
        %v1591 = vld [vmem:[#allocation2 + $0x70] sm:$0xff]
        %v1592 = vld [vmem:[#allocation2 + $0x78] sm:$0xff]
        %v1593 = vld [vmem:[#allocation2 + $0x80] sm:$0xff]
        %v1594 = vld [vmem:[#allocation2 + $0x88] sm:$0xff]
        %v1595 = vadd.f32 %v1577, %v1459
        %v1596 = vadd.f32 %v1578, %v1461
        %v1597 = vadd.f32 %v1579, %v1510
        %v1598 = vadd.f32 %v1580, %v1512
        %v1599 = vadd.f32 %v1581, %v1561
        %v1600 = vadd.f32 %v1582, %v1563
        %v1601 = vadd.f32 %v1583, %v1463
        %v1602 = vadd.f32 %v1584, %v1465
        %v1603 = vadd.f32 %v1585, %v1514
        %v1604 = vadd.f32 %v1586, %v1516
        %v1605 = vadd.f32 %v1587, %v1565
        %v1606 = vadd.f32 %v1588, %v1567
        %v1607 = vadd.f32 %v1589, %v1469
        %v1608 = vadd.f32 %v1590, %v1471
        %v1609 = vadd.f32 %v1591, %v1520
        %v1610 = vadd.f32 %v1592, %v1522
        %v1611 = vadd.f32 %v1593, %v1571
        %v1612 = vadd.f32 %v1594, %v1573
        %1613 = vst [vmem:[#allocation2] sm:$0xff] %v1595
        %1614 = vst [vmem:[#allocation2 + $0x8] sm:$0xff] %v1596
        %1615 = vst [vmem:[#allocation2 + $0x10] sm:$0xff] %v1597
        %1616 = vst [vmem:[#allocation2 + $0x18] sm:$0xff] %v1598
        %1617 = vst [vmem:[#allocation2 + $0x20] sm:$0xff] %v1599
        %1618 = vst [vmem:[#allocation2 + $0x28] sm:$0xff] %v1600
        %1619 = vst [vmem:[#allocation2 + $0x30] sm:$0xff] %v1601
        %1620 = vst [vmem:[#allocation2 + $0x38] sm:$0xff] %v1602
        %1621 = vst [vmem:[#allocation2 + $0x40] sm:$0xff] %v1603
        %1622 = vst [vmem:[#allocation2 + $0x48] sm:$0xff] %v1604
        %1623 = vst [vmem:[#allocation2 + $0x50] sm:$0xff] %v1605
        %1624 = vst [vmem:[#allocation2 + $0x58] sm:$0xff] %v1606
        %1625 = vst [vmem:[#allocation2 + $0x60] sm:$0xff] %v1607
        %1626 = vst [vmem:[#allocation2 + $0x68] sm:$0xff] %v1608
        %1627 = vst [vmem:[#allocation2 + $0x70] sm:$0xff] %v1609
        %1628 = vst [vmem:[#allocation2 + $0x78] sm:$0xff] %v1610
        %1629 = vst [vmem:[#allocation2 + $0x80] sm:$0xff] %v1611
        %1630 = vst [vmem:[#allocation2 + $0x88] sm:$0xff] %v1612
        %s1631 = scalar_lea.vmem [#allocation5], 384
        %v1632 = vld [vmem:[%s1631] sm:$0xff]
        %v1633 = vld [vmem:[%s1631 + $0x8] sm:$0xff]
        %v1634 = vld [vmem:[%s1631 + $0x10] sm:$0xff]
        %v1635 = vld [vmem:[%s1631 + $0x18] sm:$0xff]
        %v1636 = vld [vmem:[%s1631 + $0x20] sm:$0xff]
        %v1637 = vld [vmem:[%s1631 + $0x28] sm:$0xff]
        %v1638 = vld [vmem:[%s1631 + $0x30] sm:$0xff]
        %v1639 = vld [vmem:[%s1631 + $0x38] sm:$0xff]
        %v1640 = vld [vmem:[%s1631 + $0x40] sm:$0xff]
        %v1641 = vld [vmem:[%s1631 + $0x48] sm:$0x33]
        %v1642 = vld [vmem:[%s1631 + $0x50] sm:$0x33]
        %v1643 = vld [vmem:[%s1631 + $0x58] sm:$0x33]
        %vm1644 = vcmask 1045504
        %v1645 = vrot.slane %v444, 2
        %v1646 = vrot.slane %v445, 2
        %v1647 = vsel %vm1644, %v1645, %v1646
        %v1660 = vunpack.c.l.b16 %v1632
        %v1661 = vunpack.c.h.b16 %v1632
        %v1662 = vunpack.c.l.b16 %v1633
        %v1663 = vunpack.c.h.b16 %v1633
        %v1664 = vunpack.c.l.b16 %v1634
        %v1665 = vunpack.c.h.b16 %v1634
        %v1666 = vunpack.c.l.b16 %v1635
        %v1667 = vunpack.c.h.b16 %v1635
        %v1668 = vunpack.c.l.b16 %v1636
        %v1669 = vunpack.c.h.b16 %v1636
        %v1670 = vunpack.c.l.b16 %v1637
        %v1671 = vunpack.c.h.b16 %v1637
        %v1672 = vunpack.c.l.b16 %v1638
        %v1673 = vunpack.c.h.b16 %v1638
        %v1674 = vunpack.c.l.b16 %v1639
        %v1675 = vunpack.c.h.b16 %v1639
        %v1676 = vunpack.c.l.b16 %v1640
        %v1677 = vunpack.c.h.b16 %v1640
        %v1678 = vunpack.c.l.b16 %v1641
        %v1679 = vunpack.c.h.b16 %v1641
        %v1680 = vunpack.c.l.b16 %v1642
        %v1681 = vunpack.c.h.b16 %v1642
        %v1682 = vunpack.c.l.b16 %v1643
        %v1683 = vunpack.c.h.b16 %v1643
        %v1684 = vpack.c.b16 %v1666, %v1660
        %v1685 = vpack.c.b16 %v1667, %v1661
        %v1686 = vpack.c.b16 %v1668, %v1662
        %v1687 = vpack.c.b16 %v1669, %v1663
        %v1688 = vpack.c.b16 %v1670, %v1664
        %v1689 = vpack.c.b16 %v1671, %v1665
        %v1690 = vpack.c.b16 %v1678, %v1672
        %v1691 = vpack.c.b16 %v1679, %v1673
        %v1692 = vpack.c.b16 %v1680, %v1674
        %v1693 = vpack.c.b16 %v1681, %v1675
        %v1694 = vpack.c.b16 %v1682, %v1676
        %v1695 = vpack.c.b16 %v1683, %v1677
        %v1703 = vsel %vm512, %v1647, 0
        %v1706 = vsel %vm512, %v1646, 0
        %v1709 = vsel %vm519, %v1690, 0
        %v1712 = vsel %vm519, %v1691, 0
        %v1715 = vsel %vm519, %v1692, 0
        %v1718 = vsel %vm519, %v1693, 0
        %v1721 = vsel %vm519, %v1694, 0
        %v1724 = vsel %vm519, %v1695, 0
        %1726 = vmatprep.subr.bf16.mxu0 %v1685
        %1727 = vmatpush1.bf16.msra.mxu0 %v1684
        %1728 = vmatprep.subr.bf16.mxu0 %v1712
        %1729 = vmatpush1.bf16.msra.mxu0 %v1709
        %1730 = vmatprep.subr.bf16.mxu0 0
        %1731 = vmatpush1.bf16.msra.mxu0 0
        %1732 = vmatprep.subr.bf16.mxu0 0
        %1733 = vmatpush1.bf16.msra.mxu0 0
        %1734 = vmatprep.subr.bf16.mxu0 0
        %1735 = vmatpush1.bf16.msra.mxu0 0
        %1736 = vmatprep.subr.bf16.mxu0 0
        %1737 = vmatpush1.bf16.msra.mxu0 0
        %1738 = vmatprep.subr.bf16.mxu0 0
        %1739 = vmatpush1.bf16.msra.mxu0 0
        %1740 = vmatprep.subr.bf16.mxu0 0
        %1741 = vmatpush1.bf16.msra.mxu0 0
        %1742 = vmatprep.subr.bf16.mxu0 0
        %1743 = vmatpush1.bf16.msra.mxu0 0
        %1744 = vmatprep.subr.bf16.mxu0 0
        %1745 = vmatpush1.bf16.msra.mxu0 0
        %1746 = vmatprep.subr.bf16.mxu0 0
        %1747 = vmatpush1.bf16.msra.mxu0 0
        %1748 = vmatprep.subr.bf16.mxu0 0
        %1749 = vmatpush1.bf16.msra.mxu0 0
        %1750 = vmatprep.subr.bf16.mxu0 0
        %1751 = vmatpush1.bf16.msra.mxu0 0
        %1752 = vmatprep.subr.bf16.mxu0 0
        %1753 = vmatpush1.bf16.msra.mxu0 0
        %1754 = vmatprep.subr.bf16.mxu0 0
        %1755 = vmatpush1.bf16.msra.mxu0 0
        %1756 = vmatprep.subr.bf16.mxu0 0
        %1757 = vmatpush1.bf16.msra.mxu0 0
        %1758 = vmatprep.mubr.bf16.mxu0 0
        %1759 = vmatmul.mubr.bf16.gmra.mrb[0].mxu0 %v1703
        %v1760 = vpop.f32.mrb[0].mxu0
        %v1761 = vadd.f32 0.0, %v1760
        %v1762 = vpop.f32.mrb[0].mxu0
        %v1763 = vadd.f32 0.0, %v1762
        %v1764 = vpop.f32.mrb[0].mxu0
        %v1765 = vadd.f32 0.0, %v1764
        %v1766 = vpop.f32.mrb[0].mxu0
        %v1767 = vadd.f32 0.0, %v1766
        %1768 = vmatprep.mubr.bf16.mxu0 0
        %1769 = vmatmul.mubr.bf16.gmra.mrb[0].mxu0 %v1706
        %v1770 = vpop.f32.mrb[0].mxu0
        %v1771 = vadd.f32 0.0, %v1770
        %v1772 = vpop.f32.mrb[0].mxu0
        %v1773 = vadd.f32 0.0, %v1772
        %v1774 = vpop.f32.mrb[0].mxu0
        %v1775 = vpop.f32.mrb[0].mxu0
        %1776 = vdwg.mxu0
        %1777 = vmatprep.subr.bf16.mxu0 %v1687
        %1778 = vmatpush1.bf16.msra.mxu0 %v1686
        %1779 = vmatprep.subr.bf16.mxu0 %v1718
        %1780 = vmatpush1.bf16.msra.mxu0 %v1715
        %1781 = vmatprep.subr.bf16.mxu0 0
        %1782 = vmatpush1.bf16.msra.mxu0 0
        %1783 = vmatprep.subr.bf16.mxu0 0
        %1784 = vmatpush1.bf16.msra.mxu0 0
        %1785 = vmatprep.subr.bf16.mxu0 0
        %1786 = vmatpush1.bf16.msra.mxu0 0
        %1787 = vmatprep.subr.bf16.mxu0 0
        %1788 = vmatpush1.bf16.msra.mxu0 0
        %1789 = vmatprep.subr.bf16.mxu0 0
        %1790 = vmatpush1.bf16.msra.mxu0 0
        %1791 = vmatprep.subr.bf16.mxu0 0
        %1792 = vmatpush1.bf16.msra.mxu0 0
        %1793 = vmatprep.subr.bf16.mxu0 0
        %1794 = vmatpush1.bf16.msra.mxu0 0
        %1795 = vmatprep.subr.bf16.mxu0 0
        %1796 = vmatpush1.bf16.msra.mxu0 0
        %1797 = vmatprep.subr.bf16.mxu0 0
        %1798 = vmatpush1.bf16.msra.mxu0 0
        %1799 = vmatprep.subr.bf16.mxu0 0
        %1800 = vmatpush1.bf16.msra.mxu0 0
        %1801 = vmatprep.subr.bf16.mxu0 0
        %1802 = vmatpush1.bf16.msra.mxu0 0
        %1803 = vmatprep.subr.bf16.mxu0 0
        %1804 = vmatpush1.bf16.msra.mxu0 0
        %1805 = vmatprep.subr.bf16.mxu0 0
        %1806 = vmatpush1.bf16.msra.mxu0 0
        %1807 = vmatprep.subr.bf16.mxu0 0
        %1808 = vmatpush1.bf16.msra.mxu0 0
        %1809 = vmatprep.mubr.bf16.mxu0 0
        %1810 = vmatmul.mubr.bf16.gmra.mrb[0].mxu0 %v1703
        %v1811 = vpop.f32.mrb[0].mxu0
        %v1812 = vadd.f32 0.0, %v1811
        %v1813 = vpop.f32.mrb[0].mxu0
        %v1814 = vadd.f32 0.0, %v1813
        %v1815 = vpop.f32.mrb[0].mxu0
        %v1816 = vadd.f32 0.0, %v1815
        %v1817 = vpop.f32.mrb[0].mxu0
        %v1818 = vadd.f32 0.0, %v1817
        %1819 = vmatprep.mubr.bf16.mxu0 0
        %1820 = vmatmul.mubr.bf16.gmra.mrb[0].mxu0 %v1706
        %v1821 = vpop.f32.mrb[0].mxu0
        %v1822 = vadd.f32 0.0, %v1821
        %v1823 = vpop.f32.mrb[0].mxu0
        %v1824 = vadd.f32 0.0, %v1823
        %v1825 = vpop.f32.mrb[0].mxu0
        %v1826 = vpop.f32.mrb[0].mxu0
        %1827 = vdwg.mxu0
        %1828 = vmatprep.subr.bf16.mxu0 %v1689
        %1829 = vmatpush1.bf16.msra.mxu0 %v1688
        %1830 = vmatprep.subr.bf16.mxu0 %v1724
        %1831 = vmatpush1.bf16.msra.mxu0 %v1721
        %1832 = vmatprep.subr.bf16.mxu0 0
        %1833 = vmatpush1.bf16.msra.mxu0 0
        %1834 = vmatprep.subr.bf16.mxu0 0
        %1835 = vmatpush1.bf16.msra.mxu0 0
        %1836 = vmatprep.subr.bf16.mxu0 0
        %1837 = vmatpush1.bf16.msra.mxu0 0
        %1838 = vmatprep.subr.bf16.mxu0 0
        %1839 = vmatpush1.bf16.msra.mxu0 0
        %1840 = vmatprep.subr.bf16.mxu0 0
        %1841 = vmatpush1.bf16.msra.mxu0 0
        %1842 = vmatprep.subr.bf16.mxu0 0
        %1843 = vmatpush1.bf16.msra.mxu0 0
        %1844 = vmatprep.subr.bf16.mxu0 0
        %1845 = vmatpush1.bf16.msra.mxu0 0
        %1846 = vmatprep.subr.bf16.mxu0 0
        %1847 = vmatpush1.bf16.msra.mxu0 0
        %1848 = vmatprep.subr.bf16.mxu0 0
        %1849 = vmatpush1.bf16.msra.mxu0 0
        %1850 = vmatprep.subr.bf16.mxu0 0
        %1851 = vmatpush1.bf16.msra.mxu0 0
        %1852 = vmatprep.subr.bf16.mxu0 0
        %1853 = vmatpush1.bf16.msra.mxu0 0
        %1854 = vmatprep.subr.bf16.mxu0 0
        %1855 = vmatpush1.bf16.msra.mxu0 0
        %1856 = vmatprep.subr.bf16.mxu0 0
        %1857 = vmatpush1.bf16.msra.mxu0 0
        %1858 = vmatprep.subr.bf16.mxu0 0
        %1859 = vmatpush1.bf16.msra.mxu0 0
        %1860 = vmatprep.mubr.bf16.mxu0 0
        %1861 = vmatmul.mubr.bf16.gmra.mrb[0].mxu0 %v1703
        %v1862 = vpop.f32.mrb[0].mxu0
        %v1863 = vadd.f32 0.0, %v1862
        %v1864 = vpop.f32.mrb[0].mxu0
        %v1865 = vadd.f32 0.0, %v1864
        %v1866 = vpop.f32.mrb[0].mxu0
        %v1867 = vadd.f32 0.0, %v1866
        %v1868 = vpop.f32.mrb[0].mxu0
        %v1869 = vadd.f32 0.0, %v1868
        %1870 = vmatprep.mubr.bf16.mxu0 0
        %1871 = vmatmul.mubr.bf16.gmra.mrb[0].mxu0 %v1706
        %v1872 = vpop.f32.mrb[0].mxu0
        %v1873 = vadd.f32 0.0, %v1872
        %v1874 = vpop.f32.mrb[0].mxu0
        %v1875 = vadd.f32 0.0, %v1874
        %v1876 = vpop.f32.mrb[0].mxu0
        %v1877 = vpop.f32.mrb[0].mxu0
        %1878 = vdwg.mxu0
        %v1879 = vld [vmem:[#allocation2] sm:$0xff]
        %v1880 = vld [vmem:[#allocation2 + $0x8] sm:$0xff]
        %v1881 = vld [vmem:[#allocation2 + $0x10] sm:$0xff]
        %v1882 = vld [vmem:[#allocation2 + $0x18] sm:$0xff]
        %v1883 = vld [vmem:[#allocation2 + $0x20] sm:$0xff]
        %v1884 = vld [vmem:[#allocation2 + $0x28] sm:$0xff]
        %v1885 = vld [vmem:[#allocation2 + $0x30] sm:$0xff]
        %v1886 = vld [vmem:[#allocation2 + $0x38] sm:$0xff]
        %v1887 = vld [vmem:[#allocation2 + $0x40] sm:$0xff]
        %v1888 = vld [vmem:[#allocation2 + $0x48] sm:$0xff]
        %v1889 = vld [vmem:[#allocation2 + $0x50] sm:$0xff]
        %v1890 = vld [vmem:[#allocation2 + $0x58] sm:$0xff]
        %v1891 = vld [vmem:[#allocation2 + $0x60] sm:$0xff]
        %v1892 = vld [vmem:[#allocation2 + $0x68] sm:$0xff]
        %v1893 = vld [vmem:[#allocation2 + $0x70] sm:$0xff]
        %v1894 = vld [vmem:[#allocation2 + $0x78] sm:$0xff]
        %v1895 = vld [vmem:[#allocation2 + $0x80] sm:$0xff]
        %v1896 = vld [vmem:[#allocation2 + $0x88] sm:$0xff]
        %v1897 = vadd.f32 %v1879, %v1761
        %v1898 = vadd.f32 %v1880, %v1763
        %v1899 = vadd.f32 %v1881, %v1812
        %v1900 = vadd.f32 %v1882, %v1814
        %v1901 = vadd.f32 %v1883, %v1863
        %v1902 = vadd.f32 %v1884, %v1865
        %v1903 = vadd.f32 %v1885, %v1765
        %v1904 = vadd.f32 %v1886, %v1767
        %v1905 = vadd.f32 %v1887, %v1816
        %v1906 = vadd.f32 %v1888, %v1818
        %v1907 = vadd.f32 %v1889, %v1867
        %v1908 = vadd.f32 %v1890, %v1869
        %v1909 = vadd.f32 %v1891, %v1771
        %v1910 = vadd.f32 %v1892, %v1773
        %v1911 = vadd.f32 %v1893, %v1822
        %v1912 = vadd.f32 %v1894, %v1824
        %v1913 = vadd.f32 %v1895, %v1873
        %v1914 = vadd.f32 %v1896, %v1875
        %1915 = vst [vmem:[#allocation2] sm:$0xff] %v1897
        %1916 = vst [vmem:[#allocation2 + $0x8] sm:$0xff] %v1898
        %1917 = vst [vmem:[#allocation2 + $0x10] sm:$0xff] %v1899
        %1918 = vst [vmem:[#allocation2 + $0x18] sm:$0xff] %v1900
        %1919 = vst [vmem:[#allocation2 + $0x20] sm:$0xff] %v1901
        %1920 = vst [vmem:[#allocation2 + $0x28] sm:$0xff] %v1902
        %1921 = vst [vmem:[#allocation2 + $0x30] sm:$0xff] %v1903
        %1922 = vst [vmem:[#allocation2 + $0x38] sm:$0xff] %v1904
        %1923 = vst [vmem:[#allocation2 + $0x40] sm:$0xff] %v1905
        %1924 = vst [vmem:[#allocation2 + $0x48] sm:$0xff] %v1906
        %1925 = vst [vmem:[#allocation2 + $0x50] sm:$0xff] %v1907
        %1926 = vst [vmem:[#allocation2 + $0x58] sm:$0xff] %v1908
        %1927 = vst [vmem:[#allocation2 + $0x60] sm:$0xff] %v1909
        %1928 = vst [vmem:[#allocation2 + $0x68] sm:$0xff] %v1910
        %1929 = vst [vmem:[#allocation2 + $0x70] sm:$0xff] %v1911
        %1930 = vst [vmem:[#allocation2 + $0x78] sm:$0xff] %v1912
        %1931 = vst [vmem:[#allocation2 + $0x80] sm:$0xff] %v1913
        %1932 = vst [vmem:[#allocation2 + $0x88] sm:$0xff] %v1914
        %v1933 = vld [vmem:[#allocation2] ss:$8 sm:$0xf]
        %v1934 = vld [vmem:[#allocation2] ss:$8 sm:$0x30]
        %v1935 = vor.u32 %v1933, %v1934
        %s1936 = scalar_lea.vmem [#allocation2], 1
        %v1937 = vld [vmem:[%s1936] ss:$8 sm:$0xf]
        %v1938 = vld [vmem:[%s1936] ss:$8 sm:$0x30]
        %v1939 = vor.u32 %v1937, %v1938
        %v1940 = vmax.f32 %v1935, %v1939
        %v1942 = vrot.slane %v1940, 3
        %v1944 = vmax.f32 %v1940, %v1942
        %v1945 = vld [vmem:[#allocation8] sm:$0x7]
        %v1946 = vadd.f32 %v1944, %v1945
        %v1947 = vmax.f32 %v1946, 0.0
        %v1948 = vlaneseq
        %vm1949 = vcmp.ge.s32.totalorder %v1948, 0
        %vm1950 = vcmp.lt.s32.totalorder %v1948, 384
        %vm1951 = vmand %vm1949, %vm1950
        %1952 = vst.msk [vmem:[#allocation3] ss:$8 sm:$0x7] %vm1951, %v1947
        %1953 = vst.msk [vmem:[#allocation3] ss:$8 sm:$0x0] %vm1951, %v1947
        %s1954 = scalar_lea.vmem [#allocation2], 2
        %v1955 = vld [vmem:[%s1954] ss:$8 sm:$0xf]
        %v1956 = vld [vmem:[%s1954] ss:$8 sm:$0x30]
        %v1957 = vor.u32 %v1955, %v1956
        %s1958 = scalar_lea.vmem [#allocation2], 3
        %v1959 = vld [vmem:[%s1958] ss:$8 sm:$0xf]
        %v1960 = vld [vmem:[%s1958] ss:$8 sm:$0x30]
        %v1961 = vor.u32 %v1959, %v1960
        %v1962 = vmax.f32 %v1957, %v1961
        %v1964 = vrot.slane %v1962, 3
        %v1966 = vmax.f32 %v1962, %v1964
        %v1967 = vld [vmem:[#allocation8] sm:$0x7]
        %v1968 = vadd.f32 %v1966, %v1967
        %v1969 = vmax.f32 %v1968, 0.0
        %s1970 = scalar_lea.vmem [#allocation3], 1
        %1971 = vst.msk [vmem:[%s1970] ss:$8 sm:$0x7] %vm1951, %v1969
        %1972 = vst.msk [vmem:[%s1970] ss:$8 sm:$0x0] %vm1951, %v1969
        %s1973 = scalar_lea.vmem [#allocation2], 4
        %v1974 = vld [vmem:[%s1973] ss:$8 sm:$0xf]
        %v1975 = vld [vmem:[%s1973] ss:$8 sm:$0x30]
        %v1976 = vor.u32 %v1974, %v1975
        %s1977 = scalar_lea.vmem [#allocation2], 5
        %v1978 = vld [vmem:[%s1977] ss:$8 sm:$0xf]
        %v1979 = vld [vmem:[%s1977] ss:$8 sm:$0x30]
        %v1980 = vor.u32 %v1978, %v1979
        %v1981 = vmax.f32 %v1976, %v1980
        %v1983 = vrot.slane %v1981, 3
        %v1985 = vmax.f32 %v1981, %v1983
        %v1986 = vld [vmem:[#allocation8] sm:$0x7]
        %v1987 = vadd.f32 %v1985, %v1986
        %v1988 = vmax.f32 %v1987, 0.0
        %s1989 = scalar_lea.vmem [#allocation3], 2
        %1990 = vst.msk [vmem:[%s1989] ss:$8 sm:$0x7] %vm1951, %v1988
        %1991 = vst.msk [vmem:[%s1989] ss:$8 sm:$0x0] %vm1951, %v1988
        %s1992 = scalar_lea.vmem [#allocation2], 6
        %v1993 = vld [vmem:[%s1992] ss:$8 sm:$0xf]
        %v1994 = vld [vmem:[%s1992] ss:$8 sm:$0x30]
        %v1995 = vor.u32 %v1993, %v1994
        %s1996 = scalar_lea.vmem [#allocation2], 7
        %v1997 = vld [vmem:[%s1996] ss:$8 sm:$0xf]
        %v1998 = vld [vmem:[%s1996] ss:$8 sm:$0x30]
        %v1999 = vor.u32 %v1997, %v1998
        %v2000 = vmax.f32 %v1995, %v1999
        %v2002 = vrot.slane %v2000, 3
        %v2004 = vmax.f32 %v2000, %v2002
        %v2005 = vld [vmem:[#allocation8] sm:$0x7]
        %v2006 = vadd.f32 %v2004, %v2005
        %v2007 = vmax.f32 %v2006, 0.0
        %s2008 = scalar_lea.vmem [#allocation3], 3
        %2009 = vst.msk [vmem:[%s2008] ss:$8 sm:$0x7] %vm1951, %v2007
        %2010 = vst.msk [vmem:[%s2008] ss:$8 sm:$0x0] %vm1951, %v2007
        %s2011 = scalar_lea.vmem [#allocation2], 48
        %v2012 = vld [vmem:[%s2011] ss:$8 sm:$0xf]
        %v2013 = vld [vmem:[%s2011] ss:$8 sm:$0x30]
        %v2014 = vor.u32 %v2012, %v2013
        %s2015 = scalar_lea.vmem [#allocation2], 49
        %v2016 = vld [vmem:[%s2015] ss:$8 sm:$0xf]
        %v2017 = vld [vmem:[%s2015] ss:$8 sm:$0x30]
        %v2018 = vor.u32 %v2016, %v2017
        %v2019 = vmax.f32 %v2014, %v2018
        %v2021 = vrot.slane %v2019, 3
        %v2023 = vmax.f32 %v2019, %v2021
        %v2024 = vld [vmem:[#allocation8] sm:$0x7]
        %v2025 = vadd.f32 %v2023, %v2024
        %v2026 = vmax.f32 %v2025, 0.0
        %s2027 = scalar_lea.vmem [#allocation3], 4
        %2028 = vst.msk [vmem:[%s2027] ss:$8 sm:$0x7] %vm1951, %v2026
        %2029 = vst.msk [vmem:[%s2027] ss:$8 sm:$0x0] %vm1951, %v2026
        %s2030 = scalar_lea.vmem [#allocation2], 50
        %v2031 = vld [vmem:[%s2030] ss:$8 sm:$0xf]
        %v2032 = vld [vmem:[%s2030] ss:$8 sm:$0x30]
        %v2033 = vor.u32 %v2031, %v2032
        %s2034 = scalar_lea.vmem [#allocation2], 51
        %v2035 = vld [vmem:[%s2034] ss:$8 sm:$0xf]
        %v2036 = vld [vmem:[%s2034] ss:$8 sm:$0x30]
        %v2037 = vor.u32 %v2035, %v2036
        %v2038 = vmax.f32 %v2033, %v2037
        %v2040 = vrot.slane %v2038, 3
        %v2042 = vmax.f32 %v2038, %v2040
        %v2043 = vld [vmem:[#allocation8] sm:$0x7]
        %v2044 = vadd.f32 %v2042, %v2043
        %v2045 = vmax.f32 %v2044, 0.0
        %s2046 = scalar_lea.vmem [#allocation3], 5
        %2047 = vst.msk [vmem:[%s2046] ss:$8 sm:$0x7] %vm1951, %v2045
        %2048 = vst.msk [vmem:[%s2046] ss:$8 sm:$0x0] %vm1951, %v2045
        %s2049 = scalar_lea.vmem [#allocation2], 52
        %v2050 = vld [vmem:[%s2049] ss:$8 sm:$0xf]
        %v2051 = vld [vmem:[%s2049] ss:$8 sm:$0x30]
        %v2052 = vor.u32 %v2050, %v2051
        %s2053 = scalar_lea.vmem [#allocation2], 53
        %v2054 = vld [vmem:[%s2053] ss:$8 sm:$0xf]
        %v2055 = vld [vmem:[%s2053] ss:$8 sm:$0x30]
        %v2056 = vor.u32 %v2054, %v2055
        %v2057 = vmax.f32 %v2052, %v2056
        %v2059 = vrot.slane %v2057, 3
        %v2061 = vmax.f32 %v2057, %v2059
        %v2062 = vld [vmem:[#allocation8] sm:$0x7]
        %v2063 = vadd.f32 %v2061, %v2062
        %v2064 = vmax.f32 %v2063, 0.0
        %s2065 = scalar_lea.vmem [#allocation3], 6
        %2066 = vst.msk [vmem:[%s2065] ss:$8 sm:$0x7] %vm1951, %v2064
        %2067 = vst.msk [vmem:[%s2065] ss:$8 sm:$0x0] %vm1951, %v2064
        %s2068 = scalar_lea.vmem [#allocation2], 54
        %v2069 = vld [vmem:[%s2068] ss:$8 sm:$0xf]
        %v2070 = vld [vmem:[%s2068] ss:$8 sm:$0x30]
        %v2071 = vor.u32 %v2069, %v2070
        %s2072 = scalar_lea.vmem [#allocation2], 55
        %v2073 = vld [vmem:[%s2072] ss:$8 sm:$0xf]
        %v2074 = vld [vmem:[%s2072] ss:$8 sm:$0x30]
        %v2075 = vor.u32 %v2073, %v2074
        %v2076 = vmax.f32 %v2071, %v2075
        %v2078 = vrot.slane %v2076, 3
        %v2080 = vmax.f32 %v2076, %v2078
        %v2081 = vld [vmem:[#allocation8] sm:$0x7]
        %v2082 = vadd.f32 %v2080, %v2081
        %v2083 = vmax.f32 %v2082, 0.0
        %s2084 = scalar_lea.vmem [#allocation3], 7
        %2085 = vst.msk [vmem:[%s2084] ss:$8 sm:$0x7] %vm1951, %v2083
        %2086 = vst.msk [vmem:[%s2084] ss:$8 sm:$0x0] %vm1951, %v2083
        %s2087 = scalar_lea.vmem [#allocation2], 96
        %v2088 = vld [vmem:[%s2087] ss:$8 sm:$0xf]
        %v2089 = vld [vmem:[%s2087] ss:$8 sm:$0x30]
        %v2090 = vor.u32 %v2088, %v2089
        %s2091 = scalar_lea.vmem [#allocation2], 97
        %v2092 = vld [vmem:[%s2091] ss:$8 sm:$0xf]
        %v2093 = vld [vmem:[%s2091] ss:$8 sm:$0x30]
        %v2094 = vor.u32 %v2092, %v2093
        %v2095 = vmax.f32 %v2090, %v2094
        %v2097 = vrot.slane %v2095, 3
        %v2099 = vmax.f32 %v2095, %v2097
        %v2100 = vld [vmem:[#allocation8] sm:$0x7]
        %v2101 = vadd.f32 %v2099, %v2100
        %v2102 = vmax.f32 %v2101, 0.0
        %s2103 = scalar_lea.vmem [#allocation3], 24
        %2104 = vst.msk [vmem:[%s2103] ss:$8 sm:$0x7] %vm1951, %v2102
        %2105 = vst.msk [vmem:[%s2103] ss:$8 sm:$0x0] %vm1951, %v2102
        %s2106 = scalar_lea.vmem [#allocation2], 98
        %v2107 = vld [vmem:[%s2106] ss:$8 sm:$0xf]
        %v2108 = vld [vmem:[%s2106] ss:$8 sm:$0x30]
        %v2109 = vor.u32 %v2107, %v2108
        %s2110 = scalar_lea.vmem [#allocation2], 99
        %v2111 = vld [vmem:[%s2110] ss:$8 sm:$0xf]
        %v2112 = vld [vmem:[%s2110] ss:$8 sm:$0x30]
        %v2113 = vor.u32 %v2111, %v2112
        %v2114 = vmax.f32 %v2109, %v2113
        %v2116 = vrot.slane %v2114, 3
        %v2118 = vmax.f32 %v2114, %v2116
        %v2119 = vld [vmem:[#allocation8] sm:$0x7]
        %v2120 = vadd.f32 %v2118, %v2119
        %v2121 = vmax.f32 %v2120, 0.0
        %s2122 = scalar_lea.vmem [#allocation3], 25
        %2123 = vst.msk [vmem:[%s2122] ss:$8 sm:$0x7] %vm1951, %v2121
        %2124 = vst.msk [vmem:[%s2122] ss:$8 sm:$0x0] %vm1951, %v2121
        %s2125 = scalar_lea.vmem [#allocation2], 100
        %v2126 = vld [vmem:[%s2125] ss:$8 sm:$0xf]
        %v2127 = vld [vmem:[%s2125] ss:$8 sm:$0x30]
        %v2128 = vor.u32 %v2126, %v2127
        %s2129 = scalar_lea.vmem [#allocation2], 101
        %v2130 = vld [vmem:[%s2129] ss:$8 sm:$0xf]
        %v2131 = vld [vmem:[%s2129] ss:$8 sm:$0x30]
        %v2132 = vor.u32 %v2130, %v2131
        %v2133 = vmax.f32 %v2128, %v2132
        %v2135 = vrot.slane %v2133, 3
        %v2137 = vmax.f32 %v2133, %v2135
        %v2138 = vld [vmem:[#allocation8] sm:$0x7]
        %v2139 = vadd.f32 %v2137, %v2138
        %v2140 = vmax.f32 %v2139, 0.0
        %s2141 = scalar_lea.vmem [#allocation3], 26
        %2142 = vst.msk [vmem:[%s2141] ss:$8 sm:$0x7] %vm1951, %v2140
        %2143 = vst.msk [vmem:[%s2141] ss:$8 sm:$0x0] %vm1951, %v2140
        %s2144 = scalar_lea.vmem [#allocation2], 102
        %v2145 = vld [vmem:[%s2144] ss:$8 sm:$0xf]
        %v2146 = vld [vmem:[%s2144] ss:$8 sm:$0x30]
        %v2147 = vor.u32 %v2145, %v2146
        %s2148 = scalar_lea.vmem [#allocation2], 103
        %v2149 = vld [vmem:[%s2148] ss:$8 sm:$0xf]
        %v2150 = vld [vmem:[%s2148] ss:$8 sm:$0x30]
        %v2151 = vor.u32 %v2149, %v2150
        %v2152 = vmax.f32 %v2147, %v2151
        %v2154 = vrot.slane %v2152, 3
        %v2156 = vmax.f32 %v2152, %v2154
        %v2157 = vld [vmem:[#allocation8] sm:$0x7]
        %v2158 = vadd.f32 %v2156, %v2157
        %v2159 = vmax.f32 %v2158, 0.0
        %s2160 = scalar_lea.vmem [#allocation3], 27
        %2161 = vst.msk [vmem:[%s2160] ss:$8 sm:$0x7] %vm1951, %v2159
        %2162 = vst.msk [vmem:[%s2160] ss:$8 sm:$0x0] %vm1951, %v2159
        %v2163 = vld [vmem:[#allocation3] sm:$0xff]
        %v2164 = vld [vmem:[#allocation3 + $0x8] sm:$0xff]
        %v2165 = vld [vmem:[#allocation3 + $0x10] sm:$0xff]
        %v2166 = vpack.c.bf16 %v2163, %v2163
        %v2167 = vpack.c.bf16 %v2164, %v2164
        %v2168 = vpack.c.bf16 %v2165, %v2165
        %v2169 = vld [vmem:[#allocation10] sm:$0xff]
        %v2170 = vld [vmem:[#allocation10 + $0x8] sm:$0xff]
        %v2171 = vld [vmem:[#allocation10 + $0x10] sm:$0xff]
        %v2172 = vld [vmem:[#allocation10 + $0x18] sm:$0xff]
        %v2173 = vld [vmem:[#allocation10 + $0x20] sm:$0xff]
        %v2174 = vld [vmem:[#allocation10 + $0x28] sm:$0xff]
        %v2175 = vld [vmem:[#allocation10 + $0x30] sm:$0xff]
        %v2176 = vld [vmem:[#allocation10 + $0x38] sm:$0xff]
        %v2177 = vld [vmem:[#allocation10 + $0x40] sm:$0xff]
        %v2178 = vld [vmem:[#allocation10 + $0x48] sm:$0xff]
        %v2179 = vld [vmem:[#allocation10 + $0x50] sm:$0xff]
        %v2180 = vld [vmem:[#allocation10 + $0x58] sm:$0xff]
        %v2181 = vld [vmem:[#allocation10 + $0x60] sm:$0xff]
        %v2182 = vld [vmem:[#allocation10 + $0x68] sm:$0xff]
        %v2183 = vld [vmem:[#allocation10 + $0x70] sm:$0xff]
        %v2184 = vld [vmem:[#allocation10 + $0x78] sm:$0xff]
        %v2185 = vld [vmem:[#allocation10 + $0x80] sm:$0xff]
        %v2186 = vld [vmem:[#allocation10 + $0x88] sm:$0xff]
        %v2187 = vld [vmem:[#allocation10 + $0x90] sm:$0xff]
        %v2188 = vld [vmem:[#allocation10 + $0x98] sm:$0xff]
        %v2189 = vld [vmem:[#allocation10 + $0xa0] sm:$0xff]
        %v2190 = vld [vmem:[#allocation10 + $0xa8] sm:$0xff]
        %v2191 = vld [vmem:[#allocation10 + $0xb0] sm:$0xff]
        %v2192 = vld [vmem:[#allocation10 + $0xb8] sm:$0xff]
        %v2193 = vld [vmem:[#allocation10 + $0xc0] sm:$0xff]
        %v2194 = vld [vmem:[#allocation10 + $0xc8] sm:$0xff]
        %v2195 = vld [vmem:[#allocation10 + $0xd0] sm:$0xff]
        %v2196 = vld [vmem:[#allocation10 + $0xd8] sm:$0xff]
        %v2197 = vld [vmem:[#allocation10 + $0xe0] sm:$0xff]
        %v2198 = vld [vmem:[#allocation10 + $0xe8] sm:$0xff]
        %v2199 = vld [vmem:[#allocation10 + $0xf0] sm:$0xff]
        %v2200 = vld [vmem:[#allocation10 + $0xf8] sm:$0xff]
        %v2201 = vld [vmem:[#allocation10 + $0x100] sm:$0xff]
        %v2202 = vld [vmem:[#allocation10 + $0x108] sm:$0xff]
        %v2203 = vld [vmem:[#allocation10 + $0x110] sm:$0xff]
        %v2204 = vld [vmem:[#allocation10 + $0x118] sm:$0xff]
        %v2205 = vld [vmem:[#allocation10 + $0x120] sm:$0xff]
        %v2206 = vld [vmem:[#allocation10 + $0x128] sm:$0xff]
        %v2207 = vld [vmem:[#allocation10 + $0x130] sm:$0xff]
        %v2208 = vld [vmem:[#allocation10 + $0x138] sm:$0xff]
        %v2209 = vld [vmem:[#allocation10 + $0x140] sm:$0xff]
        %v2210 = vld [vmem:[#allocation10 + $0x148] sm:$0xff]
        %v2211 = vld [vmem:[#allocation10 + $0x150] sm:$0xff]
        %v2212 = vld [vmem:[#allocation10 + $0x158] sm:$0xff]
        %v2213 = vld [vmem:[#allocation10 + $0x160] sm:$0xff]
        %v2214 = vld [vmem:[#allocation10 + $0x168] sm:$0xff]
        %v2215 = vld [vmem:[#allocation10 + $0x170] sm:$0xff]
        %v2216 = vld [vmem:[#allocation10 + $0x178] sm:$0xff]
        %v2217 = vld [vmem:[#allocation10 + $0x180] sm:$0xff]
        %v2218 = vld [vmem:[#allocation10 + $0x188] sm:$0xff]
        %v2219 = vld [vmem:[#allocation10 + $0x190] sm:$0xff]
        %v2220 = vld [vmem:[#allocation10 + $0x198] sm:$0xff]
        %v2221 = vld [vmem:[#allocation10 + $0x1a0] sm:$0xff]
        %v2222 = vld [vmem:[#allocation10 + $0x1a8] sm:$0xff]
        %v2223 = vld [vmem:[#allocation10 + $0x1b0] sm:$0xff]
        %v2224 = vld [vmem:[#allocation10 + $0x1b8] sm:$0xff]
        %v2225 = vld [vmem:[#allocation10 + $0x1c0] sm:$0xff]
        %v2226 = vld [vmem:[#allocation10 + $0x1c8] sm:$0xff]
        %v2227 = vld [vmem:[#allocation10 + $0x1d0] sm:$0xff]
        %v2228 = vld [vmem:[#allocation10 + $0x1d8] sm:$0xff]
        %v2229 = vld [vmem:[#allocation10 + $0x1e0] sm:$0xff]
        %v2230 = vld [vmem:[#allocation10 + $0x1e8] sm:$0xff]
        %v2231 = vld [vmem:[#allocation10 + $0x1f0] sm:$0xff]
        %v2232 = vld [vmem:[#allocation10 + $0x1f8] sm:$0xff]
        %v2233 = vld [vmem:[#allocation10 + $0x200] sm:$0xff]
        %v2234 = vld [vmem:[#allocation10 + $0x208] sm:$0xff]
        %v2235 = vld [vmem:[#allocation10 + $0x210] sm:$0xff]
        %v2236 = vld [vmem:[#allocation10 + $0x218] sm:$0xff]
        %v2237 = vld [vmem:[#allocation10 + $0x220] sm:$0xff]
        %v2238 = vld [vmem:[#allocation10 + $0x228] sm:$0xff]
        %v2239 = vld [vmem:[#allocation10 + $0x230] sm:$0xff]
        %v2240 = vld [vmem:[#allocation10 + $0x238] sm:$0xff]
        %v2241 = vld [vmem:[#allocation10 + $0x240] sm:$0xff]
        %v2242 = vld [vmem:[#allocation10 + $0x248] sm:$0xff]
        %v2243 = vld [vmem:[#allocation10 + $0x250] sm:$0xff]
        %v2244 = vld [vmem:[#allocation10 + $0x258] sm:$0xff]
        %v2245 = vld [vmem:[#allocation10 + $0x260] sm:$0xff]
        %v2246 = vld [vmem:[#allocation10 + $0x268] sm:$0xff]
        %v2247 = vld [vmem:[#allocation10 + $0x270] sm:$0xff]
        %v2248 = vld [vmem:[#allocation10 + $0x278] sm:$0xff]
        %v2249 = vld [vmem:[#allocation10 + $0x280] sm:$0xff]
        %v2250 = vld [vmem:[#allocation10 + $0x288] sm:$0xff]
        %v2251 = vld [vmem:[#allocation10 + $0x290] sm:$0xff]
        %v2252 = vld [vmem:[#allocation10 + $0x298] sm:$0xff]
        %v2253 = vld [vmem:[#allocation10 + $0x2a0] sm:$0xff]
        %v2254 = vld [vmem:[#allocation10 + $0x2a8] sm:$0xff]
        %v2255 = vld [vmem:[#allocation10 + $0x2b0] sm:$0xff]
        %v2256 = vld [vmem:[#allocation10 + $0x2b8] sm:$0xff]
        %v2257 = vld [vmem:[#allocation10 + $0x2c0] sm:$0xff]
        %v2258 = vld [vmem:[#allocation10 + $0x2c8] sm:$0xff]
        %v2259 = vld [vmem:[#allocation10 + $0x2d0] sm:$0xff]
        %v2260 = vld [vmem:[#allocation10 + $0x2d8] sm:$0xff]
        %v2261 = vld [vmem:[#allocation10 + $0x2e0] sm:$0xff]
        %v2262 = vld [vmem:[#allocation10 + $0x2e8] sm:$0xff]
        %v2263 = vld [vmem:[#allocation10 + $0x2f0] sm:$0xff]
        %v2264 = vld [vmem:[#allocation10 + $0x2f8] sm:$0xff]
        %v2361 = vunpack.c.l.b16 %v2169
        %v2362 = vunpack.c.h.b16 %v2169
        %v2363 = vunpack.c.l.b16 %v2170
        %v2364 = vunpack.c.h.b16 %v2170
        %v2365 = vunpack.c.l.b16 %v2171
        %v2366 = vunpack.c.h.b16 %v2171
        %v2367 = vunpack.c.l.b16 %v2172
        %v2368 = vunpack.c.h.b16 %v2172
        %v2369 = vunpack.c.l.b16 %v2173
        %v2370 = vunpack.c.h.b16 %v2173
        %v2371 = vunpack.c.l.b16 %v2174
        %v2372 = vunpack.c.h.b16 %v2174
        %v2373 = vunpack.c.l.b16 %v2175
        %v2374 = vunpack.c.h.b16 %v2175
        %v2375 = vunpack.c.l.b16 %v2176
        %v2376 = vunpack.c.h.b16 %v2176
        %v2377 = vunpack.c.l.b16 %v2177
        %v2378 = vunpack.c.h.b16 %v2177
        %v2379 = vunpack.c.l.b16 %v2178
        %v2380 = vunpack.c.h.b16 %v2178
        %v2381 = vunpack.c.l.b16 %v2179
        %v2382 = vunpack.c.h.b16 %v2179
        %v2383 = vunpack.c.l.b16 %v2180
        %v2384 = vunpack.c.h.b16 %v2180
        %v2385 = vunpack.c.l.b16 %v2181
        %v2386 = vunpack.c.h.b16 %v2181
        %v2387 = vunpack.c.l.b16 %v2182
        %v2388 = vunpack.c.h.b16 %v2182
        %v2389 = vunpack.c.l.b16 %v2183
        %v2390 = vunpack.c.h.b16 %v2183
        %v2391 = vunpack.c.l.b16 %v2184
        %v2392 = vunpack.c.h.b16 %v2184
        %v2393 = vunpack.c.l.b16 %v2185
        %v2394 = vunpack.c.h.b16 %v2185
        %v2395 = vunpack.c.l.b16 %v2186
        %v2396 = vunpack.c.h.b16 %v2186
        %v2397 = vunpack.c.l.b16 %v2187
        %v2398 = vunpack.c.h.b16 %v2187
        %v2399 = vunpack.c.l.b16 %v2188
        %v2400 = vunpack.c.h.b16 %v2188
        %v2401 = vunpack.c.l.b16 %v2189
        %v2402 = vunpack.c.h.b16 %v2189
        %v2403 = vunpack.c.l.b16 %v2190
        %v2404 = vunpack.c.h.b16 %v2190
        %v2405 = vunpack.c.l.b16 %v2191
        %v2406 = vunpack.c.h.b16 %v2191
        %v2407 = vunpack.c.l.b16 %v2192
        %v2408 = vunpack.c.h.b16 %v2192
        %v2409 = vunpack.c.l.b16 %v2193
        %v2410 = vunpack.c.h.b16 %v2193
        %v2411 = vunpack.c.l.b16 %v2194
        %v2412 = vunpack.c.h.b16 %v2194
        %v2413 = vunpack.c.l.b16 %v2195
        %v2414 = vunpack.c.h.b16 %v2195
        %v2415 = vunpack.c.l.b16 %v2196
        %v2416 = vunpack.c.h.b16 %v2196
        %v2417 = vunpack.c.l.b16 %v2197
        %v2418 = vunpack.c.h.b16 %v2197
        %v2419 = vunpack.c.l.b16 %v2198
        %v2420 = vunpack.c.h.b16 %v2198
        %v2421 = vunpack.c.l.b16 %v2199
        %v2422 = vunpack.c.h.b16 %v2199
        %v2423 = vunpack.c.l.b16 %v2200
        %v2424 = vunpack.c.h.b16 %v2200
        %v2425 = vunpack.c.l.b16 %v2201
        %v2426 = vunpack.c.h.b16 %v2201
        %v2427 = vunpack.c.l.b16 %v2202
        %v2428 = vunpack.c.h.b16 %v2202
        %v2429 = vunpack.c.l.b16 %v2203
        %v2430 = vunpack.c.h.b16 %v2203
        %v2431 = vunpack.c.l.b16 %v2204
        %v2432 = vunpack.c.h.b16 %v2204
        %v2433 = vunpack.c.l.b16 %v2205
        %v2434 = vunpack.c.h.b16 %v2205
        %v2435 = vunpack.c.l.b16 %v2206
        %v2436 = vunpack.c.h.b16 %v2206
        %v2437 = vunpack.c.l.b16 %v2207
        %v2438 = vunpack.c.h.b16 %v2207
        %v2439 = vunpack.c.l.b16 %v2208
        %v2440 = vunpack.c.h.b16 %v2208
        %v2441 = vunpack.c.l.b16 %v2209
        %v2442 = vunpack.c.h.b16 %v2209
        %v2443 = vunpack.c.l.b16 %v2210
        %v2444 = vunpack.c.h.b16 %v2210
        %v2445 = vunpack.c.l.b16 %v2211
        %v2446 = vunpack.c.h.b16 %v2211
        %v2447 = vunpack.c.l.b16 %v2212
        %v2448 = vunpack.c.h.b16 %v2212
        %v2449 = vunpack.c.l.b16 %v2213
        %v2450 = vunpack.c.h.b16 %v2213
        %v2451 = vunpack.c.l.b16 %v2214
        %v2452 = vunpack.c.h.b16 %v2214
        %v2453 = vunpack.c.l.b16 %v2215
        %v2454 = vunpack.c.h.b16 %v2215
        %v2455 = vunpack.c.l.b16 %v2216
        %v2456 = vunpack.c.h.b16 %v2216
        %v2457 = vunpack.c.l.b16 %v2217
        %v2458 = vunpack.c.h.b16 %v2217
        %v2459 = vunpack.c.l.b16 %v2218
        %v2460 = vunpack.c.h.b16 %v2218
        %v2461 = vunpack.c.l.b16 %v2219
        %v2462 = vunpack.c.h.b16 %v2219
        %v2463 = vunpack.c.l.b16 %v2220
        %v2464 = vunpack.c.h.b16 %v2220
        %v2465 = vunpack.c.l.b16 %v2221
        %v2466 = vunpack.c.h.b16 %v2221
        %v2467 = vunpack.c.l.b16 %v2222
        %v2468 = vunpack.c.h.b16 %v2222
        %v2469 = vunpack.c.l.b16 %v2223
        %v2470 = vunpack.c.h.b16 %v2223
        %v2471 = vunpack.c.l.b16 %v2224
        %v2472 = vunpack.c.h.b16 %v2224
        %v2473 = vunpack.c.l.b16 %v2225
        %v2474 = vunpack.c.h.b16 %v2225
        %v2475 = vunpack.c.l.b16 %v2226
        %v2476 = vunpack.c.h.b16 %v2226
        %v2477 = vunpack.c.l.b16 %v2227
        %v2478 = vunpack.c.h.b16 %v2227
        %v2479 = vunpack.c.l.b16 %v2228
        %v2480 = vunpack.c.h.b16 %v2228
        %v2481 = vunpack.c.l.b16 %v2229
        %v2482 = vunpack.c.h.b16 %v2229
        %v2483 = vunpack.c.l.b16 %v2230
        %v2484 = vunpack.c.h.b16 %v2230
        %v2485 = vunpack.c.l.b16 %v2231
        %v2486 = vunpack.c.h.b16 %v2231
        %v2487 = vunpack.c.l.b16 %v2232
        %v2488 = vunpack.c.h.b16 %v2232
        %v2489 = vunpack.c.l.b16 %v2233
        %v2490 = vunpack.c.h.b16 %v2233
        %v2491 = vunpack.c.l.b16 %v2234
        %v2492 = vunpack.c.h.b16 %v2234
        %v2493 = vunpack.c.l.b16 %v2235
        %v2494 = vunpack.c.h.b16 %v2235
        %v2495 = vunpack.c.l.b16 %v2236
        %v2496 = vunpack.c.h.b16 %v2236
        %v2497 = vunpack.c.l.b16 %v2237
        %v2498 = vunpack.c.h.b16 %v2237
        %v2499 = vunpack.c.l.b16 %v2238
        %v2500 = vunpack.c.h.b16 %v2238
        %v2501 = vunpack.c.l.b16 %v2239
        %v2502 = vunpack.c.h.b16 %v2239
        %v2503 = vunpack.c.l.b16 %v2240
        %v2504 = vunpack.c.h.b16 %v2240
        %v2505 = vunpack.c.l.b16 %v2241
        %v2506 = vunpack.c.h.b16 %v2241
        %v2507 = vunpack.c.l.b16 %v2242
        %v2508 = vunpack.c.h.b16 %v2242
        %v2509 = vunpack.c.l.b16 %v2243
        %v2510 = vunpack.c.h.b16 %v2243
        %v2511 = vunpack.c.l.b16 %v2244
        %v2512 = vunpack.c.h.b16 %v2244
        %v2513 = vunpack.c.l.b16 %v2245
        %v2514 = vunpack.c.h.b16 %v2245
        %v2515 = vunpack.c.l.b16 %v2246
        %v2516 = vunpack.c.h.b16 %v2246
        %v2517 = vunpack.c.l.b16 %v2247
        %v2518 = vunpack.c.h.b16 %v2247
        %v2519 = vunpack.c.l.b16 %v2248
        %v2520 = vunpack.c.h.b16 %v2248
        %v2521 = vunpack.c.l.b16 %v2249
        %v2522 = vunpack.c.h.b16 %v2249
        %v2523 = vunpack.c.l.b16 %v2250
        %v2524 = vunpack.c.h.b16 %v2250
        %v2525 = vunpack.c.l.b16 %v2251
        %v2526 = vunpack.c.h.b16 %v2251
        %v2527 = vunpack.c.l.b16 %v2252
        %v2528 = vunpack.c.h.b16 %v2252
        %v2529 = vunpack.c.l.b16 %v2253
        %v2530 = vunpack.c.h.b16 %v2253
        %v2531 = vunpack.c.l.b16 %v2254
        %v2532 = vunpack.c.h.b16 %v2254
        %v2533 = vunpack.c.l.b16 %v2255
        %v2534 = vunpack.c.h.b16 %v2255
        %v2535 = vunpack.c.l.b16 %v2256
        %v2536 = vunpack.c.h.b16 %v2256
        %v2537 = vunpack.c.l.b16 %v2257
        %v2538 = vunpack.c.h.b16 %v2257
        %v2539 = vunpack.c.l.b16 %v2258
        %v2540 = vunpack.c.h.b16 %v2258
        %v2541 = vunpack.c.l.b16 %v2259
        %v2542 = vunpack.c.h.b16 %v2259
        %v2543 = vunpack.c.l.b16 %v2260
        %v2544 = vunpack.c.h.b16 %v2260
        %v2545 = vunpack.c.l.b16 %v2261
        %v2546 = vunpack.c.h.b16 %v2261
        %v2547 = vunpack.c.l.b16 %v2262
        %v2548 = vunpack.c.h.b16 %v2262
        %v2549 = vunpack.c.l.b16 %v2263
        %v2550 = vunpack.c.h.b16 %v2263
        %v2551 = vunpack.c.l.b16 %v2264
        %v2552 = vunpack.c.h.b16 %v2264
        %v2553 = vpack.c.b16 %v2365, %v2361
        %v2554 = vpack.c.b16 %v2366, %v2362
        %v2555 = vpack.c.b16 %v2367, %v2363
        %v2556 = vpack.c.b16 %v2368, %v2364
        %v2557 = vpack.c.b16 %v2373, %v2369
        %v2558 = vpack.c.b16 %v2374, %v2370
        %v2559 = vpack.c.b16 %v2375, %v2371
        %v2560 = vpack.c.b16 %v2376, %v2372
        %v2561 = vpack.c.b16 %v2381, %v2377
        %v2562 = vpack.c.b16 %v2382, %v2378
        %v2563 = vpack.c.b16 %v2383, %v2379
        %v2564 = vpack.c.b16 %v2384, %v2380
        %v2565 = vpack.c.b16 %v2389, %v2385
        %v2566 = vpack.c.b16 %v2390, %v2386
        %v2567 = vpack.c.b16 %v2391, %v2387
        %v2568 = vpack.c.b16 %v2392, %v2388
        %v2569 = vpack.c.b16 %v2397, %v2393
        %v2570 = vpack.c.b16 %v2398, %v2394
        %v2571 = vpack.c.b16 %v2399, %v2395
        %v2572 = vpack.c.b16 %v2400, %v2396
        %v2573 = vpack.c.b16 %v2405, %v2401
        %v2574 = vpack.c.b16 %v2406, %v2402
        %v2575 = vpack.c.b16 %v2407, %v2403
        %v2576 = vpack.c.b16 %v2408, %v2404
        %v2577 = vpack.c.b16 %v2413, %v2409
        %v2578 = vpack.c.b16 %v2414, %v2410
        %v2579 = vpack.c.b16 %v2415, %v2411
        %v2580 = vpack.c.b16 %v2416, %v2412
        %v2581 = vpack.c.b16 %v2421, %v2417
        %v2582 = vpack.c.b16 %v2422, %v2418
        %v2583 = vpack.c.b16 %v2423, %v2419
        %v2584 = vpack.c.b16 %v2424, %v2420
        %v2585 = vpack.c.b16 %v2429, %v2425
        %v2586 = vpack.c.b16 %v2430, %v2426
        %v2587 = vpack.c.b16 %v2431, %v2427
        %v2588 = vpack.c.b16 %v2432, %v2428
        %v2589 = vpack.c.b16 %v2437, %v2433
        %v2590 = vpack.c.b16 %v2438, %v2434
        %v2591 = vpack.c.b16 %v2439, %v2435
        %v2592 = vpack.c.b16 %v2440, %v2436
        %v2593 = vpack.c.b16 %v2445, %v2441
        %v2594 = vpack.c.b16 %v2446, %v2442
        %v2595 = vpack.c.b16 %v2447, %v2443
        %v2596 = vpack.c.b16 %v2448, %v2444
        %v2597 = vpack.c.b16 %v2453, %v2449
        %v2598 = vpack.c.b16 %v2454, %v2450
        %v2599 = vpack.c.b16 %v2455, %v2451
        %v2600 = vpack.c.b16 %v2456, %v2452
        %v2601 = vpack.c.b16 %v2461, %v2457
        %v2602 = vpack.c.b16 %v2462, %v2458
        %v2603 = vpack.c.b16 %v2463, %v2459
        %v2604 = vpack.c.b16 %v2464, %v2460
        %v2605 = vpack.c.b16 %v2469, %v2465
        %v2606 = vpack.c.b16 %v2470, %v2466
        %v2607 = vpack.c.b16 %v2471, %v2467
        %v2608 = vpack.c.b16 %v2472, %v2468
        %v2609 = vpack.c.b16 %v2477, %v2473
        %v2610 = vpack.c.b16 %v2478, %v2474
        %v2611 = vpack.c.b16 %v2479, %v2475
        %v2612 = vpack.c.b16 %v2480, %v2476
        %v2613 = vpack.c.b16 %v2485, %v2481
        %v2614 = vpack.c.b16 %v2486, %v2482
        %v2615 = vpack.c.b16 %v2487, %v2483
        %v2616 = vpack.c.b16 %v2488, %v2484
        %v2617 = vpack.c.b16 %v2493, %v2489
        %v2618 = vpack.c.b16 %v2494, %v2490
        %v2619 = vpack.c.b16 %v2495, %v2491
        %v2620 = vpack.c.b16 %v2496, %v2492
        %v2621 = vpack.c.b16 %v2501, %v2497
        %v2622 = vpack.c.b16 %v2502, %v2498
        %v2623 = vpack.c.b16 %v2503, %v2499
        %v2624 = vpack.c.b16 %v2504, %v2500
        %v2625 = vpack.c.b16 %v2509, %v2505
        %v2626 = vpack.c.b16 %v2510, %v2506
        %v2627 = vpack.c.b16 %v2511, %v2507
        %v2628 = vpack.c.b16 %v2512, %v2508
        %v2629 = vpack.c.b16 %v2517, %v2513
        %v2630 = vpack.c.b16 %v2518, %v2514
        %v2631 = vpack.c.b16 %v2519, %v2515
        %v2632 = vpack.c.b16 %v2520, %v2516
        %v2633 = vpack.c.b16 %v2525, %v2521
        %v2634 = vpack.c.b16 %v2526, %v2522
        %v2635 = vpack.c.b16 %v2527, %v2523
        %v2636 = vpack.c.b16 %v2528, %v2524
        %v2637 = vpack.c.b16 %v2533, %v2529
        %v2638 = vpack.c.b16 %v2534, %v2530
        %v2639 = vpack.c.b16 %v2535, %v2531
        %v2640 = vpack.c.b16 %v2536, %v2532
        %v2641 = vpack.c.b16 %v2541, %v2537
        %v2642 = vpack.c.b16 %v2542, %v2538
        %v2643 = vpack.c.b16 %v2543, %v2539
        %v2644 = vpack.c.b16 %v2544, %v2540
        %v2645 = vpack.c.b16 %v2549, %v2545
        %v2646 = vpack.c.b16 %v2550, %v2546
        %v2647 = vpack.c.b16 %v2551, %v2547
        %v2648 = vpack.c.b16 %v2552, %v2548
        %2745 = vmatprep.subr.bf16.mxu0 %v2554
        %2746 = vmatpush1.bf16.msra.mxu0 %v2553
        %2747 = vmatprep.subr.bf16.mxu0 %v2558
        %2748 = vmatpush1.bf16.msra.mxu0 %v2557
        %2749 = vmatprep.subr.bf16.mxu0 %v2562
        %2750 = vmatpush1.bf16.msra.mxu0 %v2561
        %2751 = vmatprep.subr.bf16.mxu0 %v2566
        %2752 = vmatpush1.bf16.msra.mxu0 %v2565
        %2753 = vmatprep.subr.bf16.mxu0 %v2570
        %2754 = vmatpush1.bf16.msra.mxu0 %v2569
        %2755 = vmatprep.subr.bf16.mxu0 %v2574
        %2756 = vmatpush1.bf16.msra.mxu0 %v2573
        %2757 = vmatprep.subr.bf16.mxu0 %v2578
        %2758 = vmatpush1.bf16.msra.mxu0 %v2577
        %2759 = vmatprep.subr.bf16.mxu0 %v2582
        %2760 = vmatpush1.bf16.msra.mxu0 %v2581
        %2761 = vmatprep.subr.bf16.mxu0 %v2586
        %2762 = vmatpush1.bf16.msra.mxu0 %v2585
        %2763 = vmatprep.subr.bf16.mxu0 %v2590
        %2764 = vmatpush1.bf16.msra.mxu0 %v2589
        %2765 = vmatprep.subr.bf16.mxu0 %v2594
        %2766 = vmatpush1.bf16.msra.mxu0 %v2593
        %2767 = vmatprep.subr.bf16.mxu0 %v2598
        %2768 = vmatpush1.bf16.msra.mxu0 %v2597
        %2769 = vmatprep.subr.bf16.mxu0 %v2602
        %2770 = vmatpush1.bf16.msra.mxu0 %v2601
        %2771 = vmatprep.subr.bf16.mxu0 %v2606
        %2772 = vmatpush1.bf16.msra.mxu0 %v2605
        %2773 = vmatprep.subr.bf16.mxu0 %v2610
        %2774 = vmatpush1.bf16.msra.mxu0 %v2609
        %2775 = vmatprep.subr.bf16.mxu0 %v2614
        %2776 = vmatpush1.bf16.msra.mxu0 %v2613
        %2777 = vmatprep.mubr.bf16.mxu0 %v2167
        %2778 = vmatmul.mubr.bf16.gmra.mrb[0].mxu0 %v2166
        %v2779 = vpop.f32.mrb[0].mxu0
        %v2780 = vadd.f32 0.0, %v2779
        %v2781 = vpop.f32.mrb[0].mxu0
        %v2782 = vadd.f32 0.0, %v2781
        %v2783 = vpop.f32.mrb[0].mxu0
        %v2784 = vpop.f32.mrb[0].mxu0
        %2785 = vdwg.mxu0
        %2786 = vmatprep.subr.bf16.mxu0 %v2618
        %2787 = vmatpush1.bf16.msra.mxu0 %v2617
        %2788 = vmatprep.subr.bf16.mxu0 %v2622
        %2789 = vmatpush1.bf16.msra.mxu0 %v2621
        %2790 = vmatprep.subr.bf16.mxu0 %v2626
        %2791 = vmatpush1.bf16.msra.mxu0 %v2625
        %2792 = vmatprep.subr.bf16.mxu0 %v2630
        %2793 = vmatpush1.bf16.msra.mxu0 %v2629
        %2794 = vmatprep.subr.bf16.mxu0 %v2634
        %2795 = vmatpush1.bf16.msra.mxu0 %v2633
        %2796 = vmatprep.subr.bf16.mxu0 %v2638
        %2797 = vmatpush1.bf16.msra.mxu0 %v2637
        %2798 = vmatprep.subr.bf16.mxu0 %v2642
        %2799 = vmatpush1.bf16.msra.mxu0 %v2641
        %2800 = vmatprep.subr.bf16.mxu0 %v2646
        %2801 = vmatpush1.bf16.msra.mxu0 %v2645
        %2802 = vmatprep.subr.bf16.mxu0 0
        %2803 = vmatpush1.bf16.msra.mxu0 0
        %2804 = vmatprep.subr.bf16.mxu0 0
        %2805 = vmatpush1.bf16.msra.mxu0 0
        %2806 = vmatprep.subr.bf16.mxu0 0
        %2807 = vmatpush1.bf16.msra.mxu0 0
        %2808 = vmatprep.subr.bf16.mxu0 0
        %2809 = vmatpush1.bf16.msra.mxu0 0
        %2810 = vmatprep.subr.bf16.mxu0 0
        %2811 = vmatpush1.bf16.msra.mxu0 0
        %2812 = vmatprep.subr.bf16.mxu0 0
        %2813 = vmatpush1.bf16.msra.mxu0 0
        %2814 = vmatprep.subr.bf16.mxu0 0
        %2815 = vmatpush1.bf16.msra.mxu0 0
        %2816 = vmatprep.subr.bf16.mxu0 0
        %2817 = vmatpush1.bf16.msra.mxu0 0
        %2818 = vmatprep.mubr.bf16.mxu0 0
        %2819 = vmatmul.mubr.bf16.gmra.mrb[0].mxu0 %v2168
        %v2820 = vpop.f32.mrb[0].mxu0
        %v2821 = vadd.f32 %v2780, %v2820
        %v2822 = vpop.f32.mrb[0].mxu0
        %v2823 = vadd.f32 %v2782, %v2822
        %v2824 = vpop.f32.mrb[0].mxu0
        %v2825 = vpop.f32.mrb[0].mxu0
        %2826 = vdwg.mxu0
        %2827 = vmatprep.subr.bf16.mxu0 %v2556
        %2828 = vmatpush1.bf16.msra.mxu0 %v2555
        %2829 = vmatprep.subr.bf16.mxu0 %v2560
        %2830 = vmatpush1.bf16.msra.mxu0 %v2559
        %2831 = vmatprep.subr.bf16.mxu0 %v2564
        %2832 = vmatpush1.bf16.msra.mxu0 %v2563
        %2833 = vmatprep.subr.bf16.mxu0 %v2568
        %2834 = vmatpush1.bf16.msra.mxu0 %v2567
        %2835 = vmatprep.subr.bf16.mxu0 %v2572
        %2836 = vmatpush1.bf16.msra.mxu0 %v2571
        %2837 = vmatprep.subr.bf16.mxu0 %v2576
        %2838 = vmatpush1.bf16.msra.mxu0 %v2575
        %2839 = vmatprep.subr.bf16.mxu0 %v2580
        %2840 = vmatpush1.bf16.msra.mxu0 %v2579
        %2841 = vmatprep.subr.bf16.mxu0 %v2584
        %2842 = vmatpush1.bf16.msra.mxu0 %v2583
        %2843 = vmatprep.subr.bf16.mxu0 %v2588
        %2844 = vmatpush1.bf16.msra.mxu0 %v2587
        %2845 = vmatprep.subr.bf16.mxu0 %v2592
        %2846 = vmatpush1.bf16.msra.mxu0 %v2591
        %2847 = vmatprep.subr.bf16.mxu0 %v2596
        %2848 = vmatpush1.bf16.msra.mxu0 %v2595
        %2849 = vmatprep.subr.bf16.mxu0 %v2600
        %2850 = vmatpush1.bf16.msra.mxu0 %v2599
        %2851 = vmatprep.subr.bf16.mxu0 %v2604
        %2852 = vmatpush1.bf16.msra.mxu0 %v2603
        %2853 = vmatprep.subr.bf16.mxu0 %v2608
        %2854 = vmatpush1.bf16.msra.mxu0 %v2607
        %2855 = vmatprep.subr.bf16.mxu0 %v2612
        %2856 = vmatpush1.bf16.msra.mxu0 %v2611
        %2857 = vmatprep.subr.bf16.mxu0 %v2616
        %2858 = vmatpush1.bf16.msra.mxu0 %v2615
        %2859 = vmatprep.mubr.bf16.mxu0 %v2167
        %2860 = vmatmul.mubr.bf16.gmra.mrb[0].mxu0 %v2166
        %v2861 = vpop.f32.mrb[0].mxu0
        %v2862 = vadd.f32 0.0, %v2861
        %v2863 = vpop.f32.mrb[0].mxu0
        %v2864 = vadd.f32 0.0, %v2863
        %v2865 = vpop.f32.mrb[0].mxu0
        %v2866 = vpop.f32.mrb[0].mxu0
        %2867 = vdwg.mxu0
        %2868 = vmatprep.subr.bf16.mxu0 %v2620
        %2869 = vmatpush1.bf16.msra.mxu0 %v2619
        %2870 = vmatprep.subr.bf16.mxu0 %v2624
        %2871 = vmatpush1.bf16.msra.mxu0 %v2623
        %2872 = vmatprep.subr.bf16.mxu0 %v2628
        %2873 = vmatpush1.bf16.msra.mxu0 %v2627
        %2874 = vmatprep.subr.bf16.mxu0 %v2632
        %2875 = vmatpush1.bf16.msra.mxu0 %v2631
        %2876 = vmatprep.subr.bf16.mxu0 %v2636
        %2877 = vmatpush1.bf16.msra.mxu0 %v2635
        %2878 = vmatprep.subr.bf16.mxu0 %v2640
        %2879 = vmatpush1.bf16.msra.mxu0 %v2639
        %2880 = vmatprep.subr.bf16.mxu0 %v2644
        %2881 = vmatpush1.bf16.msra.mxu0 %v2643
        %2882 = vmatprep.subr.bf16.mxu0 %v2648
        %2883 = vmatpush1.bf16.msra.mxu0 %v2647
        %2884 = vmatprep.subr.bf16.mxu0 0
        %2885 = vmatpush1.bf16.msra.mxu0 0
        %2886 = vmatprep.subr.bf16.mxu0 0
        %2887 = vmatpush1.bf16.msra.mxu0 0
        %2888 = vmatprep.subr.bf16.mxu0 0
        %2889 = vmatpush1.bf16.msra.mxu0 0
        %2890 = vmatprep.subr.bf16.mxu0 0
        %2891 = vmatpush1.bf16.msra.mxu0 0
        %2892 = vmatprep.subr.bf16.mxu0 0
        %2893 = vmatpush1.bf16.msra.mxu0 0
        %2894 = vmatprep.subr.bf16.mxu0 0
        %2895 = vmatpush1.bf16.msra.mxu0 0
        %2896 = vmatprep.subr.bf16.mxu0 0
        %2897 = vmatpush1.bf16.msra.mxu0 0
        %2898 = vmatprep.subr.bf16.mxu0 0
        %2899 = vmatpush1.bf16.msra.mxu0 0
        %2900 = vmatprep.mubr.bf16.mxu0 0
        %2901 = vmatmul.mubr.bf16.gmra.mrb[0].mxu0 %v2168
        %v2902 = vpop.f32.mrb[0].mxu0
        %v2903 = vadd.f32 %v2862, %v2902
        %v2904 = vpop.f32.mrb[0].mxu0
        %v2905 = vadd.f32 %v2864, %v2904
        %v2906 = vpop.f32.mrb[0].mxu0
        %v2907 = vpop.f32.mrb[0].mxu0
        %2908 = vdwg.mxu0
        %2909 = vst [vmem:[#allocation4] sm:$0xff] %v2821
        %2910 = vst [vmem:[#allocation4 + $0x8] sm:$0xff] %v2823
        %2911 = vst [vmem:[#allocation4 + $0x10] sm:$0xff] %v2903
        %2912 = vst [vmem:[#allocation4 + $0x18] sm:$0xff] %v2905
        %v2913 = vld [vmem:[#allocation3] sm:$0xfe]
        %v2914 = vld [vmem:[#allocation3 + $0x8] sm:$0xfe]
        %v2915 = vld [vmem:[#allocation3 + $0x10] sm:$0xfe]
        %v2916 = vld [vmem:[#allocation3 + $0x18] sm:$0x1]
        %v2917 = vld [vmem:[#allocation3 + $0x20] sm:$0x1]
        %v2918 = vld [vmem:[#allocation3 + $0x28] sm:$0x1]
        %v2919 = vpack.c.bf16 %v2916, %v2913
        %v2920 = vpack.c.bf16 %v2917, %v2914
        %v2921 = vpack.c.bf16 %v2918, %v2915
        %s2922 = scalar_lea.vmem [#allocation10], 768
        %v2923 = vld [vmem:[%s2922] sm:$0xff]
        %v2924 = vld [vmem:[%s2922 + $0x8] sm:$0xff]
        %v2925 = vld [vmem:[%s2922 + $0x10] sm:$0xff]
        %v2926 = vld [vmem:[%s2922 + $0x18] sm:$0xff]
        %v2927 = vld [vmem:[%s2922 + $0x20] sm:$0xff]
        %v2928 = vld [vmem:[%s2922 + $0x28] sm:$0xff]
        %v2929 = vld [vmem:[%s2922 + $0x30] sm:$0xff]
        %v2930 = vld [vmem:[%s2922 + $0x38] sm:$0xff]
        %v2931 = vld [vmem:[%s2922 + $0x40] sm:$0xff]
        %v2932 = vld [vmem:[%s2922 + $0x48] sm:$0xff]
        %v2933 = vld [vmem:[%s2922 + $0x50] sm:$0xff]
        %v2934 = vld [vmem:[%s2922 + $0x58] sm:$0xff]
        %v2935 = vld [vmem:[%s2922 + $0x60] sm:$0xff]
        %v2936 = vld [vmem:[%s2922 + $0x68] sm:$0xff]
        %v2937 = vld [vmem:[%s2922 + $0x70] sm:$0xff]
        %v2938 = vld [vmem:[%s2922 + $0x78] sm:$0xff]
        %v2939 = vld [vmem:[%s2922 + $0x80] sm:$0xff]
        %v2940 = vld [vmem:[%s2922 + $0x88] sm:$0xff]
        %v2941 = vld [vmem:[%s2922 + $0x90] sm:$0xff]
        %v2942 = vld [vmem:[%s2922 + $0x98] sm:$0xff]
        %v2943 = vld [vmem:[%s2922 + $0xa0] sm:$0xff]
        %v2944 = vld [vmem:[%s2922 + $0xa8] sm:$0xff]
        %v2945 = vld [vmem:[%s2922 + $0xb0] sm:$0xff]
        %v2946 = vld [vmem:[%s2922 + $0xb8] sm:$0xff]
        %v2947 = vld [vmem:[%s2922 + $0xc0] sm:$0xff]
        %v2948 = vld [vmem:[%s2922 + $0xc8] sm:$0xff]
        %v2949 = vld [vmem:[%s2922 + $0xd0] sm:$0xff]
        %v2950 = vld [vmem:[%s2922 + $0xd8] sm:$0xff]
        %v2951 = vld [vmem:[%s2922 + $0xe0] sm:$0xff]
        %v2952 = vld [vmem:[%s2922 + $0xe8] sm:$0xff]
        %v2953 = vld [vmem:[%s2922 + $0xf0] sm:$0xff]
        %v2954 = vld [vmem:[%s2922 + $0xf8] sm:$0xff]
        %v2955 = vld [vmem:[%s2922 + $0x100] sm:$0xff]
        %v2956 = vld [vmem:[%s2922 + $0x108] sm:$0xff]
        %v2957 = vld [vmem:[%s2922 + $0x110] sm:$0xff]
        %v2958 = vld [vmem:[%s2922 + $0x118] sm:$0xff]
        %v2959 = vld [vmem:[%s2922 + $0x120] sm:$0xff]
        %v2960 = vld [vmem:[%s2922 + $0x128] sm:$0xff]
        %v2961 = vld [vmem:[%s2922 + $0x130] sm:$0xff]
        %v2962 = vld [vmem:[%s2922 + $0x138] sm:$0xff]
        %v2963 = vld [vmem:[%s2922 + $0x140] sm:$0xff]
        %v2964 = vld [vmem:[%s2922 + $0x148] sm:$0xff]
        %v2965 = vld [vmem:[%s2922 + $0x150] sm:$0xff]
        %v2966 = vld [vmem:[%s2922 + $0x158] sm:$0xff]
        %v2967 = vld [vmem:[%s2922 + $0x160] sm:$0xff]
        %v2968 = vld [vmem:[%s2922 + $0x168] sm:$0xff]
        %v2969 = vld [vmem:[%s2922 + $0x170] sm:$0xff]
        %v2970 = vld [vmem:[%s2922 + $0x178] sm:$0xff]
        %v2971 = vld [vmem:[%s2922 + $0x180] sm:$0xff]
        %v2972 = vld [vmem:[%s2922 + $0x188] sm:$0xff]
        %v2973 = vld [vmem:[%s2922 + $0x190] sm:$0xff]
        %v2974 = vld [vmem:[%s2922 + $0x198] sm:$0xff]
        %v2975 = vld [vmem:[%s2922 + $0x1a0] sm:$0xff]
        %v2976 = vld [vmem:[%s2922 + $0x1a8] sm:$0xff]
        %v2977 = vld [vmem:[%s2922 + $0x1b0] sm:$0xff]
        %v2978 = vld [vmem:[%s2922 + $0x1b8] sm:$0xff]
        %v2979 = vld [vmem:[%s2922 + $0x1c0] sm:$0xff]
        %v2980 = vld [vmem:[%s2922 + $0x1c8] sm:$0xff]
        %v2981 = vld [vmem:[%s2922 + $0x1d0] sm:$0xff]
        %v2982 = vld [vmem:[%s2922 + $0x1d8] sm:$0xff]
        %v2983 = vld [vmem:[%s2922 + $0x1e0] sm:$0xff]
        %v2984 = vld [vmem:[%s2922 + $0x1e8] sm:$0xff]
        %v2985 = vld [vmem:[%s2922 + $0x1f0] sm:$0xff]
        %v2986 = vld [vmem:[%s2922 + $0x1f8] sm:$0xff]
        %v2987 = vld [vmem:[%s2922 + $0x200] sm:$0xff]
        %v2988 = vld [vmem:[%s2922 + $0x208] sm:$0xff]
        %v2989 = vld [vmem:[%s2922 + $0x210] sm:$0xff]
        %v2990 = vld [vmem:[%s2922 + $0x218] sm:$0xff]
        %v2991 = vld [vmem:[%s2922 + $0x220] sm:$0xff]
        %v2992 = vld [vmem:[%s2922 + $0x228] sm:$0xff]
        %v2993 = vld [vmem:[%s2922 + $0x230] sm:$0xff]
        %v2994 = vld [vmem:[%s2922 + $0x238] sm:$0xff]
        %v2995 = vld [vmem:[%s2922 + $0x240] sm:$0xff]
        %v2996 = vld [vmem:[%s2922 + $0x248] sm:$0xff]
        %v2997 = vld [vmem:[%s2922 + $0x250] sm:$0xff]
        %v2998 = vld [vmem:[%s2922 + $0x258] sm:$0xff]
        %v2999 = vld [vmem:[%s2922 + $0x260] sm:$0xff]
        %v3000 = vld [vmem:[%s2922 + $0x268] sm:$0xff]
        %v3001 = vld [vmem:[%s2922 + $0x270] sm:$0xff]
        %v3002 = vld [vmem:[%s2922 + $0x278] sm:$0xff]
        %v3003 = vld [vmem:[%s2922 + $0x280] sm:$0xff]
        %v3004 = vld [vmem:[%s2922 + $0x288] sm:$0xff]
        %v3005 = vld [vmem:[%s2922 + $0x290] sm:$0xff]
        %v3006 = vld [vmem:[%s2922 + $0x298] sm:$0xff]
        %v3007 = vld [vmem:[%s2922 + $0x2a0] sm:$0xff]
        %v3008 = vld [vmem:[%s2922 + $0x2a8] sm:$0xff]
        %v3009 = vld [vmem:[%s2922 + $0x2b0] sm:$0xff]
        %v3010 = vld [vmem:[%s2922 + $0x2b8] sm:$0xff]
        %v3011 = vld [vmem:[%s2922 + $0x2c0] sm:$0xff]
        %v3012 = vld [vmem:[%s2922 + $0x2c8] sm:$0xff]
        %v3013 = vld [vmem:[%s2922 + $0x2d0] sm:$0xff]
        %v3014 = vld [vmem:[%s2922 + $0x2d8] sm:$0xff]
        %v3015 = vld [vmem:[%s2922 + $0x2e0] sm:$0xff]
        %v3016 = vld [vmem:[%s2922 + $0x2e8] sm:$0xff]
        %v3017 = vld [vmem:[%s2922 + $0x2f0] sm:$0xff]
        %v3018 = vld [vmem:[%s2922 + $0x2f8] sm:$0xff]
        %v3020 = vshrl.u32 %v2919, 16
        %v3022 = vshll.u32 %v2919, 16
        %v3024 = vrot.slane %v3022, 1
        %v3025 = vor.u32 %v3020, %v3024
        %v3027 = vshrl.u32 %v2920, 16
        %v3029 = vshll.u32 %v2920, 16
        %v3031 = vrot.slane %v3029, 1
        %v3032 = vor.u32 %v3027, %v3031
        %v3034 = vshrl.u32 %v2921, 16
        %v3036 = vshll.u32 %v2921, 16
        %v3038 = vrot.slane %v3036, 1
        %v3039 = vor.u32 %v3034, %v3038
        %v3139 = vunpack.c.l.b16 %v2923
        %v3140 = vunpack.c.h.b16 %v2923
        %v3141 = vunpack.c.l.b16 %v2924
        %v3142 = vunpack.c.h.b16 %v2924
        %v3143 = vunpack.c.l.b16 %v2925
        %v3144 = vunpack.c.h.b16 %v2925
        %v3145 = vunpack.c.l.b16 %v2926
        %v3146 = vunpack.c.h.b16 %v2926
        %v3147 = vunpack.c.l.b16 %v2927
        %v3148 = vunpack.c.h.b16 %v2927
        %v3149 = vunpack.c.l.b16 %v2928
        %v3150 = vunpack.c.h.b16 %v2928
        %v3151 = vunpack.c.l.b16 %v2929
        %v3152 = vunpack.c.h.b16 %v2929
        %v3153 = vunpack.c.l.b16 %v2930
        %v3154 = vunpack.c.h.b16 %v2930
        %v3155 = vunpack.c.l.b16 %v2931
        %v3156 = vunpack.c.h.b16 %v2931
        %v3157 = vunpack.c.l.b16 %v2932
        %v3158 = vunpack.c.h.b16 %v2932
        %v3159 = vunpack.c.l.b16 %v2933
        %v3160 = vunpack.c.h.b16 %v2933
        %v3161 = vunpack.c.l.b16 %v2934
        %v3162 = vunpack.c.h.b16 %v2934
        %v3163 = vunpack.c.l.b16 %v2935
        %v3164 = vunpack.c.h.b16 %v2935
        %v3165 = vunpack.c.l.b16 %v2936
        %v3166 = vunpack.c.h.b16 %v2936
        %v3167 = vunpack.c.l.b16 %v2937
        %v3168 = vunpack.c.h.b16 %v2937
        %v3169 = vunpack.c.l.b16 %v2938
        %v3170 = vunpack.c.h.b16 %v2938
        %v3171 = vunpack.c.l.b16 %v2939
        %v3172 = vunpack.c.h.b16 %v2939
        %v3173 = vunpack.c.l.b16 %v2940
        %v3174 = vunpack.c.h.b16 %v2940
        %v3175 = vunpack.c.l.b16 %v2941
        %v3176 = vunpack.c.h.b16 %v2941
        %v3177 = vunpack.c.l.b16 %v2942
        %v3178 = vunpack.c.h.b16 %v2942
        %v3179 = vunpack.c.l.b16 %v2943
        %v3180 = vunpack.c.h.b16 %v2943
        %v3181 = vunpack.c.l.b16 %v2944
        %v3182 = vunpack.c.h.b16 %v2944
        %v3183 = vunpack.c.l.b16 %v2945
        %v3184 = vunpack.c.h.b16 %v2945
        %v3185 = vunpack.c.l.b16 %v2946
        %v3186 = vunpack.c.h.b16 %v2946
        %v3187 = vunpack.c.l.b16 %v2947
        %v3188 = vunpack.c.h.b16 %v2947
        %v3189 = vunpack.c.l.b16 %v2948
        %v3190 = vunpack.c.h.b16 %v2948
        %v3191 = vunpack.c.l.b16 %v2949
        %v3192 = vunpack.c.h.b16 %v2949
        %v3193 = vunpack.c.l.b16 %v2950
        %v3194 = vunpack.c.h.b16 %v2950
        %v3195 = vunpack.c.l.b16 %v2951
        %v3196 = vunpack.c.h.b16 %v2951
        %v3197 = vunpack.c.l.b16 %v2952
        %v3198 = vunpack.c.h.b16 %v2952
        %v3199 = vunpack.c.l.b16 %v2953
        %v3200 = vunpack.c.h.b16 %v2953
        %v3201 = vunpack.c.l.b16 %v2954
        %v3202 = vunpack.c.h.b16 %v2954
        %v3203 = vunpack.c.l.b16 %v2955
        %v3204 = vunpack.c.h.b16 %v2955
        %v3205 = vunpack.c.l.b16 %v2956
        %v3206 = vunpack.c.h.b16 %v2956
        %v3207 = vunpack.c.l.b16 %v2957
        %v3208 = vunpack.c.h.b16 %v2957
        %v3209 = vunpack.c.l.b16 %v2958
        %v3210 = vunpack.c.h.b16 %v2958
        %v3211 = vunpack.c.l.b16 %v2959
        %v3212 = vunpack.c.h.b16 %v2959
        %v3213 = vunpack.c.l.b16 %v2960
        %v3214 = vunpack.c.h.b16 %v2960
        %v3215 = vunpack.c.l.b16 %v2961
        %v3216 = vunpack.c.h.b16 %v2961
        %v3217 = vunpack.c.l.b16 %v2962
        %v3218 = vunpack.c.h.b16 %v2962
        %v3219 = vunpack.c.l.b16 %v2963
        %v3220 = vunpack.c.h.b16 %v2963
        %v3221 = vunpack.c.l.b16 %v2964
        %v3222 = vunpack.c.h.b16 %v2964
        %v3223 = vunpack.c.l.b16 %v2965
        %v3224 = vunpack.c.h.b16 %v2965
        %v3225 = vunpack.c.l.b16 %v2966
        %v3226 = vunpack.c.h.b16 %v2966
        %v3227 = vunpack.c.l.b16 %v2967
        %v3228 = vunpack.c.h.b16 %v2967
        %v3229 = vunpack.c.l.b16 %v2968
        %v3230 = vunpack.c.h.b16 %v2968
        %v3231 = vunpack.c.l.b16 %v2969
        %v3232 = vunpack.c.h.b16 %v2969
        %v3233 = vunpack.c.l.b16 %v2970
        %v3234 = vunpack.c.h.b16 %v2970
        %v3235 = vunpack.c.l.b16 %v2971
        %v3236 = vunpack.c.h.b16 %v2971
        %v3237 = vunpack.c.l.b16 %v2972
        %v3238 = vunpack.c.h.b16 %v2972
        %v3239 = vunpack.c.l.b16 %v2973
        %v3240 = vunpack.c.h.b16 %v2973
        %v3241 = vunpack.c.l.b16 %v2974
        %v3242 = vunpack.c.h.b16 %v2974
        %v3243 = vunpack.c.l.b16 %v2975
        %v3244 = vunpack.c.h.b16 %v2975
        %v3245 = vunpack.c.l.b16 %v2976
        %v3246 = vunpack.c.h.b16 %v2976
        %v3247 = vunpack.c.l.b16 %v2977
        %v3248 = vunpack.c.h.b16 %v2977
        %v3249 = vunpack.c.l.b16 %v2978
        %v3250 = vunpack.c.h.b16 %v2978
        %v3251 = vunpack.c.l.b16 %v2979
        %v3252 = vunpack.c.h.b16 %v2979
        %v3253 = vunpack.c.l.b16 %v2980
        %v3254 = vunpack.c.h.b16 %v2980
        %v3255 = vunpack.c.l.b16 %v2981
        %v3256 = vunpack.c.h.b16 %v2981
        %v3257 = vunpack.c.l.b16 %v2982
        %v3258 = vunpack.c.h.b16 %v2982
        %v3259 = vunpack.c.l.b16 %v2983
        %v3260 = vunpack.c.h.b16 %v2983
        %v3261 = vunpack.c.l.b16 %v2984
        %v3262 = vunpack.c.h.b16 %v2984
        %v3263 = vunpack.c.l.b16 %v2985
        %v3264 = vunpack.c.h.b16 %v2985
        %v3265 = vunpack.c.l.b16 %v2986
        %v3266 = vunpack.c.h.b16 %v2986
        %v3267 = vunpack.c.l.b16 %v2987
        %v3268 = vunpack.c.h.b16 %v2987
        %v3269 = vunpack.c.l.b16 %v2988
        %v3270 = vunpack.c.h.b16 %v2988
        %v3271 = vunpack.c.l.b16 %v2989
        %v3272 = vunpack.c.h.b16 %v2989
        %v3273 = vunpack.c.l.b16 %v2990
        %v3274 = vunpack.c.h.b16 %v2990
        %v3275 = vunpack.c.l.b16 %v2991
        %v3276 = vunpack.c.h.b16 %v2991
        %v3277 = vunpack.c.l.b16 %v2992
        %v3278 = vunpack.c.h.b16 %v2992
        %v3279 = vunpack.c.l.b16 %v2993
        %v3280 = vunpack.c.h.b16 %v2993
        %v3281 = vunpack.c.l.b16 %v2994
        %v3282 = vunpack.c.h.b16 %v2994
        %v3283 = vunpack.c.l.b16 %v2995
        %v3284 = vunpack.c.h.b16 %v2995
        %v3285 = vunpack.c.l.b16 %v2996
        %v3286 = vunpack.c.h.b16 %v2996
        %v3287 = vunpack.c.l.b16 %v2997
        %v3288 = vunpack.c.h.b16 %v2997
        %v3289 = vunpack.c.l.b16 %v2998
        %v3290 = vunpack.c.h.b16 %v2998
        %v3291 = vunpack.c.l.b16 %v2999
        %v3292 = vunpack.c.h.b16 %v2999
        %v3293 = vunpack.c.l.b16 %v3000
        %v3294 = vunpack.c.h.b16 %v3000
        %v3295 = vunpack.c.l.b16 %v3001
        %v3296 = vunpack.c.h.b16 %v3001
        %v3297 = vunpack.c.l.b16 %v3002
        %v3298 = vunpack.c.h.b16 %v3002
        %v3299 = vunpack.c.l.b16 %v3003
        %v3300 = vunpack.c.h.b16 %v3003
        %v3301 = vunpack.c.l.b16 %v3004
        %v3302 = vunpack.c.h.b16 %v3004
        %v3303 = vunpack.c.l.b16 %v3005
        %v3304 = vunpack.c.h.b16 %v3005
        %v3305 = vunpack.c.l.b16 %v3006
        %v3306 = vunpack.c.h.b16 %v3006
        %v3307 = vunpack.c.l.b16 %v3007
        %v3308 = vunpack.c.h.b16 %v3007
        %v3309 = vunpack.c.l.b16 %v3008
        %v3310 = vunpack.c.h.b16 %v3008
        %v3311 = vunpack.c.l.b16 %v3009
        %v3312 = vunpack.c.h.b16 %v3009
        %v3313 = vunpack.c.l.b16 %v3010
        %v3314 = vunpack.c.h.b16 %v3010
        %v3315 = vunpack.c.l.b16 %v3011
        %v3316 = vunpack.c.h.b16 %v3011
        %v3317 = vunpack.c.l.b16 %v3012
        %v3318 = vunpack.c.h.b16 %v3012
        %v3319 = vunpack.c.l.b16 %v3013
        %v3320 = vunpack.c.h.b16 %v3013
        %v3321 = vunpack.c.l.b16 %v3014
        %v3322 = vunpack.c.h.b16 %v3014
        %v3323 = vunpack.c.l.b16 %v3015
        %v3324 = vunpack.c.h.b16 %v3015
        %v3325 = vunpack.c.l.b16 %v3016
        %v3326 = vunpack.c.h.b16 %v3016
        %v3327 = vunpack.c.l.b16 %v3017
        %v3328 = vunpack.c.h.b16 %v3017
        %v3329 = vunpack.c.l.b16 %v3018
        %v3330 = vunpack.c.h.b16 %v3018
        %v3331 = vpack.c.b16 %v3143, %v3139
        %v3332 = vpack.c.b16 %v3144, %v3140
        %v3333 = vpack.c.b16 %v3145, %v3141
        %v3334 = vpack.c.b16 %v3146, %v3142
        %v3335 = vpack.c.b16 %v3151, %v3147
        %v3336 = vpack.c.b16 %v3152, %v3148
        %v3337 = vpack.c.b16 %v3153, %v3149
        %v3338 = vpack.c.b16 %v3154, %v3150
        %v3339 = vpack.c.b16 %v3159, %v3155
        %v3340 = vpack.c.b16 %v3160, %v3156
        %v3341 = vpack.c.b16 %v3161, %v3157
        %v3342 = vpack.c.b16 %v3162, %v3158
        %v3343 = vpack.c.b16 %v3167, %v3163
        %v3344 = vpack.c.b16 %v3168, %v3164
        %v3345 = vpack.c.b16 %v3169, %v3165
        %v3346 = vpack.c.b16 %v3170, %v3166
        %v3347 = vpack.c.b16 %v3175, %v3171
        %v3348 = vpack.c.b16 %v3176, %v3172
        %v3349 = vpack.c.b16 %v3177, %v3173
        %v3350 = vpack.c.b16 %v3178, %v3174
        %v3351 = vpack.c.b16 %v3183, %v3179
        %v3352 = vpack.c.b16 %v3184, %v3180
        %v3353 = vpack.c.b16 %v3185, %v3181
        %v3354 = vpack.c.b16 %v3186, %v3182
        %v3355 = vpack.c.b16 %v3191, %v3187
        %v3356 = vpack.c.b16 %v3192, %v3188
        %v3357 = vpack.c.b16 %v3193, %v3189
        %v3358 = vpack.c.b16 %v3194, %v3190
        %v3359 = vpack.c.b16 %v3199, %v3195
        %v3360 = vpack.c.b16 %v3200, %v3196
        %v3361 = vpack.c.b16 %v3201, %v3197
        %v3362 = vpack.c.b16 %v3202, %v3198
        %v3363 = vpack.c.b16 %v3207, %v3203
        %v3364 = vpack.c.b16 %v3208, %v3204
        %v3365 = vpack.c.b16 %v3209, %v3205
        %v3366 = vpack.c.b16 %v3210, %v3206
        %v3367 = vpack.c.b16 %v3215, %v3211
        %v3368 = vpack.c.b16 %v3216, %v3212
        %v3369 = vpack.c.b16 %v3217, %v3213
        %v3370 = vpack.c.b16 %v3218, %v3214
        %v3371 = vpack.c.b16 %v3223, %v3219
        %v3372 = vpack.c.b16 %v3224, %v3220
        %v3373 = vpack.c.b16 %v3225, %v3221
        %v3374 = vpack.c.b16 %v3226, %v3222
        %v3375 = vpack.c.b16 %v3231, %v3227
        %v3376 = vpack.c.b16 %v3232, %v3228
        %v3377 = vpack.c.b16 %v3233, %v3229
        %v3378 = vpack.c.b16 %v3234, %v3230
        %v3379 = vpack.c.b16 %v3239, %v3235
        %v3380 = vpack.c.b16 %v3240, %v3236
        %v3381 = vpack.c.b16 %v3241, %v3237
        %v3382 = vpack.c.b16 %v3242, %v3238
        %v3383 = vpack.c.b16 %v3247, %v3243
        %v3384 = vpack.c.b16 %v3248, %v3244
        %v3385 = vpack.c.b16 %v3249, %v3245
        %v3386 = vpack.c.b16 %v3250, %v3246
        %v3387 = vpack.c.b16 %v3255, %v3251
        %v3388 = vpack.c.b16 %v3256, %v3252
        %v3389 = vpack.c.b16 %v3257, %v3253
        %v3390 = vpack.c.b16 %v3258, %v3254
        %v3391 = vpack.c.b16 %v3263, %v3259
        %v3392 = vpack.c.b16 %v3264, %v3260
        %v3393 = vpack.c.b16 %v3265, %v3261
        %v3394 = vpack.c.b16 %v3266, %v3262
        %v3395 = vpack.c.b16 %v3271, %v3267
        %v3396 = vpack.c.b16 %v3272, %v3268
        %v3397 = vpack.c.b16 %v3273, %v3269
        %v3398 = vpack.c.b16 %v3274, %v3270
        %v3399 = vpack.c.b16 %v3279, %v3275
        %v3400 = vpack.c.b16 %v3280, %v3276
        %v3401 = vpack.c.b16 %v3281, %v3277
        %v3402 = vpack.c.b16 %v3282, %v3278
        %v3403 = vpack.c.b16 %v3287, %v3283
        %v3404 = vpack.c.b16 %v3288, %v3284
        %v3405 = vpack.c.b16 %v3289, %v3285
        %v3406 = vpack.c.b16 %v3290, %v3286
        %v3407 = vpack.c.b16 %v3295, %v3291
        %v3408 = vpack.c.b16 %v3296, %v3292
        %v3409 = vpack.c.b16 %v3297, %v3293
        %v3410 = vpack.c.b16 %v3298, %v3294
        %v3411 = vpack.c.b16 %v3303, %v3299
        %v3412 = vpack.c.b16 %v3304, %v3300
        %v3413 = vpack.c.b16 %v3305, %v3301
        %v3414 = vpack.c.b16 %v3306, %v3302
        %v3415 = vpack.c.b16 %v3311, %v3307
        %v3416 = vpack.c.b16 %v3312, %v3308
        %v3417 = vpack.c.b16 %v3313, %v3309
        %v3418 = vpack.c.b16 %v3314, %v3310
        %v3419 = vpack.c.b16 %v3319, %v3315
        %v3420 = vpack.c.b16 %v3320, %v3316
        %v3421 = vpack.c.b16 %v3321, %v3317
        %v3422 = vpack.c.b16 %v3322, %v3318
        %v3423 = vpack.c.b16 %v3327, %v3323
        %v3424 = vpack.c.b16 %v3328, %v3324
        %v3425 = vpack.c.b16 %v3329, %v3325
        %v3426 = vpack.c.b16 %v3330, %v3326
        %3523 = vmatprep.subr.bf16.mxu0 %v3332
        %3524 = vmatpush1.bf16.msra.mxu0 %v3331
        %3525 = vmatprep.subr.bf16.mxu0 %v3336
        %3526 = vmatpush1.bf16.msra.mxu0 %v3335
        %3527 = vmatprep.subr.bf16.mxu0 %v3340
        %3528 = vmatpush1.bf16.msra.mxu0 %v3339
        %3529 = vmatprep.subr.bf16.mxu0 %v3344
        %3530 = vmatpush1.bf16.msra.mxu0 %v3343
        %3531 = vmatprep.subr.bf16.mxu0 %v3348
        %3532 = vmatpush1.bf16.msra.mxu0 %v3347
        %3533 = vmatprep.subr.bf16.mxu0 %v3352
        %3534 = vmatpush1.bf16.msra.mxu0 %v3351
        %3535 = vmatprep.subr.bf16.mxu0 %v3356
        %3536 = vmatpush1.bf16.msra.mxu0 %v3355
        %3537 = vmatprep.subr.bf16.mxu0 %v3360
        %3538 = vmatpush1.bf16.msra.mxu0 %v3359
        %3539 = vmatprep.subr.bf16.mxu0 %v3364
        %3540 = vmatpush1.bf16.msra.mxu0 %v3363
        %3541 = vmatprep.subr.bf16.mxu0 %v3368
        %3542 = vmatpush1.bf16.msra.mxu0 %v3367
        %3543 = vmatprep.subr.bf16.mxu0 %v3372
        %3544 = vmatpush1.bf16.msra.mxu0 %v3371
        %3545 = vmatprep.subr.bf16.mxu0 %v3376
        %3546 = vmatpush1.bf16.msra.mxu0 %v3375
        %3547 = vmatprep.subr.bf16.mxu0 %v3380
        %3548 = vmatpush1.bf16.msra.mxu0 %v3379
        %3549 = vmatprep.subr.bf16.mxu0 %v3384
        %3550 = vmatpush1.bf16.msra.mxu0 %v3383
        %3551 = vmatprep.subr.bf16.mxu0 %v3388
        %3552 = vmatpush1.bf16.msra.mxu0 %v3387
        %3553 = vmatprep.subr.bf16.mxu0 %v3392
        %3554 = vmatpush1.bf16.msra.mxu0 %v3391
        %3555 = vmatprep.mubr.bf16.mxu0 %v3032
        %3556 = vmatmul.mubr.bf16.gmra.mrb[0].mxu0 %v3025
        %v3557 = vpop.f32.mrb[0].mxu0
        %v3558 = vadd.f32 0.0, %v3557
        %v3559 = vpop.f32.mrb[0].mxu0
        %v3560 = vadd.f32 0.0, %v3559
        %v3561 = vpop.f32.mrb[0].mxu0
        %v3562 = vpop.f32.mrb[0].mxu0
        %3563 = vdwg.mxu0
        %3564 = vmatprep.subr.bf16.mxu0 %v3396
        %3565 = vmatpush1.bf16.msra.mxu0 %v3395
        %3566 = vmatprep.subr.bf16.mxu0 %v3400
        %3567 = vmatpush1.bf16.msra.mxu0 %v3399
        %3568 = vmatprep.subr.bf16.mxu0 %v3404
        %3569 = vmatpush1.bf16.msra.mxu0 %v3403
        %3570 = vmatprep.subr.bf16.mxu0 %v3408
        %3571 = vmatpush1.bf16.msra.mxu0 %v3407
        %3572 = vmatprep.subr.bf16.mxu0 %v3412
        %3573 = vmatpush1.bf16.msra.mxu0 %v3411
        %3574 = vmatprep.subr.bf16.mxu0 %v3416
        %3575 = vmatpush1.bf16.msra.mxu0 %v3415
        %3576 = vmatprep.subr.bf16.mxu0 %v3420
        %3577 = vmatpush1.bf16.msra.mxu0 %v3419
        %3578 = vmatprep.subr.bf16.mxu0 %v3424
        %3579 = vmatpush1.bf16.msra.mxu0 %v3423
        %3580 = vmatprep.subr.bf16.mxu0 0
        %3581 = vmatpush1.bf16.msra.mxu0 0
        %3582 = vmatprep.subr.bf16.mxu0 0
        %3583 = vmatpush1.bf16.msra.mxu0 0
        %3584 = vmatprep.subr.bf16.mxu0 0
        %3585 = vmatpush1.bf16.msra.mxu0 0
        %3586 = vmatprep.subr.bf16.mxu0 0
        %3587 = vmatpush1.bf16.msra.mxu0 0
        %3588 = vmatprep.subr.bf16.mxu0 0
        %3589 = vmatpush1.bf16.msra.mxu0 0
        %3590 = vmatprep.subr.bf16.mxu0 0
        %3591 = vmatpush1.bf16.msra.mxu0 0
        %3592 = vmatprep.subr.bf16.mxu0 0
        %3593 = vmatpush1.bf16.msra.mxu0 0
        %3594 = vmatprep.subr.bf16.mxu0 0
        %3595 = vmatpush1.bf16.msra.mxu0 0
        %3596 = vmatprep.mubr.bf16.mxu0 0
        %3597 = vmatmul.mubr.bf16.gmra.mrb[0].mxu0 %v3039
        %v3598 = vpop.f32.mrb[0].mxu0
        %v3599 = vadd.f32 %v3558, %v3598
        %v3600 = vpop.f32.mrb[0].mxu0
        %v3601 = vadd.f32 %v3560, %v3600
        %v3602 = vpop.f32.mrb[0].mxu0
        %v3603 = vpop.f32.mrb[0].mxu0
        %3604 = vdwg.mxu0
        %3605 = vmatprep.subr.bf16.mxu0 %v3334
        %3606 = vmatpush1.bf16.msra.mxu0 %v3333
        %3607 = vmatprep.subr.bf16.mxu0 %v3338
        %3608 = vmatpush1.bf16.msra.mxu0 %v3337
        %3609 = vmatprep.subr.bf16.mxu0 %v3342
        %3610 = vmatpush1.bf16.msra.mxu0 %v3341
        %3611 = vmatprep.subr.bf16.mxu0 %v3346
        %3612 = vmatpush1.bf16.msra.mxu0 %v3345
        %3613 = vmatprep.subr.bf16.mxu0 %v3350
        %3614 = vmatpush1.bf16.msra.mxu0 %v3349
        %3615 = vmatprep.subr.bf16.mxu0 %v3354
        %3616 = vmatpush1.bf16.msra.mxu0 %v3353
        %3617 = vmatprep.subr.bf16.mxu0 %v3358
        %3618 = vmatpush1.bf16.msra.mxu0 %v3357
        %3619 = vmatprep.subr.bf16.mxu0 %v3362
        %3620 = vmatpush1.bf16.msra.mxu0 %v3361
        %3621 = vmatprep.subr.bf16.mxu0 %v3366
        %3622 = vmatpush1.bf16.msra.mxu0 %v3365
        %3623 = vmatprep.subr.bf16.mxu0 %v3370
        %3624 = vmatpush1.bf16.msra.mxu0 %v3369
        %3625 = vmatprep.subr.bf16.mxu0 %v3374
        %3626 = vmatpush1.bf16.msra.mxu0 %v3373
        %3627 = vmatprep.subr.bf16.mxu0 %v3378
        %3628 = vmatpush1.bf16.msra.mxu0 %v3377
        %3629 = vmatprep.subr.bf16.mxu0 %v3382
        %3630 = vmatpush1.bf16.msra.mxu0 %v3381
        %3631 = vmatprep.subr.bf16.mxu0 %v3386
        %3632 = vmatpush1.bf16.msra.mxu0 %v3385
        %3633 = vmatprep.subr.bf16.mxu0 %v3390
        %3634 = vmatpush1.bf16.msra.mxu0 %v3389
        %3635 = vmatprep.subr.bf16.mxu0 %v3394
        %3636 = vmatpush1.bf16.msra.mxu0 %v3393
        %3637 = vmatprep.mubr.bf16.mxu0 %v3032
        %3638 = vmatmul.mubr.bf16.gmra.mrb[0].mxu0 %v3025
        %v3639 = vpop.f32.mrb[0].mxu0
        %v3640 = vadd.f32 0.0, %v3639
        %v3641 = vpop.f32.mrb[0].mxu0
        %v3642 = vadd.f32 0.0, %v3641
        %v3643 = vpop.f32.mrb[0].mxu0
        %v3644 = vpop.f32.mrb[0].mxu0
        %3645 = vdwg.mxu0
        %3646 = vmatprep.subr.bf16.mxu0 %v3398
        %3647 = vmatpush1.bf16.msra.mxu0 %v3397
        %3648 = vmatprep.subr.bf16.mxu0 %v3402
        %3649 = vmatpush1.bf16.msra.mxu0 %v3401
        %3650 = vmatprep.subr.bf16.mxu0 %v3406
        %3651 = vmatpush1.bf16.msra.mxu0 %v3405
        %3652 = vmatprep.subr.bf16.mxu0 %v3410
        %3653 = vmatpush1.bf16.msra.mxu0 %v3409
        %3654 = vmatprep.subr.bf16.mxu0 %v3414
        %3655 = vmatpush1.bf16.msra.mxu0 %v3413
        %3656 = vmatprep.subr.bf16.mxu0 %v3418
        %3657 = vmatpush1.bf16.msra.mxu0 %v3417
        %3658 = vmatprep.subr.bf16.mxu0 %v3422
        %3659 = vmatpush1.bf16.msra.mxu0 %v3421
        %3660 = vmatprep.subr.bf16.mxu0 %v3426
        %3661 = vmatpush1.bf16.msra.mxu0 %v3425
        %3662 = vmatprep.subr.bf16.mxu0 0
        %3663 = vmatpush1.bf16.msra.mxu0 0
        %3664 = vmatprep.subr.bf16.mxu0 0
        %3665 = vmatpush1.bf16.msra.mxu0 0
        %3666 = vmatprep.subr.bf16.mxu0 0
        %3667 = vmatpush1.bf16.msra.mxu0 0
        %3668 = vmatprep.subr.bf16.mxu0 0
        %3669 = vmatpush1.bf16.msra.mxu0 0
        %3670 = vmatprep.subr.bf16.mxu0 0
        %3671 = vmatpush1.bf16.msra.mxu0 0
        %3672 = vmatprep.subr.bf16.mxu0 0
        %3673 = vmatpush1.bf16.msra.mxu0 0
        %3674 = vmatprep.subr.bf16.mxu0 0
        %3675 = vmatpush1.bf16.msra.mxu0 0
        %3676 = vmatprep.subr.bf16.mxu0 0
        %3677 = vmatpush1.bf16.msra.mxu0 0
        %3678 = vmatprep.mubr.bf16.mxu0 0
        %3679 = vmatmul.mubr.bf16.gmra.mrb[0].mxu0 %v3039
        %v3680 = vpop.f32.mrb[0].mxu0
        %v3681 = vadd.f32 %v3640, %v3680
        %v3682 = vpop.f32.mrb[0].mxu0
        %v3683 = vadd.f32 %v3642, %v3682
        %v3684 = vpop.f32.mrb[0].mxu0
        %v3685 = vpop.f32.mrb[0].mxu0
        %3686 = vdwg.mxu0
        %v3687 = vld [vmem:[#allocation4] sm:$0xff]
        %v3688 = vld [vmem:[#allocation4 + $0x8] sm:$0xff]
        %v3689 = vld [vmem:[#allocation4 + $0x10] sm:$0xff]
        %v3690 = vld [vmem:[#allocation4 + $0x18] sm:$0xff]
        %v3691 = vadd.f32 %v3687, %v3599
        %v3692 = vadd.f32 %v3688, %v3601
        %v3693 = vadd.f32 %v3689, %v3681
        %v3694 = vadd.f32 %v3690, %v3683
        %3695 = vst [vmem:[#allocation4] sm:$0xff] %v3691
        %3696 = vst [vmem:[#allocation4 + $0x8] sm:$0xff] %v3692
        %3697 = vst [vmem:[#allocation4 + $0x10] sm:$0xff] %v3693
        %3698 = vst [vmem:[#allocation4 + $0x18] sm:$0xff] %v3694
        %v3699 = vld [vmem:[#allocation3] sm:$0xfc]
        %v3700 = vld [vmem:[#allocation3 + $0x8] sm:$0xfc]
        %v3701 = vld [vmem:[#allocation3 + $0x10] sm:$0xfc]
        %v3702 = vld [vmem:[#allocation3 + $0x18] sm:$0x3]
        %v3703 = vld [vmem:[#allocation3 + $0x20] sm:$0x3]
        %v3704 = vld [vmem:[#allocation3 + $0x28] sm:$0x3]
        %v3705 = vpack.c.bf16 %v3702, %v3699
        %v3706 = vpack.c.bf16 %v3703, %v3700
        %v3707 = vpack.c.bf16 %v3704, %v3701
        %s3708 = scalar_lea.vmem [#allocation10], 1536
        %v3709 = vld [vmem:[%s3708] sm:$0xff]
        %v3710 = vld [vmem:[%s3708 + $0x8] sm:$0xff]
        %v3711 = vld [vmem:[%s3708 + $0x10] sm:$0xff]
        %v3712 = vld [vmem:[%s3708 + $0x18] sm:$0xff]
        %v3713 = vld [vmem:[%s3708 + $0x20] sm:$0xff]
        %v3714 = vld [vmem:[%s3708 + $0x28] sm:$0xff]
        %v3715 = vld [vmem:[%s3708 + $0x30] sm:$0xff]
        %v3716 = vld [vmem:[%s3708 + $0x38] sm:$0xff]
        %v3717 = vld [vmem:[%s3708 + $0x40] sm:$0xff]
        %v3718 = vld [vmem:[%s3708 + $0x48] sm:$0xff]
        %v3719 = vld [vmem:[%s3708 + $0x50] sm:$0xff]
        %v3720 = vld [vmem:[%s3708 + $0x58] sm:$0xff]
        %v3721 = vld [vmem:[%s3708 + $0x60] sm:$0xff]
        %v3722 = vld [vmem:[%s3708 + $0x68] sm:$0xff]
        %v3723 = vld [vmem:[%s3708 + $0x70] sm:$0xff]
        %v3724 = vld [vmem:[%s3708 + $0x78] sm:$0xff]
        %v3725 = vld [vmem:[%s3708 + $0x80] sm:$0xff]
        %v3726 = vld [vmem:[%s3708 + $0x88] sm:$0xff]
        %v3727 = vld [vmem:[%s3708 + $0x90] sm:$0xff]
        %v3728 = vld [vmem:[%s3708 + $0x98] sm:$0xff]
        %v3729 = vld [vmem:[%s3708 + $0xa0] sm:$0xff]
        %v3730 = vld [vmem:[%s3708 + $0xa8] sm:$0xff]
        %v3731 = vld [vmem:[%s3708 + $0xb0] sm:$0xff]
        %v3732 = vld [vmem:[%s3708 + $0xb8] sm:$0xff]
        %v3733 = vld [vmem:[%s3708 + $0xc0] sm:$0xff]
        %v3734 = vld [vmem:[%s3708 + $0xc8] sm:$0xff]
        %v3735 = vld [vmem:[%s3708 + $0xd0] sm:$0xff]
        %v3736 = vld [vmem:[%s3708 + $0xd8] sm:$0xff]
        %v3737 = vld [vmem:[%s3708 + $0xe0] sm:$0xff]
        %v3738 = vld [vmem:[%s3708 + $0xe8] sm:$0xff]
        %v3739 = vld [vmem:[%s3708 + $0xf0] sm:$0xff]
        %v3740 = vld [vmem:[%s3708 + $0xf8] sm:$0xff]
        %v3741 = vld [vmem:[%s3708 + $0x100] sm:$0xff]
        %v3742 = vld [vmem:[%s3708 + $0x108] sm:$0xff]
        %v3743 = vld [vmem:[%s3708 + $0x110] sm:$0xff]
        %v3744 = vld [vmem:[%s3708 + $0x118] sm:$0xff]
        %v3745 = vld [vmem:[%s3708 + $0x120] sm:$0xff]
        %v3746 = vld [vmem:[%s3708 + $0x128] sm:$0xff]
        %v3747 = vld [vmem:[%s3708 + $0x130] sm:$0xff]
        %v3748 = vld [vmem:[%s3708 + $0x138] sm:$0xff]
        %v3749 = vld [vmem:[%s3708 + $0x140] sm:$0xff]
        %v3750 = vld [vmem:[%s3708 + $0x148] sm:$0xff]
        %v3751 = vld [vmem:[%s3708 + $0x150] sm:$0xff]
        %v3752 = vld [vmem:[%s3708 + $0x158] sm:$0xff]
        %v3753 = vld [vmem:[%s3708 + $0x160] sm:$0xff]
        %v3754 = vld [vmem:[%s3708 + $0x168] sm:$0xff]
        %v3755 = vld [vmem:[%s3708 + $0x170] sm:$0xff]
        %v3756 = vld [vmem:[%s3708 + $0x178] sm:$0xff]
        %v3757 = vld [vmem:[%s3708 + $0x180] sm:$0xff]
        %v3758 = vld [vmem:[%s3708 + $0x188] sm:$0xff]
        %v3759 = vld [vmem:[%s3708 + $0x190] sm:$0xff]
        %v3760 = vld [vmem:[%s3708 + $0x198] sm:$0xff]
        %v3761 = vld [vmem:[%s3708 + $0x1a0] sm:$0xff]
        %v3762 = vld [vmem:[%s3708 + $0x1a8] sm:$0xff]
        %v3763 = vld [vmem:[%s3708 + $0x1b0] sm:$0xff]
        %v3764 = vld [vmem:[%s3708 + $0x1b8] sm:$0xff]
        %v3765 = vld [vmem:[%s3708 + $0x1c0] sm:$0xff]
        %v3766 = vld [vmem:[%s3708 + $0x1c8] sm:$0xff]
        %v3767 = vld [vmem:[%s3708 + $0x1d0] sm:$0xff]
        %v3768 = vld [vmem:[%s3708 + $0x1d8] sm:$0xff]
        %v3769 = vld [vmem:[%s3708 + $0x1e0] sm:$0xff]
        %v3770 = vld [vmem:[%s3708 + $0x1e8] sm:$0xff]
        %v3771 = vld [vmem:[%s3708 + $0x1f0] sm:$0xff]
        %v3772 = vld [vmem:[%s3708 + $0x1f8] sm:$0xff]
        %v3773 = vld [vmem:[%s3708 + $0x200] sm:$0xff]
        %v3774 = vld [vmem:[%s3708 + $0x208] sm:$0xff]
        %v3775 = vld [vmem:[%s3708 + $0x210] sm:$0xff]
        %v3776 = vld [vmem:[%s3708 + $0x218] sm:$0xff]
        %v3777 = vld [vmem:[%s3708 + $0x220] sm:$0xff]
        %v3778 = vld [vmem:[%s3708 + $0x228] sm:$0xff]
        %v3779 = vld [vmem:[%s3708 + $0x230] sm:$0xff]
        %v3780 = vld [vmem:[%s3708 + $0x238] sm:$0xff]
        %v3781 = vld [vmem:[%s3708 + $0x240] sm:$0xff]
        %v3782 = vld [vmem:[%s3708 + $0x248] sm:$0xff]
        %v3783 = vld [vmem:[%s3708 + $0x250] sm:$0xff]
        %v3784 = vld [vmem:[%s3708 + $0x258] sm:$0xff]
        %v3785 = vld [vmem:[%s3708 + $0x260] sm:$0xff]
        %v3786 = vld [vmem:[%s3708 + $0x268] sm:$0xff]
        %v3787 = vld [vmem:[%s3708 + $0x270] sm:$0xff]
        %v3788 = vld [vmem:[%s3708 + $0x278] sm:$0xff]
        %v3789 = vld [vmem:[%s3708 + $0x280] sm:$0xff]
        %v3790 = vld [vmem:[%s3708 + $0x288] sm:$0xff]
        %v3791 = vld [vmem:[%s3708 + $0x290] sm:$0xff]
        %v3792 = vld [vmem:[%s3708 + $0x298] sm:$0xff]
        %v3793 = vld [vmem:[%s3708 + $0x2a0] sm:$0xff]
        %v3794 = vld [vmem:[%s3708 + $0x2a8] sm:$0xff]
        %v3795 = vld [vmem:[%s3708 + $0x2b0] sm:$0xff]
        %v3796 = vld [vmem:[%s3708 + $0x2b8] sm:$0xff]
        %v3797 = vld [vmem:[%s3708 + $0x2c0] sm:$0xff]
        %v3798 = vld [vmem:[%s3708 + $0x2c8] sm:$0xff]
        %v3799 = vld [vmem:[%s3708 + $0x2d0] sm:$0xff]
        %v3800 = vld [vmem:[%s3708 + $0x2d8] sm:$0xff]
        %v3801 = vld [vmem:[%s3708 + $0x2e0] sm:$0xff]
        %v3802 = vld [vmem:[%s3708 + $0x2e8] sm:$0xff]
        %v3803 = vld [vmem:[%s3708 + $0x2f0] sm:$0xff]
        %v3804 = vld [vmem:[%s3708 + $0x2f8] sm:$0xff]
        %v3808 = vrot.slane %v3705, 1
        %v3809 = vrot.slane %v3706, 1
        %v3810 = vrot.slane %v3707, 1
        %v3910 = vunpack.c.l.b16 %v3709
        %v3911 = vunpack.c.h.b16 %v3709
        %v3912 = vunpack.c.l.b16 %v3710
        %v3913 = vunpack.c.h.b16 %v3710
        %v3914 = vunpack.c.l.b16 %v3711
        %v3915 = vunpack.c.h.b16 %v3711
        %v3916 = vunpack.c.l.b16 %v3712
        %v3917 = vunpack.c.h.b16 %v3712
        %v3918 = vunpack.c.l.b16 %v3713
        %v3919 = vunpack.c.h.b16 %v3713
        %v3920 = vunpack.c.l.b16 %v3714
        %v3921 = vunpack.c.h.b16 %v3714
        %v3922 = vunpack.c.l.b16 %v3715
        %v3923 = vunpack.c.h.b16 %v3715
        %v3924 = vunpack.c.l.b16 %v3716
        %v3925 = vunpack.c.h.b16 %v3716
        %v3926 = vunpack.c.l.b16 %v3717
        %v3927 = vunpack.c.h.b16 %v3717
        %v3928 = vunpack.c.l.b16 %v3718
        %v3929 = vunpack.c.h.b16 %v3718
        %v3930 = vunpack.c.l.b16 %v3719
        %v3931 = vunpack.c.h.b16 %v3719
        %v3932 = vunpack.c.l.b16 %v3720
        %v3933 = vunpack.c.h.b16 %v3720
        %v3934 = vunpack.c.l.b16 %v3721
        %v3935 = vunpack.c.h.b16 %v3721
        %v3936 = vunpack.c.l.b16 %v3722
        %v3937 = vunpack.c.h.b16 %v3722
        %v3938 = vunpack.c.l.b16 %v3723
        %v3939 = vunpack.c.h.b16 %v3723
        %v3940 = vunpack.c.l.b16 %v3724
        %v3941 = vunpack.c.h.b16 %v3724
        %v3942 = vunpack.c.l.b16 %v3725
        %v3943 = vunpack.c.h.b16 %v3725
        %v3944 = vunpack.c.l.b16 %v3726
        %v3945 = vunpack.c.h.b16 %v3726
        %v3946 = vunpack.c.l.b16 %v3727
        %v3947 = vunpack.c.h.b16 %v3727
        %v3948 = vunpack.c.l.b16 %v3728
        %v3949 = vunpack.c.h.b16 %v3728
        %v3950 = vunpack.c.l.b16 %v3729
        %v3951 = vunpack.c.h.b16 %v3729
        %v3952 = vunpack.c.l.b16 %v3730
        %v3953 = vunpack.c.h.b16 %v3730
        %v3954 = vunpack.c.l.b16 %v3731
        %v3955 = vunpack.c.h.b16 %v3731
        %v3956 = vunpack.c.l.b16 %v3732
        %v3957 = vunpack.c.h.b16 %v3732
        %v3958 = vunpack.c.l.b16 %v3733
        %v3959 = vunpack.c.h.b16 %v3733
        %v3960 = vunpack.c.l.b16 %v3734
        %v3961 = vunpack.c.h.b16 %v3734
        %v3962 = vunpack.c.l.b16 %v3735
        %v3963 = vunpack.c.h.b16 %v3735
        %v3964 = vunpack.c.l.b16 %v3736
        %v3965 = vunpack.c.h.b16 %v3736
        %v3966 = vunpack.c.l.b16 %v3737
        %v3967 = vunpack.c.h.b16 %v3737
        %v3968 = vunpack.c.l.b16 %v3738
        %v3969 = vunpack.c.h.b16 %v3738
        %v3970 = vunpack.c.l.b16 %v3739
        %v3971 = vunpack.c.h.b16 %v3739
        %v3972 = vunpack.c.l.b16 %v3740
        %v3973 = vunpack.c.h.b16 %v3740
        %v3974 = vunpack.c.l.b16 %v3741
        %v3975 = vunpack.c.h.b16 %v3741
        %v3976 = vunpack.c.l.b16 %v3742
        %v3977 = vunpack.c.h.b16 %v3742
        %v3978 = vunpack.c.l.b16 %v3743
        %v3979 = vunpack.c.h.b16 %v3743
        %v3980 = vunpack.c.l.b16 %v3744
        %v3981 = vunpack.c.h.b16 %v3744
        %v3982 = vunpack.c.l.b16 %v3745
        %v3983 = vunpack.c.h.b16 %v3745
        %v3984 = vunpack.c.l.b16 %v3746
        %v3985 = vunpack.c.h.b16 %v3746
        %v3986 = vunpack.c.l.b16 %v3747
        %v3987 = vunpack.c.h.b16 %v3747
        %v3988 = vunpack.c.l.b16 %v3748
        %v3989 = vunpack.c.h.b16 %v3748
        %v3990 = vunpack.c.l.b16 %v3749
        %v3991 = vunpack.c.h.b16 %v3749
        %v3992 = vunpack.c.l.b16 %v3750
        %v3993 = vunpack.c.h.b16 %v3750
        %v3994 = vunpack.c.l.b16 %v3751
        %v3995 = vunpack.c.h.b16 %v3751
        %v3996 = vunpack.c.l.b16 %v3752
        %v3997 = vunpack.c.h.b16 %v3752
        %v3998 = vunpack.c.l.b16 %v3753
        %v3999 = vunpack.c.h.b16 %v3753
        %v4000 = vunpack.c.l.b16 %v3754
        %v4001 = vunpack.c.h.b16 %v3754
        %v4002 = vunpack.c.l.b16 %v3755
        %v4003 = vunpack.c.h.b16 %v3755
        %v4004 = vunpack.c.l.b16 %v3756
        %v4005 = vunpack.c.h.b16 %v3756
        %v4006 = vunpack.c.l.b16 %v3757
        %v4007 = vunpack.c.h.b16 %v3757
        %v4008 = vunpack.c.l.b16 %v3758
        %v4009 = vunpack.c.h.b16 %v3758
        %v4010 = vunpack.c.l.b16 %v3759
        %v4011 = vunpack.c.h.b16 %v3759
        %v4012 = vunpack.c.l.b16 %v3760
        %v4013 = vunpack.c.h.b16 %v3760
        %v4014 = vunpack.c.l.b16 %v3761
        %v4015 = vunpack.c.h.b16 %v3761
        %v4016 = vunpack.c.l.b16 %v3762
        %v4017 = vunpack.c.h.b16 %v3762
        %v4018 = vunpack.c.l.b16 %v3763
        %v4019 = vunpack.c.h.b16 %v3763
        %v4020 = vunpack.c.l.b16 %v3764
        %v4021 = vunpack.c.h.b16 %v3764
        %v4022 = vunpack.c.l.b16 %v3765
        %v4023 = vunpack.c.h.b16 %v3765
        %v4024 = vunpack.c.l.b16 %v3766
        %v4025 = vunpack.c.h.b16 %v3766
        %v4026 = vunpack.c.l.b16 %v3767
        %v4027 = vunpack.c.h.b16 %v3767
        %v4028 = vunpack.c.l.b16 %v3768
        %v4029 = vunpack.c.h.b16 %v3768
        %v4030 = vunpack.c.l.b16 %v3769
        %v4031 = vunpack.c.h.b16 %v3769
        %v4032 = vunpack.c.l.b16 %v3770
        %v4033 = vunpack.c.h.b16 %v3770
        %v4034 = vunpack.c.l.b16 %v3771
        %v4035 = vunpack.c.h.b16 %v3771
        %v4036 = vunpack.c.l.b16 %v3772
        %v4037 = vunpack.c.h.b16 %v3772
        %v4038 = vunpack.c.l.b16 %v3773
        %v4039 = vunpack.c.h.b16 %v3773
        %v4040 = vunpack.c.l.b16 %v3774
        %v4041 = vunpack.c.h.b16 %v3774
        %v4042 = vunpack.c.l.b16 %v3775
        %v4043 = vunpack.c.h.b16 %v3775
        %v4044 = vunpack.c.l.b16 %v3776
        %v4045 = vunpack.c.h.b16 %v3776
        %v4046 = vunpack.c.l.b16 %v3777
        %v4047 = vunpack.c.h.b16 %v3777
        %v4048 = vunpack.c.l.b16 %v3778
        %v4049 = vunpack.c.h.b16 %v3778
        %v4050 = vunpack.c.l.b16 %v3779
        %v4051 = vunpack.c.h.b16 %v3779
        %v4052 = vunpack.c.l.b16 %v3780
        %v4053 = vunpack.c.h.b16 %v3780
        %v4054 = vunpack.c.l.b16 %v3781
        %v4055 = vunpack.c.h.b16 %v3781
        %v4056 = vunpack.c.l.b16 %v3782
        %v4057 = vunpack.c.h.b16 %v3782
        %v4058 = vunpack.c.l.b16 %v3783
        %v4059 = vunpack.c.h.b16 %v3783
        %v4060 = vunpack.c.l.b16 %v3784
        %v4061 = vunpack.c.h.b16 %v3784
        %v4062 = vunpack.c.l.b16 %v3785
        %v4063 = vunpack.c.h.b16 %v3785
        %v4064 = vunpack.c.l.b16 %v3786
        %v4065 = vunpack.c.h.b16 %v3786
        %v4066 = vunpack.c.l.b16 %v3787
        %v4067 = vunpack.c.h.b16 %v3787
        %v4068 = vunpack.c.l.b16 %v3788
        %v4069 = vunpack.c.h.b16 %v3788
        %v4070 = vunpack.c.l.b16 %v3789
        %v4071 = vunpack.c.h.b16 %v3789
        %v4072 = vunpack.c.l.b16 %v3790
        %v4073 = vunpack.c.h.b16 %v3790
        %v4074 = vunpack.c.l.b16 %v3791
        %v4075 = vunpack.c.h.b16 %v3791
        %v4076 = vunpack.c.l.b16 %v3792
        %v4077 = vunpack.c.h.b16 %v3792
        %v4078 = vunpack.c.l.b16 %v3793
        %v4079 = vunpack.c.h.b16 %v3793
        %v4080 = vunpack.c.l.b16 %v3794
        %v4081 = vunpack.c.h.b16 %v3794
        %v4082 = vunpack.c.l.b16 %v3795
        %v4083 = vunpack.c.h.b16 %v3795
        %v4084 = vunpack.c.l.b16 %v3796
        %v4085 = vunpack.c.h.b16 %v3796
        %v4086 = vunpack.c.l.b16 %v3797
        %v4087 = vunpack.c.h.b16 %v3797
        %v4088 = vunpack.c.l.b16 %v3798
        %v4089 = vunpack.c.h.b16 %v3798
        %v4090 = vunpack.c.l.b16 %v3799
        %v4091 = vunpack.c.h.b16 %v3799
        %v4092 = vunpack.c.l.b16 %v3800
        %v4093 = vunpack.c.h.b16 %v3800
        %v4094 = vunpack.c.l.b16 %v3801
        %v4095 = vunpack.c.h.b16 %v3801
        %v4096 = vunpack.c.l.b16 %v3802
        %v4097 = vunpack.c.h.b16 %v3802
        %v4098 = vunpack.c.l.b16 %v3803
        %v4099 = vunpack.c.h.b16 %v3803
        %v4100 = vunpack.c.l.b16 %v3804
        %v4101 = vunpack.c.h.b16 %v3804
        %v4102 = vpack.c.b16 %v3914, %v3910
        %v4103 = vpack.c.b16 %v3915, %v3911
        %v4104 = vpack.c.b16 %v3916, %v3912
        %v4105 = vpack.c.b16 %v3917, %v3913
        %v4106 = vpack.c.b16 %v3922, %v3918
        %v4107 = vpack.c.b16 %v3923, %v3919
        %v4108 = vpack.c.b16 %v3924, %v3920
        %v4109 = vpack.c.b16 %v3925, %v3921
        %v4110 = vpack.c.b16 %v3930, %v3926
        %v4111 = vpack.c.b16 %v3931, %v3927
        %v4112 = vpack.c.b16 %v3932, %v3928
        %v4113 = vpack.c.b16 %v3933, %v3929
        %v4114 = vpack.c.b16 %v3938, %v3934
        %v4115 = vpack.c.b16 %v3939, %v3935
        %v4116 = vpack.c.b16 %v3940, %v3936
        %v4117 = vpack.c.b16 %v3941, %v3937
        %v4118 = vpack.c.b16 %v3946, %v3942
        %v4119 = vpack.c.b16 %v3947, %v3943
        %v4120 = vpack.c.b16 %v3948, %v3944
        %v4121 = vpack.c.b16 %v3949, %v3945
        %v4122 = vpack.c.b16 %v3954, %v3950
        %v4123 = vpack.c.b16 %v3955, %v3951
        %v4124 = vpack.c.b16 %v3956, %v3952
        %v4125 = vpack.c.b16 %v3957, %v3953
        %v4126 = vpack.c.b16 %v3962, %v3958
        %v4127 = vpack.c.b16 %v3963, %v3959
        %v4128 = vpack.c.b16 %v3964, %v3960
        %v4129 = vpack.c.b16 %v3965, %v3961
        %v4130 = vpack.c.b16 %v3970, %v3966
        %v4131 = vpack.c.b16 %v3971, %v3967
        %v4132 = vpack.c.b16 %v3972, %v3968
        %v4133 = vpack.c.b16 %v3973, %v3969
        %v4134 = vpack.c.b16 %v3978, %v3974
        %v4135 = vpack.c.b16 %v3979, %v3975
        %v4136 = vpack.c.b16 %v3980, %v3976
        %v4137 = vpack.c.b16 %v3981, %v3977
        %v4138 = vpack.c.b16 %v3986, %v3982
        %v4139 = vpack.c.b16 %v3987, %v3983
        %v4140 = vpack.c.b16 %v3988, %v3984
        %v4141 = vpack.c.b16 %v3989, %v3985
        %v4142 = vpack.c.b16 %v3994, %v3990
        %v4143 = vpack.c.b16 %v3995, %v3991
        %v4144 = vpack.c.b16 %v3996, %v3992
        %v4145 = vpack.c.b16 %v3997, %v3993
        %v4146 = vpack.c.b16 %v4002, %v3998
        %v4147 = vpack.c.b16 %v4003, %v3999
        %v4148 = vpack.c.b16 %v4004, %v4000
        %v4149 = vpack.c.b16 %v4005, %v4001
        %v4150 = vpack.c.b16 %v4010, %v4006
        %v4151 = vpack.c.b16 %v4011, %v4007
        %v4152 = vpack.c.b16 %v4012, %v4008
        %v4153 = vpack.c.b16 %v4013, %v4009
        %v4154 = vpack.c.b16 %v4018, %v4014
        %v4155 = vpack.c.b16 %v4019, %v4015
        %v4156 = vpack.c.b16 %v4020, %v4016
        %v4157 = vpack.c.b16 %v4021, %v4017
        %v4158 = vpack.c.b16 %v4026, %v4022
        %v4159 = vpack.c.b16 %v4027, %v4023
        %v4160 = vpack.c.b16 %v4028, %v4024
        %v4161 = vpack.c.b16 %v4029, %v4025
        %v4162 = vpack.c.b16 %v4034, %v4030
        %v4163 = vpack.c.b16 %v4035, %v4031
        %v4164 = vpack.c.b16 %v4036, %v4032
        %v4165 = vpack.c.b16 %v4037, %v4033
        %v4166 = vpack.c.b16 %v4042, %v4038
        %v4167 = vpack.c.b16 %v4043, %v4039
        %v4168 = vpack.c.b16 %v4044, %v4040
        %v4169 = vpack.c.b16 %v4045, %v4041
        %v4170 = vpack.c.b16 %v4050, %v4046
        %v4171 = vpack.c.b16 %v4051, %v4047
        %v4172 = vpack.c.b16 %v4052, %v4048
        %v4173 = vpack.c.b16 %v4053, %v4049
        %v4174 = vpack.c.b16 %v4058, %v4054
        %v4175 = vpack.c.b16 %v4059, %v4055
        %v4176 = vpack.c.b16 %v4060, %v4056
        %v4177 = vpack.c.b16 %v4061, %v4057
        %v4178 = vpack.c.b16 %v4066, %v4062
        %v4179 = vpack.c.b16 %v4067, %v4063
        %v4180 = vpack.c.b16 %v4068, %v4064
        %v4181 = vpack.c.b16 %v4069, %v4065
        %v4182 = vpack.c.b16 %v4074, %v4070
        %v4183 = vpack.c.b16 %v4075, %v4071
        %v4184 = vpack.c.b16 %v4076, %v4072
        %v4185 = vpack.c.b16 %v4077, %v4073
        %v4186 = vpack.c.b16 %v4082, %v4078
        %v4187 = vpack.c.b16 %v4083, %v4079
        %v4188 = vpack.c.b16 %v4084, %v4080
        %v4189 = vpack.c.b16 %v4085, %v4081
        %v4190 = vpack.c.b16 %v4090, %v4086
        %v4191 = vpack.c.b16 %v4091, %v4087
        %v4192 = vpack.c.b16 %v4092, %v4088
        %v4193 = vpack.c.b16 %v4093, %v4089
        %v4194 = vpack.c.b16 %v4098, %v4094
        %v4195 = vpack.c.b16 %v4099, %v4095
        %v4196 = vpack.c.b16 %v4100, %v4096
        %v4197 = vpack.c.b16 %v4101, %v4097
        %4294 = vmatprep.subr.bf16.mxu0 %v4103
        %4295 = vmatpush1.bf16.msra.mxu0 %v4102
        %4296 = vmatprep.subr.bf16.mxu0 %v4107
        %4297 = vmatpush1.bf16.msra.mxu0 %v4106
        %4298 = vmatprep.subr.bf16.mxu0 %v4111
        %4299 = vmatpush1.bf16.msra.mxu0 %v4110
        %4300 = vmatprep.subr.bf16.mxu0 %v4115
        %4301 = vmatpush1.bf16.msra.mxu0 %v4114
        %4302 = vmatprep.subr.bf16.mxu0 %v4119
        %4303 = vmatpush1.bf16.msra.mxu0 %v4118
        %4304 = vmatprep.subr.bf16.mxu0 %v4123
        %4305 = vmatpush1.bf16.msra.mxu0 %v4122
        %4306 = vmatprep.subr.bf16.mxu0 %v4127
        %4307 = vmatpush1.bf16.msra.mxu0 %v4126
        %4308 = vmatprep.subr.bf16.mxu0 %v4131
        %4309 = vmatpush1.bf16.msra.mxu0 %v4130
        %4310 = vmatprep.subr.bf16.mxu0 %v4135
        %4311 = vmatpush1.bf16.msra.mxu0 %v4134
        %4312 = vmatprep.subr.bf16.mxu0 %v4139
        %4313 = vmatpush1.bf16.msra.mxu0 %v4138
        %4314 = vmatprep.subr.bf16.mxu0 %v4143
        %4315 = vmatpush1.bf16.msra.mxu0 %v4142
        %4316 = vmatprep.subr.bf16.mxu0 %v4147
        %4317 = vmatpush1.bf16.msra.mxu0 %v4146
        %4318 = vmatprep.subr.bf16.mxu0 %v4151
        %4319 = vmatpush1.bf16.msra.mxu0 %v4150
        %4320 = vmatprep.subr.bf16.mxu0 %v4155
        %4321 = vmatpush1.bf16.msra.mxu0 %v4154
        %4322 = vmatprep.subr.bf16.mxu0 %v4159
        %4323 = vmatpush1.bf16.msra.mxu0 %v4158
        %4324 = vmatprep.subr.bf16.mxu0 %v4163
        %4325 = vmatpush1.bf16.msra.mxu0 %v4162
        %4326 = vmatprep.mubr.bf16.mxu0 %v3809
        %4327 = vmatmul.mubr.bf16.gmra.mrb[0].mxu0 %v3808
        %v4328 = vpop.f32.mrb[0].mxu0
        %v4329 = vadd.f32 0.0, %v4328
        %v4330 = vpop.f32.mrb[0].mxu0
        %v4331 = vadd.f32 0.0, %v4330
        %v4332 = vpop.f32.mrb[0].mxu0
        %v4333 = vpop.f32.mrb[0].mxu0
        %4334 = vdwg.mxu0
        %4335 = vmatprep.subr.bf16.mxu0 %v4167
        %4336 = vmatpush1.bf16.msra.mxu0 %v4166
        %4337 = vmatprep.subr.bf16.mxu0 %v4171
        %4338 = vmatpush1.bf16.msra.mxu0 %v4170
        %4339 = vmatprep.subr.bf16.mxu0 %v4175
        %4340 = vmatpush1.bf16.msra.mxu0 %v4174
        %4341 = vmatprep.subr.bf16.mxu0 %v4179
        %4342 = vmatpush1.bf16.msra.mxu0 %v4178
        %4343 = vmatprep.subr.bf16.mxu0 %v4183
        %4344 = vmatpush1.bf16.msra.mxu0 %v4182
        %4345 = vmatprep.subr.bf16.mxu0 %v4187
        %4346 = vmatpush1.bf16.msra.mxu0 %v4186
        %4347 = vmatprep.subr.bf16.mxu0 %v4191
        %4348 = vmatpush1.bf16.msra.mxu0 %v4190
        %4349 = vmatprep.subr.bf16.mxu0 %v4195
        %4350 = vmatpush1.bf16.msra.mxu0 %v4194
        %4351 = vmatprep.subr.bf16.mxu0 0
        %4352 = vmatpush1.bf16.msra.mxu0 0
        %4353 = vmatprep.subr.bf16.mxu0 0
        %4354 = vmatpush1.bf16.msra.mxu0 0
        %4355 = vmatprep.subr.bf16.mxu0 0
        %4356 = vmatpush1.bf16.msra.mxu0 0
        %4357 = vmatprep.subr.bf16.mxu0 0
        %4358 = vmatpush1.bf16.msra.mxu0 0
        %4359 = vmatprep.subr.bf16.mxu0 0
        %4360 = vmatpush1.bf16.msra.mxu0 0
        %4361 = vmatprep.subr.bf16.mxu0 0
        %4362 = vmatpush1.bf16.msra.mxu0 0
        %4363 = vmatprep.subr.bf16.mxu0 0
        %4364 = vmatpush1.bf16.msra.mxu0 0
        %4365 = vmatprep.subr.bf16.mxu0 0
        %4366 = vmatpush1.bf16.msra.mxu0 0
        %4367 = vmatprep.mubr.bf16.mxu0 0
        %4368 = vmatmul.mubr.bf16.gmra.mrb[0].mxu0 %v3810
        %v4369 = vpop.f32.mrb[0].mxu0
        %v4370 = vadd.f32 %v4329, %v4369
        %v4371 = vpop.f32.mrb[0].mxu0
        %v4372 = vadd.f32 %v4331, %v4371
        %v4373 = vpop.f32.mrb[0].mxu0
        %v4374 = vpop.f32.mrb[0].mxu0
        %4375 = vdwg.mxu0
        %4376 = vmatprep.subr.bf16.mxu0 %v4105
        %4377 = vmatpush1.bf16.msra.mxu0 %v4104
        %4378 = vmatprep.subr.bf16.mxu0 %v4109
        %4379 = vmatpush1.bf16.msra.mxu0 %v4108
        %4380 = vmatprep.subr.bf16.mxu0 %v4113
        %4381 = vmatpush1.bf16.msra.mxu0 %v4112
        %4382 = vmatprep.subr.bf16.mxu0 %v4117
        %4383 = vmatpush1.bf16.msra.mxu0 %v4116
        %4384 = vmatprep.subr.bf16.mxu0 %v4121
        %4385 = vmatpush1.bf16.msra.mxu0 %v4120
        %4386 = vmatprep.subr.bf16.mxu0 %v4125
        %4387 = vmatpush1.bf16.msra.mxu0 %v4124
        %4388 = vmatprep.subr.bf16.mxu0 %v4129
        %4389 = vmatpush1.bf16.msra.mxu0 %v4128
        %4390 = vmatprep.subr.bf16.mxu0 %v4133
        %4391 = vmatpush1.bf16.msra.mxu0 %v4132
        %4392 = vmatprep.subr.bf16.mxu0 %v4137
        %4393 = vmatpush1.bf16.msra.mxu0 %v4136
        %4394 = vmatprep.subr.bf16.mxu0 %v4141
        %4395 = vmatpush1.bf16.msra.mxu0 %v4140
        %4396 = vmatprep.subr.bf16.mxu0 %v4145
        %4397 = vmatpush1.bf16.msra.mxu0 %v4144
        %4398 = vmatprep.subr.bf16.mxu0 %v4149
        %4399 = vmatpush1.bf16.msra.mxu0 %v4148
        %4400 = vmatprep.subr.bf16.mxu0 %v4153
        %4401 = vmatpush1.bf16.msra.mxu0 %v4152
        %4402 = vmatprep.subr.bf16.mxu0 %v4157
        %4403 = vmatpush1.bf16.msra.mxu0 %v4156
        %4404 = vmatprep.subr.bf16.mxu0 %v4161
        %4405 = vmatpush1.bf16.msra.mxu0 %v4160
        %4406 = vmatprep.subr.bf16.mxu0 %v4165
        %4407 = vmatpush1.bf16.msra.mxu0 %v4164
        %4408 = vmatprep.mubr.bf16.mxu0 %v3809
        %4409 = vmatmul.mubr.bf16.gmra.mrb[0].mxu0 %v3808
        %v4410 = vpop.f32.mrb[0].mxu0
        %v4411 = vadd.f32 0.0, %v4410
        %v4412 = vpop.f32.mrb[0].mxu0
        %v4413 = vadd.f32 0.0, %v4412
        %v4414 = vpop.f32.mrb[0].mxu0
        %v4415 = vpop.f32.mrb[0].mxu0
        %4416 = vdwg.mxu0
        %4417 = vmatprep.subr.bf16.mxu0 %v4169
        %4418 = vmatpush1.bf16.msra.mxu0 %v4168
        %4419 = vmatprep.subr.bf16.mxu0 %v4173
        %4420 = vmatpush1.bf16.msra.mxu0 %v4172
        %4421 = vmatprep.subr.bf16.mxu0 %v4177
        %4422 = vmatpush1.bf16.msra.mxu0 %v4176
        %4423 = vmatprep.subr.bf16.mxu0 %v4181
        %4424 = vmatpush1.bf16.msra.mxu0 %v4180
        %4425 = vmatprep.subr.bf16.mxu0 %v4185
        %4426 = vmatpush1.bf16.msra.mxu0 %v4184
        %4427 = vmatprep.subr.bf16.mxu0 %v4189
        %4428 = vmatpush1.bf16.msra.mxu0 %v4188
        %4429 = vmatprep.subr.bf16.mxu0 %v4193
        %4430 = vmatpush1.bf16.msra.mxu0 %v4192
        %4431 = vmatprep.subr.bf16.mxu0 %v4197
        %4432 = vmatpush1.bf16.msra.mxu0 %v4196
        %4433 = vmatprep.subr.bf16.mxu0 0
        %4434 = vmatpush1.bf16.msra.mxu0 0
        %4435 = vmatprep.subr.bf16.mxu0 0
        %4436 = vmatpush1.bf16.msra.mxu0 0
        %4437 = vmatprep.subr.bf16.mxu0 0
        %4438 = vmatpush1.bf16.msra.mxu0 0
        %4439 = vmatprep.subr.bf16.mxu0 0
        %4440 = vmatpush1.bf16.msra.mxu0 0
        %4441 = vmatprep.subr.bf16.mxu0 0
        %4442 = vmatpush1.bf16.msra.mxu0 0
        %4443 = vmatprep.subr.bf16.mxu0 0
        %4444 = vmatpush1.bf16.msra.mxu0 0
        %4445 = vmatprep.subr.bf16.mxu0 0
        %4446 = vmatpush1.bf16.msra.mxu0 0
        %4447 = vmatprep.subr.bf16.mxu0 0
        %4448 = vmatpush1.bf16.msra.mxu0 0
        %4449 = vmatprep.mubr.bf16.mxu0 0
        %4450 = vmatmul.mubr.bf16.gmra.mrb[0].mxu0 %v3810
        %v4451 = vpop.f32.mrb[0].mxu0
        %v4452 = vadd.f32 %v4411, %v4451
        %v4453 = vpop.f32.mrb[0].mxu0
        %v4454 = vadd.f32 %v4413, %v4453
        %v4455 = vpop.f32.mrb[0].mxu0
        %v4456 = vpop.f32.mrb[0].mxu0
        %4457 = vdwg.mxu0
        %v4458 = vld [vmem:[#allocation4] sm:$0xff]
        %v4459 = vld [vmem:[#allocation4 + $0x8] sm:$0xff]
        %v4460 = vld [vmem:[#allocation4 + $0x10] sm:$0xff]
        %v4461 = vld [vmem:[#allocation4 + $0x18] sm:$0xff]
        %v4462 = vadd.f32 %v4458, %v4370
        %v4463 = vadd.f32 %v4459, %v4372
        %v4464 = vadd.f32 %v4460, %v4452
        %v4465 = vadd.f32 %v4461, %v4454
        %4466 = vst [vmem:[#allocation4] sm:$0xff] %v4462
        %4467 = vst [vmem:[#allocation4 + $0x8] sm:$0xff] %v4463
        %4468 = vst [vmem:[#allocation4 + $0x10] sm:$0xff] %v4464
        %4469 = vst [vmem:[#allocation4 + $0x18] sm:$0xff] %v4465
        %v4470 = vld [vmem:[#allocation3] sm:$0xf8]
        %v4471 = vld [vmem:[#allocation3 + $0x8] sm:$0xf8]
        %v4472 = vld [vmem:[#allocation3 + $0x10] sm:$0xf8]
        %v4473 = vld [vmem:[#allocation3 + $0x18] sm:$0x7]
        %v4474 = vld [vmem:[#allocation3 + $0x20] sm:$0x7]
        %v4475 = vld [vmem:[#allocation3 + $0x28] sm:$0x7]
        %v4476 = vpack.c.bf16 %v4473, %v4470
        %v4477 = vpack.c.bf16 %v4474, %v4471
        %v4478 = vpack.c.bf16 %v4475, %v4472
        %s4479 = scalar_lea.vmem [#allocation10], 2304
        %v4480 = vld [vmem:[%s4479] sm:$0xff]
        %v4481 = vld [vmem:[%s4479 + $0x8] sm:$0xff]
        %v4482 = vld [vmem:[%s4479 + $0x10] sm:$0xff]
        %v4483 = vld [vmem:[%s4479 + $0x18] sm:$0xff]
        %v4484 = vld [vmem:[%s4479 + $0x20] sm:$0xff]
        %v4485 = vld [vmem:[%s4479 + $0x28] sm:$0xff]
        %v4486 = vld [vmem:[%s4479 + $0x30] sm:$0xff]
        %v4487 = vld [vmem:[%s4479 + $0x38] sm:$0xff]
        %v4488 = vld [vmem:[%s4479 + $0x40] sm:$0xff]
        %v4489 = vld [vmem:[%s4479 + $0x48] sm:$0xff]
        %v4490 = vld [vmem:[%s4479 + $0x50] sm:$0xff]
        %v4491 = vld [vmem:[%s4479 + $0x58] sm:$0xff]
        %v4492 = vld [vmem:[%s4479 + $0x60] sm:$0xff]
        %v4493 = vld [vmem:[%s4479 + $0x68] sm:$0xff]
        %v4494 = vld [vmem:[%s4479 + $0x70] sm:$0xff]
        %v4495 = vld [vmem:[%s4479 + $0x78] sm:$0xff]
        %v4496 = vld [vmem:[%s4479 + $0x80] sm:$0xff]
        %v4497 = vld [vmem:[%s4479 + $0x88] sm:$0xff]
        %v4498 = vld [vmem:[%s4479 + $0x90] sm:$0xff]
        %v4499 = vld [vmem:[%s4479 + $0x98] sm:$0xff]
        %v4500 = vld [vmem:[%s4479 + $0xa0] sm:$0xff]
        %v4501 = vld [vmem:[%s4479 + $0xa8] sm:$0xff]
        %v4502 = vld [vmem:[%s4479 + $0xb0] sm:$0xff]
        %v4503 = vld [vmem:[%s4479 + $0xb8] sm:$0xff]
        %v4504 = vld [vmem:[%s4479 + $0xc0] sm:$0xff]
        %v4505 = vld [vmem:[%s4479 + $0xc8] sm:$0xff]
        %v4506 = vld [vmem:[%s4479 + $0xd0] sm:$0xff]
        %v4507 = vld [vmem:[%s4479 + $0xd8] sm:$0xff]
        %v4508 = vld [vmem:[%s4479 + $0xe0] sm:$0xff]
        %v4509 = vld [vmem:[%s4479 + $0xe8] sm:$0xff]
        %v4510 = vld [vmem:[%s4479 + $0xf0] sm:$0xff]
        %v4511 = vld [vmem:[%s4479 + $0xf8] sm:$0xff]
        %v4512 = vld [vmem:[%s4479 + $0x100] sm:$0xff]
        %v4513 = vld [vmem:[%s4479 + $0x108] sm:$0xff]
        %v4514 = vld [vmem:[%s4479 + $0x110] sm:$0xff]
        %v4515 = vld [vmem:[%s4479 + $0x118] sm:$0xff]
        %v4516 = vld [vmem:[%s4479 + $0x120] sm:$0xff]
        %v4517 = vld [vmem:[%s4479 + $0x128] sm:$0xff]
        %v4518 = vld [vmem:[%s4479 + $0x130] sm:$0xff]
        %v4519 = vld [vmem:[%s4479 + $0x138] sm:$0xff]
        %v4520 = vld [vmem:[%s4479 + $0x140] sm:$0xff]
        %v4521 = vld [vmem:[%s4479 + $0x148] sm:$0xff]
        %v4522 = vld [vmem:[%s4479 + $0x150] sm:$0xff]
        %v4523 = vld [vmem:[%s4479 + $0x158] sm:$0xff]
        %v4524 = vld [vmem:[%s4479 + $0x160] sm:$0xff]
        %v4525 = vld [vmem:[%s4479 + $0x168] sm:$0xff]
        %v4526 = vld [vmem:[%s4479 + $0x170] sm:$0xff]
        %v4527 = vld [vmem:[%s4479 + $0x178] sm:$0xff]
        %v4528 = vld [vmem:[%s4479 + $0x180] sm:$0xff]
        %v4529 = vld [vmem:[%s4479 + $0x188] sm:$0xff]
        %v4530 = vld [vmem:[%s4479 + $0x190] sm:$0xff]
        %v4531 = vld [vmem:[%s4479 + $0x198] sm:$0xff]
        %v4532 = vld [vmem:[%s4479 + $0x1a0] sm:$0xff]
        %v4533 = vld [vmem:[%s4479 + $0x1a8] sm:$0xff]
        %v4534 = vld [vmem:[%s4479 + $0x1b0] sm:$0xff]
        %v4535 = vld [vmem:[%s4479 + $0x1b8] sm:$0xff]
        %v4536 = vld [vmem:[%s4479 + $0x1c0] sm:$0xff]
        %v4537 = vld [vmem:[%s4479 + $0x1c8] sm:$0xff]
        %v4538 = vld [vmem:[%s4479 + $0x1d0] sm:$0xff]
        %v4539 = vld [vmem:[%s4479 + $0x1d8] sm:$0xff]
        %v4540 = vld [vmem:[%s4479 + $0x1e0] sm:$0xff]
        %v4541 = vld [vmem:[%s4479 + $0x1e8] sm:$0xff]
        %v4542 = vld [vmem:[%s4479 + $0x1f0] sm:$0xff]
        %v4543 = vld [vmem:[%s4479 + $0x1f8] sm:$0xff]
        %v4544 = vld [vmem:[%s4479 + $0x200] sm:$0xff]
        %v4545 = vld [vmem:[%s4479 + $0x208] sm:$0xff]
        %v4546 = vld [vmem:[%s4479 + $0x210] sm:$0xff]
        %v4547 = vld [vmem:[%s4479 + $0x218] sm:$0xff]
        %v4548 = vld [vmem:[%s4479 + $0x220] sm:$0xff]
        %v4549 = vld [vmem:[%s4479 + $0x228] sm:$0xff]
        %v4550 = vld [vmem:[%s4479 + $0x230] sm:$0xff]
        %v4551 = vld [vmem:[%s4479 + $0x238] sm:$0xff]
        %v4552 = vld [vmem:[%s4479 + $0x240] sm:$0xff]
        %v4553 = vld [vmem:[%s4479 + $0x248] sm:$0xff]
        %v4554 = vld [vmem:[%s4479 + $0x250] sm:$0xff]
        %v4555 = vld [vmem:[%s4479 + $0x258] sm:$0xff]
        %v4556 = vld [vmem:[%s4479 + $0x260] sm:$0xff]
        %v4557 = vld [vmem:[%s4479 + $0x268] sm:$0xff]
        %v4558 = vld [vmem:[%s4479 + $0x270] sm:$0xff]
        %v4559 = vld [vmem:[%s4479 + $0x278] sm:$0xff]
        %v4560 = vld [vmem:[%s4479 + $0x280] sm:$0xff]
        %v4561 = vld [vmem:[%s4479 + $0x288] sm:$0xff]
        %v4562 = vld [vmem:[%s4479 + $0x290] sm:$0xff]
        %v4563 = vld [vmem:[%s4479 + $0x298] sm:$0xff]
        %v4564 = vld [vmem:[%s4479 + $0x2a0] sm:$0xff]
        %v4565 = vld [vmem:[%s4479 + $0x2a8] sm:$0xff]
        %v4566 = vld [vmem:[%s4479 + $0x2b0] sm:$0xff]
        %v4567 = vld [vmem:[%s4479 + $0x2b8] sm:$0xff]
        %v4568 = vld [vmem:[%s4479 + $0x2c0] sm:$0xff]
        %v4569 = vld [vmem:[%s4479 + $0x2c8] sm:$0xff]
        %v4570 = vld [vmem:[%s4479 + $0x2d0] sm:$0xff]
        %v4571 = vld [vmem:[%s4479 + $0x2d8] sm:$0xff]
        %v4572 = vld [vmem:[%s4479 + $0x2e0] sm:$0xff]
        %v4573 = vld [vmem:[%s4479 + $0x2e8] sm:$0xff]
        %v4574 = vld [vmem:[%s4479 + $0x2f0] sm:$0xff]
        %v4575 = vld [vmem:[%s4479 + $0x2f8] sm:$0xff]
        %v4577 = vshrl.u32 %v4476, 16
        %v4579 = vrot.slane %v4577, 1
        %v4580 = vshll.u32 %v4476, 16
        %v4582 = vrot.slane %v4580, 2
        %v4583 = vor.u32 %v4579, %v4582
        %v4585 = vshrl.u32 %v4477, 16
        %v4587 = vrot.slane %v4585, 1
        %v4588 = vshll.u32 %v4477, 16
        %v4590 = vrot.slane %v4588, 2
        %v4591 = vor.u32 %v4587, %v4590
        %v4593 = vshrl.u32 %v4478, 16
        %v4595 = vrot.slane %v4593, 1
        %v4596 = vshll.u32 %v4478, 16
        %v4598 = vrot.slane %v4596, 2
        %v4599 = vor.u32 %v4595, %v4598
        %v4699 = vunpack.c.l.b16 %v4480
        %v4700 = vunpack.c.h.b16 %v4480
        %v4701 = vunpack.c.l.b16 %v4481
        %v4702 = vunpack.c.h.b16 %v4481
        %v4703 = vunpack.c.l.b16 %v4482
        %v4704 = vunpack.c.h.b16 %v4482
        %v4705 = vunpack.c.l.b16 %v4483
        %v4706 = vunpack.c.h.b16 %v4483
        %v4707 = vunpack.c.l.b16 %v4484
        %v4708 = vunpack.c.h.b16 %v4484
        %v4709 = vunpack.c.l.b16 %v4485
        %v4710 = vunpack.c.h.b16 %v4485
        %v4711 = vunpack.c.l.b16 %v4486
        %v4712 = vunpack.c.h.b16 %v4486
        %v4713 = vunpack.c.l.b16 %v4487
        %v4714 = vunpack.c.h.b16 %v4487
        %v4715 = vunpack.c.l.b16 %v4488
        %v4716 = vunpack.c.h.b16 %v4488
        %v4717 = vunpack.c.l.b16 %v4489
        %v4718 = vunpack.c.h.b16 %v4489
        %v4719 = vunpack.c.l.b16 %v4490
        %v4720 = vunpack.c.h.b16 %v4490
        %v4721 = vunpack.c.l.b16 %v4491
        %v4722 = vunpack.c.h.b16 %v4491
        %v4723 = vunpack.c.l.b16 %v4492
        %v4724 = vunpack.c.h.b16 %v4492
        %v4725 = vunpack.c.l.b16 %v4493
        %v4726 = vunpack.c.h.b16 %v4493
        %v4727 = vunpack.c.l.b16 %v4494
        %v4728 = vunpack.c.h.b16 %v4494
        %v4729 = vunpack.c.l.b16 %v4495
        %v4730 = vunpack.c.h.b16 %v4495
        %v4731 = vunpack.c.l.b16 %v4496
        %v4732 = vunpack.c.h.b16 %v4496
        %v4733 = vunpack.c.l.b16 %v4497
        %v4734 = vunpack.c.h.b16 %v4497
        %v4735 = vunpack.c.l.b16 %v4498
        %v4736 = vunpack.c.h.b16 %v4498
        %v4737 = vunpack.c.l.b16 %v4499
        %v4738 = vunpack.c.h.b16 %v4499
        %v4739 = vunpack.c.l.b16 %v4500
        %v4740 = vunpack.c.h.b16 %v4500
        %v4741 = vunpack.c.l.b16 %v4501
        %v4742 = vunpack.c.h.b16 %v4501
        %v4743 = vunpack.c.l.b16 %v4502
        %v4744 = vunpack.c.h.b16 %v4502
        %v4745 = vunpack.c.l.b16 %v4503
        %v4746 = vunpack.c.h.b16 %v4503
        %v4747 = vunpack.c.l.b16 %v4504
        %v4748 = vunpack.c.h.b16 %v4504
        %v4749 = vunpack.c.l.b16 %v4505
        %v4750 = vunpack.c.h.b16 %v4505
        %v4751 = vunpack.c.l.b16 %v4506
        %v4752 = vunpack.c.h.b16 %v4506
        %v4753 = vunpack.c.l.b16 %v4507
        %v4754 = vunpack.c.h.b16 %v4507
        %v4755 = vunpack.c.l.b16 %v4508
        %v4756 = vunpack.c.h.b16 %v4508
        %v4757 = vunpack.c.l.b16 %v4509
        %v4758 = vunpack.c.h.b16 %v4509
        %v4759 = vunpack.c.l.b16 %v4510
        %v4760 = vunpack.c.h.b16 %v4510
        %v4761 = vunpack.c.l.b16 %v4511
        %v4762 = vunpack.c.h.b16 %v4511
        %v4763 = vunpack.c.l.b16 %v4512
        %v4764 = vunpack.c.h.b16 %v4512
        %v4765 = vunpack.c.l.b16 %v4513
        %v4766 = vunpack.c.h.b16 %v4513
        %v4767 = vunpack.c.l.b16 %v4514
        %v4768 = vunpack.c.h.b16 %v4514
        %v4769 = vunpack.c.l.b16 %v4515
        %v4770 = vunpack.c.h.b16 %v4515
        %v4771 = vunpack.c.l.b16 %v4516
        %v4772 = vunpack.c.h.b16 %v4516
        %v4773 = vunpack.c.l.b16 %v4517
        %v4774 = vunpack.c.h.b16 %v4517
        %v4775 = vunpack.c.l.b16 %v4518
        %v4776 = vunpack.c.h.b16 %v4518
        %v4777 = vunpack.c.l.b16 %v4519
        %v4778 = vunpack.c.h.b16 %v4519
        %v4779 = vunpack.c.l.b16 %v4520
        %v4780 = vunpack.c.h.b16 %v4520
        %v4781 = vunpack.c.l.b16 %v4521
        %v4782 = vunpack.c.h.b16 %v4521
        %v4783 = vunpack.c.l.b16 %v4522
        %v4784 = vunpack.c.h.b16 %v4522
        %v4785 = vunpack.c.l.b16 %v4523
        %v4786 = vunpack.c.h.b16 %v4523
        %v4787 = vunpack.c.l.b16 %v4524
        %v4788 = vunpack.c.h.b16 %v4524
        %v4789 = vunpack.c.l.b16 %v4525
        %v4790 = vunpack.c.h.b16 %v4525
        %v4791 = vunpack.c.l.b16 %v4526
        %v4792 = vunpack.c.h.b16 %v4526
        %v4793 = vunpack.c.l.b16 %v4527
        %v4794 = vunpack.c.h.b16 %v4527
        %v4795 = vunpack.c.l.b16 %v4528
        %v4796 = vunpack.c.h.b16 %v4528
        %v4797 = vunpack.c.l.b16 %v4529
        %v4798 = vunpack.c.h.b16 %v4529
        %v4799 = vunpack.c.l.b16 %v4530
        %v4800 = vunpack.c.h.b16 %v4530
        %v4801 = vunpack.c.l.b16 %v4531
        %v4802 = vunpack.c.h.b16 %v4531
        %v4803 = vunpack.c.l.b16 %v4532
        %v4804 = vunpack.c.h.b16 %v4532
        %v4805 = vunpack.c.l.b16 %v4533
        %v4806 = vunpack.c.h.b16 %v4533
        %v4807 = vunpack.c.l.b16 %v4534
        %v4808 = vunpack.c.h.b16 %v4534
        %v4809 = vunpack.c.l.b16 %v4535
        %v4810 = vunpack.c.h.b16 %v4535
        %v4811 = vunpack.c.l.b16 %v4536
        %v4812 = vunpack.c.h.b16 %v4536
        %v4813 = vunpack.c.l.b16 %v4537
        %v4814 = vunpack.c.h.b16 %v4537
        %v4815 = vunpack.c.l.b16 %v4538
        %v4816 = vunpack.c.h.b16 %v4538
        %v4817 = vunpack.c.l.b16 %v4539
        %v4818 = vunpack.c.h.b16 %v4539
        %v4819 = vunpack.c.l.b16 %v4540
        %v4820 = vunpack.c.h.b16 %v4540
        %v4821 = vunpack.c.l.b16 %v4541
        %v4822 = vunpack.c.h.b16 %v4541
        %v4823 = vunpack.c.l.b16 %v4542
        %v4824 = vunpack.c.h.b16 %v4542
        %v4825 = vunpack.c.l.b16 %v4543
        %v4826 = vunpack.c.h.b16 %v4543
        %v4827 = vunpack.c.l.b16 %v4544
        %v4828 = vunpack.c.h.b16 %v4544
        %v4829 = vunpack.c.l.b16 %v4545
        %v4830 = vunpack.c.h.b16 %v4545
        %v4831 = vunpack.c.l.b16 %v4546
        %v4832 = vunpack.c.h.b16 %v4546
        %v4833 = vunpack.c.l.b16 %v4547
        %v4834 = vunpack.c.h.b16 %v4547
        %v4835 = vunpack.c.l.b16 %v4548
        %v4836 = vunpack.c.h.b16 %v4548
        %v4837 = vunpack.c.l.b16 %v4549
        %v4838 = vunpack.c.h.b16 %v4549
        %v4839 = vunpack.c.l.b16 %v4550
        %v4840 = vunpack.c.h.b16 %v4550
        %v4841 = vunpack.c.l.b16 %v4551
        %v4842 = vunpack.c.h.b16 %v4551
        %v4843 = vunpack.c.l.b16 %v4552
        %v4844 = vunpack.c.h.b16 %v4552
        %v4845 = vunpack.c.l.b16 %v4553
        %v4846 = vunpack.c.h.b16 %v4553
        %v4847 = vunpack.c.l.b16 %v4554
        %v4848 = vunpack.c.h.b16 %v4554
        %v4849 = vunpack.c.l.b16 %v4555
        %v4850 = vunpack.c.h.b16 %v4555
        %v4851 = vunpack.c.l.b16 %v4556
        %v4852 = vunpack.c.h.b16 %v4556
        %v4853 = vunpack.c.l.b16 %v4557
        %v4854 = vunpack.c.h.b16 %v4557
        %v4855 = vunpack.c.l.b16 %v4558
        %v4856 = vunpack.c.h.b16 %v4558
        %v4857 = vunpack.c.l.b16 %v4559
        %v4858 = vunpack.c.h.b16 %v4559
        %v4859 = vunpack.c.l.b16 %v4560
        %v4860 = vunpack.c.h.b16 %v4560
        %v4861 = vunpack.c.l.b16 %v4561
        %v4862 = vunpack.c.h.b16 %v4561
        %v4863 = vunpack.c.l.b16 %v4562
        %v4864 = vunpack.c.h.b16 %v4562
        %v4865 = vunpack.c.l.b16 %v4563
        %v4866 = vunpack.c.h.b16 %v4563
        %v4867 = vunpack.c.l.b16 %v4564
        %v4868 = vunpack.c.h.b16 %v4564
        %v4869 = vunpack.c.l.b16 %v4565
        %v4870 = vunpack.c.h.b16 %v4565
        %v4871 = vunpack.c.l.b16 %v4566
        %v4872 = vunpack.c.h.b16 %v4566
        %v4873 = vunpack.c.l.b16 %v4567
        %v4874 = vunpack.c.h.b16 %v4567
        %v4875 = vunpack.c.l.b16 %v4568
        %v4876 = vunpack.c.h.b16 %v4568
        %v4877 = vunpack.c.l.b16 %v4569
        %v4878 = vunpack.c.h.b16 %v4569
        %v4879 = vunpack.c.l.b16 %v4570
        %v4880 = vunpack.c.h.b16 %v4570
        %v4881 = vunpack.c.l.b16 %v4571
        %v4882 = vunpack.c.h.b16 %v4571
        %v4883 = vunpack.c.l.b16 %v4572
        %v4884 = vunpack.c.h.b16 %v4572
        %v4885 = vunpack.c.l.b16 %v4573
        %v4886 = vunpack.c.h.b16 %v4573
        %v4887 = vunpack.c.l.b16 %v4574
        %v4888 = vunpack.c.h.b16 %v4574
        %v4889 = vunpack.c.l.b16 %v4575
        %v4890 = vunpack.c.h.b16 %v4575
        %v4891 = vpack.c.b16 %v4703, %v4699
        %v4892 = vpack.c.b16 %v4704, %v4700
        %v4893 = vpack.c.b16 %v4705, %v4701
        %v4894 = vpack.c.b16 %v4706, %v4702
        %v4895 = vpack.c.b16 %v4711, %v4707
        %v4896 = vpack.c.b16 %v4712, %v4708
        %v4897 = vpack.c.b16 %v4713, %v4709
        %v4898 = vpack.c.b16 %v4714, %v4710
        %v4899 = vpack.c.b16 %v4719, %v4715
        %v4900 = vpack.c.b16 %v4720, %v4716
        %v4901 = vpack.c.b16 %v4721, %v4717
        %v4902 = vpack.c.b16 %v4722, %v4718
        %v4903 = vpack.c.b16 %v4727, %v4723
        %v4904 = vpack.c.b16 %v4728, %v4724
        %v4905 = vpack.c.b16 %v4729, %v4725
        %v4906 = vpack.c.b16 %v4730, %v4726
        %v4907 = vpack.c.b16 %v4735, %v4731
        %v4908 = vpack.c.b16 %v4736, %v4732
        %v4909 = vpack.c.b16 %v4737, %v4733
        %v4910 = vpack.c.b16 %v4738, %v4734
        %v4911 = vpack.c.b16 %v4743, %v4739
        %v4912 = vpack.c.b16 %v4744, %v4740
        %v4913 = vpack.c.b16 %v4745, %v4741
        %v4914 = vpack.c.b16 %v4746, %v4742
        %v4915 = vpack.c.b16 %v4751, %v4747
        %v4916 = vpack.c.b16 %v4752, %v4748
        %v4917 = vpack.c.b16 %v4753, %v4749
        %v4918 = vpack.c.b16 %v4754, %v4750
        %v4919 = vpack.c.b16 %v4759, %v4755
        %v4920 = vpack.c.b16 %v4760, %v4756
        %v4921 = vpack.c.b16 %v4761, %v4757
        %v4922 = vpack.c.b16 %v4762, %v4758
        %v4923 = vpack.c.b16 %v4767, %v4763
        %v4924 = vpack.c.b16 %v4768, %v4764
        %v4925 = vpack.c.b16 %v4769, %v4765
        %v4926 = vpack.c.b16 %v4770, %v4766
        %v4927 = vpack.c.b16 %v4775, %v4771
        %v4928 = vpack.c.b16 %v4776, %v4772
        %v4929 = vpack.c.b16 %v4777, %v4773
        %v4930 = vpack.c.b16 %v4778, %v4774
        %v4931 = vpack.c.b16 %v4783, %v4779
        %v4932 = vpack.c.b16 %v4784, %v4780
        %v4933 = vpack.c.b16 %v4785, %v4781
        %v4934 = vpack.c.b16 %v4786, %v4782
        %v4935 = vpack.c.b16 %v4791, %v4787
        %v4936 = vpack.c.b16 %v4792, %v4788
        %v4937 = vpack.c.b16 %v4793, %v4789
        %v4938 = vpack.c.b16 %v4794, %v4790
        %v4939 = vpack.c.b16 %v4799, %v4795
        %v4940 = vpack.c.b16 %v4800, %v4796
        %v4941 = vpack.c.b16 %v4801, %v4797
        %v4942 = vpack.c.b16 %v4802, %v4798
        %v4943 = vpack.c.b16 %v4807, %v4803
        %v4944 = vpack.c.b16 %v4808, %v4804
        %v4945 = vpack.c.b16 %v4809, %v4805
        %v4946 = vpack.c.b16 %v4810, %v4806
        %v4947 = vpack.c.b16 %v4815, %v4811
        %v4948 = vpack.c.b16 %v4816, %v4812
        %v4949 = vpack.c.b16 %v4817, %v4813
        %v4950 = vpack.c.b16 %v4818, %v4814
        %v4951 = vpack.c.b16 %v4823, %v4819
        %v4952 = vpack.c.b16 %v4824, %v4820
        %v4953 = vpack.c.b16 %v4825, %v4821
        %v4954 = vpack.c.b16 %v4826, %v4822
        %v4955 = vpack.c.b16 %v4831, %v4827
        %v4956 = vpack.c.b16 %v4832, %v4828
        %v4957 = vpack.c.b16 %v4833, %v4829
        %v4958 = vpack.c.b16 %v4834, %v4830
        %v4959 = vpack.c.b16 %v4839, %v4835
        %v4960 = vpack.c.b16 %v4840, %v4836
        %v4961 = vpack.c.b16 %v4841, %v4837
        %v4962 = vpack.c.b16 %v4842, %v4838
        %v4963 = vpack.c.b16 %v4847, %v4843
        %v4964 = vpack.c.b16 %v4848, %v4844
        %v4965 = vpack.c.b16 %v4849, %v4845
        %v4966 = vpack.c.b16 %v4850, %v4846
        %v4967 = vpack.c.b16 %v4855, %v4851
        %v4968 = vpack.c.b16 %v4856, %v4852
        %v4969 = vpack.c.b16 %v4857, %v4853
        %v4970 = vpack.c.b16 %v4858, %v4854
        %v4971 = vpack.c.b16 %v4863, %v4859
        %v4972 = vpack.c.b16 %v4864, %v4860
        %v4973 = vpack.c.b16 %v4865, %v4861
        %v4974 = vpack.c.b16 %v4866, %v4862
        %v4975 = vpack.c.b16 %v4871, %v4867
        %v4976 = vpack.c.b16 %v4872, %v4868
        %v4977 = vpack.c.b16 %v4873, %v4869
        %v4978 = vpack.c.b16 %v4874, %v4870
        %v4979 = vpack.c.b16 %v4879, %v4875
        %v4980 = vpack.c.b16 %v4880, %v4876
        %v4981 = vpack.c.b16 %v4881, %v4877
        %v4982 = vpack.c.b16 %v4882, %v4878
        %v4983 = vpack.c.b16 %v4887, %v4883
        %v4984 = vpack.c.b16 %v4888, %v4884
        %v4985 = vpack.c.b16 %v4889, %v4885
        %v4986 = vpack.c.b16 %v4890, %v4886
        %5083 = vmatprep.subr.bf16.mxu0 %v4892
        %5084 = vmatpush1.bf16.msra.mxu0 %v4891
        %5085 = vmatprep.subr.bf16.mxu0 %v4896
        %5086 = vmatpush1.bf16.msra.mxu0 %v4895
        %5087 = vmatprep.subr.bf16.mxu0 %v4900
        %5088 = vmatpush1.bf16.msra.mxu0 %v4899
        %5089 = vmatprep.subr.bf16.mxu0 %v4904
        %5090 = vmatpush1.bf16.msra.mxu0 %v4903
        %5091 = vmatprep.subr.bf16.mxu0 %v4908
        %5092 = vmatpush1.bf16.msra.mxu0 %v4907
        %5093 = vmatprep.subr.bf16.mxu0 %v4912
        %5094 = vmatpush1.bf16.msra.mxu0 %v4911
        %5095 = vmatprep.subr.bf16.mxu0 %v4916
        %5096 = vmatpush1.bf16.msra.mxu0 %v4915
        %5097 = vmatprep.subr.bf16.mxu0 %v4920
        %5098 = vmatpush1.bf16.msra.mxu0 %v4919
        %5099 = vmatprep.subr.bf16.mxu0 %v4924
        %5100 = vmatpush1.bf16.msra.mxu0 %v4923
        %5101 = vmatprep.subr.bf16.mxu0 %v4928
        %5102 = vmatpush1.bf16.msra.mxu0 %v4927
        %5103 = vmatprep.subr.bf16.mxu0 %v4932
        %5104 = vmatpush1.bf16.msra.mxu0 %v4931
        %5105 = vmatprep.subr.bf16.mxu0 %v4936
        %5106 = vmatpush1.bf16.msra.mxu0 %v4935
        %5107 = vmatprep.subr.bf16.mxu0 %v4940
        %5108 = vmatpush1.bf16.msra.mxu0 %v4939
        %5109 = vmatprep.subr.bf16.mxu0 %v4944
        %5110 = vmatpush1.bf16.msra.mxu0 %v4943
        %5111 = vmatprep.subr.bf16.mxu0 %v4948
        %5112 = vmatpush1.bf16.msra.mxu0 %v4947
        %5113 = vmatprep.subr.bf16.mxu0 %v4952
        %5114 = vmatpush1.bf16.msra.mxu0 %v4951
        %5115 = vmatprep.mubr.bf16.mxu0 %v4591
        %5116 = vmatmul.mubr.bf16.gmra.mrb[0].mxu0 %v4583
        %v5117 = vpop.f32.mrb[0].mxu0
        %v5118 = vadd.f32 0.0, %v5117
        %v5119 = vpop.f32.mrb[0].mxu0
        %v5120 = vadd.f32 0.0, %v5119
        %v5121 = vpop.f32.mrb[0].mxu0
        %v5122 = vpop.f32.mrb[0].mxu0
        %5123 = vdwg.mxu0
        %5124 = vmatprep.subr.bf16.mxu0 %v4956
        %5125 = vmatpush1.bf16.msra.mxu0 %v4955
        %5126 = vmatprep.subr.bf16.mxu0 %v4960
        %5127 = vmatpush1.bf16.msra.mxu0 %v4959
        %5128 = vmatprep.subr.bf16.mxu0 %v4964
        %5129 = vmatpush1.bf16.msra.mxu0 %v4963
        %5130 = vmatprep.subr.bf16.mxu0 %v4968
        %5131 = vmatpush1.bf16.msra.mxu0 %v4967
        %5132 = vmatprep.subr.bf16.mxu0 %v4972
        %5133 = vmatpush1.bf16.msra.mxu0 %v4971
        %5134 = vmatprep.subr.bf16.mxu0 %v4976
        %5135 = vmatpush1.bf16.msra.mxu0 %v4975
        %5136 = vmatprep.subr.bf16.mxu0 %v4980
        %5137 = vmatpush1.bf16.msra.mxu0 %v4979
        %5138 = vmatprep.subr.bf16.mxu0 %v4984
        %5139 = vmatpush1.bf16.msra.mxu0 %v4983
        %5140 = vmatprep.subr.bf16.mxu0 0
        %5141 = vmatpush1.bf16.msra.mxu0 0
        %5142 = vmatprep.subr.bf16.mxu0 0
        %5143 = vmatpush1.bf16.msra.mxu0 0
        %5144 = vmatprep.subr.bf16.mxu0 0
        %5145 = vmatpush1.bf16.msra.mxu0 0
        %5146 = vmatprep.subr.bf16.mxu0 0
        %5147 = vmatpush1.bf16.msra.mxu0 0
        %5148 = vmatprep.subr.bf16.mxu0 0
        %5149 = vmatpush1.bf16.msra.mxu0 0
        %5150 = vmatprep.subr.bf16.mxu0 0
        %5151 = vmatpush1.bf16.msra.mxu0 0
        %5152 = vmatprep.subr.bf16.mxu0 0
        %5153 = vmatpush1.bf16.msra.mxu0 0
        %5154 = vmatprep.subr.bf16.mxu0 0
        %5155 = vmatpush1.bf16.msra.mxu0 0
        %5156 = vmatprep.mubr.bf16.mxu0 0
        %5157 = vmatmul.mubr.bf16.gmra.mrb[0].mxu0 %v4599
        %v5158 = vpop.f32.mrb[0].mxu0
        %v5159 = vadd.f32 %v5118, %v5158
        %v5160 = vpop.f32.mrb[0].mxu0
        %v5161 = vadd.f32 %v5120, %v5160
        %v5162 = vpop.f32.mrb[0].mxu0
        %v5163 = vpop.f32.mrb[0].mxu0
        %5164 = vdwg.mxu0
        %5165 = vmatprep.subr.bf16.mxu0 %v4894
        %5166 = vmatpush1.bf16.msra.mxu0 %v4893
        %5167 = vmatprep.subr.bf16.mxu0 %v4898
        %5168 = vmatpush1.bf16.msra.mxu0 %v4897
        %5169 = vmatprep.subr.bf16.mxu0 %v4902
        %5170 = vmatpush1.bf16.msra.mxu0 %v4901
        %5171 = vmatprep.subr.bf16.mxu0 %v4906
        %5172 = vmatpush1.bf16.msra.mxu0 %v4905
        %5173 = vmatprep.subr.bf16.mxu0 %v4910
        %5174 = vmatpush1.bf16.msra.mxu0 %v4909
        %5175 = vmatprep.subr.bf16.mxu0 %v4914
        %5176 = vmatpush1.bf16.msra.mxu0 %v4913
        %5177 = vmatprep.subr.bf16.mxu0 %v4918
        %5178 = vmatpush1.bf16.msra.mxu0 %v4917
        %5179 = vmatprep.subr.bf16.mxu0 %v4922
        %5180 = vmatpush1.bf16.msra.mxu0 %v4921
        %5181 = vmatprep.subr.bf16.mxu0 %v4926
        %5182 = vmatpush1.bf16.msra.mxu0 %v4925
        %5183 = vmatprep.subr.bf16.mxu0 %v4930
        %5184 = vmatpush1.bf16.msra.mxu0 %v4929
        %5185 = vmatprep.subr.bf16.mxu0 %v4934
        %5186 = vmatpush1.bf16.msra.mxu0 %v4933
        %5187 = vmatprep.subr.bf16.mxu0 %v4938
        %5188 = vmatpush1.bf16.msra.mxu0 %v4937
        %5189 = vmatprep.subr.bf16.mxu0 %v4942
        %5190 = vmatpush1.bf16.msra.mxu0 %v4941
        %5191 = vmatprep.subr.bf16.mxu0 %v4946
        %5192 = vmatpush1.bf16.msra.mxu0 %v4945
        %5193 = vmatprep.subr.bf16.mxu0 %v4950
        %5194 = vmatpush1.bf16.msra.mxu0 %v4949
        %5195 = vmatprep.subr.bf16.mxu0 %v4954
        %5196 = vmatpush1.bf16.msra.mxu0 %v4953
        %5197 = vmatprep.mubr.bf16.mxu0 %v4591
        %5198 = vmatmul.mubr.bf16.gmra.mrb[0].mxu0 %v4583
        %v5199 = vpop.f32.mrb[0].mxu0
        %v5200 = vadd.f32 0.0, %v5199
        %v5201 = vpop.f32.mrb[0].mxu0
        %v5202 = vadd.f32 0.0, %v5201
        %v5203 = vpop.f32.mrb[0].mxu0
        %v5204 = vpop.f32.mrb[0].mxu0
        %5205 = vdwg.mxu0
        %5206 = vmatprep.subr.bf16.mxu0 %v4958
        %5207 = vmatpush1.bf16.msra.mxu0 %v4957
        %5208 = vmatprep.subr.bf16.mxu0 %v4962
        %5209 = vmatpush1.bf16.msra.mxu0 %v4961
        %5210 = vmatprep.subr.bf16.mxu0 %v4966
        %5211 = vmatpush1.bf16.msra.mxu0 %v4965
        %5212 = vmatprep.subr.bf16.mxu0 %v4970
        %5213 = vmatpush1.bf16.msra.mxu0 %v4969
        %5214 = vmatprep.subr.bf16.mxu0 %v4974
        %5215 = vmatpush1.bf16.msra.mxu0 %v4973
        %5216 = vmatprep.subr.bf16.mxu0 %v4978
        %5217 = vmatpush1.bf16.msra.mxu0 %v4977
        %5218 = vmatprep.subr.bf16.mxu0 %v4982
        %5219 = vmatpush1.bf16.msra.mxu0 %v4981
        %5220 = vmatprep.subr.bf16.mxu0 %v4986
        %5221 = vmatpush1.bf16.msra.mxu0 %v4985
        %5222 = vmatprep.subr.bf16.mxu0 0
        %5223 = vmatpush1.bf16.msra.mxu0 0
        %5224 = vmatprep.subr.bf16.mxu0 0
        %5225 = vmatpush1.bf16.msra.mxu0 0
        %5226 = vmatprep.subr.bf16.mxu0 0
        %5227 = vmatpush1.bf16.msra.mxu0 0
        %5228 = vmatprep.subr.bf16.mxu0 0
        %5229 = vmatpush1.bf16.msra.mxu0 0
        %5230 = vmatprep.subr.bf16.mxu0 0
        %5231 = vmatpush1.bf16.msra.mxu0 0
        %5232 = vmatprep.subr.bf16.mxu0 0
        %5233 = vmatpush1.bf16.msra.mxu0 0
        %5234 = vmatprep.subr.bf16.mxu0 0
        %5235 = vmatpush1.bf16.msra.mxu0 0
        %5236 = vmatprep.subr.bf16.mxu0 0
        %5237 = vmatpush1.bf16.msra.mxu0 0
        %5238 = vmatprep.mubr.bf16.mxu0 0
        %5239 = vmatmul.mubr.bf16.gmra.mrb[0].mxu0 %v4599
        %v5240 = vpop.f32.mrb[0].mxu0
        %v5241 = vadd.f32 %v5200, %v5240
        %v5242 = vpop.f32.mrb[0].mxu0
        %v5243 = vadd.f32 %v5202, %v5242
        %v5244 = vpop.f32.mrb[0].mxu0
        %v5245 = vpop.f32.mrb[0].mxu0
        %5246 = vdwg.mxu0
        %v5247 = vld [vmem:[#allocation4] sm:$0xff]
        %v5248 = vld [vmem:[#allocation4 + $0x8] sm:$0xff]
        %v5249 = vld [vmem:[#allocation4 + $0x10] sm:$0xff]
        %v5250 = vld [vmem:[#allocation4 + $0x18] sm:$0xff]
        %v5251 = vadd.f32 %v5247, %v5159
        %v5252 = vadd.f32 %v5248, %v5161
        %v5253 = vadd.f32 %v5249, %v5241
        %v5254 = vadd.f32 %v5250, %v5243
        %5255 = vst [vmem:[#allocation4] sm:$0xff] %v5251
        %5256 = vst [vmem:[#allocation4 + $0x8] sm:$0xff] %v5252
        %5257 = vst [vmem:[#allocation4 + $0x10] sm:$0xff] %v5253
        %5258 = vst [vmem:[#allocation4 + $0x18] sm:$0xff] %v5254
        %v5259 = vld [vmem:[#allocation3] sm:$0xf0]
        %v5260 = vld [vmem:[#allocation3 + $0x8] sm:$0xf0]
        %v5261 = vld [vmem:[#allocation3 + $0x10] sm:$0xf0]
        %v5262 = vld [vmem:[#allocation3 + $0x18] sm:$0xf]
        %v5263 = vld [vmem:[#allocation3 + $0x20] sm:$0xf]
        %v5264 = vld [vmem:[#allocation3 + $0x28] sm:$0xf]
        %v5265 = vpack.c.bf16 %v5262, %v5259
        %v5266 = vpack.c.bf16 %v5263, %v5260
        %v5267 = vpack.c.bf16 %v5264, %v5261
        %s5268 = scalar_lea.vmem [#allocation10], 3072
        %v5269 = vld [vmem:[%s5268] sm:$0xff]
        %v5270 = vld [vmem:[%s5268 + $0x8] sm:$0xff]
        %v5271 = vld [vmem:[%s5268 + $0x10] sm:$0xff]
        %v5272 = vld [vmem:[%s5268 + $0x18] sm:$0xff]
        %v5273 = vld [vmem:[%s5268 + $0x20] sm:$0xff]
        %v5274 = vld [vmem:[%s5268 + $0x28] sm:$0xff]
        %v5275 = vld [vmem:[%s5268 + $0x30] sm:$0xff]
        %v5276 = vld [vmem:[%s5268 + $0x38] sm:$0xff]
        %v5277 = vld [vmem:[%s5268 + $0x40] sm:$0xff]
        %v5278 = vld [vmem:[%s5268 + $0x48] sm:$0xff]
        %v5279 = vld [vmem:[%s5268 + $0x50] sm:$0xff]
        %v5280 = vld [vmem:[%s5268 + $0x58] sm:$0xff]
        %v5281 = vld [vmem:[%s5268 + $0x60] sm:$0xff]
        %v5282 = vld [vmem:[%s5268 + $0x68] sm:$0xff]
        %v5283 = vld [vmem:[%s5268 + $0x70] sm:$0xff]
        %v5284 = vld [vmem:[%s5268 + $0x78] sm:$0xff]
        %v5285 = vld [vmem:[%s5268 + $0x80] sm:$0xff]
        %v5286 = vld [vmem:[%s5268 + $0x88] sm:$0xff]
        %v5287 = vld [vmem:[%s5268 + $0x90] sm:$0xff]
        %v5288 = vld [vmem:[%s5268 + $0x98] sm:$0xff]
        %v5289 = vld [vmem:[%s5268 + $0xa0] sm:$0xff]
        %v5290 = vld [vmem:[%s5268 + $0xa8] sm:$0xff]
        %v5291 = vld [vmem:[%s5268 + $0xb0] sm:$0xff]
        %v5292 = vld [vmem:[%s5268 + $0xb8] sm:$0xff]
        %v5293 = vld [vmem:[%s5268 + $0xc0] sm:$0xff]
        %v5294 = vld [vmem:[%s5268 + $0xc8] sm:$0xff]
        %v5295 = vld [vmem:[%s5268 + $0xd0] sm:$0xff]
        %v5296 = vld [vmem:[%s5268 + $0xd8] sm:$0xff]
        %v5297 = vld [vmem:[%s5268 + $0xe0] sm:$0xff]
        %v5298 = vld [vmem:[%s5268 + $0xe8] sm:$0xff]
        %v5299 = vld [vmem:[%s5268 + $0xf0] sm:$0xff]
        %v5300 = vld [vmem:[%s5268 + $0xf8] sm:$0xff]
        %v5301 = vld [vmem:[%s5268 + $0x100] sm:$0xff]
        %v5302 = vld [vmem:[%s5268 + $0x108] sm:$0xff]
        %v5303 = vld [vmem:[%s5268 + $0x110] sm:$0xff]
        %v5304 = vld [vmem:[%s5268 + $0x118] sm:$0xff]
        %v5305 = vld [vmem:[%s5268 + $0x120] sm:$0xff]
        %v5306 = vld [vmem:[%s5268 + $0x128] sm:$0xff]
        %v5307 = vld [vmem:[%s5268 + $0x130] sm:$0xff]
        %v5308 = vld [vmem:[%s5268 + $0x138] sm:$0xff]
        %v5309 = vld [vmem:[%s5268 + $0x140] sm:$0xff]
        %v5310 = vld [vmem:[%s5268 + $0x148] sm:$0xff]
        %v5311 = vld [vmem:[%s5268 + $0x150] sm:$0xff]
        %v5312 = vld [vmem:[%s5268 + $0x158] sm:$0xff]
        %v5313 = vld [vmem:[%s5268 + $0x160] sm:$0xff]
        %v5314 = vld [vmem:[%s5268 + $0x168] sm:$0xff]
        %v5315 = vld [vmem:[%s5268 + $0x170] sm:$0xff]
        %v5316 = vld [vmem:[%s5268 + $0x178] sm:$0xff]
        %v5317 = vld [vmem:[%s5268 + $0x180] sm:$0xff]
        %v5318 = vld [vmem:[%s5268 + $0x188] sm:$0xff]
        %v5319 = vld [vmem:[%s5268 + $0x190] sm:$0xff]
        %v5320 = vld [vmem:[%s5268 + $0x198] sm:$0xff]
        %v5321 = vld [vmem:[%s5268 + $0x1a0] sm:$0xff]
        %v5322 = vld [vmem:[%s5268 + $0x1a8] sm:$0xff]
        %v5323 = vld [vmem:[%s5268 + $0x1b0] sm:$0xff]
        %v5324 = vld [vmem:[%s5268 + $0x1b8] sm:$0xff]
        %v5325 = vld [vmem:[%s5268 + $0x1c0] sm:$0xff]
        %v5326 = vld [vmem:[%s5268 + $0x1c8] sm:$0xff]
        %v5327 = vld [vmem:[%s5268 + $0x1d0] sm:$0xff]
        %v5328 = vld [vmem:[%s5268 + $0x1d8] sm:$0xff]
        %v5329 = vld [vmem:[%s5268 + $0x1e0] sm:$0xff]
        %v5330 = vld [vmem:[%s5268 + $0x1e8] sm:$0xff]
        %v5331 = vld [vmem:[%s5268 + $0x1f0] sm:$0xff]
        %v5332 = vld [vmem:[%s5268 + $0x1f8] sm:$0xff]
        %v5333 = vld [vmem:[%s5268 + $0x200] sm:$0xff]
        %v5334 = vld [vmem:[%s5268 + $0x208] sm:$0xff]
        %v5335 = vld [vmem:[%s5268 + $0x210] sm:$0xff]
        %v5336 = vld [vmem:[%s5268 + $0x218] sm:$0xff]
        %v5337 = vld [vmem:[%s5268 + $0x220] sm:$0xff]
        %v5338 = vld [vmem:[%s5268 + $0x228] sm:$0xff]
        %v5339 = vld [vmem:[%s5268 + $0x230] sm:$0xff]
        %v5340 = vld [vmem:[%s5268 + $0x238] sm:$0xff]
        %v5341 = vld [vmem:[%s5268 + $0x240] sm:$0xff]
        %v5342 = vld [vmem:[%s5268 + $0x248] sm:$0xff]
        %v5343 = vld [vmem:[%s5268 + $0x250] sm:$0xff]
        %v5344 = vld [vmem:[%s5268 + $0x258] sm:$0xff]
        %v5345 = vld [vmem:[%s5268 + $0x260] sm:$0xff]
        %v5346 = vld [vmem:[%s5268 + $0x268] sm:$0xff]
        %v5347 = vld [vmem:[%s5268 + $0x270] sm:$0xff]
        %v5348 = vld [vmem:[%s5268 + $0x278] sm:$0xff]
        %v5349 = vld [vmem:[%s5268 + $0x280] sm:$0xff]
        %v5350 = vld [vmem:[%s5268 + $0x288] sm:$0xff]
        %v5351 = vld [vmem:[%s5268 + $0x290] sm:$0xff]
        %v5352 = vld [vmem:[%s5268 + $0x298] sm:$0xff]
        %v5353 = vld [vmem:[%s5268 + $0x2a0] sm:$0xff]
        %v5354 = vld [vmem:[%s5268 + $0x2a8] sm:$0xff]
        %v5355 = vld [vmem:[%s5268 + $0x2b0] sm:$0xff]
        %v5356 = vld [vmem:[%s5268 + $0x2b8] sm:$0xff]
        %v5357 = vld [vmem:[%s5268 + $0x2c0] sm:$0xff]
        %v5358 = vld [vmem:[%s5268 + $0x2c8] sm:$0xff]
        %v5359 = vld [vmem:[%s5268 + $0x2d0] sm:$0xff]
        %v5360 = vld [vmem:[%s5268 + $0x2d8] sm:$0xff]
        %v5361 = vld [vmem:[%s5268 + $0x2e0] sm:$0xff]
        %v5362 = vld [vmem:[%s5268 + $0x2e8] sm:$0xff]
        %v5363 = vld [vmem:[%s5268 + $0x2f0] sm:$0xff]
        %v5364 = vld [vmem:[%s5268 + $0x2f8] sm:$0xff]
        %v5368 = vrot.slane %v5265, 2
        %v5369 = vrot.slane %v5266, 2
        %v5370 = vrot.slane %v5267, 2
        %v5470 = vunpack.c.l.b16 %v5269
        %v5471 = vunpack.c.h.b16 %v5269
        %v5472 = vunpack.c.l.b16 %v5270
        %v5473 = vunpack.c.h.b16 %v5270
        %v5474 = vunpack.c.l.b16 %v5271
        %v5475 = vunpack.c.h.b16 %v5271
        %v5476 = vunpack.c.l.b16 %v5272
        %v5477 = vunpack.c.h.b16 %v5272
        %v5478 = vunpack.c.l.b16 %v5273
        %v5479 = vunpack.c.h.b16 %v5273
        %v5480 = vunpack.c.l.b16 %v5274
        %v5481 = vunpack.c.h.b16 %v5274
        %v5482 = vunpack.c.l.b16 %v5275
        %v5483 = vunpack.c.h.b16 %v5275
        %v5484 = vunpack.c.l.b16 %v5276
        %v5485 = vunpack.c.h.b16 %v5276
        %v5486 = vunpack.c.l.b16 %v5277
        %v5487 = vunpack.c.h.b16 %v5277
        %v5488 = vunpack.c.l.b16 %v5278
        %v5489 = vunpack.c.h.b16 %v5278
        %v5490 = vunpack.c.l.b16 %v5279
        %v5491 = vunpack.c.h.b16 %v5279
        %v5492 = vunpack.c.l.b16 %v5280
        %v5493 = vunpack.c.h.b16 %v5280
        %v5494 = vunpack.c.l.b16 %v5281
        %v5495 = vunpack.c.h.b16 %v5281
        %v5496 = vunpack.c.l.b16 %v5282
        %v5497 = vunpack.c.h.b16 %v5282
        %v5498 = vunpack.c.l.b16 %v5283
        %v5499 = vunpack.c.h.b16 %v5283
        %v5500 = vunpack.c.l.b16 %v5284
        %v5501 = vunpack.c.h.b16 %v5284
        %v5502 = vunpack.c.l.b16 %v5285
        %v5503 = vunpack.c.h.b16 %v5285
        %v5504 = vunpack.c.l.b16 %v5286
        %v5505 = vunpack.c.h.b16 %v5286
        %v5506 = vunpack.c.l.b16 %v5287
        %v5507 = vunpack.c.h.b16 %v5287
        %v5508 = vunpack.c.l.b16 %v5288
        %v5509 = vunpack.c.h.b16 %v5288
        %v5510 = vunpack.c.l.b16 %v5289
        %v5511 = vunpack.c.h.b16 %v5289
        %v5512 = vunpack.c.l.b16 %v5290
        %v5513 = vunpack.c.h.b16 %v5290
        %v5514 = vunpack.c.l.b16 %v5291
        %v5515 = vunpack.c.h.b16 %v5291
        %v5516 = vunpack.c.l.b16 %v5292
        %v5517 = vunpack.c.h.b16 %v5292
        %v5518 = vunpack.c.l.b16 %v5293
        %v5519 = vunpack.c.h.b16 %v5293
        %v5520 = vunpack.c.l.b16 %v5294
        %v5521 = vunpack.c.h.b16 %v5294
        %v5522 = vunpack.c.l.b16 %v5295
        %v5523 = vunpack.c.h.b16 %v5295
        %v5524 = vunpack.c.l.b16 %v5296
        %v5525 = vunpack.c.h.b16 %v5296
        %v5526 = vunpack.c.l.b16 %v5297
        %v5527 = vunpack.c.h.b16 %v5297
        %v5528 = vunpack.c.l.b16 %v5298
        %v5529 = vunpack.c.h.b16 %v5298
        %v5530 = vunpack.c.l.b16 %v5299
        %v5531 = vunpack.c.h.b16 %v5299
        %v5532 = vunpack.c.l.b16 %v5300
        %v5533 = vunpack.c.h.b16 %v5300
        %v5534 = vunpack.c.l.b16 %v5301
        %v5535 = vunpack.c.h.b16 %v5301
        %v5536 = vunpack.c.l.b16 %v5302
        %v5537 = vunpack.c.h.b16 %v5302
        %v5538 = vunpack.c.l.b16 %v5303
        %v5539 = vunpack.c.h.b16 %v5303
        %v5540 = vunpack.c.l.b16 %v5304
        %v5541 = vunpack.c.h.b16 %v5304
        %v5542 = vunpack.c.l.b16 %v5305
        %v5543 = vunpack.c.h.b16 %v5305
        %v5544 = vunpack.c.l.b16 %v5306
        %v5545 = vunpack.c.h.b16 %v5306
        %v5546 = vunpack.c.l.b16 %v5307
        %v5547 = vunpack.c.h.b16 %v5307
        %v5548 = vunpack.c.l.b16 %v5308
        %v5549 = vunpack.c.h.b16 %v5308
        %v5550 = vunpack.c.l.b16 %v5309
        %v5551 = vunpack.c.h.b16 %v5309
        %v5552 = vunpack.c.l.b16 %v5310
        %v5553 = vunpack.c.h.b16 %v5310
        %v5554 = vunpack.c.l.b16 %v5311
        %v5555 = vunpack.c.h.b16 %v5311
        %v5556 = vunpack.c.l.b16 %v5312
        %v5557 = vunpack.c.h.b16 %v5312
        %v5558 = vunpack.c.l.b16 %v5313
        %v5559 = vunpack.c.h.b16 %v5313
        %v5560 = vunpack.c.l.b16 %v5314
        %v5561 = vunpack.c.h.b16 %v5314
        %v5562 = vunpack.c.l.b16 %v5315
        %v5563 = vunpack.c.h.b16 %v5315
        %v5564 = vunpack.c.l.b16 %v5316
        %v5565 = vunpack.c.h.b16 %v5316
        %v5566 = vunpack.c.l.b16 %v5317
        %v5567 = vunpack.c.h.b16 %v5317
        %v5568 = vunpack.c.l.b16 %v5318
        %v5569 = vunpack.c.h.b16 %v5318
        %v5570 = vunpack.c.l.b16 %v5319
        %v5571 = vunpack.c.h.b16 %v5319
        %v5572 = vunpack.c.l.b16 %v5320
        %v5573 = vunpack.c.h.b16 %v5320
        %v5574 = vunpack.c.l.b16 %v5321
        %v5575 = vunpack.c.h.b16 %v5321
        %v5576 = vunpack.c.l.b16 %v5322
        %v5577 = vunpack.c.h.b16 %v5322
        %v5578 = vunpack.c.l.b16 %v5323
        %v5579 = vunpack.c.h.b16 %v5323
        %v5580 = vunpack.c.l.b16 %v5324
        %v5581 = vunpack.c.h.b16 %v5324
        %v5582 = vunpack.c.l.b16 %v5325
        %v5583 = vunpack.c.h.b16 %v5325
        %v5584 = vunpack.c.l.b16 %v5326
        %v5585 = vunpack.c.h.b16 %v5326
        %v5586 = vunpack.c.l.b16 %v5327
        %v5587 = vunpack.c.h.b16 %v5327
        %v5588 = vunpack.c.l.b16 %v5328
        %v5589 = vunpack.c.h.b16 %v5328
        %v5590 = vunpack.c.l.b16 %v5329
        %v5591 = vunpack.c.h.b16 %v5329
        %v5592 = vunpack.c.l.b16 %v5330
        %v5593 = vunpack.c.h.b16 %v5330
        %v5594 = vunpack.c.l.b16 %v5331
        %v5595 = vunpack.c.h.b16 %v5331
        %v5596 = vunpack.c.l.b16 %v5332
        %v5597 = vunpack.c.h.b16 %v5332
        %v5598 = vunpack.c.l.b16 %v5333
        %v5599 = vunpack.c.h.b16 %v5333
        %v5600 = vunpack.c.l.b16 %v5334
        %v5601 = vunpack.c.h.b16 %v5334
        %v5602 = vunpack.c.l.b16 %v5335
        %v5603 = vunpack.c.h.b16 %v5335
        %v5604 = vunpack.c.l.b16 %v5336
        %v5605 = vunpack.c.h.b16 %v5336
        %v5606 = vunpack.c.l.b16 %v5337
        %v5607 = vunpack.c.h.b16 %v5337
        %v5608 = vunpack.c.l.b16 %v5338
        %v5609 = vunpack.c.h.b16 %v5338
        %v5610 = vunpack.c.l.b16 %v5339
        %v5611 = vunpack.c.h.b16 %v5339
        %v5612 = vunpack.c.l.b16 %v5340
        %v5613 = vunpack.c.h.b16 %v5340
        %v5614 = vunpack.c.l.b16 %v5341
        %v5615 = vunpack.c.h.b16 %v5341
        %v5616 = vunpack.c.l.b16 %v5342
        %v5617 = vunpack.c.h.b16 %v5342
        %v5618 = vunpack.c.l.b16 %v5343
        %v5619 = vunpack.c.h.b16 %v5343
        %v5620 = vunpack.c.l.b16 %v5344
        %v5621 = vunpack.c.h.b16 %v5344
        %v5622 = vunpack.c.l.b16 %v5345
        %v5623 = vunpack.c.h.b16 %v5345
        %v5624 = vunpack.c.l.b16 %v5346
        %v5625 = vunpack.c.h.b16 %v5346
        %v5626 = vunpack.c.l.b16 %v5347
        %v5627 = vunpack.c.h.b16 %v5347
        %v5628 = vunpack.c.l.b16 %v5348
        %v5629 = vunpack.c.h.b16 %v5348
        %v5630 = vunpack.c.l.b16 %v5349
        %v5631 = vunpack.c.h.b16 %v5349
        %v5632 = vunpack.c.l.b16 %v5350
        %v5633 = vunpack.c.h.b16 %v5350
        %v5634 = vunpack.c.l.b16 %v5351
        %v5635 = vunpack.c.h.b16 %v5351
        %v5636 = vunpack.c.l.b16 %v5352
        %v5637 = vunpack.c.h.b16 %v5352
        %v5638 = vunpack.c.l.b16 %v5353
        %v5639 = vunpack.c.h.b16 %v5353
        %v5640 = vunpack.c.l.b16 %v5354
        %v5641 = vunpack.c.h.b16 %v5354
        %v5642 = vunpack.c.l.b16 %v5355
        %v5643 = vunpack.c.h.b16 %v5355
        %v5644 = vunpack.c.l.b16 %v5356
        %v5645 = vunpack.c.h.b16 %v5356
        %v5646 = vunpack.c.l.b16 %v5357
        %v5647 = vunpack.c.h.b16 %v5357
        %v5648 = vunpack.c.l.b16 %v5358
        %v5649 = vunpack.c.h.b16 %v5358
        %v5650 = vunpack.c.l.b16 %v5359
        %v5651 = vunpack.c.h.b16 %v5359
        %v5652 = vunpack.c.l.b16 %v5360
        %v5653 = vunpack.c.h.b16 %v5360
        %v5654 = vunpack.c.l.b16 %v5361
        %v5655 = vunpack.c.h.b16 %v5361
        %v5656 = vunpack.c.l.b16 %v5362
        %v5657 = vunpack.c.h.b16 %v5362
        %v5658 = vunpack.c.l.b16 %v5363
        %v5659 = vunpack.c.h.b16 %v5363
        %v5660 = vunpack.c.l.b16 %v5364
        %v5661 = vunpack.c.h.b16 %v5364
        %v5662 = vpack.c.b16 %v5474, %v5470
        %v5663 = vpack.c.b16 %v5475, %v5471
        %v5664 = vpack.c.b16 %v5476, %v5472
        %v5665 = vpack.c.b16 %v5477, %v5473
        %v5666 = vpack.c.b16 %v5482, %v5478
        %v5667 = vpack.c.b16 %v5483, %v5479
        %v5668 = vpack.c.b16 %v5484, %v5480
        %v5669 = vpack.c.b16 %v5485, %v5481
        %v5670 = vpack.c.b16 %v5490, %v5486
        %v5671 = vpack.c.b16 %v5491, %v5487
        %v5672 = vpack.c.b16 %v5492, %v5488
        %v5673 = vpack.c.b16 %v5493, %v5489
        %v5674 = vpack.c.b16 %v5498, %v5494
        %v5675 = vpack.c.b16 %v5499, %v5495
        %v5676 = vpack.c.b16 %v5500, %v5496
        %v5677 = vpack.c.b16 %v5501, %v5497
        %v5678 = vpack.c.b16 %v5506, %v5502
        %v5679 = vpack.c.b16 %v5507, %v5503
        %v5680 = vpack.c.b16 %v5508, %v5504
        %v5681 = vpack.c.b16 %v5509, %v5505
        %v5682 = vpack.c.b16 %v5514, %v5510
        %v5683 = vpack.c.b16 %v5515, %v5511
        %v5684 = vpack.c.b16 %v5516, %v5512
        %v5685 = vpack.c.b16 %v5517, %v5513
        %v5686 = vpack.c.b16 %v5522, %v5518
        %v5687 = vpack.c.b16 %v5523, %v5519
        %v5688 = vpack.c.b16 %v5524, %v5520
        %v5689 = vpack.c.b16 %v5525, %v5521
        %v5690 = vpack.c.b16 %v5530, %v5526
        %v5691 = vpack.c.b16 %v5531, %v5527
        %v5692 = vpack.c.b16 %v5532, %v5528
        %v5693 = vpack.c.b16 %v5533, %v5529
        %v5694 = vpack.c.b16 %v5538, %v5534
        %v5695 = vpack.c.b16 %v5539, %v5535
        %v5696 = vpack.c.b16 %v5540, %v5536
        %v5697 = vpack.c.b16 %v5541, %v5537
        %v5698 = vpack.c.b16 %v5546, %v5542
        %v5699 = vpack.c.b16 %v5547, %v5543
        %v5700 = vpack.c.b16 %v5548, %v5544
        %v5701 = vpack.c.b16 %v5549, %v5545
        %v5702 = vpack.c.b16 %v5554, %v5550
        %v5703 = vpack.c.b16 %v5555, %v5551
        %v5704 = vpack.c.b16 %v5556, %v5552
        %v5705 = vpack.c.b16 %v5557, %v5553
        %v5706 = vpack.c.b16 %v5562, %v5558
        %v5707 = vpack.c.b16 %v5563, %v5559
        %v5708 = vpack.c.b16 %v5564, %v5560
        %v5709 = vpack.c.b16 %v5565, %v5561
        %v5710 = vpack.c.b16 %v5570, %v5566
        %v5711 = vpack.c.b16 %v5571, %v5567
        %v5712 = vpack.c.b16 %v5572, %v5568
        %v5713 = vpack.c.b16 %v5573, %v5569
        %v5714 = vpack.c.b16 %v5578, %v5574
        %v5715 = vpack.c.b16 %v5579, %v5575
        %v5716 = vpack.c.b16 %v5580, %v5576
        %v5717 = vpack.c.b16 %v5581, %v5577
        %v5718 = vpack.c.b16 %v5586, %v5582
        %v5719 = vpack.c.b16 %v5587, %v5583
        %v5720 = vpack.c.b16 %v5588, %v5584
        %v5721 = vpack.c.b16 %v5589, %v5585
        %v5722 = vpack.c.b16 %v5594, %v5590
        %v5723 = vpack.c.b16 %v5595, %v5591
        %v5724 = vpack.c.b16 %v5596, %v5592
        %v5725 = vpack.c.b16 %v5597, %v5593
        %v5726 = vpack.c.b16 %v5602, %v5598
        %v5727 = vpack.c.b16 %v5603, %v5599
        %v5728 = vpack.c.b16 %v5604, %v5600
        %v5729 = vpack.c.b16 %v5605, %v5601
        %v5730 = vpack.c.b16 %v5610, %v5606
        %v5731 = vpack.c.b16 %v5611, %v5607
        %v5732 = vpack.c.b16 %v5612, %v5608
        %v5733 = vpack.c.b16 %v5613, %v5609
        %v5734 = vpack.c.b16 %v5618, %v5614
        %v5735 = vpack.c.b16 %v5619, %v5615
        %v5736 = vpack.c.b16 %v5620, %v5616
        %v5737 = vpack.c.b16 %v5621, %v5617
        %v5738 = vpack.c.b16 %v5626, %v5622
        %v5739 = vpack.c.b16 %v5627, %v5623
        %v5740 = vpack.c.b16 %v5628, %v5624
        %v5741 = vpack.c.b16 %v5629, %v5625
        %v5742 = vpack.c.b16 %v5634, %v5630
        %v5743 = vpack.c.b16 %v5635, %v5631
        %v5744 = vpack.c.b16 %v5636, %v5632
        %v5745 = vpack.c.b16 %v5637, %v5633
        %v5746 = vpack.c.b16 %v5642, %v5638
        %v5747 = vpack.c.b16 %v5643, %v5639
        %v5748 = vpack.c.b16 %v5644, %v5640
        %v5749 = vpack.c.b16 %v5645, %v5641
        %v5750 = vpack.c.b16 %v5650, %v5646
        %v5751 = vpack.c.b16 %v5651, %v5647
        %v5752 = vpack.c.b16 %v5652, %v5648
        %v5753 = vpack.c.b16 %v5653, %v5649
        %v5754 = vpack.c.b16 %v5658, %v5654
        %v5755 = vpack.c.b16 %v5659, %v5655
        %v5756 = vpack.c.b16 %v5660, %v5656
        %v5757 = vpack.c.b16 %v5661, %v5657
        %5854 = vmatprep.subr.bf16.mxu0 %v5663
        %5855 = vmatpush1.bf16.msra.mxu0 %v5662
        %5856 = vmatprep.subr.bf16.mxu0 %v5667
        %5857 = vmatpush1.bf16.msra.mxu0 %v5666
        %5858 = vmatprep.subr.bf16.mxu0 %v5671
        %5859 = vmatpush1.bf16.msra.mxu0 %v5670
        %5860 = vmatprep.subr.bf16.mxu0 %v5675
        %5861 = vmatpush1.bf16.msra.mxu0 %v5674
        %5862 = vmatprep.subr.bf16.mxu0 %v5679
        %5863 = vmatpush1.bf16.msra.mxu0 %v5678
        %5864 = vmatprep.subr.bf16.mxu0 %v5683
        %5865 = vmatpush1.bf16.msra.mxu0 %v5682
        %5866 = vmatprep.subr.bf16.mxu0 %v5687
        %5867 = vmatpush1.bf16.msra.mxu0 %v5686
        %5868 = vmatprep.subr.bf16.mxu0 %v5691
        %5869 = vmatpush1.bf16.msra.mxu0 %v5690
        %5870 = vmatprep.subr.bf16.mxu0 %v5695
        %5871 = vmatpush1.bf16.msra.mxu0 %v5694
        %5872 = vmatprep.subr.bf16.mxu0 %v5699
        %5873 = vmatpush1.bf16.msra.mxu0 %v5698
        %5874 = vmatprep.subr.bf16.mxu0 %v5703
        %5875 = vmatpush1.bf16.msra.mxu0 %v5702
        %5876 = vmatprep.subr.bf16.mxu0 %v5707
        %5877 = vmatpush1.bf16.msra.mxu0 %v5706
        %5878 = vmatprep.subr.bf16.mxu0 %v5711
        %5879 = vmatpush1.bf16.msra.mxu0 %v5710
        %5880 = vmatprep.subr.bf16.mxu0 %v5715
        %5881 = vmatpush1.bf16.msra.mxu0 %v5714
        %5882 = vmatprep.subr.bf16.mxu0 %v5719
        %5883 = vmatpush1.bf16.msra.mxu0 %v5718
        %5884 = vmatprep.subr.bf16.mxu0 %v5723
        %5885 = vmatpush1.bf16.msra.mxu0 %v5722
        %5886 = vmatprep.mubr.bf16.mxu0 %v5369
        %5887 = vmatmul.mubr.bf16.gmra.mrb[0].mxu0 %v5368
        %v5888 = vpop.f32.mrb[0].mxu0
        %v5889 = vadd.f32 0.0, %v5888
        %v5890 = vpop.f32.mrb[0].mxu0
        %v5891 = vadd.f32 0.0, %v5890
        %v5892 = vpop.f32.mrb[0].mxu0
        %v5893 = vpop.f32.mrb[0].mxu0
        %5894 = vdwg.mxu0
        %5895 = vmatprep.subr.bf16.mxu0 %v5727
        %5896 = vmatpush1.bf16.msra.mxu0 %v5726
        %5897 = vmatprep.subr.bf16.mxu0 %v5731
        %5898 = vmatpush1.bf16.msra.mxu0 %v5730
        %5899 = vmatprep.subr.bf16.mxu0 %v5735
        %5900 = vmatpush1.bf16.msra.mxu0 %v5734
        %5901 = vmatprep.subr.bf16.mxu0 %v5739
        %5902 = vmatpush1.bf16.msra.mxu0 %v5738
        %5903 = vmatprep.subr.bf16.mxu0 %v5743
        %5904 = vmatpush1.bf16.msra.mxu0 %v5742
        %5905 = vmatprep.subr.bf16.mxu0 %v5747
        %5906 = vmatpush1.bf16.msra.mxu0 %v5746
        %5907 = vmatprep.subr.bf16.mxu0 %v5751
        %5908 = vmatpush1.bf16.msra.mxu0 %v5750
        %5909 = vmatprep.subr.bf16.mxu0 %v5755
        %5910 = vmatpush1.bf16.msra.mxu0 %v5754
        %5911 = vmatprep.subr.bf16.mxu0 0
        %5912 = vmatpush1.bf16.msra.mxu0 0
        %5913 = vmatprep.subr.bf16.mxu0 0
        %5914 = vmatpush1.bf16.msra.mxu0 0
        %5915 = vmatprep.subr.bf16.mxu0 0
        %5916 = vmatpush1.bf16.msra.mxu0 0
        %5917 = vmatprep.subr.bf16.mxu0 0
        %5918 = vmatpush1.bf16.msra.mxu0 0
        %5919 = vmatprep.subr.bf16.mxu0 0
        %5920 = vmatpush1.bf16.msra.mxu0 0
        %5921 = vmatprep.subr.bf16.mxu0 0
        %5922 = vmatpush1.bf16.msra.mxu0 0
        %5923 = vmatprep.subr.bf16.mxu0 0
        %5924 = vmatpush1.bf16.msra.mxu0 0
        %5925 = vmatprep.subr.bf16.mxu0 0
        %5926 = vmatpush1.bf16.msra.mxu0 0
        %5927 = vmatprep.mubr.bf16.mxu0 0
        %5928 = vmatmul.mubr.bf16.gmra.mrb[0].mxu0 %v5370
        %v5929 = vpop.f32.mrb[0].mxu0
        %v5930 = vadd.f32 %v5889, %v5929
        %v5931 = vpop.f32.mrb[0].mxu0
        %v5932 = vadd.f32 %v5891, %v5931
        %v5933 = vpop.f32.mrb[0].mxu0
        %v5934 = vpop.f32.mrb[0].mxu0
        %5935 = vdwg.mxu0
        %5936 = vmatprep.subr.bf16.mxu0 %v5665
        %5937 = vmatpush1.bf16.msra.mxu0 %v5664
        %5938 = vmatprep.subr.bf16.mxu0 %v5669
        %5939 = vmatpush1.bf16.msra.mxu0 %v5668
        %5940 = vmatprep.subr.bf16.mxu0 %v5673
        %5941 = vmatpush1.bf16.msra.mxu0 %v5672
        %5942 = vmatprep.subr.bf16.mxu0 %v5677
        %5943 = vmatpush1.bf16.msra.mxu0 %v5676
        %5944 = vmatprep.subr.bf16.mxu0 %v5681
        %5945 = vmatpush1.bf16.msra.mxu0 %v5680
        %5946 = vmatprep.subr.bf16.mxu0 %v5685
        %5947 = vmatpush1.bf16.msra.mxu0 %v5684
        %5948 = vmatprep.subr.bf16.mxu0 %v5689
        %5949 = vmatpush1.bf16.msra.mxu0 %v5688
        %5950 = vmatprep.subr.bf16.mxu0 %v5693
        %5951 = vmatpush1.bf16.msra.mxu0 %v5692
        %5952 = vmatprep.subr.bf16.mxu0 %v5697
        %5953 = vmatpush1.bf16.msra.mxu0 %v5696
        %5954 = vmatprep.subr.bf16.mxu0 %v5701
        %5955 = vmatpush1.bf16.msra.mxu0 %v5700
        %5956 = vmatprep.subr.bf16.mxu0 %v5705
        %5957 = vmatpush1.bf16.msra.mxu0 %v5704
        %5958 = vmatprep.subr.bf16.mxu0 %v5709
        %5959 = vmatpush1.bf16.msra.mxu0 %v5708
        %5960 = vmatprep.subr.bf16.mxu0 %v5713
        %5961 = vmatpush1.bf16.msra.mxu0 %v5712
        %5962 = vmatprep.subr.bf16.mxu0 %v5717
        %5963 = vmatpush1.bf16.msra.mxu0 %v5716
        %5964 = vmatprep.subr.bf16.mxu0 %v5721
        %5965 = vmatpush1.bf16.msra.mxu0 %v5720
        %5966 = vmatprep.subr.bf16.mxu0 %v5725
        %5967 = vmatpush1.bf16.msra.mxu0 %v5724
        %5968 = vmatprep.mubr.bf16.mxu0 %v5369
        %5969 = vmatmul.mubr.bf16.gmra.mrb[0].mxu0 %v5368
        %v5970 = vpop.f32.mrb[0].mxu0
        %v5971 = vadd.f32 0.0, %v5970
        %v5972 = vpop.f32.mrb[0].mxu0
        %v5973 = vadd.f32 0.0, %v5972
        %v5974 = vpop.f32.mrb[0].mxu0
        %v5975 = vpop.f32.mrb[0].mxu0
        %5976 = vdwg.mxu0
        %5977 = vmatprep.subr.bf16.mxu0 %v5729
        %5978 = vmatpush1.bf16.msra.mxu0 %v5728
        %5979 = vmatprep.subr.bf16.mxu0 %v5733
        %5980 = vmatpush1.bf16.msra.mxu0 %v5732
        %5981 = vmatprep.subr.bf16.mxu0 %v5737
        %5982 = vmatpush1.bf16.msra.mxu0 %v5736
        %5983 = vmatprep.subr.bf16.mxu0 %v5741
        %5984 = vmatpush1.bf16.msra.mxu0 %v5740
        %5985 = vmatprep.subr.bf16.mxu0 %v5745
        %5986 = vmatpush1.bf16.msra.mxu0 %v5744
        %5987 = vmatprep.subr.bf16.mxu0 %v5749
        %5988 = vmatpush1.bf16.msra.mxu0 %v5748
        %5989 = vmatprep.subr.bf16.mxu0 %v5753
        %5990 = vmatpush1.bf16.msra.mxu0 %v5752
        %5991 = vmatprep.subr.bf16.mxu0 %v5757
        %5992 = vmatpush1.bf16.msra.mxu0 %v5756
        %5993 = vmatprep.subr.bf16.mxu0 0
        %5994 = vmatpush1.bf16.msra.mxu0 0
        %5995 = vmatprep.subr.bf16.mxu0 0
        %5996 = vmatpush1.bf16.msra.mxu0 0
        %5997 = vmatprep.subr.bf16.mxu0 0
        %5998 = vmatpush1.bf16.msra.mxu0 0
        %5999 = vmatprep.subr.bf16.mxu0 0
        %6000 = vmatpush1.bf16.msra.mxu0 0
        %6001 = vmatprep.subr.bf16.mxu0 0
        %6002 = vmatpush1.bf16.msra.mxu0 0
        %6003 = vmatprep.subr.bf16.mxu0 0
        %6004 = vmatpush1.bf16.msra.mxu0 0
        %6005 = vmatprep.subr.bf16.mxu0 0
        %6006 = vmatpush1.bf16.msra.mxu0 0
        %6007 = vmatprep.subr.bf16.mxu0 0
        %6008 = vmatpush1.bf16.msra.mxu0 0
        %6009 = vmatprep.mubr.bf16.mxu0 0
        %6010 = vmatmul.mubr.bf16.gmra.mrb[0].mxu0 %v5370
        %v6011 = vpop.f32.mrb[0].mxu0
        %v6012 = vadd.f32 %v5971, %v6011
        %v6013 = vpop.f32.mrb[0].mxu0
        %v6014 = vadd.f32 %v5973, %v6013
        %v6015 = vpop.f32.mrb[0].mxu0
        %v6016 = vpop.f32.mrb[0].mxu0
        %6017 = vdwg.mxu0
        %v6018 = vld [vmem:[#allocation4] sm:$0xff]
        %v6019 = vld [vmem:[#allocation4 + $0x8] sm:$0xff]
        %v6020 = vld [vmem:[#allocation4 + $0x10] sm:$0xff]
        %v6021 = vld [vmem:[#allocation4 + $0x18] sm:$0xff]
        %v6022 = vadd.f32 %v6018, %v5930
        %v6023 = vadd.f32 %v6019, %v5932
        %v6024 = vadd.f32 %v6020, %v6012
        %v6025 = vadd.f32 %v6021, %v6014
        %6026 = vst [vmem:[#allocation4] sm:$0xff] %v6022
        %6027 = vst [vmem:[#allocation4 + $0x8] sm:$0xff] %v6023
        %6028 = vst [vmem:[#allocation4 + $0x10] sm:$0xff] %v6024
        %6029 = vst [vmem:[#allocation4 + $0x18] sm:$0xff] %v6025
        %v6030 = vld [vmem:[#allocation4] ss:$8 sm:$0xf]
        %s6031 = scalar_lea.vmem [#allocation4], 1
        %v6032 = vld [vmem:[%s6031] ss:$8 sm:$0xf]
        %v6033 = vmax.f32 %v6030, %v6032
        %v6035 = vrot.slane %v6033, 2
        %v6037 = vmax.f32 %v6033, %v6035
        %v6038 = vld [vmem:[#allocation11] sm:$0x3]
        %v6039 = vadd.f32 %v6037, %v6038
        %v6040 = vmax.f32 %v6039, 0.0
        %v6042 = vlaneseq
        %v6043 = vshrl.u32 %v6042, 7
        %v6044 = vsub.s32 0, %v6043
        %v6045 = vrot.slane %v6040, %v6044
        %v6046 = vlaneseq
        %v6047 = vshrl.u32 %v6046, 7
        %v6048 = vsub.s32 1, %v6047
        %v6049 = vrot.slane %v6040, %v6048
        %v6052 = vpack.c.bf16 %v6045, %v6045
        %v6053 = vpack.c.bf16 %v6049, %v6049
        %v6054 = vld [vmem:[#allocation13] sm:$0xff]
        %v6055 = vld [vmem:[#allocation13 + $0x8] sm:$0xff]
        %v6056 = vld [vmem:[#allocation13 + $0x10] sm:$0xff]
        %v6057 = vld [vmem:[#allocation13 + $0x18] sm:$0xff]
        %v6058 = vld [vmem:[#allocation13 + $0x20] sm:$0xff]
        %v6059 = vld [vmem:[#allocation13 + $0x28] sm:$0xff]
        %v6060 = vld [vmem:[#allocation13 + $0x30] sm:$0xff]
        %v6061 = vld [vmem:[#allocation13 + $0x38] sm:$0xff]
        %v6062 = vld [vmem:[#allocation13 + $0x40] sm:$0xff]
        %v6063 = vld [vmem:[#allocation13 + $0x48] sm:$0xff]
        %v6064 = vld [vmem:[#allocation13 + $0x50] sm:$0xff]
        %v6065 = vld [vmem:[#allocation13 + $0x58] sm:$0xff]
        %v6066 = vld [vmem:[#allocation13 + $0x60] sm:$0xff]
        %v6067 = vld [vmem:[#allocation13 + $0x68] sm:$0xff]
        %v6068 = vld [vmem:[#allocation13 + $0x70] sm:$0xff]
        %v6069 = vld [vmem:[#allocation13 + $0x78] sm:$0xff]
        %v6070 = vld [vmem:[#allocation13 + $0x80] sm:$0xff]
        %v6071 = vld [vmem:[#allocation13 + $0x88] sm:$0xff]
        %v6072 = vld [vmem:[#allocation13 + $0x90] sm:$0xff]
        %v6073 = vld [vmem:[#allocation13 + $0x98] sm:$0xff]
        %v6074 = vld [vmem:[#allocation13 + $0xa0] sm:$0xff]
        %v6075 = vld [vmem:[#allocation13 + $0xa8] sm:$0xff]
        %v6076 = vld [vmem:[#allocation13 + $0xb0] sm:$0xff]
        %v6077 = vld [vmem:[#allocation13 + $0xb8] sm:$0xff]
        %v6078 = vld [vmem:[#allocation13 + $0xc0] sm:$0xff]
        %v6079 = vld [vmem:[#allocation13 + $0xc8] sm:$0xff]
        %v6080 = vld [vmem:[#allocation13 + $0xd0] sm:$0xff]
        %v6081 = vld [vmem:[#allocation13 + $0xd8] sm:$0xff]
        %v6082 = vld [vmem:[#allocation13 + $0xe0] sm:$0xff]
        %v6083 = vld [vmem:[#allocation13 + $0xe8] sm:$0xff]
        %v6084 = vld [vmem:[#allocation13 + $0xf0] sm:$0xff]
        %v6085 = vld [vmem:[#allocation13 + $0xf8] sm:$0xff]
        %v6086 = vld [vmem:[#allocation13 + $0x100] sm:$0xff]
        %v6087 = vld [vmem:[#allocation13 + $0x108] sm:$0xff]
        %v6088 = vld [vmem:[#allocation13 + $0x110] sm:$0xff]
        %v6089 = vld [vmem:[#allocation13 + $0x118] sm:$0xff]
        %v6090 = vld [vmem:[#allocation13 + $0x120] sm:$0xff]
        %v6091 = vld [vmem:[#allocation13 + $0x128] sm:$0xff]
        %v6092 = vld [vmem:[#allocation13 + $0x130] sm:$0xff]
        %v6093 = vld [vmem:[#allocation13 + $0x138] sm:$0xff]
        %v6094 = vld [vmem:[#allocation13 + $0x140] sm:$0xff]
        %v6095 = vld [vmem:[#allocation13 + $0x148] sm:$0xff]
        %v6096 = vld [vmem:[#allocation13 + $0x150] sm:$0xff]
        %v6097 = vld [vmem:[#allocation13 + $0x158] sm:$0xff]
        %v6098 = vld [vmem:[#allocation13 + $0x160] sm:$0xff]
        %v6099 = vld [vmem:[#allocation13 + $0x168] sm:$0xff]
        %v6100 = vld [vmem:[#allocation13 + $0x170] sm:$0xff]
        %v6101 = vld [vmem:[#allocation13 + $0x178] sm:$0xff]
        %v6102 = vld [vmem:[#allocation13 + $0x180] sm:$0xff]
        %v6103 = vld [vmem:[#allocation13 + $0x188] sm:$0xff]
        %v6104 = vld [vmem:[#allocation13 + $0x190] sm:$0xff]
        %v6105 = vld [vmem:[#allocation13 + $0x198] sm:$0xff]
        %v6106 = vld [vmem:[#allocation13 + $0x1a0] sm:$0xff]
        %v6107 = vld [vmem:[#allocation13 + $0x1a8] sm:$0xff]
        %v6108 = vld [vmem:[#allocation13 + $0x1b0] sm:$0xff]
        %v6109 = vld [vmem:[#allocation13 + $0x1b8] sm:$0xff]
        %v6110 = vld [vmem:[#allocation13 + $0x1c0] sm:$0xff]
        %v6111 = vld [vmem:[#allocation13 + $0x1c8] sm:$0xff]
        %v6112 = vld [vmem:[#allocation13 + $0x1d0] sm:$0xff]
        %v6113 = vld [vmem:[#allocation13 + $0x1d8] sm:$0xff]
        %v6114 = vld [vmem:[#allocation13 + $0x1e0] sm:$0xff]
        %v6115 = vld [vmem:[#allocation13 + $0x1e8] sm:$0xff]
        %v6116 = vld [vmem:[#allocation13 + $0x1f0] sm:$0xff]
        %v6117 = vld [vmem:[#allocation13 + $0x1f8] sm:$0xff]
        %s6118 = scalar_lea.vmem [#allocation4], 2
        %v6119 = vld [vmem:[%s6118] ss:$8 sm:$0xf]
        %s6120 = scalar_lea.vmem [#allocation4], 3
        %v6121 = vld [vmem:[%s6120] ss:$8 sm:$0xf]
        %v6122 = vmax.f32 %v6119, %v6121
        %v6124 = vrot.slane %v6122, 2
        %v6126 = vmax.f32 %v6122, %v6124
        %v6127 = vadd.f32 %v6126, %v6038
        %v6128 = vmax.f32 %v6127, 0.0
        %v6130 = vlaneseq
        %v6131 = vshrl.u32 %v6130, 7
        %v6132 = vsub.s32 0, %v6131
        %v6133 = vrot.slane %v6128, %v6132
        %v6134 = vlaneseq
        %v6135 = vshrl.u32 %v6134, 7
        %v6136 = vsub.s32 1, %v6135
        %v6137 = vrot.slane %v6128, %v6136
        %v6140 = vpack.c.bf16 %v6133, %v6133
        %v6141 = vpack.c.bf16 %v6137, %v6137
        %s6142 = scalar_lea.vmem [#allocation13], 512
        %v6143 = vld [vmem:[%s6142] sm:$0xff]
        %v6144 = vld [vmem:[%s6142 + $0x8] sm:$0xff]
        %v6145 = vld [vmem:[%s6142 + $0x10] sm:$0xff]
        %v6146 = vld [vmem:[%s6142 + $0x18] sm:$0xff]
        %v6147 = vld [vmem:[%s6142 + $0x20] sm:$0xff]
        %v6148 = vld [vmem:[%s6142 + $0x28] sm:$0xff]
        %v6149 = vld [vmem:[%s6142 + $0x30] sm:$0xff]
        %v6150 = vld [vmem:[%s6142 + $0x38] sm:$0xff]
        %v6151 = vld [vmem:[%s6142 + $0x40] sm:$0xff]
        %v6152 = vld [vmem:[%s6142 + $0x48] sm:$0xff]
        %v6153 = vld [vmem:[%s6142 + $0x50] sm:$0xff]
        %v6154 = vld [vmem:[%s6142 + $0x58] sm:$0xff]
        %v6155 = vld [vmem:[%s6142 + $0x60] sm:$0xff]
        %v6156 = vld [vmem:[%s6142 + $0x68] sm:$0xff]
        %v6157 = vld [vmem:[%s6142 + $0x70] sm:$0xff]
        %v6158 = vld [vmem:[%s6142 + $0x78] sm:$0xff]
        %v6159 = vld [vmem:[%s6142 + $0x80] sm:$0xff]
        %v6160 = vld [vmem:[%s6142 + $0x88] sm:$0xff]
        %v6161 = vld [vmem:[%s6142 + $0x90] sm:$0xff]
        %v6162 = vld [vmem:[%s6142 + $0x98] sm:$0xff]
        %v6163 = vld [vmem:[%s6142 + $0xa0] sm:$0xff]
        %v6164 = vld [vmem:[%s6142 + $0xa8] sm:$0xff]
        %v6165 = vld [vmem:[%s6142 + $0xb0] sm:$0xff]
        %v6166 = vld [vmem:[%s6142 + $0xb8] sm:$0xff]
        %v6167 = vld [vmem:[%s6142 + $0xc0] sm:$0xff]
        %v6168 = vld [vmem:[%s6142 + $0xc8] sm:$0xff]
        %v6169 = vld [vmem:[%s6142 + $0xd0] sm:$0xff]
        %v6170 = vld [vmem:[%s6142 + $0xd8] sm:$0xff]
        %v6171 = vld [vmem:[%s6142 + $0xe0] sm:$0xff]
        %v6172 = vld [vmem:[%s6142 + $0xe8] sm:$0xff]
        %v6173 = vld [vmem:[%s6142 + $0xf0] sm:$0xff]
        %v6174 = vld [vmem:[%s6142 + $0xf8] sm:$0xff]
        %v6175 = vld [vmem:[%s6142 + $0x100] sm:$0xff]
        %v6176 = vld [vmem:[%s6142 + $0x108] sm:$0xff]
        %v6177 = vld [vmem:[%s6142 + $0x110] sm:$0xff]
        %v6178 = vld [vmem:[%s6142 + $0x118] sm:$0xff]
        %v6179 = vld [vmem:[%s6142 + $0x120] sm:$0xff]
        %v6180 = vld [vmem:[%s6142 + $0x128] sm:$0xff]
        %v6181 = vld [vmem:[%s6142 + $0x130] sm:$0xff]
        %v6182 = vld [vmem:[%s6142 + $0x138] sm:$0xff]
        %v6183 = vld [vmem:[%s6142 + $0x140] sm:$0xff]
        %v6184 = vld [vmem:[%s6142 + $0x148] sm:$0xff]
        %v6185 = vld [vmem:[%s6142 + $0x150] sm:$0xff]
        %v6186 = vld [vmem:[%s6142 + $0x158] sm:$0xff]
        %v6187 = vld [vmem:[%s6142 + $0x160] sm:$0xff]
        %v6188 = vld [vmem:[%s6142 + $0x168] sm:$0xff]
        %v6189 = vld [vmem:[%s6142 + $0x170] sm:$0xff]
        %v6190 = vld [vmem:[%s6142 + $0x178] sm:$0xff]
        %v6191 = vld [vmem:[%s6142 + $0x180] sm:$0xff]
        %v6192 = vld [vmem:[%s6142 + $0x188] sm:$0xff]
        %v6193 = vld [vmem:[%s6142 + $0x190] sm:$0xff]
        %v6194 = vld [vmem:[%s6142 + $0x198] sm:$0xff]
        %v6195 = vld [vmem:[%s6142 + $0x1a0] sm:$0xff]
        %v6196 = vld [vmem:[%s6142 + $0x1a8] sm:$0xff]
        %v6197 = vld [vmem:[%s6142 + $0x1b0] sm:$0xff]
        %v6198 = vld [vmem:[%s6142 + $0x1b8] sm:$0xff]
        %v6199 = vld [vmem:[%s6142 + $0x1c0] sm:$0xff]
        %v6200 = vld [vmem:[%s6142 + $0x1c8] sm:$0xff]
        %v6201 = vld [vmem:[%s6142 + $0x1d0] sm:$0xff]
        %v6202 = vld [vmem:[%s6142 + $0x1d8] sm:$0xff]
        %v6203 = vld [vmem:[%s6142 + $0x1e0] sm:$0xff]
        %v6204 = vld [vmem:[%s6142 + $0x1e8] sm:$0xff]
        %v6205 = vld [vmem:[%s6142 + $0x1f0] sm:$0xff]
        %v6206 = vld [vmem:[%s6142 + $0x1f8] sm:$0xff]
        %v6271 = vunpack.c.l.b16 %v6143
        %v6272 = vunpack.c.h.b16 %v6143
        %v6273 = vunpack.c.l.b16 %v6144
        %v6274 = vunpack.c.h.b16 %v6144
        %v6275 = vunpack.c.l.b16 %v6145
        %v6276 = vunpack.c.h.b16 %v6145
        %v6277 = vunpack.c.l.b16 %v6146
        %v6278 = vunpack.c.h.b16 %v6146
        %v6279 = vunpack.c.l.b16 %v6147
        %v6280 = vunpack.c.h.b16 %v6147
        %v6281 = vunpack.c.l.b16 %v6148
        %v6282 = vunpack.c.h.b16 %v6148
        %v6283 = vunpack.c.l.b16 %v6149
        %v6284 = vunpack.c.h.b16 %v6149
        %v6285 = vunpack.c.l.b16 %v6150
        %v6286 = vunpack.c.h.b16 %v6150
        %v6287 = vunpack.c.l.b16 %v6151
        %v6288 = vunpack.c.h.b16 %v6151
        %v6289 = vunpack.c.l.b16 %v6152
        %v6290 = vunpack.c.h.b16 %v6152
        %v6291 = vunpack.c.l.b16 %v6153
        %v6292 = vunpack.c.h.b16 %v6153
        %v6293 = vunpack.c.l.b16 %v6154
        %v6294 = vunpack.c.h.b16 %v6154
        %v6295 = vunpack.c.l.b16 %v6155
        %v6296 = vunpack.c.h.b16 %v6155
        %v6297 = vunpack.c.l.b16 %v6156
        %v6298 = vunpack.c.h.b16 %v6156
        %v6299 = vunpack.c.l.b16 %v6157
        %v6300 = vunpack.c.h.b16 %v6157
        %v6301 = vunpack.c.l.b16 %v6158
        %v6302 = vunpack.c.h.b16 %v6158
        %v6303 = vunpack.c.l.b16 %v6159
        %v6304 = vunpack.c.h.b16 %v6159
        %v6305 = vunpack.c.l.b16 %v6160
        %v6306 = vunpack.c.h.b16 %v6160
        %v6307 = vunpack.c.l.b16 %v6161
        %v6308 = vunpack.c.h.b16 %v6161
        %v6309 = vunpack.c.l.b16 %v6162
        %v6310 = vunpack.c.h.b16 %v6162
        %v6311 = vunpack.c.l.b16 %v6163
        %v6312 = vunpack.c.h.b16 %v6163
        %v6313 = vunpack.c.l.b16 %v6164
        %v6314 = vunpack.c.h.b16 %v6164
        %v6315 = vunpack.c.l.b16 %v6165
        %v6316 = vunpack.c.h.b16 %v6165
        %v6317 = vunpack.c.l.b16 %v6166
        %v6318 = vunpack.c.h.b16 %v6166
        %v6319 = vunpack.c.l.b16 %v6167
        %v6320 = vunpack.c.h.b16 %v6167
        %v6321 = vunpack.c.l.b16 %v6168
        %v6322 = vunpack.c.h.b16 %v6168
        %v6323 = vunpack.c.l.b16 %v6169
        %v6324 = vunpack.c.h.b16 %v6169
        %v6325 = vunpack.c.l.b16 %v6170
        %v6326 = vunpack.c.h.b16 %v6170
        %v6327 = vunpack.c.l.b16 %v6171
        %v6328 = vunpack.c.h.b16 %v6171
        %v6329 = vunpack.c.l.b16 %v6172
        %v6330 = vunpack.c.h.b16 %v6172
        %v6331 = vunpack.c.l.b16 %v6173
        %v6332 = vunpack.c.h.b16 %v6173
        %v6333 = vunpack.c.l.b16 %v6174
        %v6334 = vunpack.c.h.b16 %v6174
        %v6335 = vunpack.c.l.b16 %v6175
        %v6336 = vunpack.c.h.b16 %v6175
        %v6337 = vunpack.c.l.b16 %v6176
        %v6338 = vunpack.c.h.b16 %v6176
        %v6339 = vunpack.c.l.b16 %v6177
        %v6340 = vunpack.c.h.b16 %v6177
        %v6341 = vunpack.c.l.b16 %v6178
        %v6342 = vunpack.c.h.b16 %v6178
        %v6343 = vunpack.c.l.b16 %v6179
        %v6344 = vunpack.c.h.b16 %v6179
        %v6345 = vunpack.c.l.b16 %v6180
        %v6346 = vunpack.c.h.b16 %v6180
        %v6347 = vunpack.c.l.b16 %v6181
        %v6348 = vunpack.c.h.b16 %v6181
        %v6349 = vunpack.c.l.b16 %v6182
        %v6350 = vunpack.c.h.b16 %v6182
        %v6351 = vunpack.c.l.b16 %v6183
        %v6352 = vunpack.c.h.b16 %v6183
        %v6353 = vunpack.c.l.b16 %v6184
        %v6354 = vunpack.c.h.b16 %v6184
        %v6355 = vunpack.c.l.b16 %v6185
        %v6356 = vunpack.c.h.b16 %v6185
        %v6357 = vunpack.c.l.b16 %v6186
        %v6358 = vunpack.c.h.b16 %v6186
        %v6359 = vunpack.c.l.b16 %v6187
        %v6360 = vunpack.c.h.b16 %v6187
        %v6361 = vunpack.c.l.b16 %v6188
        %v6362 = vunpack.c.h.b16 %v6188
        %v6363 = vunpack.c.l.b16 %v6189
        %v6364 = vunpack.c.h.b16 %v6189
        %v6365 = vunpack.c.l.b16 %v6190
        %v6366 = vunpack.c.h.b16 %v6190
        %v6367 = vunpack.c.l.b16 %v6191
        %v6368 = vunpack.c.h.b16 %v6191
        %v6369 = vunpack.c.l.b16 %v6192
        %v6370 = vunpack.c.h.b16 %v6192
        %v6371 = vunpack.c.l.b16 %v6193
        %v6372 = vunpack.c.h.b16 %v6193
        %v6373 = vunpack.c.l.b16 %v6194
        %v6374 = vunpack.c.h.b16 %v6194
        %v6375 = vunpack.c.l.b16 %v6195
        %v6376 = vunpack.c.h.b16 %v6195
        %v6377 = vunpack.c.l.b16 %v6196
        %v6378 = vunpack.c.h.b16 %v6196
        %v6379 = vunpack.c.l.b16 %v6197
        %v6380 = vunpack.c.h.b16 %v6197
        %v6381 = vunpack.c.l.b16 %v6198
        %v6382 = vunpack.c.h.b16 %v6198
        %v6383 = vunpack.c.l.b16 %v6199
        %v6384 = vunpack.c.h.b16 %v6199
        %v6385 = vunpack.c.l.b16 %v6200
        %v6386 = vunpack.c.h.b16 %v6200
        %v6387 = vunpack.c.l.b16 %v6201
        %v6388 = vunpack.c.h.b16 %v6201
        %v6389 = vunpack.c.l.b16 %v6202
        %v6390 = vunpack.c.h.b16 %v6202
        %v6391 = vunpack.c.l.b16 %v6203
        %v6392 = vunpack.c.h.b16 %v6203
        %v6393 = vunpack.c.l.b16 %v6204
        %v6394 = vunpack.c.h.b16 %v6204
        %v6395 = vunpack.c.l.b16 %v6205
        %v6396 = vunpack.c.h.b16 %v6205
        %v6397 = vunpack.c.l.b16 %v6206
        %v6398 = vunpack.c.h.b16 %v6206
        %v6399 = vpack.c.b16 %v6275, %v6271
        %v6400 = vpack.c.b16 %v6276, %v6272
        %v6401 = vpack.c.b16 %v6277, %v6273
        %v6402 = vpack.c.b16 %v6278, %v6274
        %v6403 = vpack.c.b16 %v6283, %v6279
        %v6404 = vpack.c.b16 %v6284, %v6280
        %v6405 = vpack.c.b16 %v6285, %v6281
        %v6406 = vpack.c.b16 %v6286, %v6282
        %v6407 = vpack.c.b16 %v6291, %v6287
        %v6408 = vpack.c.b16 %v6292, %v6288
        %v6409 = vpack.c.b16 %v6293, %v6289
        %v6410 = vpack.c.b16 %v6294, %v6290
        %v6411 = vpack.c.b16 %v6299, %v6295
        %v6412 = vpack.c.b16 %v6300, %v6296
        %v6413 = vpack.c.b16 %v6301, %v6297
        %v6414 = vpack.c.b16 %v6302, %v6298
        %v6415 = vpack.c.b16 %v6307, %v6303
        %v6416 = vpack.c.b16 %v6308, %v6304
        %v6417 = vpack.c.b16 %v6309, %v6305
        %v6418 = vpack.c.b16 %v6310, %v6306
        %v6419 = vpack.c.b16 %v6315, %v6311
        %v6420 = vpack.c.b16 %v6316, %v6312
        %v6421 = vpack.c.b16 %v6317, %v6313
        %v6422 = vpack.c.b16 %v6318, %v6314
        %v6423 = vpack.c.b16 %v6323, %v6319
        %v6424 = vpack.c.b16 %v6324, %v6320
        %v6425 = vpack.c.b16 %v6325, %v6321
        %v6426 = vpack.c.b16 %v6326, %v6322
        %v6427 = vpack.c.b16 %v6331, %v6327
        %v6428 = vpack.c.b16 %v6332, %v6328
        %v6429 = vpack.c.b16 %v6333, %v6329
        %v6430 = vpack.c.b16 %v6334, %v6330
        %v6431 = vpack.c.b16 %v6339, %v6335
        %v6432 = vpack.c.b16 %v6340, %v6336
        %v6433 = vpack.c.b16 %v6341, %v6337
        %v6434 = vpack.c.b16 %v6342, %v6338
        %v6435 = vpack.c.b16 %v6347, %v6343
        %v6436 = vpack.c.b16 %v6348, %v6344
        %v6437 = vpack.c.b16 %v6349, %v6345
        %v6438 = vpack.c.b16 %v6350, %v6346
        %v6439 = vpack.c.b16 %v6355, %v6351
        %v6440 = vpack.c.b16 %v6356, %v6352
        %v6441 = vpack.c.b16 %v6357, %v6353
        %v6442 = vpack.c.b16 %v6358, %v6354
        %v6443 = vpack.c.b16 %v6363, %v6359
        %v6444 = vpack.c.b16 %v6364, %v6360
        %v6445 = vpack.c.b16 %v6365, %v6361
        %v6446 = vpack.c.b16 %v6366, %v6362
        %v6447 = vpack.c.b16 %v6371, %v6367
        %v6448 = vpack.c.b16 %v6372, %v6368
        %v6449 = vpack.c.b16 %v6373, %v6369
        %v6450 = vpack.c.b16 %v6374, %v6370
        %v6451 = vpack.c.b16 %v6379, %v6375
        %v6452 = vpack.c.b16 %v6380, %v6376
        %v6453 = vpack.c.b16 %v6381, %v6377
        %v6454 = vpack.c.b16 %v6382, %v6378
        %v6455 = vpack.c.b16 %v6387, %v6383
        %v6456 = vpack.c.b16 %v6388, %v6384
        %v6457 = vpack.c.b16 %v6389, %v6385
        %v6458 = vpack.c.b16 %v6390, %v6386
        %v6459 = vpack.c.b16 %v6395, %v6391
        %v6460 = vpack.c.b16 %v6396, %v6392
        %v6461 = vpack.c.b16 %v6397, %v6393
        %v6462 = vpack.c.b16 %v6398, %v6394
        %6527 = vmatprep.subr.bf16.mxu0 %v6400
        %6528 = vmatpush1.bf16.msra.mxu0 %v6399
        %6529 = vmatprep.subr.bf16.mxu0 %v6404
        %6530 = vmatpush1.bf16.msra.mxu0 %v6403
        %6531 = vmatprep.subr.bf16.mxu0 %v6408
        %6532 = vmatpush1.bf16.msra.mxu0 %v6407
        %6533 = vmatprep.subr.bf16.mxu0 %v6412
        %6534 = vmatpush1.bf16.msra.mxu0 %v6411
        %6535 = vmatprep.subr.bf16.mxu0 %v6416
        %6536 = vmatpush1.bf16.msra.mxu0 %v6415
        %6537 = vmatprep.subr.bf16.mxu0 %v6420
        %6538 = vmatpush1.bf16.msra.mxu0 %v6419
        %6539 = vmatprep.subr.bf16.mxu0 %v6424
        %6540 = vmatpush1.bf16.msra.mxu0 %v6423
        %6541 = vmatprep.subr.bf16.mxu0 %v6428
        %6542 = vmatpush1.bf16.msra.mxu0 %v6427
        %6543 = vmatprep.subr.bf16.mxu0 %v6432
        %6544 = vmatpush1.bf16.msra.mxu0 %v6431
        %6545 = vmatprep.subr.bf16.mxu0 %v6436
        %6546 = vmatpush1.bf16.msra.mxu0 %v6435
        %6547 = vmatprep.subr.bf16.mxu0 %v6440
        %6548 = vmatpush1.bf16.msra.mxu0 %v6439
        %6549 = vmatprep.subr.bf16.mxu0 %v6444
        %6550 = vmatpush1.bf16.msra.mxu0 %v6443
        %6551 = vmatprep.subr.bf16.mxu0 %v6448
        %6552 = vmatpush1.bf16.msra.mxu0 %v6447
        %6553 = vmatprep.subr.bf16.mxu0 %v6452
        %6554 = vmatpush1.bf16.msra.mxu0 %v6451
        %6555 = vmatprep.subr.bf16.mxu0 %v6456
        %6556 = vmatpush1.bf16.msra.mxu0 %v6455
        %6557 = vmatprep.subr.bf16.mxu0 %v6460
        %6558 = vmatpush1.bf16.msra.mxu0 %v6459
        %6559 = vmatprep.mubr.bf16.mxu0 %v6141
        %6560 = vmatmul.mubr.bf16.gmra.mrb[0].mxu0 %v6140
        %v6561 = vpop.f32.mrb[0].mxu0
        %v6562 = vadd.f32 0.0, %v6561
        %v6563 = vpop.f32.mrb[0].mxu0
        %v6564 = vadd.f32 0.0, %v6563
        %v6565 = vpop.f32.mrb[0].mxu0
        %v6566 = vpop.f32.mrb[0].mxu0
        %6567 = vdwg.mxu0
        %6568 = vmatprep.subr.bf16.mxu0 %v6402
        %6569 = vmatpush1.bf16.msra.mxu0 %v6401
        %6570 = vmatprep.subr.bf16.mxu0 %v6406
        %6571 = vmatpush1.bf16.msra.mxu0 %v6405
        %6572 = vmatprep.subr.bf16.mxu0 %v6410
        %6573 = vmatpush1.bf16.msra.mxu0 %v6409
        %6574 = vmatprep.subr.bf16.mxu0 %v6414
        %6575 = vmatpush1.bf16.msra.mxu0 %v6413
        %6576 = vmatprep.subr.bf16.mxu0 %v6418
        %6577 = vmatpush1.bf16.msra.mxu0 %v6417
        %6578 = vmatprep.subr.bf16.mxu0 %v6422
        %6579 = vmatpush1.bf16.msra.mxu0 %v6421
        %6580 = vmatprep.subr.bf16.mxu0 %v6426
        %6581 = vmatpush1.bf16.msra.mxu0 %v6425
        %6582 = vmatprep.subr.bf16.mxu0 %v6430
        %6583 = vmatpush1.bf16.msra.mxu0 %v6429
        %6584 = vmatprep.subr.bf16.mxu0 %v6434
        %6585 = vmatpush1.bf16.msra.mxu0 %v6433
        %6586 = vmatprep.subr.bf16.mxu0 %v6438
        %6587 = vmatpush1.bf16.msra.mxu0 %v6437
        %6588 = vmatprep.subr.bf16.mxu0 %v6442
        %6589 = vmatpush1.bf16.msra.mxu0 %v6441
        %6590 = vmatprep.subr.bf16.mxu0 %v6446
        %6591 = vmatpush1.bf16.msra.mxu0 %v6445
        %6592 = vmatprep.subr.bf16.mxu0 %v6450
        %6593 = vmatpush1.bf16.msra.mxu0 %v6449
        %6594 = vmatprep.subr.bf16.mxu0 %v6454
        %6595 = vmatpush1.bf16.msra.mxu0 %v6453
        %6596 = vmatprep.subr.bf16.mxu0 %v6458
        %6597 = vmatpush1.bf16.msra.mxu0 %v6457
        %6598 = vmatprep.subr.bf16.mxu0 %v6462
        %6599 = vmatpush1.bf16.msra.mxu0 %v6461
        %6600 = vmatprep.mubr.bf16.mxu0 %v6141
        %6601 = vmatmul.mubr.bf16.gmra.mrb[0].mxu0 %v6140
        %v6602 = vpop.f32.mrb[0].mxu0
        %v6603 = vadd.f32 0.0, %v6602
        %v6604 = vpop.f32.mrb[0].mxu0
        %v6605 = vadd.f32 0.0, %v6604
        %v6606 = vpop.f32.mrb[0].mxu0
        %v6607 = vpop.f32.mrb[0].mxu0
        %6608 = vdwg.mxu0
        %v6673 = vunpack.c.l.b16 %v6054
        %v6674 = vunpack.c.h.b16 %v6054
        %v6675 = vunpack.c.l.b16 %v6055
        %v6676 = vunpack.c.h.b16 %v6055
        %v6677 = vunpack.c.l.b16 %v6056
        %v6678 = vunpack.c.h.b16 %v6056
        %v6679 = vunpack.c.l.b16 %v6057
        %v6680 = vunpack.c.h.b16 %v6057
        %v6681 = vunpack.c.l.b16 %v6058
        %v6682 = vunpack.c.h.b16 %v6058
        %v6683 = vunpack.c.l.b16 %v6059
        %v6684 = vunpack.c.h.b16 %v6059
        %v6685 = vunpack.c.l.b16 %v6060
        %v6686 = vunpack.c.h.b16 %v6060
        %v6687 = vunpack.c.l.b16 %v6061
        %v6688 = vunpack.c.h.b16 %v6061
        %v6689 = vunpack.c.l.b16 %v6062
        %v6690 = vunpack.c.h.b16 %v6062
        %v6691 = vunpack.c.l.b16 %v6063
        %v6692 = vunpack.c.h.b16 %v6063
        %v6693 = vunpack.c.l.b16 %v6064
        %v6694 = vunpack.c.h.b16 %v6064
        %v6695 = vunpack.c.l.b16 %v6065
        %v6696 = vunpack.c.h.b16 %v6065
        %v6697 = vunpack.c.l.b16 %v6066
        %v6698 = vunpack.c.h.b16 %v6066
        %v6699 = vunpack.c.l.b16 %v6067
        %v6700 = vunpack.c.h.b16 %v6067
        %v6701 = vunpack.c.l.b16 %v6068
        %v6702 = vunpack.c.h.b16 %v6068
        %v6703 = vunpack.c.l.b16 %v6069
        %v6704 = vunpack.c.h.b16 %v6069
        %v6705 = vunpack.c.l.b16 %v6070
        %v6706 = vunpack.c.h.b16 %v6070
        %v6707 = vunpack.c.l.b16 %v6071
        %v6708 = vunpack.c.h.b16 %v6071
        %v6709 = vunpack.c.l.b16 %v6072
        %v6710 = vunpack.c.h.b16 %v6072
        %v6711 = vunpack.c.l.b16 %v6073
        %v6712 = vunpack.c.h.b16 %v6073
        %v6713 = vunpack.c.l.b16 %v6074
        %v6714 = vunpack.c.h.b16 %v6074
        %v6715 = vunpack.c.l.b16 %v6075
        %v6716 = vunpack.c.h.b16 %v6075
        %v6717 = vunpack.c.l.b16 %v6076
        %v6718 = vunpack.c.h.b16 %v6076
        %v6719 = vunpack.c.l.b16 %v6077
        %v6720 = vunpack.c.h.b16 %v6077
        %v6721 = vunpack.c.l.b16 %v6078
        %v6722 = vunpack.c.h.b16 %v6078
        %v6723 = vunpack.c.l.b16 %v6079
        %v6724 = vunpack.c.h.b16 %v6079
        %v6725 = vunpack.c.l.b16 %v6080
        %v6726 = vunpack.c.h.b16 %v6080
        %v6727 = vunpack.c.l.b16 %v6081
        %v6728 = vunpack.c.h.b16 %v6081
        %v6729 = vunpack.c.l.b16 %v6082
        %v6730 = vunpack.c.h.b16 %v6082
        %v6731 = vunpack.c.l.b16 %v6083
        %v6732 = vunpack.c.h.b16 %v6083
        %v6733 = vunpack.c.l.b16 %v6084
        %v6734 = vunpack.c.h.b16 %v6084
        %v6735 = vunpack.c.l.b16 %v6085
        %v6736 = vunpack.c.h.b16 %v6085
        %v6737 = vunpack.c.l.b16 %v6086
        %v6738 = vunpack.c.h.b16 %v6086
        %v6739 = vunpack.c.l.b16 %v6087
        %v6740 = vunpack.c.h.b16 %v6087
        %v6741 = vunpack.c.l.b16 %v6088
        %v6742 = vunpack.c.h.b16 %v6088
        %v6743 = vunpack.c.l.b16 %v6089
        %v6744 = vunpack.c.h.b16 %v6089
        %v6745 = vunpack.c.l.b16 %v6090
        %v6746 = vunpack.c.h.b16 %v6090
        %v6747 = vunpack.c.l.b16 %v6091
        %v6748 = vunpack.c.h.b16 %v6091
        %v6749 = vunpack.c.l.b16 %v6092
        %v6750 = vunpack.c.h.b16 %v6092
        %v6751 = vunpack.c.l.b16 %v6093
        %v6752 = vunpack.c.h.b16 %v6093
        %v6753 = vunpack.c.l.b16 %v6094
        %v6754 = vunpack.c.h.b16 %v6094
        %v6755 = vunpack.c.l.b16 %v6095
        %v6756 = vunpack.c.h.b16 %v6095
        %v6757 = vunpack.c.l.b16 %v6096
        %v6758 = vunpack.c.h.b16 %v6096
        %v6759 = vunpack.c.l.b16 %v6097
        %v6760 = vunpack.c.h.b16 %v6097
        %v6761 = vunpack.c.l.b16 %v6098
        %v6762 = vunpack.c.h.b16 %v6098
        %v6763 = vunpack.c.l.b16 %v6099
        %v6764 = vunpack.c.h.b16 %v6099
        %v6765 = vunpack.c.l.b16 %v6100
        %v6766 = vunpack.c.h.b16 %v6100
        %v6767 = vunpack.c.l.b16 %v6101
        %v6768 = vunpack.c.h.b16 %v6101
        %v6769 = vunpack.c.l.b16 %v6102
        %v6770 = vunpack.c.h.b16 %v6102
        %v6771 = vunpack.c.l.b16 %v6103
        %v6772 = vunpack.c.h.b16 %v6103
        %v6773 = vunpack.c.l.b16 %v6104
        %v6774 = vunpack.c.h.b16 %v6104
        %v6775 = vunpack.c.l.b16 %v6105
        %v6776 = vunpack.c.h.b16 %v6105
        %v6777 = vunpack.c.l.b16 %v6106
        %v6778 = vunpack.c.h.b16 %v6106
        %v6779 = vunpack.c.l.b16 %v6107
        %v6780 = vunpack.c.h.b16 %v6107
        %v6781 = vunpack.c.l.b16 %v6108
        %v6782 = vunpack.c.h.b16 %v6108
        %v6783 = vunpack.c.l.b16 %v6109
        %v6784 = vunpack.c.h.b16 %v6109
        %v6785 = vunpack.c.l.b16 %v6110
        %v6786 = vunpack.c.h.b16 %v6110
        %v6787 = vunpack.c.l.b16 %v6111
        %v6788 = vunpack.c.h.b16 %v6111
        %v6789 = vunpack.c.l.b16 %v6112
        %v6790 = vunpack.c.h.b16 %v6112
        %v6791 = vunpack.c.l.b16 %v6113
        %v6792 = vunpack.c.h.b16 %v6113
        %v6793 = vunpack.c.l.b16 %v6114
        %v6794 = vunpack.c.h.b16 %v6114
        %v6795 = vunpack.c.l.b16 %v6115
        %v6796 = vunpack.c.h.b16 %v6115
        %v6797 = vunpack.c.l.b16 %v6116
        %v6798 = vunpack.c.h.b16 %v6116
        %v6799 = vunpack.c.l.b16 %v6117
        %v6800 = vunpack.c.h.b16 %v6117
        %v6801 = vpack.c.b16 %v6677, %v6673
        %v6802 = vpack.c.b16 %v6678, %v6674
        %v6803 = vpack.c.b16 %v6679, %v6675
        %v6804 = vpack.c.b16 %v6680, %v6676
        %v6805 = vpack.c.b16 %v6685, %v6681
        %v6806 = vpack.c.b16 %v6686, %v6682
        %v6807 = vpack.c.b16 %v6687, %v6683
        %v6808 = vpack.c.b16 %v6688, %v6684
        %v6809 = vpack.c.b16 %v6693, %v6689
        %v6810 = vpack.c.b16 %v6694, %v6690
        %v6811 = vpack.c.b16 %v6695, %v6691
        %v6812 = vpack.c.b16 %v6696, %v6692
        %v6813 = vpack.c.b16 %v6701, %v6697
        %v6814 = vpack.c.b16 %v6702, %v6698
        %v6815 = vpack.c.b16 %v6703, %v6699
        %v6816 = vpack.c.b16 %v6704, %v6700
        %v6817 = vpack.c.b16 %v6709, %v6705
        %v6818 = vpack.c.b16 %v6710, %v6706
        %v6819 = vpack.c.b16 %v6711, %v6707
        %v6820 = vpack.c.b16 %v6712, %v6708
        %v6821 = vpack.c.b16 %v6717, %v6713
        %v6822 = vpack.c.b16 %v6718, %v6714
        %v6823 = vpack.c.b16 %v6719, %v6715
        %v6824 = vpack.c.b16 %v6720, %v6716
        %v6825 = vpack.c.b16 %v6725, %v6721
        %v6826 = vpack.c.b16 %v6726, %v6722
        %v6827 = vpack.c.b16 %v6727, %v6723
        %v6828 = vpack.c.b16 %v6728, %v6724
        %v6829 = vpack.c.b16 %v6733, %v6729
        %v6830 = vpack.c.b16 %v6734, %v6730
        %v6831 = vpack.c.b16 %v6735, %v6731
        %v6832 = vpack.c.b16 %v6736, %v6732
        %v6833 = vpack.c.b16 %v6741, %v6737
        %v6834 = vpack.c.b16 %v6742, %v6738
        %v6835 = vpack.c.b16 %v6743, %v6739
        %v6836 = vpack.c.b16 %v6744, %v6740
        %v6837 = vpack.c.b16 %v6749, %v6745
        %v6838 = vpack.c.b16 %v6750, %v6746
        %v6839 = vpack.c.b16 %v6751, %v6747
        %v6840 = vpack.c.b16 %v6752, %v6748
        %v6841 = vpack.c.b16 %v6757, %v6753
        %v6842 = vpack.c.b16 %v6758, %v6754
        %v6843 = vpack.c.b16 %v6759, %v6755
        %v6844 = vpack.c.b16 %v6760, %v6756
        %v6845 = vpack.c.b16 %v6765, %v6761
        %v6846 = vpack.c.b16 %v6766, %v6762
        %v6847 = vpack.c.b16 %v6767, %v6763
        %v6848 = vpack.c.b16 %v6768, %v6764
        %v6849 = vpack.c.b16 %v6773, %v6769
        %v6850 = vpack.c.b16 %v6774, %v6770
        %v6851 = vpack.c.b16 %v6775, %v6771
        %v6852 = vpack.c.b16 %v6776, %v6772
        %v6853 = vpack.c.b16 %v6781, %v6777
        %v6854 = vpack.c.b16 %v6782, %v6778
        %v6855 = vpack.c.b16 %v6783, %v6779
        %v6856 = vpack.c.b16 %v6784, %v6780
        %v6857 = vpack.c.b16 %v6789, %v6785
        %v6858 = vpack.c.b16 %v6790, %v6786
        %v6859 = vpack.c.b16 %v6791, %v6787
        %v6860 = vpack.c.b16 %v6792, %v6788
        %v6861 = vpack.c.b16 %v6797, %v6793
        %v6862 = vpack.c.b16 %v6798, %v6794
        %v6863 = vpack.c.b16 %v6799, %v6795
        %v6864 = vpack.c.b16 %v6800, %v6796
        %6929 = vmatprep.subr.bf16.mxu0 %v6802
        %6930 = vmatpush1.bf16.msra.mxu0 %v6801
        %6931 = vmatprep.subr.bf16.mxu0 %v6806
        %6932 = vmatpush1.bf16.msra.mxu0 %v6805
        %6933 = vmatprep.subr.bf16.mxu0 %v6810
        %6934 = vmatpush1.bf16.msra.mxu0 %v6809
        %6935 = vmatprep.subr.bf16.mxu0 %v6814
        %6936 = vmatpush1.bf16.msra.mxu0 %v6813
        %6937 = vmatprep.subr.bf16.mxu0 %v6818
        %6938 = vmatpush1.bf16.msra.mxu0 %v6817
        %6939 = vmatprep.subr.bf16.mxu0 %v6822
        %6940 = vmatpush1.bf16.msra.mxu0 %v6821
        %6941 = vmatprep.subr.bf16.mxu0 %v6826
        %6942 = vmatpush1.bf16.msra.mxu0 %v6825
        %6943 = vmatprep.subr.bf16.mxu0 %v6830
        %6944 = vmatpush1.bf16.msra.mxu0 %v6829
        %6945 = vmatprep.subr.bf16.mxu0 %v6834
        %6946 = vmatpush1.bf16.msra.mxu0 %v6833
        %6947 = vmatprep.subr.bf16.mxu0 %v6838
        %6948 = vmatpush1.bf16.msra.mxu0 %v6837
        %6949 = vmatprep.subr.bf16.mxu0 %v6842
        %6950 = vmatpush1.bf16.msra.mxu0 %v6841
        %6951 = vmatprep.subr.bf16.mxu0 %v6846
        %6952 = vmatpush1.bf16.msra.mxu0 %v6845
        %6953 = vmatprep.subr.bf16.mxu0 %v6850
        %6954 = vmatpush1.bf16.msra.mxu0 %v6849
        %6955 = vmatprep.subr.bf16.mxu0 %v6854
        %6956 = vmatpush1.bf16.msra.mxu0 %v6853
        %6957 = vmatprep.subr.bf16.mxu0 %v6858
        %6958 = vmatpush1.bf16.msra.mxu0 %v6857
        %6959 = vmatprep.subr.bf16.mxu0 %v6862
        %6960 = vmatpush1.bf16.msra.mxu0 %v6861
        %6961 = vmatprep.mubr.bf16.mxu0 %v6053
        %6962 = vmatmul.mubr.bf16.gmra.mrb[0].mxu0 %v6052
        %v6963 = vpop.f32.mrb[0].mxu0
        %v6964 = vadd.f32 %v6562, %v6963
        %v6965 = vpop.f32.mrb[0].mxu0
        %v6966 = vadd.f32 %v6564, %v6965
        %v6967 = vpop.f32.mrb[0].mxu0
        %v6968 = vpop.f32.mrb[0].mxu0
        %6969 = vdwg.mxu0
        %6970 = vmatprep.subr.bf16.mxu0 %v6804
        %6971 = vmatpush1.bf16.msra.mxu0 %v6803
        %6972 = vmatprep.subr.bf16.mxu0 %v6808
        %6973 = vmatpush1.bf16.msra.mxu0 %v6807
        %6974 = vmatprep.subr.bf16.mxu0 %v6812
        %6975 = vmatpush1.bf16.msra.mxu0 %v6811
        %6976 = vmatprep.subr.bf16.mxu0 %v6816
        %6977 = vmatpush1.bf16.msra.mxu0 %v6815
        %6978 = vmatprep.subr.bf16.mxu0 %v6820
        %6979 = vmatpush1.bf16.msra.mxu0 %v6819
        %6980 = vmatprep.subr.bf16.mxu0 %v6824
        %6981 = vmatpush1.bf16.msra.mxu0 %v6823
        %6982 = vmatprep.subr.bf16.mxu0 %v6828
        %6983 = vmatpush1.bf16.msra.mxu0 %v6827
        %6984 = vmatprep.subr.bf16.mxu0 %v6832
        %6985 = vmatpush1.bf16.msra.mxu0 %v6831
        %6986 = vmatprep.subr.bf16.mxu0 %v6836
        %6987 = vmatpush1.bf16.msra.mxu0 %v6835
        %6988 = vmatprep.subr.bf16.mxu0 %v6840
        %6989 = vmatpush1.bf16.msra.mxu0 %v6839
        %6990 = vmatprep.subr.bf16.mxu0 %v6844
        %6991 = vmatpush1.bf16.msra.mxu0 %v6843
        %6992 = vmatprep.subr.bf16.mxu0 %v6848
        %6993 = vmatpush1.bf16.msra.mxu0 %v6847
        %6994 = vmatprep.subr.bf16.mxu0 %v6852
        %6995 = vmatpush1.bf16.msra.mxu0 %v6851
        %6996 = vmatprep.subr.bf16.mxu0 %v6856
        %6997 = vmatpush1.bf16.msra.mxu0 %v6855
        %6998 = vmatprep.subr.bf16.mxu0 %v6860
        %6999 = vmatpush1.bf16.msra.mxu0 %v6859
        %7000 = vmatprep.subr.bf16.mxu0 %v6864
        %7001 = vmatpush1.bf16.msra.mxu0 %v6863
        %7002 = vmatprep.mubr.bf16.mxu0 %v6053
        %7003 = vmatmul.mubr.bf16.gmra.mrb[0].mxu0 %v6052
        %v7004 = vpop.f32.mrb[0].mxu0
        %v7005 = vadd.f32 %v6603, %v7004
        %v7006 = vpop.f32.mrb[0].mxu0
        %v7007 = vadd.f32 %v6605, %v7006
        %v7008 = vpop.f32.mrb[0].mxu0
        %v7009 = vpop.f32.mrb[0].mxu0
        %7010 = vdwg.mxu0
        %s7011 = scalar_lea.vmem [#allocation4], 4
        %v7012 = vld [vmem:[%s7011] ss:$8 sm:$0xf]
        %s7013 = scalar_lea.vmem [#allocation4], 5
        %v7014 = vld [vmem:[%s7013] ss:$8 sm:$0xf]
        %v7015 = vmax.f32 %v7012, %v7014
        %v7017 = vrot.slane %v7015, 2
        %v7019 = vmax.f32 %v7015, %v7017
        %v7020 = vadd.f32 %v7019, %v6038
        %v7021 = vmax.f32 %v7020, 0.0
        %v7023 = vlaneseq
        %v7024 = vshrl.u32 %v7023, 7
        %v7025 = vsub.s32 0, %v7024
        %v7026 = vrot.slane %v7021, %v7025
        %v7027 = vlaneseq
        %v7028 = vshrl.u32 %v7027, 7
        %v7029 = vsub.s32 1, %v7028
        %v7030 = vrot.slane %v7021, %v7029
        %v7033 = vpack.c.bf16 %v7026, %v7026
        %v7034 = vpack.c.bf16 %v7030, %v7030
        %s7035 = scalar_lea.vmem [#allocation13], 1024
        %v7036 = vld [vmem:[%s7035] sm:$0xff]
        %v7037 = vld [vmem:[%s7035 + $0x8] sm:$0xff]
        %v7038 = vld [vmem:[%s7035 + $0x10] sm:$0xff]
        %v7039 = vld [vmem:[%s7035 + $0x18] sm:$0xff]
        %v7040 = vld [vmem:[%s7035 + $0x20] sm:$0xff]
        %v7041 = vld [vmem:[%s7035 + $0x28] sm:$0xff]
        %v7042 = vld [vmem:[%s7035 + $0x30] sm:$0xff]
        %v7043 = vld [vmem:[%s7035 + $0x38] sm:$0xff]
        %v7044 = vld [vmem:[%s7035 + $0x40] sm:$0xff]
        %v7045 = vld [vmem:[%s7035 + $0x48] sm:$0xff]
        %v7046 = vld [vmem:[%s7035 + $0x50] sm:$0xff]
        %v7047 = vld [vmem:[%s7035 + $0x58] sm:$0xff]
        %v7048 = vld [vmem:[%s7035 + $0x60] sm:$0xff]
        %v7049 = vld [vmem:[%s7035 + $0x68] sm:$0xff]
        %v7050 = vld [vmem:[%s7035 + $0x70] sm:$0xff]
        %v7051 = vld [vmem:[%s7035 + $0x78] sm:$0xff]
        %v7052 = vld [vmem:[%s7035 + $0x80] sm:$0xff]
        %v7053 = vld [vmem:[%s7035 + $0x88] sm:$0xff]
        %v7054 = vld [vmem:[%s7035 + $0x90] sm:$0xff]
        %v7055 = vld [vmem:[%s7035 + $0x98] sm:$0xff]
        %v7056 = vld [vmem:[%s7035 + $0xa0] sm:$0xff]
        %v7057 = vld [vmem:[%s7035 + $0xa8] sm:$0xff]
        %v7058 = vld [vmem:[%s7035 + $0xb0] sm:$0xff]
        %v7059 = vld [vmem:[%s7035 + $0xb8] sm:$0xff]
        %v7060 = vld [vmem:[%s7035 + $0xc0] sm:$0xff]
        %v7061 = vld [vmem:[%s7035 + $0xc8] sm:$0xff]
        %v7062 = vld [vmem:[%s7035 + $0xd0] sm:$0xff]
        %v7063 = vld [vmem:[%s7035 + $0xd8] sm:$0xff]
        %v7064 = vld [vmem:[%s7035 + $0xe0] sm:$0xff]
        %v7065 = vld [vmem:[%s7035 + $0xe8] sm:$0xff]
        %v7066 = vld [vmem:[%s7035 + $0xf0] sm:$0xff]
        %v7067 = vld [vmem:[%s7035 + $0xf8] sm:$0xff]
        %v7068 = vld [vmem:[%s7035 + $0x100] sm:$0xff]
        %v7069 = vld [vmem:[%s7035 + $0x108] sm:$0xff]
        %v7070 = vld [vmem:[%s7035 + $0x110] sm:$0xff]
        %v7071 = vld [vmem:[%s7035 + $0x118] sm:$0xff]
        %v7072 = vld [vmem:[%s7035 + $0x120] sm:$0xff]
        %v7073 = vld [vmem:[%s7035 + $0x128] sm:$0xff]
        %v7074 = vld [vmem:[%s7035 + $0x130] sm:$0xff]
        %v7075 = vld [vmem:[%s7035 + $0x138] sm:$0xff]
        %v7076 = vld [vmem:[%s7035 + $0x140] sm:$0xff]
        %v7077 = vld [vmem:[%s7035 + $0x148] sm:$0xff]
        %v7078 = vld [vmem:[%s7035 + $0x150] sm:$0xff]
        %v7079 = vld [vmem:[%s7035 + $0x158] sm:$0xff]
        %v7080 = vld [vmem:[%s7035 + $0x160] sm:$0xff]
        %v7081 = vld [vmem:[%s7035 + $0x168] sm:$0xff]
        %v7082 = vld [vmem:[%s7035 + $0x170] sm:$0xff]
        %v7083 = vld [vmem:[%s7035 + $0x178] sm:$0xff]
        %v7084 = vld [vmem:[%s7035 + $0x180] sm:$0xff]
        %v7085 = vld [vmem:[%s7035 + $0x188] sm:$0xff]
        %v7086 = vld [vmem:[%s7035 + $0x190] sm:$0xff]
        %v7087 = vld [vmem:[%s7035 + $0x198] sm:$0xff]
        %v7088 = vld [vmem:[%s7035 + $0x1a0] sm:$0xff]
        %v7089 = vld [vmem:[%s7035 + $0x1a8] sm:$0xff]
        %v7090 = vld [vmem:[%s7035 + $0x1b0] sm:$0xff]
        %v7091 = vld [vmem:[%s7035 + $0x1b8] sm:$0xff]
        %v7092 = vld [vmem:[%s7035 + $0x1c0] sm:$0xff]
        %v7093 = vld [vmem:[%s7035 + $0x1c8] sm:$0xff]
        %v7094 = vld [vmem:[%s7035 + $0x1d0] sm:$0xff]
        %v7095 = vld [vmem:[%s7035 + $0x1d8] sm:$0xff]
        %v7096 = vld [vmem:[%s7035 + $0x1e0] sm:$0xff]
        %v7097 = vld [vmem:[%s7035 + $0x1e8] sm:$0xff]
        %v7098 = vld [vmem:[%s7035 + $0x1f0] sm:$0xff]
        %v7099 = vld [vmem:[%s7035 + $0x1f8] sm:$0xff]
        %v7164 = vunpack.c.l.b16 %v7036
        %v7165 = vunpack.c.h.b16 %v7036
        %v7166 = vunpack.c.l.b16 %v7037
        %v7167 = vunpack.c.h.b16 %v7037
        %v7168 = vunpack.c.l.b16 %v7038
        %v7169 = vunpack.c.h.b16 %v7038
        %v7170 = vunpack.c.l.b16 %v7039
        %v7171 = vunpack.c.h.b16 %v7039
        %v7172 = vunpack.c.l.b16 %v7040
        %v7173 = vunpack.c.h.b16 %v7040
        %v7174 = vunpack.c.l.b16 %v7041
        %v7175 = vunpack.c.h.b16 %v7041
        %v7176 = vunpack.c.l.b16 %v7042
        %v7177 = vunpack.c.h.b16 %v7042
        %v7178 = vunpack.c.l.b16 %v7043
        %v7179 = vunpack.c.h.b16 %v7043
        %v7180 = vunpack.c.l.b16 %v7044
        %v7181 = vunpack.c.h.b16 %v7044
        %v7182 = vunpack.c.l.b16 %v7045
        %v7183 = vunpack.c.h.b16 %v7045
        %v7184 = vunpack.c.l.b16 %v7046
        %v7185 = vunpack.c.h.b16 %v7046
        %v7186 = vunpack.c.l.b16 %v7047
        %v7187 = vunpack.c.h.b16 %v7047
        %v7188 = vunpack.c.l.b16 %v7048
        %v7189 = vunpack.c.h.b16 %v7048
        %v7190 = vunpack.c.l.b16 %v7049
        %v7191 = vunpack.c.h.b16 %v7049
        %v7192 = vunpack.c.l.b16 %v7050
        %v7193 = vunpack.c.h.b16 %v7050
        %v7194 = vunpack.c.l.b16 %v7051
        %v7195 = vunpack.c.h.b16 %v7051
        %v7196 = vunpack.c.l.b16 %v7052
        %v7197 = vunpack.c.h.b16 %v7052
        %v7198 = vunpack.c.l.b16 %v7053
        %v7199 = vunpack.c.h.b16 %v7053
        %v7200 = vunpack.c.l.b16 %v7054
        %v7201 = vunpack.c.h.b16 %v7054
        %v7202 = vunpack.c.l.b16 %v7055
        %v7203 = vunpack.c.h.b16 %v7055
        %v7204 = vunpack.c.l.b16 %v7056
        %v7205 = vunpack.c.h.b16 %v7056
        %v7206 = vunpack.c.l.b16 %v7057
        %v7207 = vunpack.c.h.b16 %v7057
        %v7208 = vunpack.c.l.b16 %v7058
        %v7209 = vunpack.c.h.b16 %v7058
        %v7210 = vunpack.c.l.b16 %v7059
        %v7211 = vunpack.c.h.b16 %v7059
        %v7212 = vunpack.c.l.b16 %v7060
        %v7213 = vunpack.c.h.b16 %v7060
        %v7214 = vunpack.c.l.b16 %v7061
        %v7215 = vunpack.c.h.b16 %v7061
        %v7216 = vunpack.c.l.b16 %v7062
        %v7217 = vunpack.c.h.b16 %v7062
        %v7218 = vunpack.c.l.b16 %v7063
        %v7219 = vunpack.c.h.b16 %v7063
        %v7220 = vunpack.c.l.b16 %v7064
        %v7221 = vunpack.c.h.b16 %v7064
        %v7222 = vunpack.c.l.b16 %v7065
        %v7223 = vunpack.c.h.b16 %v7065
        %v7224 = vunpack.c.l.b16 %v7066
        %v7225 = vunpack.c.h.b16 %v7066
        %v7226 = vunpack.c.l.b16 %v7067
        %v7227 = vunpack.c.h.b16 %v7067
        %v7228 = vunpack.c.l.b16 %v7068
        %v7229 = vunpack.c.h.b16 %v7068
        %v7230 = vunpack.c.l.b16 %v7069
        %v7231 = vunpack.c.h.b16 %v7069
        %v7232 = vunpack.c.l.b16 %v7070
        %v7233 = vunpack.c.h.b16 %v7070
        %v7234 = vunpack.c.l.b16 %v7071
        %v7235 = vunpack.c.h.b16 %v7071
        %v7236 = vunpack.c.l.b16 %v7072
        %v7237 = vunpack.c.h.b16 %v7072
        %v7238 = vunpack.c.l.b16 %v7073
        %v7239 = vunpack.c.h.b16 %v7073
        %v7240 = vunpack.c.l.b16 %v7074
        %v7241 = vunpack.c.h.b16 %v7074
        %v7242 = vunpack.c.l.b16 %v7075
        %v7243 = vunpack.c.h.b16 %v7075
        %v7244 = vunpack.c.l.b16 %v7076
        %v7245 = vunpack.c.h.b16 %v7076
        %v7246 = vunpack.c.l.b16 %v7077
        %v7247 = vunpack.c.h.b16 %v7077
        %v7248 = vunpack.c.l.b16 %v7078
        %v7249 = vunpack.c.h.b16 %v7078
        %v7250 = vunpack.c.l.b16 %v7079
        %v7251 = vunpack.c.h.b16 %v7079
        %v7252 = vunpack.c.l.b16 %v7080
        %v7253 = vunpack.c.h.b16 %v7080
        %v7254 = vunpack.c.l.b16 %v7081
        %v7255 = vunpack.c.h.b16 %v7081
        %v7256 = vunpack.c.l.b16 %v7082
        %v7257 = vunpack.c.h.b16 %v7082
        %v7258 = vunpack.c.l.b16 %v7083
        %v7259 = vunpack.c.h.b16 %v7083
        %v7260 = vunpack.c.l.b16 %v7084
        %v7261 = vunpack.c.h.b16 %v7084
        %v7262 = vunpack.c.l.b16 %v7085
        %v7263 = vunpack.c.h.b16 %v7085
        %v7264 = vunpack.c.l.b16 %v7086
        %v7265 = vunpack.c.h.b16 %v7086
        %v7266 = vunpack.c.l.b16 %v7087
        %v7267 = vunpack.c.h.b16 %v7087
        %v7268 = vunpack.c.l.b16 %v7088
        %v7269 = vunpack.c.h.b16 %v7088
        %v7270 = vunpack.c.l.b16 %v7089
        %v7271 = vunpack.c.h.b16 %v7089
        %v7272 = vunpack.c.l.b16 %v7090
        %v7273 = vunpack.c.h.b16 %v7090
        %v7274 = vunpack.c.l.b16 %v7091
        %v7275 = vunpack.c.h.b16 %v7091
        %v7276 = vunpack.c.l.b16 %v7092
        %v7277 = vunpack.c.h.b16 %v7092
        %v7278 = vunpack.c.l.b16 %v7093
        %v7279 = vunpack.c.h.b16 %v7093
        %v7280 = vunpack.c.l.b16 %v7094
        %v7281 = vunpack.c.h.b16 %v7094
        %v7282 = vunpack.c.l.b16 %v7095
        %v7283 = vunpack.c.h.b16 %v7095
        %v7284 = vunpack.c.l.b16 %v7096
        %v7285 = vunpack.c.h.b16 %v7096
        %v7286 = vunpack.c.l.b16 %v7097
        %v7287 = vunpack.c.h.b16 %v7097
        %v7288 = vunpack.c.l.b16 %v7098
        %v7289 = vunpack.c.h.b16 %v7098
        %v7290 = vunpack.c.l.b16 %v7099
        %v7291 = vunpack.c.h.b16 %v7099
        %v7292 = vpack.c.b16 %v7168, %v7164
        %v7293 = vpack.c.b16 %v7169, %v7165
        %v7294 = vpack.c.b16 %v7170, %v7166
        %v7295 = vpack.c.b16 %v7171, %v7167
        %v7296 = vpack.c.b16 %v7176, %v7172
        %v7297 = vpack.c.b16 %v7177, %v7173
        %v7298 = vpack.c.b16 %v7178, %v7174
        %v7299 = vpack.c.b16 %v7179, %v7175
        %v7300 = vpack.c.b16 %v7184, %v7180
        %v7301 = vpack.c.b16 %v7185, %v7181
        %v7302 = vpack.c.b16 %v7186, %v7182
        %v7303 = vpack.c.b16 %v7187, %v7183
        %v7304 = vpack.c.b16 %v7192, %v7188
        %v7305 = vpack.c.b16 %v7193, %v7189
        %v7306 = vpack.c.b16 %v7194, %v7190
        %v7307 = vpack.c.b16 %v7195, %v7191
        %v7308 = vpack.c.b16 %v7200, %v7196
        %v7309 = vpack.c.b16 %v7201, %v7197
        %v7310 = vpack.c.b16 %v7202, %v7198
        %v7311 = vpack.c.b16 %v7203, %v7199
        %v7312 = vpack.c.b16 %v7208, %v7204
        %v7313 = vpack.c.b16 %v7209, %v7205
        %v7314 = vpack.c.b16 %v7210, %v7206
        %v7315 = vpack.c.b16 %v7211, %v7207
        %v7316 = vpack.c.b16 %v7216, %v7212
        %v7317 = vpack.c.b16 %v7217, %v7213
        %v7318 = vpack.c.b16 %v7218, %v7214
        %v7319 = vpack.c.b16 %v7219, %v7215
        %v7320 = vpack.c.b16 %v7224, %v7220
        %v7321 = vpack.c.b16 %v7225, %v7221
        %v7322 = vpack.c.b16 %v7226, %v7222
        %v7323 = vpack.c.b16 %v7227, %v7223
        %v7324 = vpack.c.b16 %v7232, %v7228
        %v7325 = vpack.c.b16 %v7233, %v7229
        %v7326 = vpack.c.b16 %v7234, %v7230
        %v7327 = vpack.c.b16 %v7235, %v7231
        %v7328 = vpack.c.b16 %v7240, %v7236
        %v7329 = vpack.c.b16 %v7241, %v7237
        %v7330 = vpack.c.b16 %v7242, %v7238
        %v7331 = vpack.c.b16 %v7243, %v7239
        %v7332 = vpack.c.b16 %v7248, %v7244
        %v7333 = vpack.c.b16 %v7249, %v7245
        %v7334 = vpack.c.b16 %v7250, %v7246
        %v7335 = vpack.c.b16 %v7251, %v7247
        %v7336 = vpack.c.b16 %v7256, %v7252
        %v7337 = vpack.c.b16 %v7257, %v7253
        %v7338 = vpack.c.b16 %v7258, %v7254
        %v7339 = vpack.c.b16 %v7259, %v7255
        %v7340 = vpack.c.b16 %v7264, %v7260
        %v7341 = vpack.c.b16 %v7265, %v7261
        %v7342 = vpack.c.b16 %v7266, %v7262
        %v7343 = vpack.c.b16 %v7267, %v7263
        %v7344 = vpack.c.b16 %v7272, %v7268
        %v7345 = vpack.c.b16 %v7273, %v7269
        %v7346 = vpack.c.b16 %v7274, %v7270
        %v7347 = vpack.c.b16 %v7275, %v7271
        %v7348 = vpack.c.b16 %v7280, %v7276
        %v7349 = vpack.c.b16 %v7281, %v7277
        %v7350 = vpack.c.b16 %v7282, %v7278
        %v7351 = vpack.c.b16 %v7283, %v7279
        %v7352 = vpack.c.b16 %v7288, %v7284
        %v7353 = vpack.c.b16 %v7289, %v7285
        %v7354 = vpack.c.b16 %v7290, %v7286
        %v7355 = vpack.c.b16 %v7291, %v7287
        %7420 = vmatprep.subr.bf16.mxu0 %v7293
        %7421 = vmatpush1.bf16.msra.mxu0 %v7292
        %7422 = vmatprep.subr.bf16.mxu0 %v7297
        %7423 = vmatpush1.bf16.msra.mxu0 %v7296
        %7424 = vmatprep.subr.bf16.mxu0 %v7301
        %7425 = vmatpush1.bf16.msra.mxu0 %v7300
        %7426 = vmatprep.subr.bf16.mxu0 %v7305
        %7427 = vmatpush1.bf16.msra.mxu0 %v7304
        %7428 = vmatprep.subr.bf16.mxu0 %v7309
        %7429 = vmatpush1.bf16.msra.mxu0 %v7308
        %7430 = vmatprep.subr.bf16.mxu0 %v7313
        %7431 = vmatpush1.bf16.msra.mxu0 %v7312
        %7432 = vmatprep.subr.bf16.mxu0 %v7317
        %7433 = vmatpush1.bf16.msra.mxu0 %v7316
        %7434 = vmatprep.subr.bf16.mxu0 %v7321
        %7435 = vmatpush1.bf16.msra.mxu0 %v7320
        %7436 = vmatprep.subr.bf16.mxu0 %v7325
        %7437 = vmatpush1.bf16.msra.mxu0 %v7324
        %7438 = vmatprep.subr.bf16.mxu0 %v7329
        %7439 = vmatpush1.bf16.msra.mxu0 %v7328
        %7440 = vmatprep.subr.bf16.mxu0 %v7333
        %7441 = vmatpush1.bf16.msra.mxu0 %v7332
        %7442 = vmatprep.subr.bf16.mxu0 %v7337
        %7443 = vmatpush1.bf16.msra.mxu0 %v7336
        %7444 = vmatprep.subr.bf16.mxu0 %v7341
        %7445 = vmatpush1.bf16.msra.mxu0 %v7340
        %7446 = vmatprep.subr.bf16.mxu0 %v7345
        %7447 = vmatpush1.bf16.msra.mxu0 %v7344
        %7448 = vmatprep.subr.bf16.mxu0 %v7349
        %7449 = vmatpush1.bf16.msra.mxu0 %v7348
        %7450 = vmatprep.subr.bf16.mxu0 %v7353
        %7451 = vmatpush1.bf16.msra.mxu0 %v7352
        %7452 = vmatprep.mubr.bf16.mxu0 %v7034
        %7453 = vmatmul.mubr.bf16.gmra.mrb[0].mxu0 %v7033
        %v7454 = vpop.f32.mrb[0].mxu0
        %v7455 = vadd.f32 0.0, %v7454
        %v7456 = vpop.f32.mrb[0].mxu0
        %v7457 = vadd.f32 0.0, %v7456
        %v7458 = vpop.f32.mrb[0].mxu0
        %v7459 = vpop.f32.mrb[0].mxu0
        %7460 = vdwg.mxu0
        %7461 = vmatprep.subr.bf16.mxu0 %v7295
        %7462 = vmatpush1.bf16.msra.mxu0 %v7294
        %7463 = vmatprep.subr.bf16.mxu0 %v7299
        %7464 = vmatpush1.bf16.msra.mxu0 %v7298
        %7465 = vmatprep.subr.bf16.mxu0 %v7303
        %7466 = vmatpush1.bf16.msra.mxu0 %v7302
        %7467 = vmatprep.subr.bf16.mxu0 %v7307
        %7468 = vmatpush1.bf16.msra.mxu0 %v7306
        %7469 = vmatprep.subr.bf16.mxu0 %v7311
        %7470 = vmatpush1.bf16.msra.mxu0 %v7310
        %7471 = vmatprep.subr.bf16.mxu0 %v7315
        %7472 = vmatpush1.bf16.msra.mxu0 %v7314
        %7473 = vmatprep.subr.bf16.mxu0 %v7319
        %7474 = vmatpush1.bf16.msra.mxu0 %v7318
        %7475 = vmatprep.subr.bf16.mxu0 %v7323
        %7476 = vmatpush1.bf16.msra.mxu0 %v7322
        %7477 = vmatprep.subr.bf16.mxu0 %v7327
        %7478 = vmatpush1.bf16.msra.mxu0 %v7326
        %7479 = vmatprep.subr.bf16.mxu0 %v7331
        %7480 = vmatpush1.bf16.msra.mxu0 %v7330
        %7481 = vmatprep.subr.bf16.mxu0 %v7335
        %7482 = vmatpush1.bf16.msra.mxu0 %v7334
        %7483 = vmatprep.subr.bf16.mxu0 %v7339
        %7484 = vmatpush1.bf16.msra.mxu0 %v7338
        %7485 = vmatprep.subr.bf16.mxu0 %v7343
        %7486 = vmatpush1.bf16.msra.mxu0 %v7342
        %7487 = vmatprep.subr.bf16.mxu0 %v7347
        %7488 = vmatpush1.bf16.msra.mxu0 %v7346
        %7489 = vmatprep.subr.bf16.mxu0 %v7351
        %7490 = vmatpush1.bf16.msra.mxu0 %v7350
        %7491 = vmatprep.subr.bf16.mxu0 %v7355
        %7492 = vmatpush1.bf16.msra.mxu0 %v7354
        %7493 = vmatprep.mubr.bf16.mxu0 %v7034
        %7494 = vmatmul.mubr.bf16.gmra.mrb[0].mxu0 %v7033
        %v7495 = vpop.f32.mrb[0].mxu0
        %v7496 = vadd.f32 0.0, %v7495
        %v7497 = vpop.f32.mrb[0].mxu0
        %v7498 = vadd.f32 0.0, %v7497
        %v7499 = vpop.f32.mrb[0].mxu0
        %v7500 = vpop.f32.mrb[0].mxu0
        %7501 = vdwg.mxu0
        %v7502 = vadd.f32 %v6964, %v7455
        %v7503 = vadd.f32 %v6966, %v7457
        %v7504 = vadd.f32 %v7005, %v7496
        %v7505 = vadd.f32 %v7007, %v7498
        %s7506 = scalar_lea.vmem [#allocation4], 6
        %v7507 = vld [vmem:[%s7506] ss:$8 sm:$0xf]
        %s7508 = scalar_lea.vmem [#allocation4], 7
        %v7509 = vld [vmem:[%s7508] ss:$8 sm:$0xf]
        %v7510 = vmax.f32 %v7507, %v7509
        %v7512 = vrot.slane %v7510, 2
        %v7514 = vmax.f32 %v7510, %v7512
        %v7515 = vadd.f32 %v7514, %v6038
        %v7516 = vmax.f32 %v7515, 0.0
        %v7518 = vlaneseq
        %v7519 = vshrl.u32 %v7518, 7
        %v7520 = vsub.s32 0, %v7519
        %v7521 = vrot.slane %v7516, %v7520
        %v7522 = vlaneseq
        %v7523 = vshrl.u32 %v7522, 7
        %v7524 = vsub.s32 1, %v7523
        %v7525 = vrot.slane %v7516, %v7524
        %v7528 = vpack.c.bf16 %v7521, %v7521
        %v7529 = vpack.c.bf16 %v7525, %v7525
        %s7530 = scalar_lea.vmem [#allocation13], 1536
        %v7531 = vld [vmem:[%s7530] sm:$0xff]
        %v7532 = vld [vmem:[%s7530 + $0x8] sm:$0xff]
        %v7533 = vld [vmem:[%s7530 + $0x10] sm:$0xff]
        %v7534 = vld [vmem:[%s7530 + $0x18] sm:$0xff]
        %v7535 = vld [vmem:[%s7530 + $0x20] sm:$0xff]
        %v7536 = vld [vmem:[%s7530 + $0x28] sm:$0xff]
        %v7537 = vld [vmem:[%s7530 + $0x30] sm:$0xff]
        %v7538 = vld [vmem:[%s7530 + $0x38] sm:$0xff]
        %v7539 = vld [vmem:[%s7530 + $0x40] sm:$0xff]
        %v7540 = vld [vmem:[%s7530 + $0x48] sm:$0xff]
        %v7541 = vld [vmem:[%s7530 + $0x50] sm:$0xff]
        %v7542 = vld [vmem:[%s7530 + $0x58] sm:$0xff]
        %v7543 = vld [vmem:[%s7530 + $0x60] sm:$0xff]
        %v7544 = vld [vmem:[%s7530 + $0x68] sm:$0xff]
        %v7545 = vld [vmem:[%s7530 + $0x70] sm:$0xff]
        %v7546 = vld [vmem:[%s7530 + $0x78] sm:$0xff]
        %v7547 = vld [vmem:[%s7530 + $0x80] sm:$0xff]
        %v7548 = vld [vmem:[%s7530 + $0x88] sm:$0xff]
        %v7549 = vld [vmem:[%s7530 + $0x90] sm:$0xff]
        %v7550 = vld [vmem:[%s7530 + $0x98] sm:$0xff]
        %v7551 = vld [vmem:[%s7530 + $0xa0] sm:$0xff]
        %v7552 = vld [vmem:[%s7530 + $0xa8] sm:$0xff]
        %v7553 = vld [vmem:[%s7530 + $0xb0] sm:$0xff]
        %v7554 = vld [vmem:[%s7530 + $0xb8] sm:$0xff]
        %v7555 = vld [vmem:[%s7530 + $0xc0] sm:$0xff]
        %v7556 = vld [vmem:[%s7530 + $0xc8] sm:$0xff]
        %v7557 = vld [vmem:[%s7530 + $0xd0] sm:$0xff]
        %v7558 = vld [vmem:[%s7530 + $0xd8] sm:$0xff]
        %v7559 = vld [vmem:[%s7530 + $0xe0] sm:$0xff]
        %v7560 = vld [vmem:[%s7530 + $0xe8] sm:$0xff]
        %v7561 = vld [vmem:[%s7530 + $0xf0] sm:$0xff]
        %v7562 = vld [vmem:[%s7530 + $0xf8] sm:$0xff]
        %v7563 = vld [vmem:[%s7530 + $0x100] sm:$0xff]
        %v7564 = vld [vmem:[%s7530 + $0x108] sm:$0xff]
        %v7565 = vld [vmem:[%s7530 + $0x110] sm:$0xff]
        %v7566 = vld [vmem:[%s7530 + $0x118] sm:$0xff]
        %v7567 = vld [vmem:[%s7530 + $0x120] sm:$0xff]
        %v7568 = vld [vmem:[%s7530 + $0x128] sm:$0xff]
        %v7569 = vld [vmem:[%s7530 + $0x130] sm:$0xff]
        %v7570 = vld [vmem:[%s7530 + $0x138] sm:$0xff]
        %v7571 = vld [vmem:[%s7530 + $0x140] sm:$0xff]
        %v7572 = vld [vmem:[%s7530 + $0x148] sm:$0xff]
        %v7573 = vld [vmem:[%s7530 + $0x150] sm:$0xff]
        %v7574 = vld [vmem:[%s7530 + $0x158] sm:$0xff]
        %v7575 = vld [vmem:[%s7530 + $0x160] sm:$0xff]
        %v7576 = vld [vmem:[%s7530 + $0x168] sm:$0xff]
        %v7577 = vld [vmem:[%s7530 + $0x170] sm:$0xff]
        %v7578 = vld [vmem:[%s7530 + $0x178] sm:$0xff]
        %v7579 = vld [vmem:[%s7530 + $0x180] sm:$0xff]
        %v7580 = vld [vmem:[%s7530 + $0x188] sm:$0xff]
        %v7581 = vld [vmem:[%s7530 + $0x190] sm:$0xff]
        %v7582 = vld [vmem:[%s7530 + $0x198] sm:$0xff]
        %v7583 = vld [vmem:[%s7530 + $0x1a0] sm:$0xff]
        %v7584 = vld [vmem:[%s7530 + $0x1a8] sm:$0xff]
        %v7585 = vld [vmem:[%s7530 + $0x1b0] sm:$0xff]
        %v7586 = vld [vmem:[%s7530 + $0x1b8] sm:$0xff]
        %v7587 = vld [vmem:[%s7530 + $0x1c0] sm:$0xff]
        %v7588 = vld [vmem:[%s7530 + $0x1c8] sm:$0xff]
        %v7589 = vld [vmem:[%s7530 + $0x1d0] sm:$0xff]
        %v7590 = vld [vmem:[%s7530 + $0x1d8] sm:$0xff]
        %v7591 = vld [vmem:[%s7530 + $0x1e0] sm:$0xff]
        %v7592 = vld [vmem:[%s7530 + $0x1e8] sm:$0xff]
        %v7593 = vld [vmem:[%s7530 + $0x1f0] sm:$0xff]
        %v7594 = vld [vmem:[%s7530 + $0x1f8] sm:$0xff]
        %v7659 = vunpack.c.l.b16 %v7531
        %v7660 = vunpack.c.h.b16 %v7531
        %v7661 = vunpack.c.l.b16 %v7532
        %v7662 = vunpack.c.h.b16 %v7532
        %v7663 = vunpack.c.l.b16 %v7533
        %v7664 = vunpack.c.h.b16 %v7533
        %v7665 = vunpack.c.l.b16 %v7534
        %v7666 = vunpack.c.h.b16 %v7534
        %v7667 = vunpack.c.l.b16 %v7535
        %v7668 = vunpack.c.h.b16 %v7535
        %v7669 = vunpack.c.l.b16 %v7536
        %v7670 = vunpack.c.h.b16 %v7536
        %v7671 = vunpack.c.l.b16 %v7537
        %v7672 = vunpack.c.h.b16 %v7537
        %v7673 = vunpack.c.l.b16 %v7538
        %v7674 = vunpack.c.h.b16 %v7538
        %v7675 = vunpack.c.l.b16 %v7539
        %v7676 = vunpack.c.h.b16 %v7539
        %v7677 = vunpack.c.l.b16 %v7540
        %v7678 = vunpack.c.h.b16 %v7540
        %v7679 = vunpack.c.l.b16 %v7541
        %v7680 = vunpack.c.h.b16 %v7541
        %v7681 = vunpack.c.l.b16 %v7542
        %v7682 = vunpack.c.h.b16 %v7542
        %v7683 = vunpack.c.l.b16 %v7543
        %v7684 = vunpack.c.h.b16 %v7543
        %v7685 = vunpack.c.l.b16 %v7544
        %v7686 = vunpack.c.h.b16 %v7544
        %v7687 = vunpack.c.l.b16 %v7545
        %v7688 = vunpack.c.h.b16 %v7545
        %v7689 = vunpack.c.l.b16 %v7546
        %v7690 = vunpack.c.h.b16 %v7546
        %v7691 = vunpack.c.l.b16 %v7547
        %v7692 = vunpack.c.h.b16 %v7547
        %v7693 = vunpack.c.l.b16 %v7548
        %v7694 = vunpack.c.h.b16 %v7548
        %v7695 = vunpack.c.l.b16 %v7549
        %v7696 = vunpack.c.h.b16 %v7549
        %v7697 = vunpack.c.l.b16 %v7550
        %v7698 = vunpack.c.h.b16 %v7550
        %v7699 = vunpack.c.l.b16 %v7551
        %v7700 = vunpack.c.h.b16 %v7551
        %v7701 = vunpack.c.l.b16 %v7552
        %v7702 = vunpack.c.h.b16 %v7552
        %v7703 = vunpack.c.l.b16 %v7553
        %v7704 = vunpack.c.h.b16 %v7553
        %v7705 = vunpack.c.l.b16 %v7554
        %v7706 = vunpack.c.h.b16 %v7554
        %v7707 = vunpack.c.l.b16 %v7555
        %v7708 = vunpack.c.h.b16 %v7555
        %v7709 = vunpack.c.l.b16 %v7556
        %v7710 = vunpack.c.h.b16 %v7556
        %v7711 = vunpack.c.l.b16 %v7557
        %v7712 = vunpack.c.h.b16 %v7557
        %v7713 = vunpack.c.l.b16 %v7558
        %v7714 = vunpack.c.h.b16 %v7558
        %v7715 = vunpack.c.l.b16 %v7559
        %v7716 = vunpack.c.h.b16 %v7559
        %v7717 = vunpack.c.l.b16 %v7560
        %v7718 = vunpack.c.h.b16 %v7560
        %v7719 = vunpack.c.l.b16 %v7561
        %v7720 = vunpack.c.h.b16 %v7561
        %v7721 = vunpack.c.l.b16 %v7562
        %v7722 = vunpack.c.h.b16 %v7562
        %v7723 = vunpack.c.l.b16 %v7563
        %v7724 = vunpack.c.h.b16 %v7563
        %v7725 = vunpack.c.l.b16 %v7564
        %v7726 = vunpack.c.h.b16 %v7564
        %v7727 = vunpack.c.l.b16 %v7565
        %v7728 = vunpack.c.h.b16 %v7565
        %v7729 = vunpack.c.l.b16 %v7566
        %v7730 = vunpack.c.h.b16 %v7566
        %v7731 = vunpack.c.l.b16 %v7567
        %v7732 = vunpack.c.h.b16 %v7567
        %v7733 = vunpack.c.l.b16 %v7568
        %v7734 = vunpack.c.h.b16 %v7568
        %v7735 = vunpack.c.l.b16 %v7569
        %v7736 = vunpack.c.h.b16 %v7569
        %v7737 = vunpack.c.l.b16 %v7570
        %v7738 = vunpack.c.h.b16 %v7570
        %v7739 = vunpack.c.l.b16 %v7571
        %v7740 = vunpack.c.h.b16 %v7571
        %v7741 = vunpack.c.l.b16 %v7572
        %v7742 = vunpack.c.h.b16 %v7572
        %v7743 = vunpack.c.l.b16 %v7573
        %v7744 = vunpack.c.h.b16 %v7573
        %v7745 = vunpack.c.l.b16 %v7574
        %v7746 = vunpack.c.h.b16 %v7574
        %v7747 = vunpack.c.l.b16 %v7575
        %v7748 = vunpack.c.h.b16 %v7575
        %v7749 = vunpack.c.l.b16 %v7576
        %v7750 = vunpack.c.h.b16 %v7576
        %v7751 = vunpack.c.l.b16 %v7577
        %v7752 = vunpack.c.h.b16 %v7577
        %v7753 = vunpack.c.l.b16 %v7578
        %v7754 = vunpack.c.h.b16 %v7578
        %v7755 = vunpack.c.l.b16 %v7579
        %v7756 = vunpack.c.h.b16 %v7579
        %v7757 = vunpack.c.l.b16 %v7580
        %v7758 = vunpack.c.h.b16 %v7580
        %v7759 = vunpack.c.l.b16 %v7581
        %v7760 = vunpack.c.h.b16 %v7581
        %v7761 = vunpack.c.l.b16 %v7582
        %v7762 = vunpack.c.h.b16 %v7582
        %v7763 = vunpack.c.l.b16 %v7583
        %v7764 = vunpack.c.h.b16 %v7583
        %v7765 = vunpack.c.l.b16 %v7584
        %v7766 = vunpack.c.h.b16 %v7584
        %v7767 = vunpack.c.l.b16 %v7585
        %v7768 = vunpack.c.h.b16 %v7585
        %v7769 = vunpack.c.l.b16 %v7586
        %v7770 = vunpack.c.h.b16 %v7586
        %v7771 = vunpack.c.l.b16 %v7587
        %v7772 = vunpack.c.h.b16 %v7587
        %v7773 = vunpack.c.l.b16 %v7588
        %v7774 = vunpack.c.h.b16 %v7588
        %v7775 = vunpack.c.l.b16 %v7589
        %v7776 = vunpack.c.h.b16 %v7589
        %v7777 = vunpack.c.l.b16 %v7590
        %v7778 = vunpack.c.h.b16 %v7590
        %v7779 = vunpack.c.l.b16 %v7591
        %v7780 = vunpack.c.h.b16 %v7591
        %v7781 = vunpack.c.l.b16 %v7592
        %v7782 = vunpack.c.h.b16 %v7592
        %v7783 = vunpack.c.l.b16 %v7593
        %v7784 = vunpack.c.h.b16 %v7593
        %v7785 = vunpack.c.l.b16 %v7594
        %v7786 = vunpack.c.h.b16 %v7594
        %v7787 = vpack.c.b16 %v7663, %v7659
        %v7788 = vpack.c.b16 %v7664, %v7660
        %v7789 = vpack.c.b16 %v7665, %v7661
        %v7790 = vpack.c.b16 %v7666, %v7662
        %v7791 = vpack.c.b16 %v7671, %v7667
        %v7792 = vpack.c.b16 %v7672, %v7668
        %v7793 = vpack.c.b16 %v7673, %v7669
        %v7794 = vpack.c.b16 %v7674, %v7670
        %v7795 = vpack.c.b16 %v7679, %v7675
        %v7796 = vpack.c.b16 %v7680, %v7676
        %v7797 = vpack.c.b16 %v7681, %v7677
        %v7798 = vpack.c.b16 %v7682, %v7678
        %v7799 = vpack.c.b16 %v7687, %v7683
        %v7800 = vpack.c.b16 %v7688, %v7684
        %v7801 = vpack.c.b16 %v7689, %v7685
        %v7802 = vpack.c.b16 %v7690, %v7686
        %v7803 = vpack.c.b16 %v7695, %v7691
        %v7804 = vpack.c.b16 %v7696, %v7692
        %v7805 = vpack.c.b16 %v7697, %v7693
        %v7806 = vpack.c.b16 %v7698, %v7694
        %v7807 = vpack.c.b16 %v7703, %v7699
        %v7808 = vpack.c.b16 %v7704, %v7700
        %v7809 = vpack.c.b16 %v7705, %v7701
        %v7810 = vpack.c.b16 %v7706, %v7702
        %v7811 = vpack.c.b16 %v7711, %v7707
        %v7812 = vpack.c.b16 %v7712, %v7708
        %v7813 = vpack.c.b16 %v7713, %v7709
        %v7814 = vpack.c.b16 %v7714, %v7710
        %v7815 = vpack.c.b16 %v7719, %v7715
        %v7816 = vpack.c.b16 %v7720, %v7716
        %v7817 = vpack.c.b16 %v7721, %v7717
        %v7818 = vpack.c.b16 %v7722, %v7718
        %v7819 = vpack.c.b16 %v7727, %v7723
        %v7820 = vpack.c.b16 %v7728, %v7724
        %v7821 = vpack.c.b16 %v7729, %v7725
        %v7822 = vpack.c.b16 %v7730, %v7726
        %v7823 = vpack.c.b16 %v7735, %v7731
        %v7824 = vpack.c.b16 %v7736, %v7732
        %v7825 = vpack.c.b16 %v7737, %v7733
        %v7826 = vpack.c.b16 %v7738, %v7734
        %v7827 = vpack.c.b16 %v7743, %v7739
        %v7828 = vpack.c.b16 %v7744, %v7740
        %v7829 = vpack.c.b16 %v7745, %v7741
        %v7830 = vpack.c.b16 %v7746, %v7742
        %v7831 = vpack.c.b16 %v7751, %v7747
        %v7832 = vpack.c.b16 %v7752, %v7748
        %v7833 = vpack.c.b16 %v7753, %v7749
        %v7834 = vpack.c.b16 %v7754, %v7750
        %v7835 = vpack.c.b16 %v7759, %v7755
        %v7836 = vpack.c.b16 %v7760, %v7756
        %v7837 = vpack.c.b16 %v7761, %v7757
        %v7838 = vpack.c.b16 %v7762, %v7758
        %v7839 = vpack.c.b16 %v7767, %v7763
        %v7840 = vpack.c.b16 %v7768, %v7764
        %v7841 = vpack.c.b16 %v7769, %v7765
        %v7842 = vpack.c.b16 %v7770, %v7766
        %v7843 = vpack.c.b16 %v7775, %v7771
        %v7844 = vpack.c.b16 %v7776, %v7772
        %v7845 = vpack.c.b16 %v7777, %v7773
        %v7846 = vpack.c.b16 %v7778, %v7774
        %v7847 = vpack.c.b16 %v7783, %v7779
        %v7848 = vpack.c.b16 %v7784, %v7780
        %v7849 = vpack.c.b16 %v7785, %v7781
        %v7850 = vpack.c.b16 %v7786, %v7782
        %7915 = vmatprep.subr.bf16.mxu0 %v7788
        %7916 = vmatpush1.bf16.msra.mxu0 %v7787
        %7917 = vmatprep.subr.bf16.mxu0 %v7792
        %7918 = vmatpush1.bf16.msra.mxu0 %v7791
        %7919 = vmatprep.subr.bf16.mxu0 %v7796
        %7920 = vmatpush1.bf16.msra.mxu0 %v7795
        %7921 = vmatprep.subr.bf16.mxu0 %v7800
        %7922 = vmatpush1.bf16.msra.mxu0 %v7799
        %7923 = vmatprep.subr.bf16.mxu0 %v7804
        %7924 = vmatpush1.bf16.msra.mxu0 %v7803
        %7925 = vmatprep.subr.bf16.mxu0 %v7808
        %7926 = vmatpush1.bf16.msra.mxu0 %v7807
        %7927 = vmatprep.subr.bf16.mxu0 %v7812
        %7928 = vmatpush1.bf16.msra.mxu0 %v7811
        %7929 = vmatprep.subr.bf16.mxu0 %v7816
        %7930 = vmatpush1.bf16.msra.mxu0 %v7815
        %7931 = vmatprep.subr.bf16.mxu0 %v7820
        %7932 = vmatpush1.bf16.msra.mxu0 %v7819
        %7933 = vmatprep.subr.bf16.mxu0 %v7824
        %7934 = vmatpush1.bf16.msra.mxu0 %v7823
        %7935 = vmatprep.subr.bf16.mxu0 %v7828
        %7936 = vmatpush1.bf16.msra.mxu0 %v7827
        %7937 = vmatprep.subr.bf16.mxu0 %v7832
        %7938 = vmatpush1.bf16.msra.mxu0 %v7831
        %7939 = vmatprep.subr.bf16.mxu0 %v7836
        %7940 = vmatpush1.bf16.msra.mxu0 %v7835
        %7941 = vmatprep.subr.bf16.mxu0 %v7840
        %7942 = vmatpush1.bf16.msra.mxu0 %v7839
        %7943 = vmatprep.subr.bf16.mxu0 %v7844
        %7944 = vmatpush1.bf16.msra.mxu0 %v7843
        %7945 = vmatprep.subr.bf16.mxu0 %v7848
        %7946 = vmatpush1.bf16.msra.mxu0 %v7847
        %7947 = vmatprep.mubr.bf16.mxu0 %v7529
        %7948 = vmatmul.mubr.bf16.gmra.mrb[0].mxu0 %v7528
        %v7949 = vpop.f32.mrb[0].mxu0
        %v7950 = vadd.f32 0.0, %v7949
        %v7951 = vpop.f32.mrb[0].mxu0
        %v7952 = vadd.f32 0.0, %v7951
        %v7953 = vpop.f32.mrb[0].mxu0
        %v7954 = vpop.f32.mrb[0].mxu0
        %7955 = vdwg.mxu0
        %7956 = vmatprep.subr.bf16.mxu0 %v7790
        %7957 = vmatpush1.bf16.msra.mxu0 %v7789
        %7958 = vmatprep.subr.bf16.mxu0 %v7794
        %7959 = vmatpush1.bf16.msra.mxu0 %v7793
        %7960 = vmatprep.subr.bf16.mxu0 %v7798
        %7961 = vmatpush1.bf16.msra.mxu0 %v7797
        %7962 = vmatprep.subr.bf16.mxu0 %v7802
        %7963 = vmatpush1.bf16.msra.mxu0 %v7801
        %7964 = vmatprep.subr.bf16.mxu0 %v7806
        %7965 = vmatpush1.bf16.msra.mxu0 %v7805
        %7966 = vmatprep.subr.bf16.mxu0 %v7810
        %7967 = vmatpush1.bf16.msra.mxu0 %v7809
        %7968 = vmatprep.subr.bf16.mxu0 %v7814
        %7969 = vmatpush1.bf16.msra.mxu0 %v7813
        %7970 = vmatprep.subr.bf16.mxu0 %v7818
        %7971 = vmatpush1.bf16.msra.mxu0 %v7817
        %7972 = vmatprep.subr.bf16.mxu0 %v7822
        %7973 = vmatpush1.bf16.msra.mxu0 %v7821
        %7974 = vmatprep.subr.bf16.mxu0 %v7826
        %7975 = vmatpush1.bf16.msra.mxu0 %v7825
        %7976 = vmatprep.subr.bf16.mxu0 %v7830
        %7977 = vmatpush1.bf16.msra.mxu0 %v7829
        %7978 = vmatprep.subr.bf16.mxu0 %v7834
        %7979 = vmatpush1.bf16.msra.mxu0 %v7833
        %7980 = vmatprep.subr.bf16.mxu0 %v7838
        %7981 = vmatpush1.bf16.msra.mxu0 %v7837
        %7982 = vmatprep.subr.bf16.mxu0 %v7842
        %7983 = vmatpush1.bf16.msra.mxu0 %v7841
        %7984 = vmatprep.subr.bf16.mxu0 %v7846
        %7985 = vmatpush1.bf16.msra.mxu0 %v7845
        %7986 = vmatprep.subr.bf16.mxu0 %v7850
        %7987 = vmatpush1.bf16.msra.mxu0 %v7849
        %7988 = vmatprep.mubr.bf16.mxu0 %v7529
        %7989 = vmatmul.mubr.bf16.gmra.mrb[0].mxu0 %v7528
        %v7990 = vpop.f32.mrb[0].mxu0
        %v7991 = vadd.f32 0.0, %v7990
        %v7992 = vpop.f32.mrb[0].mxu0
        %v7993 = vadd.f32 0.0, %v7992
        %v7994 = vpop.f32.mrb[0].mxu0
        %v7995 = vpop.f32.mrb[0].mxu0
        %7996 = vdwg.mxu0
        %v7997 = vadd.f32 %v7502, %v7950
        %v7998 = vadd.f32 %v7503, %v7952
        %v7999 = vadd.f32 %v7504, %v7991
        %v8000 = vadd.f32 %v7505, %v7993
        %v8001 = vld [vmem:[#allocation14] sm:$0xf]
        %v8003 = vlaneseq
        %v8004 = vshrl.u32 %v8003, 7
        %v8005 = vsub.s32 0, %v8004
        %v8006 = vrot.slane %v8001, %v8005
        %v8007 = vlaneseq
        %v8008 = vshrl.u32 %v8007, 7
        %v8009 = vsub.s32 1, %v8008
        %v8010 = vrot.slane %v8001, %v8009
        %v8011 = vlaneseq
        %v8012 = vshrl.u32 %v8011, 7
        %v8013 = vsub.s32 2, %v8012
        %v8014 = vrot.slane %v8001, %v8013
        %v8015 = vlaneseq
        %v8016 = vshrl.u32 %v8015, 7
        %v8017 = vsub.s32 3, %v8016
        %v8018 = vrot.slane %v8001, %v8017
        %v8023 = vadd.f32 %v7997, %v8006
        %v8024 = vadd.f32 %v7998, %v8010
        %v8025 = vadd.f32 %v7999, %v8014
        %v8026 = vadd.f32 %v8000, %v8018
        %v8027 = vmax.f32 %v8023, 0.0
        %v8028 = vmax.f32 %v8024, 0.0
        %v8029 = vmax.f32 %v8025, 0.0
        %v8030 = vmax.f32 %v8026, 0.0
        %v8031 = vpack.c.bf16 %v8027, %v8027
        %v8032 = vpack.c.bf16 %v8028, %v8028
        %v8033 = vpack.c.bf16 %v8029, %v8029
        %v8034 = vpack.c.bf16 %v8030, %v8030
        %v8035 = vld [vmem:[#allocation16] sm:$0xf]
        %v8036 = vld [vmem:[#allocation16 + $0x4] sm:$0xf]
        %v8037 = vld [vmem:[#allocation16 + $0x8] sm:$0xf]
        %v8038 = vld [vmem:[#allocation16 + $0xc] sm:$0xf]
        %v8039 = vld [vmem:[#allocation16 + $0x10] sm:$0xf]
        %v8040 = vld [vmem:[#allocation16 + $0x14] sm:$0xf]
        %v8041 = vld [vmem:[#allocation16 + $0x18] sm:$0xf]
        %v8042 = vld [vmem:[#allocation16 + $0x1c] sm:$0xf]
        %v8043 = vld [vmem:[#allocation16 + $0x20] sm:$0xf]
        %v8044 = vld [vmem:[#allocation16 + $0x24] sm:$0xf]
        %v8045 = vld [vmem:[#allocation16 + $0x28] sm:$0xf]
        %v8046 = vld [vmem:[#allocation16 + $0x2c] sm:$0xf]
        %v8047 = vld [vmem:[#allocation16 + $0x30] sm:$0xf]
        %v8048 = vld [vmem:[#allocation16 + $0x34] sm:$0xf]
        %v8049 = vld [vmem:[#allocation16 + $0x38] sm:$0xf]
        %v8050 = vld [vmem:[#allocation16 + $0x3c] sm:$0xf]
        %v8051 = vld [vmem:[#allocation16 + $0x40] sm:$0xf]
        %v8052 = vld [vmem:[#allocation16 + $0x44] sm:$0xf]
        %v8053 = vld [vmem:[#allocation16 + $0x48] sm:$0xf]
        %v8054 = vld [vmem:[#allocation16 + $0x4c] sm:$0xf]
        %v8055 = vld [vmem:[#allocation16 + $0x50] sm:$0xf]
        %v8056 = vld [vmem:[#allocation16 + $0x54] sm:$0xf]
        %v8057 = vld [vmem:[#allocation16 + $0x58] sm:$0xf]
        %v8058 = vld [vmem:[#allocation16 + $0x5c] sm:$0xf]
        %v8059 = vld [vmem:[#allocation16 + $0x60] sm:$0xf]
        %v8060 = vld [vmem:[#allocation16 + $0x64] sm:$0xf]
        %v8061 = vld [vmem:[#allocation16 + $0x68] sm:$0xf]
        %v8062 = vld [vmem:[#allocation16 + $0x6c] sm:$0xf]
        %v8063 = vld [vmem:[#allocation16 + $0x70] sm:$0xf]
        %v8064 = vld [vmem:[#allocation16 + $0x74] sm:$0xf]
        %v8065 = vld [vmem:[#allocation16 + $0x78] sm:$0xf]
        %v8066 = vld [vmem:[#allocation16 + $0x7c] sm:$0xf]
        %v8067 = vld [vmem:[#allocation16 + $0x80] sm:$0xf]
        %v8068 = vld [vmem:[#allocation16 + $0x84] sm:$0xf]
        %v8069 = vld [vmem:[#allocation16 + $0x88] sm:$0xf]
        %v8070 = vld [vmem:[#allocation16 + $0x8c] sm:$0xf]
        %v8071 = vld [vmem:[#allocation16 + $0x90] sm:$0xf]
        %v8072 = vld [vmem:[#allocation16 + $0x94] sm:$0xf]
        %v8073 = vld [vmem:[#allocation16 + $0x98] sm:$0xf]
        %v8074 = vld [vmem:[#allocation16 + $0x9c] sm:$0xf]
        %v8075 = vld [vmem:[#allocation16 + $0xa0] sm:$0xf]
        %v8076 = vld [vmem:[#allocation16 + $0xa4] sm:$0xf]
        %v8077 = vld [vmem:[#allocation16 + $0xa8] sm:$0xf]
        %v8078 = vld [vmem:[#allocation16 + $0xac] sm:$0xf]
        %v8079 = vld [vmem:[#allocation16 + $0xb0] sm:$0xf]
        %v8080 = vld [vmem:[#allocation16 + $0xb4] sm:$0xf]
        %v8081 = vld [vmem:[#allocation16 + $0xb8] sm:$0xf]
        %v8082 = vld [vmem:[#allocation16 + $0xbc] sm:$0xf]
        %v8083 = vld [vmem:[#allocation16 + $0xc0] sm:$0xf]
        %v8084 = vld [vmem:[#allocation16 + $0xc4] sm:$0xf]
        %v8085 = vld [vmem:[#allocation16 + $0xc8] sm:$0xf]
        %v8086 = vld [vmem:[#allocation16 + $0xcc] sm:$0xf]
        %v8087 = vld [vmem:[#allocation16 + $0xd0] sm:$0xf]
        %v8088 = vld [vmem:[#allocation16 + $0xd4] sm:$0xf]
        %v8089 = vld [vmem:[#allocation16 + $0xd8] sm:$0xf]
        %v8090 = vld [vmem:[#allocation16 + $0xdc] sm:$0xf]
        %v8091 = vld [vmem:[#allocation16 + $0xe0] sm:$0xf]
        %v8092 = vld [vmem:[#allocation16 + $0xe4] sm:$0xf]
        %v8093 = vld [vmem:[#allocation16 + $0xe8] sm:$0xf]
        %v8094 = vld [vmem:[#allocation16 + $0xec] sm:$0xf]
        %v8095 = vld [vmem:[#allocation16 + $0xf0] sm:$0xf]
        %v8096 = vld [vmem:[#allocation16 + $0xf4] sm:$0xf]
        %v8097 = vld [vmem:[#allocation16 + $0xf8] sm:$0xf]
        %v8098 = vld [vmem:[#allocation16 + $0xfc] sm:$0xf]
        %v8099 = vld [vmem:[#allocation17] sm:$0x1]
        %v8164 = vunpack.c.l.b16 %v8035
        %v8165 = vunpack.c.l.b16 %v8036
        %v8166 = vunpack.c.l.b16 %v8037
        %v8167 = vunpack.c.l.b16 %v8038
        %v8168 = vunpack.c.l.b16 %v8039
        %v8169 = vunpack.c.l.b16 %v8040
        %v8170 = vunpack.c.l.b16 %v8041
        %v8171 = vunpack.c.l.b16 %v8042
        %v8172 = vunpack.c.l.b16 %v8043
        %v8173 = vunpack.c.l.b16 %v8044
        %v8174 = vunpack.c.l.b16 %v8045
        %v8175 = vunpack.c.l.b16 %v8046
        %v8176 = vunpack.c.l.b16 %v8047
        %v8177 = vunpack.c.l.b16 %v8048
        %v8178 = vunpack.c.l.b16 %v8049
        %v8179 = vunpack.c.l.b16 %v8050
        %v8180 = vunpack.c.l.b16 %v8051
        %v8181 = vunpack.c.l.b16 %v8052
        %v8182 = vunpack.c.l.b16 %v8053
        %v8183 = vunpack.c.l.b16 %v8054
        %v8184 = vunpack.c.l.b16 %v8055
        %v8185 = vunpack.c.l.b16 %v8056
        %v8186 = vunpack.c.l.b16 %v8057
        %v8187 = vunpack.c.l.b16 %v8058
        %v8188 = vunpack.c.l.b16 %v8059
        %v8189 = vunpack.c.l.b16 %v8060
        %v8190 = vunpack.c.l.b16 %v8061
        %v8191 = vunpack.c.l.b16 %v8062
        %v8192 = vunpack.c.l.b16 %v8063
        %v8193 = vunpack.c.l.b16 %v8064
        %v8194 = vunpack.c.l.b16 %v8065
        %v8195 = vunpack.c.l.b16 %v8066
        %v8196 = vunpack.c.l.b16 %v8067
        %v8197 = vunpack.c.l.b16 %v8068
        %v8198 = vunpack.c.l.b16 %v8069
        %v8199 = vunpack.c.l.b16 %v8070
        %v8200 = vunpack.c.l.b16 %v8071
        %v8201 = vunpack.c.l.b16 %v8072
        %v8202 = vunpack.c.l.b16 %v8073
        %v8203 = vunpack.c.l.b16 %v8074
        %v8204 = vunpack.c.l.b16 %v8075
        %v8205 = vunpack.c.l.b16 %v8076
        %v8206 = vunpack.c.l.b16 %v8077
        %v8207 = vunpack.c.l.b16 %v8078
        %v8208 = vunpack.c.l.b16 %v8079
        %v8209 = vunpack.c.l.b16 %v8080
        %v8210 = vunpack.c.l.b16 %v8081
        %v8211 = vunpack.c.l.b16 %v8082
        %v8212 = vunpack.c.l.b16 %v8083
        %v8213 = vunpack.c.l.b16 %v8084
        %v8214 = vunpack.c.l.b16 %v8085
        %v8215 = vunpack.c.l.b16 %v8086
        %v8216 = vunpack.c.l.b16 %v8087
        %v8217 = vunpack.c.l.b16 %v8088
        %v8218 = vunpack.c.l.b16 %v8089
        %v8219 = vunpack.c.l.b16 %v8090
        %v8220 = vunpack.c.l.b16 %v8091
        %v8221 = vunpack.c.l.b16 %v8092
        %v8222 = vunpack.c.l.b16 %v8093
        %v8223 = vunpack.c.l.b16 %v8094
        %v8224 = vunpack.c.l.b16 %v8095
        %v8225 = vunpack.c.l.b16 %v8096
        %v8226 = vunpack.c.l.b16 %v8097
        %v8227 = vunpack.c.l.b16 %v8098
        %v8228 = vpack.c.b16 %v8165, %v8164
        %v8229 = vpack.c.b16 %v8167, %v8166
        %v8230 = vpack.c.b16 %v8169, %v8168
        %v8231 = vpack.c.b16 %v8171, %v8170
        %v8232 = vpack.c.b16 %v8173, %v8172
        %v8233 = vpack.c.b16 %v8175, %v8174
        %v8234 = vpack.c.b16 %v8177, %v8176
        %v8235 = vpack.c.b16 %v8179, %v8178
        %v8236 = vpack.c.b16 %v8181, %v8180
        %v8237 = vpack.c.b16 %v8183, %v8182
        %v8238 = vpack.c.b16 %v8185, %v8184
        %v8239 = vpack.c.b16 %v8187, %v8186
        %v8240 = vpack.c.b16 %v8189, %v8188
        %v8241 = vpack.c.b16 %v8191, %v8190
        %v8242 = vpack.c.b16 %v8193, %v8192
        %v8243 = vpack.c.b16 %v8195, %v8194
        %v8244 = vpack.c.b16 %v8197, %v8196
        %v8245 = vpack.c.b16 %v8199, %v8198
        %v8246 = vpack.c.b16 %v8201, %v8200
        %v8247 = vpack.c.b16 %v8203, %v8202
        %v8248 = vpack.c.b16 %v8205, %v8204
        %v8249 = vpack.c.b16 %v8207, %v8206
        %v8250 = vpack.c.b16 %v8209, %v8208
        %v8251 = vpack.c.b16 %v8211, %v8210
        %v8252 = vpack.c.b16 %v8213, %v8212
        %v8253 = vpack.c.b16 %v8215, %v8214
        %v8254 = vpack.c.b16 %v8217, %v8216
        %v8255 = vpack.c.b16 %v8219, %v8218
        %v8256 = vpack.c.b16 %v8221, %v8220
        %v8257 = vpack.c.b16 %v8223, %v8222
        %v8258 = vpack.c.b16 %v8225, %v8224
        %v8259 = vpack.c.b16 %v8227, %v8226
        %8292 = vmatprep.subr.bf16.mxu0 0
        %8293 = vmatpush1.bf16.msra.mxu0 %v8228
        %8294 = vmatprep.subr.bf16.mxu0 0
        %8295 = vmatpush1.bf16.msra.mxu0 %v8229
        %8296 = vmatprep.subr.bf16.mxu0 0
        %8297 = vmatpush1.bf16.msra.mxu0 %v8230
        %8298 = vmatprep.subr.bf16.mxu0 0
        %8299 = vmatpush1.bf16.msra.mxu0 %v8231
        %8300 = vmatprep.subr.bf16.mxu0 0
        %8301 = vmatpush1.bf16.msra.mxu0 %v8232
        %8302 = vmatprep.subr.bf16.mxu0 0
        %8303 = vmatpush1.bf16.msra.mxu0 %v8233
        %8304 = vmatprep.subr.bf16.mxu0 0
        %8305 = vmatpush1.bf16.msra.mxu0 %v8234
        %8306 = vmatprep.subr.bf16.mxu0 0
        %8307 = vmatpush1.bf16.msra.mxu0 %v8235
        %8308 = vmatprep.subr.bf16.mxu0 0
        %8309 = vmatpush1.bf16.msra.mxu0 %v8236
        %8310 = vmatprep.subr.bf16.mxu0 0
        %8311 = vmatpush1.bf16.msra.mxu0 %v8237
        %8312 = vmatprep.subr.bf16.mxu0 0
        %8313 = vmatpush1.bf16.msra.mxu0 %v8238
        %8314 = vmatprep.subr.bf16.mxu0 0
        %8315 = vmatpush1.bf16.msra.mxu0 %v8239
        %8316 = vmatprep.subr.bf16.mxu0 0
        %8317 = vmatpush1.bf16.msra.mxu0 %v8240
        %8318 = vmatprep.subr.bf16.mxu0 0
        %8319 = vmatpush1.bf16.msra.mxu0 %v8241
        %8320 = vmatprep.subr.bf16.mxu0 0
        %8321 = vmatpush1.bf16.msra.mxu0 %v8242
        %8322 = vmatprep.subr.bf16.mxu0 0
        %8323 = vmatpush1.bf16.msra.mxu0 %v8243
        %8324 = vmatprep.mubr.bf16.mxu0 %v8032
        %8325 = vmatmul.mubr.bf16.gmra.mrb[0].mxu0 %v8031
        %v8326 = vpop.f32.mrb[0].mxu0
        %v8327 = vadd.f32 %v8099, %v8326
        %v8328 = vpop.f32.mrb[0].mxu0
        %v8329 = vpop.f32.mrb[0].mxu0
        %v8330 = vpop.f32.mrb[0].mxu0
        %8331 = vdwg.mxu0
        %8332 = vmatprep.subr.bf16.mxu0 0
        %8333 = vmatpush1.bf16.msra.mxu0 %v8244
        %8334 = vmatprep.subr.bf16.mxu0 0
        %8335 = vmatpush1.bf16.msra.mxu0 %v8245
        %8336 = vmatprep.subr.bf16.mxu0 0
        %8337 = vmatpush1.bf16.msra.mxu0 %v8246
        %8338 = vmatprep.subr.bf16.mxu0 0
        %8339 = vmatpush1.bf16.msra.mxu0 %v8247
        %8340 = vmatprep.subr.bf16.mxu0 0
        %8341 = vmatpush1.bf16.msra.mxu0 %v8248
        %8342 = vmatprep.subr.bf16.mxu0 0
        %8343 = vmatpush1.bf16.msra.mxu0 %v8249
        %8344 = vmatprep.subr.bf16.mxu0 0
        %8345 = vmatpush1.bf16.msra.mxu0 %v8250
        %8346 = vmatprep.subr.bf16.mxu0 0
        %8347 = vmatpush1.bf16.msra.mxu0 %v8251
        %8348 = vmatprep.subr.bf16.mxu0 0
        %8349 = vmatpush1.bf16.msra.mxu0 %v8252
        %8350 = vmatprep.subr.bf16.mxu0 0
        %8351 = vmatpush1.bf16.msra.mxu0 %v8253
        %8352 = vmatprep.subr.bf16.mxu0 0
        %8353 = vmatpush1.bf16.msra.mxu0 %v8254
        %8354 = vmatprep.subr.bf16.mxu0 0
        %8355 = vmatpush1.bf16.msra.mxu0 %v8255
        %8356 = vmatprep.subr.bf16.mxu0 0
        %8357 = vmatpush1.bf16.msra.mxu0 %v8256
        %8358 = vmatprep.subr.bf16.mxu0 0
        %8359 = vmatpush1.bf16.msra.mxu0 %v8257
        %8360 = vmatprep.subr.bf16.mxu0 0
        %8361 = vmatpush1.bf16.msra.mxu0 %v8258
        %8362 = vmatprep.subr.bf16.mxu0 0
        %8363 = vmatpush1.bf16.msra.mxu0 %v8259
        %8364 = vmatprep.mubr.bf16.mxu0 %v8034
        %8365 = vmatmul.mubr.bf16.gmra.mrb[0].mxu0 %v8033
        %v8366 = vpop.f32.mrb[0].mxu0
        %v8367 = vadd.f32 %v8327, %v8366
        %v8368 = vpop.f32.mrb[0].mxu0
        %v8369 = vpop.f32.mrb[0].mxu0
        %v8370 = vpop.f32.mrb[0].mxu0
        %8371 = vdwg.mxu0
        %v8372 = vlaneseq
        %v8373 = vand.u32 %v8372, 127
        %vm8374 = vcmp.lt.s32.totalorder %v8373, 10
        %v8375 = vsel %vm8374, %v8367, -1e+30
        %vm8376 = vcmask 1040384
        %v8377 = vsel %vm8376, %v8375, -inf
        %8378 = vmax.xlane.f32.xlu0 %v8377
        %v8379 = vpop.xlane.xlu0 %8378
        %v8380 = vsub.f32 %v8367, %v8379
        %v8381 = vmul.f32 %v8380, 1.442695
        %v8382 = vpow.pop %v8381
        %v8383 = vsel %vm8374, %v8382, 0.0
        %v8384 = vsel %vm8376, %v8383, 0.0
        %8385 = vadd.xlane.f32.xlu0 %v8384
        %v8386 = vpop.xlane.xlu0 %8385
        %v8387 = vlog2.pop %v8386
        %v8388 = vmul.f32 %v8387, 0.6931472
        %v8389 = vsub.f32 %v8380, %v8388
        %8390 = vst [vmem:[%s433] sm:$0x1] %v8389
        %s8391 = sand.u32 %s230, 1
        %s8392 = scalar_lea.sflag [#allocation7], %s8391
        %s8393 = sand.u32 %s230, 1
        %s8394 = scalar_lea.vmem [#allocation19], %s8393
        // Predicated region
        $region89: #{lenet_forward.1} parent=55 // pred_check
          %p8395 = pneg %p240
        $region90: #{lenet_forward.1} parent=55 // pred_check_branch
          %8397 = sbr.rel (%p8395) target = $region92
        $region91: #{lenet_forward.1} parent=55 // pred_region
          %s8399 = ssub.s32 16, 16
          %8400 = vsyncadd %s8392, %s8399
          %s8401 = smul.addr %s28, 16
          %s8402 = scalar_lea.hbm %s9, %s8401
          %s8404 = sshll.u32 %s8394, 4
          %s8405 = int_to_ptr.vmem [resolvable:$true] %s8404
          %8407 = dma.vmem_to_hbm [thread:$0]  %s8405, 16, %s8402, %s8392
        $region92: #{lenet_forward.1} parent=55 // pred_fallthru
          _
      $region56: #{lenet_forward.1} parent=5 // pred_fallthru
        _
      %p8408 = scmp.le.s32.totalorder 2, %s23
      // Predicated region
      $region93: #{lenet_forward.1} parent=5 // pred_check
        %p8409 = pneg %p8408
      $region94: #{lenet_forward.1} parent=5 // pred_check_branch
        %8411 = sbr.rel (%p8409) target = $region96
      $region95: #{lenet_forward.1} parent=5 // pred_region
        %s8412 = ssub.s32 %s23, 2
        // Predicated region
        $region97: #{lenet_forward.1} parent=95 // pred_check
          %p8413 = pneg %p246
        $region98: #{lenet_forward.1} parent=95 // pred_check_branch
          %8415 = sbr.rel (%p8413) target = $region100
        $region99: #{lenet_forward.1} parent=95 // pred_region
          %s8416 = sand.u32 %s231, 1
          %s8417 = scalar_lea.sflag [#allocation7], %s8416
          %s8418 = sand.u32 %s231, 1
          %s8419 = scalar_lea.vmem [#allocation19], %s8418
          %8420 = dma.done %s8417, 16
        $region100: #{lenet_forward.1} parent=95 // pred_fallthru
          _
      $region96: #{lenet_forward.1} parent=5 // pred_fallthru
        _
    $region6: #{lenet_forward.1} parent=1 // loop_footer
      %s27 = sadd.s32 1, %s23
    $region7: #{lenet_forward.1} parent=1 // loop_footer_branch
      %22 = sbr.rel target = $region3
    $region8: #{lenet_forward.1} parent=1 // loop_exit
      _
    %8421 = vsyncpa [#allocation6], 1
    %s8422 = scalar_lea.sflag [#allocation6], 1
    %8423 = vsyncpa %s8422, 1
    %8424 = vsyncpa [#allocation9], 1
    %8425 = vsyncpa [#allocation12], 1
    %8426 = vsyncpa [#allocation15], 1
    %8427 = vsyncpa [#allocation18], 1
    %8428 = vsyncpa [#allocation7], 1
    %s8429 = scalar_lea.sflag [#allocation7], 1
    %8430 = vsyncpa %s8429, 1

</llo_original>
